<compile_context>
chip_gen: v7x
topology: tpu7x:2x2x1
jax: 0.10.0
libtpu: 0.0.40
codegen_flags: <defaults>
</compile_context>

<pallas_src>
import functools

import jax
import jax.numpy as jnp
from jax import lax
from jax.experimental import pallas as pl
from jax.experimental.pallas import tpu as pltpu


# ----------------------------------------------------------------------------
# Pallas kernels
# ----------------------------------------------------------------------------
def dag_pair_kernel(h_ref, mask_ref, sm_ref,
                    wq_ref, wk_ref, gatb_ref, wr_ref,
                    wx_ref, bx_ref, wm_ref, bm_ref,
                    out_ref, kp_ref):
    """One GNN layer for one chain (grid axis = chain: short / long).

    h_ref   : (N, B, D)   previous-layer hidden states
    mask_ref: (N, N, B)   additive mask: -(1-adj)*1e30 + (-3e38 if j>=i)
    sm_ref  : (N, N, B)   s_mask (speaker mask), shared across chains
    wq/wk   : (1, D)      GAT linear split into Q / K parts; gatb: (1,1)
    wr      : (2D, D)     [Wr0^T ; Wr1^T]
    wx, bx  : (D, 6D),(1,6D)  fused x-side GRU weights  [c_wih^T | p_whh^T]
    wm, bm  : (D, 6D),(1,6D)  fused M-side GRU weights  [c_whh^T | p_wih^T]
    out_ref : (N, B, D)   H1 for this layer (ref-resident accumulator)
    kp_ref  : (N, B)      cached kpart_j = H1[j] . wk   (VMEM scratch)
    """
    N, B, D = h_ref.shape
    D3 = 3 * D

    wqv = wq_ref[...]          # (1, D)
    wkv = wk_ref[...]          # (1, D)
    gat_b = gatb_ref[...]      # (1, 1)
    wr = wr_ref[...]           # (2D, D)
    wx = wx_ref[...]           # (D, 6D)
    bx = bx_ref[...]           # (1, 6D)
    wm = wm_ref[...]           # (D, 6D)
    bm = bm_ref[...]           # (1, 6D)
    jidx = lax.broadcasted_iota(jnp.int32, (N, B), 0)

    def fused_gru(x, M):
        # gx = [gi_c | gh_p], gm = [gh_c | gi_p]   (PyTorch nn.GRUCell math)
        gx = jnp.dot(x, wx, preferred_element_type=jnp.float32) + bx   # (B, 6D)
        gm = jnp.dot(M, wm, preferred_element_type=jnp.float32) + bm   # (B, 6D)
        gi_c, gh_p = gx[:, :D3], gx[:, D3:]
        gh_c, gi_p = gm[:, :D3], gm[:, D3:]
        rc = jax.nn.sigmoid(gi_c[:, :D] + gh_c[:, :D])
        zc = jax.nn.sigmoid(gi_c[:, D:2 * D] + gh_c[:, D:2 * D])
        nc = jnp.tanh(gi_c[:, 2 * D:] + rc * gh_c[:, 2 * D:])
        C = (1.0 - zc) * nc + zc * M                                   # GRU_c(x, M)
        rp = jax.nn.sigmoid(gi_p[:, :D] + gh_p[:, :D])
        zp = jax.nn.sigmoid(gi_p[:, D:2 * D] + gh_p[:, D:2 * D])
        npv = jnp.tanh(gi_p[:, 2 * D:] + rp * gh_p[:, 2 * D:])
        P = (1.0 - zp) * npv + zp * x                                  # GRU_p(M, x)
        return C + P

    # ---- i == 0 : M = 0, no attention ----
    x0 = h_ref[0]
    row0 = fused_gru(x0, jnp.zeros_like(x0))
    out_ref[...] = jnp.concatenate(
        [row0[None], jnp.zeros((N - 1, B, D), jnp.float32)], axis=0)
    kp_ref[...] = jnp.where(jidx == 0, jnp.sum(row0 * wkv, axis=-1), 0.0)

    # ---- i = 1 .. N-1 : GAT_dialoggcn_v1 attention + fused GRU updates ----
    def body(i, carry):
        x = h_ref[i]                # (B, D)
        sm_i = sm_ref[i]            # (N, B)
        mask_i = mask_ref[i]        # (N, B) additive mask (adj + causal)
        kp = kp_ref[...]            # (N, B) cached K-projections (rows >= i are 0)
        H1 = out_ref[...]           # (N, B, D) rows >= i are 0

        # alpha_j = wq.Q + wk.K_j + b  (+ mask); softmax over j
        qpart = jnp.sum(x * wqv, axis=-1)                 # (B,)
        alpha = kp + qpart[None, :] + gat_b + mask_i      # (N, B)
        m = jnp.max(alpha, axis=0, keepdims=True)
        e = jnp.exp(alpha - m)                            # masked entries -> exactly 0
        attn = e / jnp.sum(e, axis=0, keepdims=True)      # (N, B)

        # V = s_mask * (H1 Wr0^T) + (1 - s_mask) * (H1 Wr1^T);  M = attn @ V
        w0 = attn * sm_i
        w1 = attn - w0
        A0 = jnp.sum(w0[:, :, None] * H1, axis=0)         # (B, D)
        A1 = jnp.sum(w1[:, :, None] * H1, axis=0)         # (B, D)
        Mv = jnp.dot(jnp.concatenate([A0, A1], axis=1), wr,
                     preferred_element_type=jnp.float32)  # (B, D)

        row = fused_gru(x, Mv)                            # C + P
        out_ref[pl.ds(i, 1), :, :] = row[None]
        kp_ref[...] = jnp.where(jidx == i, jnp.sum(row * wkv, axis=-1), kp)
        return carry

    lax.fori_loop(1, N, body, 0, unroll=True)


def linear_kernel(x_ref, wt_ref, b_ref, o_ref, *, relu):
    y = jnp.dot(x_ref[...], wt_ref[...],
                preferred_element_type=jnp.float32) + b_ref[...]
    if relu:
        y = jnp.maximum(y, 0.0)
    o_ref[...] = y


def mlp_head_kernel(x_ref, w0_ref, b0_ref, w1_ref, b1_ref, w2_ref, b2_ref,
                    o_ref):
    """Fused out_mlp: Linear+ReLU -> Linear+ReLU -> (Dropout=id) -> Linear."""
    h = jnp.maximum(jnp.dot(x_ref[...], w0_ref[...],
                            preferred_element_type=jnp.float32) + b0_ref[...], 0.0)
    h = jnp.maximum(jnp.dot(h, w1_ref[...],
                            preferred_element_type=jnp.float32) + b1_ref[...], 0.0)
    o_ref[...] = jnp.dot(h, w2_ref[...],
                         preferred_element_type=jnp.float32) + b2_ref[...]


# ----------------------------------------------------------------------------
# Wrappers
# ----------------------------------------------------------------------------
_VMEM = pl.BlockSpec(memory_space=pltpu.MemorySpace.VMEM)


def pallas_linear(x, w, b, relu=False):
    # x: (M, Fin); w: (Fout, Fin) (PyTorch layout); b: (Fout,)
    M, _ = x.shape
    Fout = w.shape[0]
    return pl.pallas_call(
        functools.partial(linear_kernel, relu=relu),
        out_shape=jax.ShapeDtypeStruct((M, Fout), jnp.float32),
        in_specs=[_VMEM, _VMEM, _VMEM],
        out_specs=_VMEM,
    )(x, w.T, b.reshape(1, Fout))


def pallas_mlp_head(x, p0, p1, p2):
    M = x.shape[0]
    Fout = p2[0].shape[0]
    return pl.pallas_call(
        mlp_head_kernel,
        out_shape=jax.ShapeDtypeStruct((M, Fout), jnp.float32),
        in_specs=[_VMEM] * 7,
        out_specs=_VMEM,
    )(x, p0[0].T, p0[1].reshape(1, -1),
      p1[0].T, p1[1].reshape(1, -1),
      p2[0].T, p2[1].reshape(1, -1))


def build_additive_mask(adj_1, adj_2):
    """(2, N_tgt, N_src, B): -(1-adj)*1e30 (mask_logic) + (-3e38 where j >= i)."""
    N = adj_1.shape[1]
    adjT = jnp.transpose(jnp.stack([adj_1, adj_2], axis=0), (0, 2, 3, 1))
    i_idx = jnp.arange(N)[:, None]
    j_idx = jnp.arange(N)[None, :]
    tri_add = jnp.where(j_idx < i_idx, 0.0, -3.0e38).astype(jnp.float32)
    return (-(1.0 - adjT) * 1e30 + tri_add[None, :, :, None]).astype(jnp.float32)


def dag_layer_pair(Hs, Hl, mask_add, sm_t, p):
    """Run one GNN layer for BOTH chains in a single pallas_call (grid=(2,))."""
    B, N, D = Hs.shape
    h_stack = jnp.stack([jnp.transpose(Hs, (1, 0, 2)),
                         jnp.transpose(Hl, (1, 0, 2))], axis=0)       # (2, N, B, D)
    chain_spec4 = pl.BlockSpec((None, N, B, D), lambda c: (c, 0, 0, 0))
    out = pl.pallas_call(
        dag_pair_kernel,
        out_shape=jax.ShapeDtypeStruct((2, N, B, D), jnp.float32),
        grid=(2,),
        in_specs=[
            chain_spec4,                                              # h
            pl.BlockSpec((None, N, N, B), lambda c: (c, 0, 0, 0)),    # additive mask
            pl.BlockSpec((N, N, B), lambda c: (0, 0, 0)),             # s_mask (shared)
            pl.BlockSpec((None, 1, D), lambda c: (c, 0, 0)),          # wq
            pl.BlockSpec((None, 1, D), lambda c: (c, 0, 0)),          # wk
            pl.BlockSpec((None, 1, 1), lambda c: (c, 0, 0)),          # gat_b
            pl.BlockSpec((None, 2 * D, D), lambda c: (c, 0, 0)),      # wr = [Wr0^T;Wr1^T]
            pl.BlockSpec((None, D, 6 * D), lambda c: (c, 0, 0)),      # wx
            pl.BlockSpec((None, 1, 6 * D), lambda c: (c, 0, 0)),      # bx
            pl.BlockSpec((None, D, 6 * D), lambda c: (c, 0, 0)),      # wm
            pl.BlockSpec((None, 1, 6 * D), lambda c: (c, 0, 0)),      # bm
        ],
        out_specs=chain_spec4,
        scratch_shapes=[pltpu.VMEM((N, B), jnp.float32)],             # kpart cache
        compiler_params=pltpu.CompilerParams(
            dimension_semantics=("parallel",)),                       # 2 TCs on v7x
    )(h_stack, mask_add, sm_t, p['wq'], p['wk'], p['gat_b'], p['wr'],
      p['wx'], p['bx'], p['wm'], p['bm'])
    return jnp.transpose(out[0], (1, 0, 2)), jnp.transpose(out[1], (1, 0, 2))


# ----------------------------------------------------------------------------
# Deterministic parameter init (mirrors module __init__ shapes)
# ----------------------------------------------------------------------------
def _init_linear(key, fout, fin, scale=0.1):
    kw, kb = jax.random.split(key)
    w = scale * jax.random.normal(kw, (fout, fin), jnp.float32)
    b = scale * jax.random.normal(kb, (fout,), jnp.float32)
    return w, b


def init_layer_params(key, D, scale=0.1):
    ks = jax.random.split(key, 12)
    gat_w = scale * jax.random.normal(ks[0], (1, 2 * D), jnp.float32)   # Linear(2D,1)
    gat_b = scale * jax.random.normal(ks[1], (1,), jnp.float32)
    wr0 = scale * jax.random.normal(ks[2], (D, D), jnp.float32)
    wr1 = scale * jax.random.normal(ks[3], (D, D), jnp.float32)
    c_wih = scale * jax.random.normal(ks[4], (3 * D, D), jnp.float32)   # GRUCell
    c_whh = scale * jax.random.normal(ks[5], (3 * D, D), jnp.float32)
    c_bih = scale * jax.random.normal(ks[6], (3 * D,), jnp.float32)
    c_bhh = scale * jax.random.normal(ks[7], (3 * D,), jnp.float32)
    p_wih = scale * jax.random.normal(ks[8], (3 * D, D), jnp.float32)
    p_whh = scale * jax.random.normal(ks[9], (3 * D, D), jnp.float32)
    p_bih = scale * jax.random.normal(ks[10], (3 * D,), jnp.float32)
    p_bhh = scale * jax.random.normal(ks[11], (3 * D,), jnp.float32)
    return dict(
        wq=gat_w[:, :D], wk=gat_w[:, D:], gat_b=gat_b.reshape(1, 1),
        wr0t=wr0.T, wr1t=wr1.T,
        c_wih=c_wih.T, c_whh=c_whh.T,
        c_bih=c_bih.reshape(1, -1), c_bhh=c_bhh.reshape(1, -1),
        p_wih=p_wih.T, p_whh=p_whh.T,
        p_bih=p_bih.reshape(1, -1), p_bhh=p_bhh.reshape(1, -1),
    )


def fuse_pair_params(ps, plg):
    """Stack short/long params on a leading chain axis with fused GRU weights."""
    def stack(fn):
        return jnp.stack([fn(ps), fn(plg)], axis=0)
    return dict(
        wq=stack(lambda p: p['wq']),                                   # (2,1,D)
        wk=stack(lambda p: p['wk']),                                   # (2,1,D)
        gat_b=stack(lambda p: p['gat_b']),                             # (2,1,1)
        wr=stack(lambda p: jnp.concatenate([p['wr0t'], p['wr1t']], 0)),  # (2,2D,D)
        wx=stack(lambda p: jnp.concatenate([p['c_wih'], p['p_whh']], 1)),  # (2,D,6D)
        bx=stack(lambda p: jnp.concatenate([p['c_bih'], p['p_bhh']], 1)),  # (2,1,6D)
        wm=stack(lambda p: jnp.concatenate([p['c_whh'], p['p_wih']], 1)),  # (2,D,6D)
        bm=stack(lambda p: jnp.concatenate([p['c_bhh'], p['p_bih']], 1)),  # (2,1,6D)
    )


# ----------------------------------------------------------------------------
# Driver
# ----------------------------------------------------------------------------
if __name__ == "__main__":
    B, N = 2, 8
    EMB, HID = 64, 32
    GNN_LAYERS, MLP_LAYERS, NUM_CLASS = 2, 2, 6

    key = jax.random.PRNGKey(0)
    keys = jax.random.split(key, 10)

    features = jax.random.normal(keys[0], (B, N, EMB), jnp.float32)
    adj_1 = (jax.random.uniform(keys[1], (B, N, N)) > 0.5).astype(jnp.float32)
    adj_2 = (jax.random.uniform(keys[2], (B, N, N)) > 0.5).astype(jnp.float32)
    s_mask = (jax.random.uniform(keys[3], (B, N, N)) > 0.5).astype(jnp.float32)
    s_mask_onehot = jax.nn.one_hot(s_mask.astype(jnp.int32), 2)   # unused in forward
    lengths = jnp.full((B,), N, jnp.int32)                        # unused (nodal_att_type=None)

    fc1_w, fc1_b = _init_linear(keys[4], HID, EMB)
    short_raw = [init_layer_params(k, HID) for k in jax.random.split(keys[5], GNN_LAYERS)]
    long_raw = [init_layer_params(k, HID) for k in jax.random.split(keys[6], GNN_LAYERS)]
    pair_params = [fuse_pair_params(short_raw[l], long_raw[l]) for l in range(GNN_LAYERS)]
    in_dim = HID * (GNN_LAYERS + 1) + EMB
    mlp0 = _init_linear(keys[7], HID, in_dim)
    mlp1 = _init_linear(keys[8], HID, HID)       # mlp_layers - 1 == 1 extra layer
    mlp_out = _init_linear(keys[9], NUM_CLASS, HID)
    # NOTE: fcs_short / fcs_long exist in __init__ but are never used in forward.

    def forward(features, adj_1, adj_2, s_mask, lengths):
        # torch.equal sanity check on adj_1/adj_2 has no effect on output -> skipped
        Bb, Nn, E = features.shape
        H0 = pallas_linear(features.reshape(Bb * Nn, E), fc1_w, fc1_b, relu=True)
        H0 = H0.reshape(Bb, Nn, HID)

        mask_add = build_additive_mask(adj_1, adj_2)   # (2, N, N, B)
        sm_t = jnp.transpose(s_mask, (1, 2, 0))        # (N, N, B)

        Hs, Hl = [H0], [H0]
        for l in range(GNN_LAYERS):
            hs_next, hl_next = dag_layer_pair(Hs[l], Hl[l], mask_add, sm_t,
                                              pair_params[l])
            Hs.append(hs_next)
            Hl.append(hl_next)

        sum_features = jnp.concatenate(Hs, axis=2) + jnp.concatenate(Hl, axis=2)
        H_final = jnp.concatenate([sum_features, features], axis=2)
        # attentive_node_features with nodal_att_type=None is the identity.

        x = H_final.reshape(Bb * Nn, in_dim)
        # nn.Dropout inside out_mlp: identity at inference.
        logits = pallas_mlp_head(x, mlp0, mlp1, mlp_out)
        return logits.reshape(Bb, Nn, NUM_CLASS)

    logits = jax.jit(forward)(features, adj_1, adj_2, s_mask, lengths)
    jax.block_until_ready(logits)
    assert logits.shape == (B, N, NUM_CLASS)
    assert bool(jnp.all(jnp.isfinite(logits)))
    print("KERNEL_OK")
</pallas_src>

<mosaic_0001>
module attributes {stable_mosaic.version = 11 : i64} {
  func.func @linear_kernel(%arg0: memref<16x64xf32, #tpu.memory_space<vmem>>, %arg1: memref<64x32xf32, #tpu.memory_space<vmem>>, %arg2: memref<1x32xf32, #tpu.memory_space<vmem>>, %arg3: memref<16x32xf32, #tpu.memory_space<vmem>>) attributes {dimension_semantics = [], scalar_prefetch = 0 : i64, scratch_operands = 0 : i64, tpu.core_type = #tpu.core_type<tc>} {
    %c0 = arith.constant 0 : index
    %c0_0 = arith.constant 0 : index
    %0 = vector.load %arg0[%c0, %c0_0] : memref<16x64xf32, #tpu.memory_space<vmem>>, vector<16x64xf32>
    %c0_1 = arith.constant 0 : index
    %c0_2 = arith.constant 0 : index
    %1 = vector.load %arg1[%c0_1, %c0_2] : memref<64x32xf32, #tpu.memory_space<vmem>>, vector<64x32xf32>
    %cst = arith.constant dense<0.000000e+00> : vector<16x32xf32>
    %2 = tpu.matmul %0, %1, %cst {dimension_numbers = #tpu.dot_dimension_numbers<[1], [0], [0], [1], [0, 0, 1, 1], [], []>} : vector<16x64xf32>, vector<64x32xf32>, vector<16x32xf32> -> vector<16x32xf32>
    %c0_3 = arith.constant 0 : index
    %c0_4 = arith.constant 0 : index
    %3 = vector.load %arg2[%c0_3, %c0_4] : memref<1x32xf32, #tpu.memory_space<vmem>>, vector<1x32xf32>
    %4 = vector.broadcast %3 : vector<1x32xf32> to vector<16x32xf32>
    %5 = arith.addf %2, %4 : vector<16x32xf32>
    %cst_5 = arith.constant 0.000000e+00 : f32
    %6 = vector.broadcast %cst_5 : f32 to vector<16x32xf32>
    %7 = arith.maximumf %5, %6 : vector<16x32xf32>
    %c0_6 = arith.constant 0 : index
    %c0_7 = arith.constant 0 : index
    %8 = vector.load %arg3[%c0_6, %c0_7] : memref<16x32xf32, #tpu.memory_space<vmem>>, vector<16x32xf32>
    tpu.vector_store %arg3[%c0_6, %c0_7], %7 {strides = array<i32>} : memref<16x32xf32, #tpu.memory_space<vmem>>, vector<16x32xf32>,
    return
  }
}

module attributes {stable_mosaic.version = 11 : i64} {
  func.func @dag_pair_kernel(%arg0: i32, %arg1: memref<1x8x2x32xf32, #tpu.memory_space<vmem>>, %arg2: memref<1x8x8x2xf32, #tpu.memory_space<vmem>>, %arg3: memref<8x8x2xf32, #tpu.memory_space<vmem>>, %arg4: memref<1x1x32xf32, #tpu.memory_space<vmem>>, %arg5: memref<1x1x32xf32, #tpu.memory_space<vmem>>, %arg6: memref<1x1x1xf32, #tpu.memory_space<vmem>>, %arg7: memref<1x64x32xf32, #tpu.memory_space<vmem>>, %arg8: memref<1x32x192xf32, #tpu.memory_space<vmem>>, %arg9: memref<1x1x192xf32, #tpu.memory_space<vmem>>, %arg10: memref<1x32x192xf32, #tpu.memory_space<vmem>>, %arg11: memref<1x1x192xf32, #tpu.memory_space<vmem>>, %arg12: memref<1x8x2x32xf32, #tpu.memory_space<vmem>>, %arg13: memref<8x2xf32, #tpu.memory_space<vmem>>) attributes {dimension_semantics = [#tpu.dimension_semantics<parallel>], iteration_bounds = array<i64: 2>, scalar_prefetch = 0 : i64, scratch_operands = 1 : i64, tpu.core_type = #tpu.core_type<tc>, window_params = [{transform_indices = @transform_0, window_bounds = array<i64: 1, 8, 2, 32>}, {transform_indices = @transform_1, window_bounds = array<i64: 1, 8, 8, 2>}, {pipeline_mode = #tpu.pipeline_mode<synchronous>, transform_indices = @transform_2, window_bounds = array<i64: 8, 8, 2>}, {transform_indices = @transform_3, window_bounds = array<i64: 1, 1, 32>}, {transform_indices = @transform_4, window_bounds = array<i64: 1, 1, 32>}, {transform_indices = @transform_5, window_bounds = array<i64: 1, 1, 1>}, {transform_indices = @transform_6, window_bounds = array<i64: 1, 64, 32>}, {transform_indices = @transform_7, window_bounds = array<i64: 1, 32, 192>}, {transform_indices = @transform_8, window_bounds = array<i64: 1, 1, 192>}, {transform_indices = @transform_9, window_bounds = array<i64: 1, 32, 192>}, {transform_indices = @transform_10, window_bounds = array<i64: 1, 1, 192>}, {transform_indices = @transform_11, window_bounds = array<i64: 1, 8, 2, 32>}]} {
    %c0 = arith.constant 0 : index
    %c0_0 = arith.constant 0 : index
    %c0_1 = arith.constant 0 : index
    %0 = vector.load %arg4[%c0, %c0_0, %c0_1] : memref<1x1x32xf32, #tpu.memory_space<vmem>>, vector<1x1x32xf32>
    %1 = vector.shape_cast %0 : vector<1x1x32xf32> to vector<1x32xf32>
    %c0_2 = arith.constant 0 : index
    %c0_3 = arith.constant 0 : index
    %c0_4 = arith.constant 0 : index
    %2 = vector.load %arg5[%c0_2, %c0_3, %c0_4] : memref<1x1x32xf32, #tpu.memory_space<vmem>>, vector<1x1x32xf32>
    %3 = vector.shape_cast %2 : vector<1x1x32xf32> to vector<1x32xf32>
    %c0_5 = arith.constant 0 : index
    %c0_6 = arith.constant 0 : index
    %c0_7 = arith.constant 0 : index
    %4 = vector.load %arg6[%c0_5, %c0_6, %c0_7] : memref<1x1x1xf32, #tpu.memory_space<vmem>>, vector<1x1x1xf32>
    %5 = vector.shape_cast %4 : vector<1x1x1xf32> to vector<1x1xf32>
    %c0_8 = arith.constant 0 : index
    %c0_9 = arith.constant 0 : index
    %c0_10 = arith.constant 0 : index
    %6 = vector.load %arg7[%c0_8, %c0_9, %c0_10] : memref<1x64x32xf32, #tpu.memory_space<vmem>>, vector<1x64x32xf32>
    %7 = vector.shape_cast %6 : vector<1x64x32xf32> to vector<64x32xf32>
    %c0_11 = arith.constant 0 : index
    %c0_12 = arith.constant 0 : index
    %c0_13 = arith.constant 0 : index
    %8 = vector.load %arg8[%c0_11, %c0_12, %c0_13] : memref<1x32x192xf32, #tpu.memory_space<vmem>>, vector<1x32x192xf32>
    %9 = vector.shape_cast %8 : vector<1x32x192xf32> to vector<32x192xf32>
    %c0_14 = arith.constant 0 : index
    %c0_15 = arith.constant 0 : index
    %c0_16 = arith.constant 0 : index
    %10 = vector.load %arg9[%c0_14, %c0_15, %c0_16] : memref<1x1x192xf32, #tpu.memory_space<vmem>>, vector<1x1x192xf32>
    %11 = vector.shape_cast %10 : vector<1x1x192xf32> to vector<1x192xf32>
    %c0_17 = arith.constant 0 : index
    %c0_18 = arith.constant 0 : index
    %c0_19 = arith.constant 0 : index
    %12 = vector.load %arg10[%c0_17, %c0_18, %c0_19] : memref<1x32x192xf32, #tpu.memory_space<vmem>>, vector<1x32x192xf32>
    %13 = vector.shape_cast %12 : vector<1x32x192xf32> to vector<32x192xf32>
    %c0_20 = arith.constant 0 : index
    %c0_21 = arith.constant 0 : index
    %c0_22 = arith.constant 0 : index
    %14 = vector.load %arg11[%c0_20, %c0_21, %c0_22] : memref<1x1x192xf32, #tpu.memory_space<vmem>>, vector<1x1x192xf32>
    %15 = vector.shape_cast %14 : vector<1x1x192xf32> to vector<1x192xf32>
    %16 = tpu.iota {dimensions = array<i32: 0>} : vector<8x2xi32>
    %c0_23 = arith.constant 0 : index
    %c0_24 = arith.constant 0 : index
    %c0_25 = arith.constant 0 : index
    %c0_26 = arith.constant 0 : index
    %17 = vector.load %arg1[%c0_23, %c0_24, %c0_25, %c0_26] : memref<1x8x2x32xf32, #tpu.memory_space<vmem>>, vector<1x1x2x32xf32>
    %18 = vector.shape_cast %17 : vector<1x1x2x32xf32> to vector<2x32xf32>
    %cst = arith.constant 0.000000e+00 : f32
    %19 = vector.broadcast %cst : f32 to vector<2x32xf32>
    %cst_27 = arith.constant dense<0.000000e+00> : vector<2x192xf32>
    %20 = tpu.matmul %18, %9, %cst_27 {dimension_numbers = #tpu.dot_dimension_numbers<[1], [0], [0], [1], [0, 0, 1, 1], [], []>} : vector<2x32xf32>, vector<32x192xf32>, vector<2x192xf32> -> vector<2x192xf32>
    %21 = vector.broadcast %11 : vector<1x192xf32> to vector<2x192xf32>
    %22 = arith.addf %20, %21 : vector<2x192xf32>
    %cst_28 = arith.constant dense<0.000000e+00> : vector<2x192xf32>
    %23 = tpu.matmul %19, %13, %cst_28 {dimension_numbers = #tpu.dot_dimension_numbers<[1], [0], [0], [1], [0, 0, 1, 1], [], []>} : vector<2x32xf32>, vector<32x192xf32>, vector<2x192xf32> -> vector<2x192xf32>
    %24 = vector.broadcast %15 : vector<1x192xf32> to vector<2x192xf32>
    %25 = arith.addf %23, %24 : vector<2x192xf32>
    %26 = vector.extract_strided_slice %22 {offsets = [0, 0], sizes = [2, 96], strides = [1, 1]} : vector<2x192xf32> to vector<2x96xf32>
    %27 = vector.extract_strided_slice %22 {offsets = [0, 96], sizes = [2, 96], strides = [1, 1]} : vector<2x192xf32> to vector<2x96xf32>
    %28 = vector.extract_strided_slice %25 {offsets = [0, 0], sizes = [2, 96], strides = [1, 1]} : vector<2x192xf32> to vector<2x96xf32>
    %29 = vector.extract_strided_slice %25 {offsets = [0, 96], sizes = [2, 96], strides = [1, 1]} : vector<2x192xf32> to vector<2x96xf32>
    %30 = vector.extract_strided_slice %26 {offsets = [0, 0], sizes = [2, 32], strides = [1, 1]} : vector<2x96xf32> to vector<2x32xf32>
    %31 = vector.extract_strided_slice %28 {offsets = [0, 0], sizes = [2, 32], strides = [1, 1]} : vector<2x96xf32> to vector<2x32xf32>
    %32 = arith.addf %30, %31 : vector<2x32xf32>
    %33 = arith.negf %32 : vector<2x32xf32>
    %34 = math.exp %33 : vector<2x32xf32>
    %cst_29 = arith.constant 1.000000e+00 : f32
    %35 = vector.broadcast %cst_29 : f32 to vector<2x32xf32>
    %36 = arith.addf %35, %34 : vector<2x32xf32>
    %37 = arith.divf %35, %36 : vector<2x32xf32>
    %38 = vector.extract_strided_slice %26 {offsets = [0, 32], sizes = [2, 32], strides = [1, 1]} : vector<2x96xf32> to vector<2x32xf32>
    %39 = vector.extract_strided_slice %28 {offsets = [0, 32], sizes = [2, 32], strides = [1, 1]} : vector<2x96xf32> to vector<2x32xf32>
    %40 = arith.addf %38, %39 : vector<2x32xf32>
    %41 = arith.negf %40 : vector<2x32xf32>
    %42 = math.exp %41 : vector<2x32xf32>
    %cst_30 = arith.constant 1.000000e+00 : f32
    %43 = vector.broadcast %cst_30 : f32 to vector<2x32xf32>
    %44 = arith.addf %43, %42 : vector<2x32xf32>
    %45 = arith.divf %43, %44 : vector<2x32xf32>
    %46 = vector.extract_strided_slice %26 {offsets = [0, 64], sizes = [2, 32], strides = [1, 1]} : vector<2x96xf32> to vector<2x32xf32>
    %47 = vector.extract_strided_slice %28 {offsets = [0, 64], sizes = [2, 32], strides = [1, 1]} : vector<2x96xf32> to vector<2x32xf32>
    %48 = arith.mulf %37, %47 : vector<2x32xf32>
    %49 = arith.addf %46, %48 : vector<2x32xf32>
    %50 = math.tanh %49 : vector<2x32xf32>
    %cst_31 = arith.constant 1.000000e+00 : f32
    %51 = vector.broadcast %cst_31 : f32 to vector<2x32xf32>
    %52 = arith.subf %51, %45 : vector<2x32xf32>
    %53 = arith.mulf %52, %50 : vector<2x32xf32>
    %54 = arith.mulf %45, %19 : vector<2x32xf32>
    %55 = arith.addf %53, %54 : vector<2x32xf32>
    %56 = vector.extract_strided_slice %29 {offsets = [0, 0], sizes = [2, 32], strides = [1, 1]} : vector<2x96xf32> to vector<2x32xf32>
    %57 = vector.extract_strided_slice %27 {offsets = [0, 0], sizes = [2, 32], strides = [1, 1]} : vector<2x96xf32> to vector<2x32xf32>
    %58 = arith.addf %56, %57 : vector<2x32xf32>
    %59 = arith.negf %58 : vector<2x32xf32>
    %60 = math.exp %59 : vector<2x32xf32>
    %cst_32 = arith.constant 1.000000e+00 : f32
    %61 = vector.broadcast %cst_32 : f32 to vector<2x32xf32>
    %62 = arith.addf %61, %60 : vector<2x32xf32>
    %63 = arith.divf %61, %62 : vector<2x32xf32>
    %64 = vector.extract_strided_slice %29 {offsets = [0, 32], sizes = [2, 32], strides = [1, 1]} : vector<2x96xf32> to vector<2x32xf32>
    %65 = vector.extract_strided_slice %27 {offsets = [0, 32], sizes = [2, 32], strides = [1, 1]} : vector<2x96xf32> to vector<2x32xf32>
    %66 = arith.addf %64, %65 : vector<2x32xf32>
    %67 = arith.negf %66 : vector<2x32xf32>
    %68 = math.exp %67 : vector<2x32xf32>
    %cst_33 = arith.constant 1.000000e+00 : f32
    %69 = vector.broadcast %cst_33 : f32 to vector<2x32xf32>
    %70 = arith.addf %69, %68 : vector<2x32xf32>
    %71 = arith.divf %69, %70 : vector<2x32xf32>
    %72 = vector.extract_strided_slice %29 {offsets = [0, 64], sizes = [2, 32], strides = [1, 1]} : vector<2x96xf32> to vector<2x32xf32>
    %73 = vector.extract_strided_slice %27 {offsets = [0, 64], sizes = [2, 32], strides = [1, 1]} : vector<2x96xf32> to vector<2x32xf32>
    %74 = arith.mulf %63, %73 : vector<2x32xf32>
    %75 = arith.addf %72, %74 : vector<2x32xf32>
    %76 = math.tanh %75 : vector<2x32xf32>
    %cst_34 = arith.constant 1.000000e+00 : f32
    %77 = vector.broadcast %cst_34 : f32 to vector<2x32xf32>
    %78 = arith.subf %77, %71 : vector<2x32xf32>
    %79 = arith.mulf %78, %76 : vector<2x32xf32>
    %80 = arith.mulf %71, %18 : vector<2x32xf32>
    %81 = arith.addf %79, %80 : vector<2x32xf32>
    %82 = arith.addf %55, %81 : vector<2x32xf32>
    %83 = vector.shape_cast %82 : vector<2x32xf32> to vector<1x2x32xf32>
    %cst_35 = arith.constant 0.000000e+00 : f32
    %84 = vector.broadcast %cst_35 : f32 to vector<7x2x32xf32>
    %85 = tpu.concatenate %83, %84 in 0 : vector<1x2x32xf32>, vector<7x2x32xf32> -> vector<8x2x32xf32>
    %c0_36 = arith.constant 0 : index
    %c0_37 = arith.constant 0 : index
    %c0_38 = arith.constant 0 : index
    %c0_39 = arith.constant 0 : index
    %86 = vector.load %arg12[%c0_36, %c0_37, %c0_38, %c0_39] : memref<1x8x2x32xf32, #tpu.memory_space<vmem>>, vector<1x8x2x32xf32>
    %87 = vector.shape_cast %86 : vector<1x8x2x32xf32> to vector<8x2x32xf32>
    %88 = vector.shape_cast %85 : vector<8x2x32xf32> to vector<1x8x2x32xf32>
    tpu.vector_store %arg12[%c0_36, %c0_37, %c0_38, %c0_39], %88 {strides = array<i32>} : memref<1x8x2x32xf32, #tpu.memory_space<vmem>>, vector<1x8x2x32xf32>,
    %c0_i32 = arith.constant 0 : i32
    %89 = vector.broadcast %c0_i32 : i32 to vector<8x2xi32>
    %90 = arith.cmpi eq, %16, %89 : vector<8x2xi32>
    %91 = vector.broadcast %3 : vector<1x32xf32> to vector<2x32xf32>
    %92 = arith.mulf %82, %91 : vector<2x32xf32>
    %cst_40 = arith.constant dense<0.000000e+00> : vector<2xf32>
    %93 = vector.multi_reduction <add>, %92, %cst_40 [1] : vector<2x32xf32> to vector<2xf32>
    %cst_41 = arith.constant 0.000000e+00 : f32
    %94 = vector.shape_cast %93 : vector<2xf32> to vector<1x2xf32>
    %95 = vector.broadcast %94 : vector<1x2xf32> to vector<8x2xf32>
    %96 = vector.broadcast %cst_41 : f32 to vector<8x2xf32>
    %97 = arith.select %90, %95, %96 : vector<8x2xi1>, vector<8x2xf32>
    %c0_42 = arith.constant 0 : index
    %c0_43 = arith.constant 0 : index
    %98 = vector.load %arg13[%c0_42, %c0_43] : memref<8x2xf32, #tpu.memory_space<vmem>>, vector<8x2xf32>
    tpu.vector_store %arg13[%c0_42, %c0_43], %97 {strides = array<i32>} : memref<8x2xf32, #tpu.memory_space<vmem>>, vector<8x2xf32>,
    %c1_i32 = arith.constant 1 : i32
    %c0_44 = arith.constant 0 : index
    %99 = arith.index_cast %c1_i32 : i32 to index
    %c0_45 = arith.constant 0 : index
    %c0_46 = arith.constant 0 : index
    %100 = vector.load %arg1[%c0_44, %99, %c0_45, %c0_46] : memref<1x8x2x32xf32, #tpu.memory_space<vmem>>, vector<1x1x2x32xf32>
    %101 = vector.shape_cast %100 : vector<1x1x2x32xf32> to vector<2x32xf32>
    %102 = arith.index_cast %c1_i32 : i32 to index
    %c0_47 = arith.constant 0 : index
    %c0_48 = arith.constant 0 : index
    %103 = vector.load %arg3[%102, %c0_47, %c0_48] : memref<8x8x2xf32, #tpu.memory_space<vmem>>, vector<1x8x2xf32>
    %104 = vector.shape_cast %103 : vector<1x8x2xf32> to vector<8x2xf32>
    %c0_49 = arith.constant 0 : index
    %105 = arith.index_cast %c1_i32 : i32 to index
    %c0_50 = arith.constant 0 : index
    %c0_51 = arith.constant 0 : index
    %106 = vector.load %arg2[%c0_49, %105, %c0_50, %c0_51] : memref<1x8x8x2xf32, #tpu.memory_space<vmem>>, vector<1x1x8x2xf32>
    %107 = vector.shape_cast %106 : vector<1x1x8x2xf32> to vector<8x2xf32>
    %c0_52 = arith.constant 0 : index
    %c0_53 = arith.constant 0 : index
    %108 = vector.load %arg13[%c0_52, %c0_53] : memref<8x2xf32, #tpu.memory_space<vmem>>, vector<8x2xf32>
    %c0_54 = arith.constant 0 : index
    %c0_55 = arith.constant 0 : index
    %c0_56 = arith.constant 0 : index
    %c0_57 = arith.constant 0 : index
    %109 = vector.load %arg12[%c0_54, %c0_55, %c0_56, %c0_57] : memref<1x8x2x32xf32, #tpu.memory_space<vmem>>, vector<1x8x2x32xf32>
    %110 = vector.shape_cast %109 : vector<1x8x2x32xf32> to vector<8x2x32xf32>
    %111 = vector.broadcast %1 : vector<1x32xf32> to vector<2x32xf32>
    %112 = arith.mulf %101, %111 : vector<2x32xf32>
    %cst_58 = arith.constant dense<0.000000e+00> : vector<2xf32>
    %113 = vector.multi_reduction <add>, %112, %cst_58 [1] : vector<2x32xf32> to vector<2xf32>
    %114 = vector.shape_cast %113 : vector<2xf32> to vector<1x2xf32>
    %115 = vector.broadcast %114 : vector<1x2xf32> to vector<8x2xf32>
    %116 = arith.addf %108, %115 : vector<8x2xf32>
    %117 = vector.broadcast %5 : vector<1x1xf32> to vector<8x2xf32>
    %118 = arith.addf %116, %117 : vector<8x2xf32>
    %119 = arith.addf %118, %107 : vector<8x2xf32>
    %cst_59 = arith.constant dense<0xFF800000> : vector<2xf32>
    %120 = vector.multi_reduction <maximumf>, %119, %cst_59 [0] : vector<8x2xf32> to vector<2xf32>
    %121 = vector.shape_cast %120 : vector<2xf32> to vector<1x2xf32>
    %122 = vector.broadcast %121 : vector<1x2xf32> to vector<8x2xf32>
    %123 = arith.subf %119, %122 : vector<8x2xf32>
    %124 = math.exp %123 : vector<8x2xf32>
    %cst_60 = arith.constant dense<0.000000e+00> : vector<2xf32>
    %125 = vector.multi_reduction <add>, %124, %cst_60 [0] : vector<8x2xf32> to vector<2xf32>
    %126 = vector.shape_cast %125 : vector<2xf32> to vector<1x2xf32>
    %127 = vector.broadcast %126 : vector<1x2xf32> to vector<8x2xf32>
    %128 = arith.divf %124, %127 : vector<8x2xf32>
    %129 = arith.mulf %128, %104 : vector<8x2xf32>
    %130 = arith.subf %128, %129 : vector<8x2xf32>
    %131 = vector.shape_cast %129 : vector<8x2xf32> to vector<8x2x1xf32>
    %132 = vector.broadcast %131 : vector<8x2x1xf32> to vector<8x2x32xf32>
    %133 = arith.mulf %132, %110 : vector<8x2x32xf32>
    %cst_61 = arith.constant dense<0.000000e+00> : vector<2x32xf32>
    %134 = vector.multi_reduction <add>, %133, %cst_61 [0] : vector<8x2x32xf32> to vector<2x32xf32>
    %135 = vector.shape_cast %130 : vector<8x2xf32> to vector<8x2x1xf32>
    %136 = vector.broadcast %135 : vector<8x2x1xf32> to vector<8x2x32xf32>
    %137 = arith.mulf %136, %110 : vector<8x2x32xf32>
    %cst_62 = arith.constant dense<0.000000e+00> : vector<2x32xf32>
    %138 = vector.multi_reduction <add>, %137, %cst_62 [0] : vector<8x2x32xf32> to vector<2x32xf32>
    %139 = tpu.concatenate %134, %138 in 1 : vector<2x32xf32>, vector<2x32xf32> -> vector<2x64xf32>
    %cst_63 = arith.constant dense<0.000000e+00> : vector<2x32xf32>
    %140 = tpu.matmul %139, %7, %cst_63 {dimension_numbers = #tpu.dot_dimension_numbers<[1], [0], [0], [1], [0, 0, 1, 1], [], []>} : vector<2x64xf32>, vector<64x32xf32>, vector<2x32xf32> -> vector<2x32xf32>
    %cst_64 = arith.constant dense<0.000000e+00> : vector<2x192xf32>
    %141 = tpu.matmul %101, %9, %cst_64 {dimension_numbers = #tpu.dot_dimension_numbers<[1], [0], [0], [1], [0, 0, 1, 1], [], []>} : vector<2x32xf32>, vector<32x192xf32>, vector<2x192xf32> -> vector<2x192xf32>
    %142 = vector.broadcast %11 : vector<1x192xf32> to vector<2x192xf32>
    %143 = arith.addf %141, %142 : vector<2x192xf32>
    %cst_65 = arith.constant dense<0.000000e+00> : vector<2x192xf32>
    %144 = tpu.matmul %140, %13, %cst_65 {dimension_numbers = #tpu.dot_dimension_numbers<[1], [0], [0], [1], [0, 0, 1, 1], [], []>} : vector<2x32xf32>, vector<32x192xf32>, vector<2x192xf32> -> vector<2x192xf32>
    %145 = vector.broadcast %15 : vector<1x192xf32> to vector<2x192xf32>
    %146 = arith.addf %144, %145 : vector<2x192xf32>
    %147 = vector.extract_strided_slice %143 {offsets = [0, 0], sizes = [2, 96], strides = [1, 1]} : vector<2x192xf32> to vector<2x96xf32>
    %148 = vector.extract_strided_slice %143 {offsets = [0, 96], sizes = [2, 96], strides = [1, 1]} : vector<2x192xf32> to vector<2x96xf32>
    %149 = vector.extract_strided_slice %146 {offsets = [0, 0], sizes = [2, 96], strides = [1, 1]} : vector<2x192xf32> to vector<2x96xf32>
    %150 = vector.extract_strided_slice %146 {offsets = [0, 96], sizes = [2, 96], strides = [1, 1]} : vector<2x192xf32> to vector<2x96xf32>
    %151 = vector.extract_strided_slice %147 {offsets = [0, 0], sizes = [2, 32], strides = [1, 1]} : vector<2x96xf32> to vector<2x32xf32>
    %152 = vector.extract_strided_slice %149 {offsets = [0, 0], sizes = [2, 32], strides = [1, 1]} : vector<2x96xf32> to vector<2x32xf32>
    %153 = arith.addf %151, %152 : vector<2x32xf32>
    %154 = arith.negf %153 : vector<2x32xf32>
    %155 = math.exp %154 : vector<2x32xf32>
    %cst_66 = arith.constant 1.000000e+00 : f32
    %156 = vector.broadcast %cst_66 : f32 to vector<2x32xf32>
    %157 = arith.addf %156, %155 : vector<2x32xf32>
    %158 = arith.divf %156, %157 : vector<2x32xf32>
    %159 = vector.extract_strided_slice %147 {offsets = [0, 32], sizes = [2, 32], strides = [1, 1]} : vector<2x96xf32> to vector<2x32xf32>
    %160 = vector.extract_strided_slice %149 {offsets = [0, 32], sizes = [2, 32], strides = [1, 1]} : vector<2x96xf32> to vector<2x32xf32>
    %161 = arith.addf %159, %160 : vector<2x32xf32>
    %162 = arith.negf %161 : vector<2x32xf32>
    %163 = math.exp %162 : vector<2x32xf32>
    %cst_67 = arith.constant 1.000000e+00 : f32
    %164 = vector.broadcast %cst_67 : f32 to vector<2x32xf32>
    %165 = arith.addf %164, %163 : vector<2x32xf32>
    %166 = arith.divf %164, %165 : vector<2x32xf32>
    %167 = vector.extract_strided_slice %147 {offsets = [0, 64], sizes = [2, 32], strides = [1, 1]} : vector<2x96xf32> to vector<2x32xf32>
    %168 = vector.extract_strided_slice %149 {offsets = [0, 64], sizes = [2, 32], strides = [1, 1]} : vector<2x96xf32> to vector<2x32xf32>
    %169 = arith.mulf %158, %168 : vector<2x32xf32>
    %170 = arith.addf %167, %169 : vector<2x32xf32>
    %171 = math.tanh %170 : vector<2x32xf32>
    %cst_68 = arith.constant 1.000000e+00 : f32
    %172 = vector.broadcast %cst_68 : f32 to vector<2x32xf32>
    %173 = arith.subf %172, %166 : vector<2x32xf32>
    %174 = arith.mulf %173, %171 : vector<2x32xf32>
    %175 = arith.mulf %166, %140 : vector<2x32xf32>
    %176 = arith.addf %174, %175 : vector<2x32xf32>
    %177 = vector.extract_strided_slice %150 {offsets = [0, 0], sizes = [2, 32], strides = [1, 1]} : vector<2x96xf32> to vector<2x32xf32>
    %178 = vector.extract_strided_slice %148 {offsets = [0, 0], sizes = [2, 32], strides = [1, 1]} : vector<2x96xf32> to vector<2x32xf32>
    %179 = arith.addf %177, %178 : vector<2x32xf32>
    %180 = arith.negf %179 : vector<2x32xf32>
    %181 = math.exp %180 : vector<2x32xf32>
    %cst_69 = arith.constant 1.000000e+00 : f32
    %182 = vector.broadcast %cst_69 : f32 to vector<2x32xf32>
    %183 = arith.addf %182, %181 : vector<2x32xf32>
    %184 = arith.divf %182, %183 : vector<2x32xf32>
    %185 = vector.extract_strided_slice %150 {offsets = [0, 32], sizes = [2, 32], strides = [1, 1]} : vector<2x96xf32> to vector<2x32xf32>
    %186 = vector.extract_strided_slice %148 {offsets = [0, 32], sizes = [2, 32], strides = [1, 1]} : vector<2x96xf32> to vector<2x32xf32>
    %187 = arith.addf %185, %186 : vector<2x32xf32>
    %188 = arith.negf %187 : vector<2x32xf32>
    %189 = math.exp %188 : vector<2x32xf32>
    %cst_70 = arith.constant 1.000000e+00 : f32
    %190 = vector.broadcast %cst_70 : f32 to vector<2x32xf32>
    %191 = arith.addf %190, %189 : vector<2x32xf32>
    %192 = arith.divf %190, %191 : vector<2x32xf32>
    %193 = vector.extract_strided_slice %150 {offsets = [0, 64], sizes = [2, 32], strides = [1, 1]} : vector<2x96xf32> to vector<2x32xf32>
    %194 = vector.extract_strided_slice %148 {offsets = [0, 64], sizes = [2, 32], strides = [1, 1]} : vector<2x96xf32> to vector<2x32xf32>
    %195 = arith.mulf %184, %194 : vector<2x32xf32>
    %196 = arith.addf %193, %195 : vector<2x32xf32>
    %197 = math.tanh %196 : vector<2x32xf32>
    %cst_71 = arith.constant 1.000000e+00 : f32
    %198 = vector.broadcast %cst_71 : f32 to vector<2x32xf32>
    %199 = arith.subf %198, %192 : vector<2x32xf32>
    %200 = arith.mulf %199, %197 : vector<2x32xf32>
    %201 = arith.mulf %192, %101 : vector<2x32xf32>
    %202 = arith.addf %200, %201 : vector<2x32xf32>
    %203 = arith.addf %176, %202 : vector<2x32xf32>
    %204 = vector.shape_cast %203 : vector<2x32xf32> to vector<1x2x32xf32>
    %c0_72 = arith.constant 0 : index
    %205 = arith.index_cast %c1_i32 : i32 to index
    %c0_73 = arith.constant 0 : index
    %c0_74 = arith.constant 0 : index
    %206 = vector.load %arg12[%c0_72, %205, %c0_73, %c0_74] : memref<1x8x2x32xf32, #tpu.memory_space<vmem>>, vector<1x1x2x32xf32>
    %207 = vector.shape_cast %206 : vector<1x1x2x32xf32> to vector<1x2x32xf32>
    %208 = vector.shape_cast %204 : vector<1x2x32xf32> to vector<1x1x2x32xf32>
    tpu.vector_store %arg12[%c0_72, %205, %c0_73, %c0_74], %208 {strides = array<i32>} : memref<1x8x2x32xf32, #tpu.memory_space<vmem>>, vector<1x1x2x32xf32>,
    %209 = vector.broadcast %c1_i32 : i32 to vector<8x2xi32>
    %210 = arith.cmpi eq, %16, %209 : vector<8x2xi32>
    %211 = vector.broadcast %3 : vector<1x32xf32> to vector<2x32xf32>
    %212 = arith.mulf %203, %211 : vector<2x32xf32>
    %cst_75 = arith.constant dense<0.000000e+00> : vector<2xf32>
    %213 = vector.multi_reduction <add>, %212, %cst_75 [1] : vector<2x32xf32> to vector<2xf32>
    %214 = vector.shape_cast %213 : vector<2xf32> to vector<1x2xf32>
    %215 = vector.broadcast %214 : vector<1x2xf32> to vector<8x2xf32>
    %216 = arith.select %210, %215, %108 : vector<8x2xi1>, vector<8x2xf32>
    %c0_76 = arith.constant 0 : index
    %c0_77 = arith.constant 0 : index
    %217 = vector.load %arg13[%c0_76, %c0_77] : memref<8x2xf32, #tpu.memory_space<vmem>>, vector<8x2xf32>
    tpu.vector_store %arg13[%c0_76, %c0_77], %216 {strides = array<i32>} : memref<8x2xf32, #tpu.memory_space<vmem>>, vector<8x2xf32>,
    %c2_i32 = arith.constant 2 : i32
    %c0_78 = arith.constant 0 : index
    %218 = arith.index_cast %c2_i32 : i32 to index
    %c0_79 = arith.constant 0 : index
    %c0_80 = arith.constant 0 : index
    %219 = vector.load %arg1[%c0_78, %218, %c0_79, %c0_80] : memref<1x8x2x32xf32, #tpu.memory_space<vmem>>, vector<1x1x2x32xf32>
    %220 = vector.shape_cast %219 : vector<1x1x2x32xf32> to vector<2x32xf32>
    %221 = arith.index_cast %c2_i32 : i32 to index
    %c0_81 = arith.constant 0 : index
    %c0_82 = arith.constant 0 : index
    %222 = vector.load %arg3[%221, %c0_81, %c0_82] : memref<8x8x2xf32, #tpu.memory_space<vmem>>, vector<1x8x2xf32>
    %223 = vector.shape_cast %222 : vector<1x8x2xf32> to vector<8x2xf32>
    %c0_83 = arith.constant 0 : index
    %224 = arith.index_cast %c2_i32 : i32 to index
    %c0_84 = arith.constant 0 : index
    %c0_85 = arith.constant 0 : index
    %225 = vector.load %arg2[%c0_83, %224, %c0_84, %c0_85] : memref<1x8x8x2xf32, #tpu.memory_space<vmem>>, vector<1x1x8x2xf32>
    %226 = vector.shape_cast %225 : vector<1x1x8x2xf32> to vector<8x2xf32>
    %c0_86 = arith.constant 0 : index
    %c0_87 = arith.constant 0 : index
    %227 = vector.load %arg13[%c0_86, %c0_87] : memref<8x2xf32, #tpu.memory_space<vmem>>, vector<8x2xf32>
    %c0_88 = arith.constant 0 : index
    %c0_89 = arith.constant 0 : index
    %c0_90 = arith.constant 0 : index
    %c0_91 = arith.constant 0 : index
    %228 = vector.load %arg12[%c0_88, %c0_89, %c0_90, %c0_91] : memref<1x8x2x32xf32, #tpu.memory_space<vmem>>, vector<1x8x2x32xf32>
    %229 = vector.shape_cast %228 : vector<1x8x2x32xf32> to vector<8x2x32xf32>
    %230 = vector.broadcast %1 : vector<1x32xf32> to vector<2x32xf32>
    %231 = arith.mulf %220, %230 : vector<2x32xf32>
    %cst_92 = arith.constant dense<0.000000e+00> : vector<2xf32>
    %232 = vector.multi_reduction <add>, %231, %cst_92 [1] : vector<2x32xf32> to vector<2xf32>
    %233 = vector.shape_cast %232 : vector<2xf32> to vector<1x2xf32>
    %234 = vector.broadcast %233 : vector<1x2xf32> to vector<8x2xf32>
    %235 = arith.addf %227, %234 : vector<8x2xf32>
    %236 = vector.broadcast %5 : vector<1x1xf32> to vector<8x2xf32>
    %237 = arith.addf %235, %236 : vector<8x2xf32>
    %238 = arith.addf %237, %226 : vector<8x2xf32>
    %cst_93 = arith.constant dense<0xFF800000> : vector<2xf32>
    %239 = vector.multi_reduction <maximumf>, %238, %cst_93 [0] : vector<8x2xf32> to vector<2xf32>
    %240 = vector.shape_cast %239 : vector<2xf32> to vector<1x2xf32>
    %241 = vector.broadcast %240 : vector<1x2xf32> to vector<8x2xf32>
    %242 = arith.subf %238, %241 : vector<8x2xf32>
    %243 = math.exp %242 : vector<8x2xf32>
    %cst_94 = arith.constant dense<0.000000e+00> : vector<2xf32>
    %244 = vector.multi_reduction <add>, %243, %cst_94 [0] : vector<8x2xf32> to vector<2xf32>
    %245 = vector.shape_cast %244 : vector<2xf32> to vector<1x2xf32>
    %246 = vector.broadcast %245 : vector<1x2xf32> to vector<8x2xf32>
    %247 = arith.divf %243, %246 : vector<8x2xf32>
    %248 = arith.mulf %247, %223 : vector<8x2xf32>
    %249 = arith.subf %247, %248 : vector<8x2xf32>
    %250 = vector.shape_cast %248 : vector<8x2xf32> to vector<8x2x1xf32>
    %251 = vector.broadcast %250 : vector<8x2x1xf32> to vector<8x2x32xf32>
    %252 = arith.mulf %251, %229 : vector<8x2x32xf32>
    %cst_95 = arith.constant dense<0.000000e+00> : vector<2x32xf32>
    %253 = vector.multi_reduction <add>, %252, %cst_95 [0] : vector<8x2x32xf32> to vector<2x32xf32>
    %254 = vector.shape_cast %249 : vector<8x2xf32> to vector<8x2x1xf32>
    %255 = vector.broadcast %254 : vector<8x2x1xf32> to vector<8x2x32xf32>
    %256 = arith.mulf %255, %229 : vector<8x2x32xf32>
    %cst_96 = arith.constant dense<0.000000e+00> : vector<2x32xf32>
    %257 = vector.multi_reduction <add>, %256, %cst_96 [0] : vector<8x2x32xf32> to vector<2x32xf32>
    %258 = tpu.concatenate %253, %257 in 1 : vector<2x32xf32>, vector<2x32xf32> -> vector<2x64xf32>
    %cst_97 = arith.constant dense<0.000000e+00> : vector<2x32xf32>
    %259 = tpu.matmul %258, %7, %cst_97 {dimension_numbers = #tpu.dot_dimension_numbers<[1], [0], [0], [1], [0, 0, 1, 1], [], []>} : vector<2x64xf32>, vector<64x32xf32>, vector<2x32xf32> -> vector<2x32xf32>
    %cst_98 = arith.constant dense<0.000000e+00> : vector<2x192xf32>
    %260 = tpu.matmul %220, %9, %cst_98 {dimension_numbers = #tpu.dot_dimension_numbers<[1], [0], [0], [1], [0, 0, 1, 1], [], []>} : vector<2x32xf32>, vector<32x192xf32>, vector<2x192xf32> -> vector<2x192xf32>
    %261 = vector.broadcast %11 : vector<1x192xf32> to vector<2x192xf32>
    %262 = arith.addf %260, %261 : vector<2x192xf32>
    %cst_99 = arith.constant dense<0.000000e+00> : vector<2x192xf32>
    %263 = tpu.matmul %259, %13, %cst_99 {dimension_numbers = #tpu.dot_dimension_numbers<[1], [0], [0], [1], [0, 0, 1, 1], [], []>} : vector<2x32xf32>, vector<32x192xf32>, vector<2x192xf32> -> vector<2x192xf32>
    %264 = vector.broadcast %15 : vector<1x192xf32> to vector<2x192xf32>
    %265 = arith.addf %263, %264 : vector<2x192xf32>
    %266 = vector.extract_strided_slice %262 {offsets = [0, 0], sizes = [2, 96], strides = [1, 1]} : vector<2x192xf32> to vector<2x96xf32>
    %267 = vector.extract_strided_slice %262 {offsets = [0, 96], sizes = [2, 96], strides = [1, 1]} : vector<2x192xf32> to vector<2x96xf32>
    %268 = vector.extract_strided_slice %265 {offsets = [0, 0], sizes = [2, 96], strides = [1, 1]} : vector<2x192xf32> to vector<2x96xf32>
    %269 = vector.extract_strided_slice %265 {offsets = [0, 96], sizes = [2, 96], strides = [1, 1]} : vector<2x192xf32> to vector<2x96xf32>
    %270 = vector.extract_strided_slice %266 {offsets = [0, 0], sizes = [2, 32], strides = [1, 1]} : vector<2x96xf32> to vector<2x32xf32>
    %271 = vector.extract_strided_slice %268 {offsets = [0, 0], sizes = [2, 32], strides = [1, 1]} : vector<2x96xf32> to vector<2x32xf32>
    %272 = arith.addf %270, %271 : vector<2x32xf32>
    %273 = arith.negf %272 : vector<2x32xf32>
    %274 = math.exp %273 : vector<2x32xf32>
    %cst_100 = arith.constant 1.000000e+00 : f32
    %275 = vector.broadcast %cst_100 : f32 to vector<2x32xf32>
    %276 = arith.addf %275, %274 : vector<2x32xf32>
    %277 = arith.divf %275, %276 : vector<2x32xf32>
    %278 = vector.extract_strided_slice %266 {offsets = [0, 32], sizes = [2, 32], strides = [1, 1]} : vector<2x96xf32> to vector<2x32xf32>
    %279 = vector.extract_strided_slice %268 {offsets = [0, 32], sizes = [2, 32], strides = [1, 1]} : vector<2x96xf32> to vector<2x32xf32>
    %280 = arith.addf %278, %279 : vector<2x32xf32>
    %281 = arith.negf %280 : vector<2x32xf32>
    %282 = math.exp %281 : vector<2x32xf32>
    %cst_101 = arith.constant 1.000000e+00 : f32
    %283 = vector.broadcast %cst_101 : f32 to vector<2x32xf32>
    %284 = arith.addf %283, %282 : vector<2x32xf32>
    %285 = arith.divf %283, %284 : vector<2x32xf32>
    %286 = vector.extract_strided_slice %266 {offsets = [0, 64], sizes = [2, 32], strides = [1, 1]} : vector<2x96xf32> to vector<2x32xf32>
    %287 = vector.extract_strided_slice %268 {offsets = [0, 64], sizes = [2, 32], strides = [1, 1]} : vector<2x96xf32> to vector<2x32xf32>
    %288 = arith.mulf %277, %287 : vector<2x32xf32>
    %289 = arith.addf %286, %288 : vector<2x32xf32>
    %290 = math.tanh %289 : vector<2x32xf32>
    %cst_102 = arith.constant 1.000000e+00 : f32
    %291 = vector.broadcast %cst_102 : f32 to vector<2x32xf32>
    %292 = arith.subf %291, %285 : vector<2x32xf32>
    %293 = arith.mulf %292, %290 : vector<2x32xf32>
    %294 = arith.mulf %285, %259 : vector<2x32xf32>
    %295 = arith.addf %293, %294 : vector<2x32xf32>
    %296 = vector.extract_strided_slice %269 {offsets = [0, 0], sizes = [2, 32], strides = [1, 1]} : vector<2x96xf32> to vector<2x32xf32>
    %297 = vector.extract_strided_slice %267 {offsets = [0, 0], sizes = [2, 32], strides = [1, 1]} : vector<2x96xf32> to vector<2x32xf32>
    %298 = arith.addf %296, %297 : vector<2x32xf32>
    %299 = arith.negf %298 : vector<2x32xf32>
    %300 = math.exp %299 : vector<2x32xf32>
    %cst_103 = arith.constant 1.000000e+00 : f32
    %301 = vector.broadcast %cst_103 : f32 to vector<2x32xf32>
    %302 = arith.addf %301, %300 : vector<2x32xf32>
    %303 = arith.divf %301, %302 : vector<2x32xf32>
    %304 = vector.extract_strided_slice %269 {offsets = [0, 32], sizes = [2, 32], strides = [1, 1]} : vector<2x96xf32> to vector<2x32xf32>
    %305 = vector.extract_strided_slice %267 {offsets = [0, 32], sizes = [2, 32], strides = [1, 1]} : vector<2x96xf32> to vector<2x32xf32>
    %306 = arith.addf %304, %305 : vector<2x32xf32>
    %307 = arith.negf %306 : vector<2x32xf32>
    %308 = math.exp %307 : vector<2x32xf32>
    %cst_104 = arith.constant 1.000000e+00 : f32
    %309 = vector.broadcast %cst_104 : f32 to vector<2x32xf32>
    %310 = arith.addf %309, %308 : vector<2x32xf32>
    %311 = arith.divf %309, %310 : vector<2x32xf32>
    %312 = vector.extract_strided_slice %269 {offsets = [0, 64], sizes = [2, 32], strides = [1, 1]} : vector<2x96xf32> to vector<2x32xf32>
    %313 = vector.extract_strided_slice %267 {offsets = [0, 64], sizes = [2, 32], strides = [1, 1]} : vector<2x96xf32> to vector<2x32xf32>
    %314 = arith.mulf %303, %313 : vector<2x32xf32>
    %315 = arith.addf %312, %314 : vector<2x32xf32>
    %316 = math.tanh %315 : vector<2x32xf32>
    %cst_105 = arith.constant 1.000000e+00 : f32
    %317 = vector.broadcast %cst_105 : f32 to vector<2x32xf32>
    %318 = arith.subf %317, %311 : vector<2x32xf32>
    %319 = arith.mulf %318, %316 : vector<2x32xf32>
    %320 = arith.mulf %311, %220 : vector<2x32xf32>
    %321 = arith.addf %319, %320 : vector<2x32xf32>
    %322 = arith.addf %295, %321 : vector<2x32xf32>
    %323 = vector.shape_cast %322 : vector<2x32xf32> to vector<1x2x32xf32>
    %c0_106 = arith.constant 0 : index
    %324 = arith.index_cast %c2_i32 : i32 to index
    %c0_107 = arith.constant 0 : index
    %c0_108 = arith.constant 0 : index
    %325 = vector.load %arg12[%c0_106, %324, %c0_107, %c0_108] : memref<1x8x2x32xf32, #tpu.memory_space<vmem>>, vector<1x1x2x32xf32>
    %326 = vector.shape_cast %325 : vector<1x1x2x32xf32> to vector<1x2x32xf32>
    %327 = vector.shape_cast %323 : vector<1x2x32xf32> to vector<1x1x2x32xf32>
    tpu.vector_store %arg12[%c0_106, %324, %c0_107, %c0_108], %327 {strides = array<i32>} : memref<1x8x2x32xf32, #tpu.memory_space<vmem>>, vector<1x1x2x32xf32>,
    %328 = vector.broadcast %c2_i32 : i32 to vector<8x2xi32>
    %329 = arith.cmpi eq, %16, %328 : vector<8x2xi32>
    %330 = vector.broadcast %3 : vector<1x32xf32> to vector<2x32xf32>
    %331 = arith.mulf %322, %330 : vector<2x32xf32>
    %cst_109 = arith.constant dense<0.000000e+00> : vector<2xf32>
    %332 = vector.multi_reduction <add>, %331, %cst_109 [1] : vector<2x32xf32> to vector<2xf32>
    %333 = vector.shape_cast %332 : vector<2xf32> to vector<1x2xf32>
    %334 = vector.broadcast %333 : vector<1x2xf32> to vector<8x2xf32>
    %335 = arith.select %329, %334, %227 : vector<8x2xi1>, vector<8x2xf32>
    %c0_110 = arith.constant 0 : index
    %c0_111 = arith.constant 0 : index
    %336 = vector.load %arg13[%c0_110, %c0_111] : memref<8x2xf32, #tpu.memory_space<vmem>>, vector<8x2xf32>
    tpu.vector_store %arg13[%c0_110, %c0_111], %335 {strides = array<i32>} : memref<8x2xf32, #tpu.memory_space<vmem>>, vector<8x2xf32>,
    %c3_i32 = arith.constant 3 : i32
    %c0_112 = arith.constant 0 : index
    %337 = arith.index_cast %c3_i32 : i32 to index
    %c0_113 = arith.constant 0 : index
    %c0_114 = arith.constant 0 : index
    %338 = vector.load %arg1[%c0_112, %337, %c0_113, %c0_114] : memref<1x8x2x32xf32, #tpu.memory_space<vmem>>, vector<1x1x2x32xf32>
    %339 = vector.shape_cast %338 : vector<1x1x2x32xf32> to vector<2x32xf32>
    %340 = arith.index_cast %c3_i32 : i32 to index
    %c0_115 = arith.constant 0 : index
    %c0_116 = arith.constant 0 : index
    %341 = vector.load %arg3[%340, %c0_115, %c0_116] : memref<8x8x2xf32, #tpu.memory_space<vmem>>, vector<1x8x2xf32>
    %342 = vector.shape_cast %341 : vector<1x8x2xf32> to vector<8x2xf32>
    %c0_117 = arith.constant 0 : index
    %343 = arith.index_cast %c3_i32 : i32 to index
    %c0_118 = arith.constant 0 : index
    %c0_119 = arith.constant 0 : index
    %344 = vector.load %arg2[%c0_117, %343, %c0_118, %c0_119] : memref<1x8x8x2xf32, #tpu.memory_space<vmem>>, vector<1x1x8x2xf32>
    %345 = vector.shape_cast %344 : vector<1x1x8x2xf32> to vector<8x2xf32>
    %c0_120 = arith.constant 0 : index
    %c0_121 = arith.constant 0 : index
    %346 = vector.load %arg13[%c0_120, %c0_121] : memref<8x2xf32, #tpu.memory_space<vmem>>, vector<8x2xf32>
    %c0_122 = arith.constant 0 : index
    %c0_123 = arith.constant 0 : index
    %c0_124 = arith.constant 0 : index
    %c0_125 = arith.constant 0 : index
    %347 = vector.load %arg12[%c0_122, %c0_123, %c0_124, %c0_125] : memref<1x8x2x32xf32, #tpu.memory_space<vmem>>, vector<1x8x2x32xf32>
    %348 = vector.shape_cast %347 : vector<1x8x2x32xf32> to vector<8x2x32xf32>
    %349 = vector.broadcast %1 : vector<1x32xf32> to vector<2x32xf32>
    %350 = arith.mulf %339, %349 : vector<2x32xf32>
    %cst_126 = arith.constant dense<0.000000e+00> : vector<2xf32>
    %351 = vector.multi_reduction <add>, %350, %cst_126 [1] : vector<2x32xf32> to vector<2xf32>
    %352 = vector.shape_cast %351 : vector<2xf32> to vector<1x2xf32>
    %353 = vector.broadcast %352 : vector<1x2xf32> to vector<8x2xf32>
    %354 = arith.addf %346, %353 : vector<8x2xf32>
    %355 = vector.broadcast %5 : vector<1x1xf32> to vector<8x2xf32>
    %356 = arith.addf %354, %355 : vector<8x2xf32>
    %357 = arith.addf %356, %345 : vector<8x2xf32>
    %cst_127 = arith.constant dense<0xFF800000> : vector<2xf32>
    %358 = vector.multi_reduction <maximumf>, %357, %cst_127 [0] : vector<8x2xf32> to vector<2xf32>
    %359 = vector.shape_cast %358 : vector<2xf32> to vector<1x2xf32>
    %360 = vector.broadcast %359 : vector<1x2xf32> to vector<8x2xf32>
    %361 = arith.subf %357, %360 : vector<8x2xf32>
    %362 = math.exp %361 : vector<8x2xf32>
    %cst_128 = arith.constant dense<0.000000e+00> : vector<2xf32>
    %363 = vector.multi_reduction <add>, %362, %cst_128 [0] : vector<8x2xf32> to vector<2xf32>
    %364 = vector.shape_cast %363 : vector<2xf32> to vector<1x2xf32>
    %365 = vector.broadcast %364 : vector<1x2xf32> to vector<8x2xf32>
    %366 = arith.divf %362, %365 : vector<8x2xf32>
    %367 = arith.mulf %366, %342 : vector<8x2xf32>
    %368 = arith.subf %366, %367 : vector<8x2xf32>
    %369 = vector.shape_cast %367 : vector<8x2xf32> to vector<8x2x1xf32>
    %370 = vector.broadcast %369 : vector<8x2x1xf32> to vector<8x2x32xf32>
    %371 = arith.mulf %370, %348 : vector<8x2x32xf32>
    %cst_129 = arith.constant dense<0.000000e+00> : vector<2x32xf32>
    %372 = vector.multi_reduction <add>, %371, %cst_129 [0] : vector<8x2x32xf32> to vector<2x32xf32>
    %373 = vector.shape_cast %368 : vector<8x2xf32> to vector<8x2x1xf32>
    %374 = vector.broadcast %373 : vector<8x2x1xf32> to vector<8x2x32xf32>
    %375 = arith.mulf %374, %348 : vector<8x2x32xf32>
    %cst_130 = arith.constant dense<0.000000e+00> : vector<2x32xf32>
    %376 = vector.multi_reduction <add>, %375, %cst_130 [0] : vector<8x2x32xf32> to vector<2x32xf32>
    %377 = tpu.concatenate %372, %376 in 1 : vector<2x32xf32>, vector<2x32xf32> -> vector<2x64xf32>
    %cst_131 = arith.constant dense<0.000000e+00> : vector<2x32xf32>
    %378 = tpu.matmul %377, %7, %cst_131 {dimension_numbers = #tpu.dot_dimension_numbers<[1], [0], [0], [1], [0, 0, 1, 1], [], []>} : vector<2x64xf32>, vector<64x32xf32>, vector<2x32xf32> -> vector<2x32xf32>
    %cst_132 = arith.constant dense<0.000000e+00> : vector<2x192xf32>
    %379 = tpu.matmul %339, %9, %cst_132 {dimension_numbers = #tpu.dot_dimension_numbers<[1], [0], [0], [1], [0, 0, 1, 1], [], []>} : vector<2x32xf32>, vector<32x192xf32>, vector<2x192xf32> -> vector<2x192xf32>
    %380 = vector.broadcast %11 : vector<1x192xf32> to vector<2x192xf32>
    %381 = arith.addf %379, %380 : vector<2x192xf32>
    %cst_133 = arith.constant dense<0.000000e+00> : vector<2x192xf32>
    %382 = tpu.matmul %378, %13, %cst_133 {dimension_numbers = #tpu.dot_dimension_numbers<[1], [0], [0], [1], [0, 0, 1, 1], [], []>} : vector<2x32xf32>, vector<32x192xf32>, vector<2x192xf32> -> vector<2x192xf32>
    %383 = vector.broadcast %15 : vector<1x192xf32> to vector<2x192xf32>
    %384 = arith.addf %382, %383 : vector<2x192xf32>
    %385 = vector.extract_strided_slice %381 {offsets = [0, 0], sizes = [2, 96], strides = [1, 1]} : vector<2x192xf32> to vector<2x96xf32>
    %386 = vector.extract_strided_slice %381 {offsets = [0, 96], sizes = [2, 96], strides = [1, 1]} : vector<2x192xf32> to vector<2x96xf32>
    %387 = vector.extract_strided_slice %384 {offsets = [0, 0], sizes = [2, 96], strides = [1, 1]} : vector<2x192xf32> to vector<2x96xf32>
    %388 = vector.extract_strided_slice %384 {offsets = [0, 96], sizes = [2, 96], strides = [1, 1]} : vector<2x192xf32> to vector<2x96xf32>
    %389 = vector.extract_strided_slice %385 {offsets = [0, 0], sizes = [2, 32], strides = [1, 1]} : vector<2x96xf32> to vector<2x32xf32>
    %390 = vector.extract_strided_slice %387 {offsets = [0, 0], sizes = [2, 32], strides = [1, 1]} : vector<2x96xf32> to vector<2x32xf32>
    %391 = arith.addf %389, %390 : vector<2x32xf32>
    %392 = arith.negf %391 : vector<2x32xf32>
    %393 = math.exp %392 : vector<2x32xf32>
    %cst_134 = arith.constant 1.000000e+00 : f32
    %394 = vector.broadcast %cst_134 : f32 to vector<2x32xf32>
    %395 = arith.addf %394, %393 : vector<2x32xf32>
    %396 = arith.divf %394, %395 : vector<2x32xf32>
    %397 = vector.extract_strided_slice %385 {offsets = [0, 32], sizes = [2, 32], strides = [1, 1]} : vector<2x96xf32> to vector<2x32xf32>
    %398 = vector.extract_strided_slice %387 {offsets = [0, 32], sizes = [2, 32], strides = [1, 1]} : vector<2x96xf32> to vector<2x32xf32>
    %399 = arith.addf %397, %398 : vector<2x32xf32>
    %400 = arith.negf %399 : vector<2x32xf32>
    %401 = math.exp %400 : vector<2x32xf32>
    %cst_135 = arith.constant 1.000000e+00 : f32
    %402 = vector.broadcast %cst_135 : f32 to vector<2x32xf32>
    %403 = arith.addf %402, %401 : vector<2x32xf32>
    %404 = arith.divf %402, %403 : vector<2x32xf32>
    %405 = vector.extract_strided_slice %385 {offsets = [0, 64], sizes = [2, 32], strides = [1, 1]} : vector<2x96xf32> to vector<2x32xf32>
    %406 = vector.extract_strided_slice %387 {offsets = [0, 64], sizes = [2, 32], strides = [1, 1]} : vector<2x96xf32> to vector<2x32xf32>
    %407 = arith.mulf %396, %406 : vector<2x32xf32>
    %408 = arith.addf %405, %407 : vector<2x32xf32>
    %409 = math.tanh %408 : vector<2x32xf32>
    %cst_136 = arith.constant 1.000000e+00 : f32
    %410 = vector.broadcast %cst_136 : f32 to vector<2x32xf32>
    %411 = arith.subf %410, %404 : vector<2x32xf32>
    %412 = arith.mulf %411, %409 : vector<2x32xf32>
    %413 = arith.mulf %404, %378 : vector<2x32xf32>
    %414 = arith.addf %412, %413 : vector<2x32xf32>
    %415 = vector.extract_strided_slice %388 {offsets = [0, 0], sizes = [2, 32], strides = [1, 1]} : vector<2x96xf32> to vector<2x32xf32>
    %416 = vector.extract_strided_slice %386 {offsets = [0, 0], sizes = [2, 32], strides = [1, 1]} : vector<2x96xf32> to vector<2x32xf32>
    %417 = arith.addf %415, %416 : vector<2x32xf32>
    %418 = arith.negf %417 : vector<2x32xf32>
    %419 = math.exp %418 : vector<2x32xf32>
    %cst_137 = arith.constant 1.000000e+00 : f32
    %420 = vector.broadcast %cst_137 : f32 to vector<2x32xf32>
    %421 = arith.addf %420, %419 : vector<2x32xf32>
    %422 = arith.divf %420, %421 : vector<2x32xf32>
    %423 = vector.extract_strided_slice %388 {offsets = [0, 32], sizes = [2, 32], strides = [1, 1]} : vector<2x96xf32> to vector<2x32xf32>
    %424 = vector.extract_strided_slice %386 {offsets = [0, 32], sizes = [2, 32], strides = [1, 1]} : vector<2x96xf32> to vector<2x32xf32>
    %425 = arith.addf %423, %424 : vector<2x32xf32>
    %426 = arith.negf %425 : vector<2x32xf32>
    %427 = math.exp %426 : vector<2x32xf32>
    %cst_138 = arith.constant 1.000000e+00 : f32
    %428 = vector.broadcast %cst_138 : f32 to vector<2x32xf32>
    %429 = arith.addf %428, %427 : vector<2x32xf32>
    %430 = arith.divf %428, %429 : vector<2x32xf32>
    %431 = vector.extract_strided_slice %388 {offsets = [0, 64], sizes = [2, 32], strides = [1, 1]} : vector<2x96xf32> to vector<2x32xf32>
    %432 = vector.extract_strided_slice %386 {offsets = [0, 64], sizes = [2, 32], strides = [1, 1]} : vector<2x96xf32> to vector<2x32xf32>
    %433 = arith.mulf %422, %432 : vector<2x32xf32>
    %434 = arith.addf %431, %433 : vector<2x32xf32>
    %435 = math.tanh %434 : vector<2x32xf32>
    %cst_139 = arith.constant 1.000000e+00 : f32
    %436 = vector.broadcast %cst_139 : f32 to vector<2x32xf32>
    %437 = arith.subf %436, %430 : vector<2x32xf32>
    %438 = arith.mulf %437, %435 : vector<2x32xf32>
    %439 = arith.mulf %430, %339 : vector<2x32xf32>
    %440 = arith.addf %438, %439 : vector<2x32xf32>
    %441 = arith.addf %414, %440 : vector<2x32xf32>
    %442 = vector.shape_cast %441 : vector<2x32xf32> to vector<1x2x32xf32>
    %c0_140 = arith.constant 0 : index
    %443 = arith.index_cast %c3_i32 : i32 to index
    %c0_141 = arith.constant 0 : index
    %c0_142 = arith.constant 0 : index
    %444 = vector.load %arg12[%c0_140, %443, %c0_141, %c0_142] : memref<1x8x2x32xf32, #tpu.memory_space<vmem>>, vector<1x1x2x32xf32>
    %445 = vector.shape_cast %444 : vector<1x1x2x32xf32> to vector<1x2x32xf32>
    %446 = vector.shape_cast %442 : vector<1x2x32xf32> to vector<1x1x2x32xf32>
    tpu.vector_store %arg12[%c0_140, %443, %c0_141, %c0_142], %446 {strides = array<i32>} : memref<1x8x2x32xf32, #tpu.memory_space<vmem>>, vector<1x1x2x32xf32>,
    %447 = vector.broadcast %c3_i32 : i32 to vector<8x2xi32>
    %448 = arith.cmpi eq, %16, %447 : vector<8x2xi32>
    %449 = vector.broadcast %3 : vector<1x32xf32> to vector<2x32xf32>
    %450 = arith.mulf %441, %449 : vector<2x32xf32>
    %cst_143 = arith.constant dense<0.000000e+00> : vector<2xf32>
    %451 = vector.multi_reduction <add>, %450, %cst_143 [1] : vector<2x32xf32> to vector<2xf32>
    %452 = vector.shape_cast %451 : vector<2xf32> to vector<1x2xf32>
    %453 = vector.broadcast %452 : vector<1x2xf32> to vector<8x2xf32>
    %454 = arith.select %448, %453, %346 : vector<8x2xi1>, vector<8x2xf32>
    %c0_144 = arith.constant 0 : index
    %c0_145 = arith.constant 0 : index
    %455 = vector.load %arg13[%c0_144, %c0_145] : memref<8x2xf32, #tpu.memory_space<vmem>>, vector<8x2xf32>
    tpu.vector_store %arg13[%c0_144, %c0_145], %454 {strides = array<i32>} : memref<8x2xf32, #tpu.memory_space<vmem>>, vector<8x2xf32>,
    %c4_i32 = arith.constant 4 : i32
    %c0_146 = arith.constant 0 : index
    %456 = arith.index_cast %c4_i32 : i32 to index
    %c0_147 = arith.constant 0 : index
    %c0_148 = arith.constant 0 : index
    %457 = vector.load %arg1[%c0_146, %456, %c0_147, %c0_148] : memref<1x8x2x32xf32, #tpu.memory_space<vmem>>, vector<1x1x2x32xf32>
    %458 = vector.shape_cast %457 : vector<1x1x2x32xf32> to vector<2x32xf32>
    %459 = arith.index_cast %c4_i32 : i32 to index
    %c0_149 = arith.constant 0 : index
    %c0_150 = arith.constant 0 : index
    %460 = vector.load %arg3[%459, %c0_149, %c0_150] : memref<8x8x2xf32, #tpu.memory_space<vmem>>, vector<1x8x2xf32>
    %461 = vector.shape_cast %460 : vector<1x8x2xf32> to vector<8x2xf32>
    %c0_151 = arith.constant 0 : index
    %462 = arith.index_cast %c4_i32 : i32 to index
    %c0_152 = arith.constant 0 : index
    %c0_153 = arith.constant 0 : index
    %463 = vector.load %arg2[%c0_151, %462, %c0_152, %c0_153] : memref<1x8x8x2xf32, #tpu.memory_space<vmem>>, vector<1x1x8x2xf32>
    %464 = vector.shape_cast %463 : vector<1x1x8x2xf32> to vector<8x2xf32>
    %c0_154 = arith.constant 0 : index
    %c0_155 = arith.constant 0 : index
    %465 = vector.load %arg13[%c0_154, %c0_155] : memref<8x2xf32, #tpu.memory_space<vmem>>, vector<8x2xf32>
    %c0_156 = arith.constant 0 : index
    %c0_157 = arith.constant 0 : index
    %c0_158 = arith.constant 0 : index
    %c0_159 = arith.constant 0 : index
    %466 = vector.load %arg12[%c0_156, %c0_157, %c0_158, %c0_159] : memref<1x8x2x32xf32, #tpu.memory_space<vmem>>, vector<1x8x2x32xf32>
    %467 = vector.shape_cast %466 : vector<1x8x2x32xf32> to vector<8x2x32xf32>
    %468 = vector.broadcast %1 : vector<1x32xf32> to vector<2x32xf32>
    %469 = arith.mulf %458, %468 : vector<2x32xf32>
    %cst_160 = arith.constant dense<0.000000e+00> : vector<2xf32>
    %470 = vector.multi_reduction <add>, %469, %cst_160 [1] : vector<2x32xf32> to vector<2xf32>
    %471 = vector.shape_cast %470 : vector<2xf32> to vector<1x2xf32>
    %472 = vector.broadcast %471 : vector<1x2xf32> to vector<8x2xf32>
    %473 = arith.addf %465, %472 : vector<8x2xf32>
    %474 = vector.broadcast %5 : vector<1x1xf32> to vector<8x2xf32>
    %475 = arith.addf %473, %474 : vector<8x2xf32>
    %476 = arith.addf %475, %464 : vector<8x2xf32>
    %cst_161 = arith.constant dense<0xFF800000> : vector<2xf32>
    %477 = vector.multi_reduction <maximumf>, %476, %cst_161 [0] : vector<8x2xf32> to vector<2xf32>
    %478 = vector.shape_cast %477 : vector<2xf32> to vector<1x2xf32>
    %479 = vector.broadcast %478 : vector<1x2xf32> to vector<8x2xf32>
    %480 = arith.subf %476, %479 : vector<8x2xf32>
    %481 = math.exp %480 : vector<8x2xf32>
    %cst_162 = arith.constant dense<0.000000e+00> : vector<2xf32>
    %482 = vector.multi_reduction <add>, %481, %cst_162 [0] : vector<8x2xf32> to vector<2xf32>
    %483 = vector.shape_cast %482 : vector<2xf32> to vector<1x2xf32>
    %484 = vector.broadcast %483 : vector<1x2xf32> to vector<8x2xf32>
    %485 = arith.divf %481, %484 : vector<8x2xf32>
    %486 = arith.mulf %485, %461 : vector<8x2xf32>
    %487 = arith.subf %485, %486 : vector<8x2xf32>
    %488 = vector.shape_cast %486 : vector<8x2xf32> to vector<8x2x1xf32>
    %489 = vector.broadcast %488 : vector<8x2x1xf32> to vector<8x2x32xf32>
    %490 = arith.mulf %489, %467 : vector<8x2x32xf32>
    %cst_163 = arith.constant dense<0.000000e+00> : vector<2x32xf32>
    %491 = vector.multi_reduction <add>, %490, %cst_163 [0] : vector<8x2x32xf32> to vector<2x32xf32>
    %492 = vector.shape_cast %487 : vector<8x2xf32> to vector<8x2x1xf32>
    %493 = vector.broadcast %492 : vector<8x2x1xf32> to vector<8x2x32xf32>
    %494 = arith.mulf %493, %467 : vector<8x2x32xf32>
    %cst_164 = arith.constant dense<0.000000e+00> : vector<2x32xf32>
    %495 = vector.multi_reduction <add>, %494, %cst_164 [0] : vector<8x2x32xf32> to vector<2x32xf32>
    %496 = tpu.concatenate %491, %495 in 1 : vector<2x32xf32>, vector<2x32xf32> -> vector<2x64xf32>
    %cst_165 = arith.constant dense<0.000000e+00> : vector<2x32xf32>
    %497 = tpu.matmul %496, %7, %cst_165 {dimension_numbers = #tpu.dot_dimension_numbers<[1], [0], [0], [1], [0, 0, 1, 1], [], []>} : vector<2x64xf32>, vector<64x32xf32>, vector<2x32xf32> -> vector<2x32xf32>
    %cst_166 = arith.constant dense<0.000000e+00> : vector<2x192xf32>
    %498 = tpu.matmul %458, %9, %cst_166 {dimension_numbers = #tpu.dot_dimension_numbers<[1], [0], [0], [1], [0, 0, 1, 1], [], []>} : vector<2x32xf32>, vector<32x192xf32>, vector<2x192xf32> -> vector<2x192xf32>
    %499 = vector.broadcast %11 : vector<1x192xf32> to vector<2x192xf32>
    %500 = arith.addf %498, %499 : vector<2x192xf32>
    %cst_167 = arith.constant dense<0.000000e+00> : vector<2x192xf32>
    %501 = tpu.matmul %497, %13, %cst_167 {dimension_numbers = #tpu.dot_dimension_numbers<[1], [0], [0], [1], [0, 0, 1, 1], [], []>} : vector<2x32xf32>, vector<32x192xf32>, vector<2x192xf32> -> vector<2x192xf32>
    %502 = vector.broadcast %15 : vector<1x192xf32> to vector<2x192xf32>
    %503 = arith.addf %501, %502 : vector<2x192xf32>
    %504 = vector.extract_strided_slice %500 {offsets = [0, 0], sizes = [2, 96], strides = [1, 1]} : vector<2x192xf32> to vector<2x96xf32>
    %505 = vector.extract_strided_slice %500 {offsets = [0, 96], sizes = [2, 96], strides = [1, 1]} : vector<2x192xf32> to vector<2x96xf32>
    %506 = vector.extract_strided_slice %503 {offsets = [0, 0], sizes = [2, 96], strides = [1, 1]} : vector<2x192xf32> to vector<2x96xf32>
    %507 = vector.extract_strided_slice %503 {offsets = [0, 96], sizes = [2, 96], strides = [1, 1]} : vector<2x192xf32> to vector<2x96xf32>
    %508 = vector.extract_strided_slice %504 {offsets = [0, 0], sizes = [2, 32], strides = [1, 1]} : vector<2x96xf32> to vector<2x32xf32>
    %509 = vector.extract_strided_slice %506 {offsets = [0, 0], sizes = [2, 32], strides = [1, 1]} : vector<2x96xf32> to vector<2x32xf32>
    %510 = arith.addf %508, %509 : vector<2x32xf32>
    %511 = arith.negf %510 : vector<2x32xf32>
    %512 = math.exp %511 : vector<2x32xf32>
    %cst_168 = arith.constant 1.000000e+00 : f32
    %513 = vector.broadcast %cst_168 : f32 to vector<2x32xf32>
    %514 = arith.addf %513, %512 : vector<2x32xf32>
    %515 = arith.divf %513, %514 : vector<2x32xf32>
    %516 = vector.extract_strided_slice %504 {offsets = [0, 32], sizes = [2, 32], strides = [1, 1]} : vector<2x96xf32> to vector<2x32xf32>
    %517 = vector.extract_strided_slice %506 {offsets = [0, 32], sizes = [2, 32], strides = [1, 1]} : vector<2x96xf32> to vector<2x32xf32>
    %518 = arith.addf %516, %517 : vector<2x32xf32>
    %519 = arith.negf %518 : vector<2x32xf32>
    %520 = math.exp %519 : vector<2x32xf32>
    %cst_169 = arith.constant 1.000000e+00 : f32
    %521 = vector.broadcast %cst_169 : f32 to vector<2x32xf32>
    %522 = arith.addf %521, %520 : vector<2x32xf32>
    %523 = arith.divf %521, %522 : vector<2x32xf32>
    %524 = vector.extract_strided_slice %504 {offsets = [0, 64], sizes = [2, 32], strides = [1, 1]} : vector<2x96xf32> to vector<2x32xf32>
    %525 = vector.extract_strided_slice %506 {offsets = [0, 64], sizes = [2, 32], strides = [1, 1]} : vector<2x96xf32> to vector<2x32xf32>
    %526 = arith.mulf %515, %525 : vector<2x32xf32>
    %527 = arith.addf %524, %526 : vector<2x32xf32>
    %528 = math.tanh %527 : vector<2x32xf32>
    %cst_170 = arith.constant 1.000000e+00 : f32
    %529 = vector.broadcast %cst_170 : f32 to vector<2x32xf32>
    %530 = arith.subf %529, %523 : vector<2x32xf32>
    %531 = arith.mulf %530, %528 : vector<2x32xf32>
    %532 = arith.mulf %523, %497 : vector<2x32xf32>
    %533 = arith.addf %531, %532 : vector<2x32xf32>
    %534 = vector.extract_strided_slice %507 {offsets = [0, 0], sizes = [2, 32], strides = [1, 1]} : vector<2x96xf32> to vector<2x32xf32>
    %535 = vector.extract_strided_slice %505 {offsets = [0, 0], sizes = [2, 32], strides = [1, 1]} : vector<2x96xf32> to vector<2x32xf32>
    %536 = arith.addf %534, %535 : vector<2x32xf32>
    %537 = arith.negf %536 : vector<2x32xf32>
    %538 = math.exp %537 : vector<2x32xf32>
    %cst_171 = arith.constant 1.000000e+00 : f32
    %539 = vector.broadcast %cst_171 : f32 to vector<2x32xf32>
    %540 = arith.addf %539, %538 : vector<2x32xf32>
    %541 = arith.divf %539, %540 : vector<2x32xf32>
    %542 = vector.extract_strided_slice %507 {offsets = [0, 32], sizes = [2, 32], strides = [1, 1]} : vector<2x96xf32> to vector<2x32xf32>
    %543 = vector.extract_strided_slice %505 {offsets = [0, 32], sizes = [2, 32], strides = [1, 1]} : vector<2x96xf32> to vector<2x32xf32>
    %544 = arith.addf %542, %543 : vector<2x32xf32>
    %545 = arith.negf %544 : vector<2x32xf32>
    %546 = math.exp %545 : vector<2x32xf32>
    %cst_172 = arith.constant 1.000000e+00 : f32
    %547 = vector.broadcast %cst_172 : f32 to vector<2x32xf32>
    %548 = arith.addf %547, %546 : vector<2x32xf32>
    %549 = arith.divf %547, %548 : vector<2x32xf32>
    %550 = vector.extract_strided_slice %507 {offsets = [0, 64], sizes = [2, 32], strides = [1, 1]} : vector<2x96xf32> to vector<2x32xf32>
    %551 = vector.extract_strided_slice %505 {offsets = [0, 64], sizes = [2, 32], strides = [1, 1]} : vector<2x96xf32> to vector<2x32xf32>
    %552 = arith.mulf %541, %551 : vector<2x32xf32>
    %553 = arith.addf %550, %552 : vector<2x32xf32>
    %554 = math.tanh %553 : vector<2x32xf32>
    %cst_173 = arith.constant 1.000000e+00 : f32
    %555 = vector.broadcast %cst_173 : f32 to vector<2x32xf32>
    %556 = arith.subf %555, %549 : vector<2x32xf32>
    %557 = arith.mulf %556, %554 : vector<2x32xf32>
    %558 = arith.mulf %549, %458 : vector<2x32xf32>
    %559 = arith.addf %557, %558 : vector<2x32xf32>
    %560 = arith.addf %533, %559 : vector<2x32xf32>
    %561 = vector.shape_cast %560 : vector<2x32xf32> to vector<1x2x32xf32>
    %c0_174 = arith.constant 0 : index
    %562 = arith.index_cast %c4_i32 : i32 to index
    %c0_175 = arith.constant 0 : index
    %c0_176 = arith.constant 0 : index
    %563 = vector.load %arg12[%c0_174, %562, %c0_175, %c0_176] : memref<1x8x2x32xf32, #tpu.memory_space<vmem>>, vector<1x1x2x32xf32>
    %564 = vector.shape_cast %563 : vector<1x1x2x32xf32> to vector<1x2x32xf32>
    %565 = vector.shape_cast %561 : vector<1x2x32xf32> to vector<1x1x2x32xf32>
    tpu.vector_store %arg12[%c0_174, %562, %c0_175, %c0_176], %565 {strides = array<i32>} : memref<1x8x2x32xf32, #tpu.memory_space<vmem>>, vector<1x1x2x32xf32>,
    %566 = vector.broadcast %c4_i32 : i32 to vector<8x2xi32>
    %567 = arith.cmpi eq, %16, %566 : vector<8x2xi32>
    %568 = vector.broadcast %3 : vector<1x32xf32> to vector<2x32xf32>
    %569 = arith.mulf %560, %568 : vector<2x32xf32>
    %cst_177 = arith.constant dense<0.000000e+00> : vector<2xf32>
    %570 = vector.multi_reduction <add>, %569, %cst_177 [1] : vector<2x32xf32> to vector<2xf32>
    %571 = vector.shape_cast %570 : vector<2xf32> to vector<1x2xf32>
    %572 = vector.broadcast %571 : vector<1x2xf32> to vector<8x2xf32>
    %573 = arith.select %567, %572, %465 : vector<8x2xi1>, vector<8x2xf32>
    %c0_178 = arith.constant 0 : index
    %c0_179 = arith.constant 0 : index
    %574 = vector.load %arg13[%c0_178, %c0_179] : memref<8x2xf32, #tpu.memory_space<vmem>>, vector<8x2xf32>
    tpu.vector_store %arg13[%c0_178, %c0_179], %573 {strides = array<i32>} : memref<8x2xf32, #tpu.memory_space<vmem>>, vector<8x2xf32>,
    %c5_i32 = arith.constant 5 : i32
    %c0_180 = arith.constant 0 : index
    %575 = arith.index_cast %c5_i32 : i32 to index
    %c0_181 = arith.constant 0 : index
    %c0_182 = arith.constant 0 : index
    %576 = vector.load %arg1[%c0_180, %575, %c0_181, %c0_182] : memref<1x8x2x32xf32, #tpu.memory_space<vmem>>, vector<1x1x2x32xf32>
    %577 = vector.shape_cast %576 : vector<1x1x2x32xf32> to vector<2x32xf32>
    %578 = arith.index_cast %c5_i32 : i32 to index
    %c0_183 = arith.constant 0 : index
    %c0_184 = arith.constant 0 : index
    %579 = vector.load %arg3[%578, %c0_183, %c0_184] : memref<8x8x2xf32, #tpu.memory_space<vmem>>, vector<1x8x2xf32>
    %580 = vector.shape_cast %579 : vector<1x8x2xf32> to vector<8x2xf32>
    %c0_185 = arith.constant 0 : index
    %581 = arith.index_cast %c5_i32 : i32 to index
    %c0_186 = arith.constant 0 : index
    %c0_187 = arith.constant 0 : index
    %582 = vector.load %arg2[%c0_185, %581, %c0_186, %c0_187] : memref<1x8x8x2xf32, #tpu.memory_space<vmem>>, vector<1x1x8x2xf32>
    %583 = vector.shape_cast %582 : vector<1x1x8x2xf32> to vector<8x2xf32>
    %c0_188 = arith.constant 0 : index
    %c0_189 = arith.constant 0 : index
    %584 = vector.load %arg13[%c0_188, %c0_189] : memref<8x2xf32, #tpu.memory_space<vmem>>, vector<8x2xf32>
    %c0_190 = arith.constant 0 : index
    %c0_191 = arith.constant 0 : index
    %c0_192 = arith.constant 0 : index
    %c0_193 = arith.constant 0 : index
    %585 = vector.load %arg12[%c0_190, %c0_191, %c0_192, %c0_193] : memref<1x8x2x32xf32, #tpu.memory_space<vmem>>, vector<1x8x2x32xf32>
    %586 = vector.shape_cast %585 : vector<1x8x2x32xf32> to vector<8x2x32xf32>
    %587 = vector.broadcast %1 : vector<1x32xf32> to vector<2x32xf32>
    %588 = arith.mulf %577, %587 : vector<2x32xf32>
    %cst_194 = arith.constant dense<0.000000e+00> : vector<2xf32>
    %589 = vector.multi_reduction <add>, %588, %cst_194 [1] : vector<2x32xf32> to vector<2xf32>
    %590 = vector.shape_cast %589 : vector<2xf32> to vector<1x2xf32>
    %591 = vector.broadcast %590 : vector<1x2xf32> to vector<8x2xf32>
    %592 = arith.addf %584, %591 : vector<8x2xf32>
    %593 = vector.broadcast %5 : vector<1x1xf32> to vector<8x2xf32>
    %594 = arith.addf %592, %593 : vector<8x2xf32>
    %595 = arith.addf %594, %583 : vector<8x2xf32>
    %cst_195 = arith.constant dense<0xFF800000> : vector<2xf32>
    %596 = vector.multi_reduction <maximumf>, %595, %cst_195 [0] : vector<8x2xf32> to vector<2xf32>
    %597 = vector.shape_cast %596 : vector<2xf32> to vector<1x2xf32>
    %598 = vector.broadcast %597 : vector<1x2xf32> to vector<8x2xf32>
    %599 = arith.subf %595, %598 : vector<8x2xf32>
    %600 = math.exp %599 : vector<8x2xf32>
    %cst_196 = arith.constant dense<0.000000e+00> : vector<2xf32>
    %601 = vector.multi_reduction <add>, %600, %cst_196 [0] : vector<8x2xf32> to vector<2xf32>
    %602 = vector.shape_cast %601 : vector<2xf32> to vector<1x2xf32>
    %603 = vector.broadcast %602 : vector<1x2xf32> to vector<8x2xf32>
    %604 = arith.divf %600, %603 : vector<8x2xf32>
    %605 = arith.mulf %604, %580 : vector<8x2xf32>
    %606 = arith.subf %604, %605 : vector<8x2xf32>
    %607 = vector.shape_cast %605 : vector<8x2xf32> to vector<8x2x1xf32>
    %608 = vector.broadcast %607 : vector<8x2x1xf32> to vector<8x2x32xf32>
    %609 = arith.mulf %608, %586 : vector<8x2x32xf32>
    %cst_197 = arith.constant dense<0.000000e+00> : vector<2x32xf32>
    %610 = vector.multi_reduction <add>, %609, %cst_197 [0] : vector<8x2x32xf32> to vector<2x32xf32>
    %611 = vector.shape_cast %606 : vector<8x2xf32> to vector<8x2x1xf32>
    %612 = vector.broadcast %611 : vector<8x2x1xf32> to vector<8x2x32xf32>
    %613 = arith.mulf %612, %586 : vector<8x2x32xf32>
    %cst_198 = arith.constant dense<0.000000e+00> : vector<2x32xf32>
    %614 = vector.multi_reduction <add>, %613, %cst_198 [0] : vector<8x2x32xf32> to vector<2x32xf32>
    %615 = tpu.concatenate %610, %614 in 1 : vector<2x32xf32>, vector<2x32xf32> -> vector<2x64xf32>
    %cst_199 = arith.constant dense<0.000000e+00> : vector<2x32xf32>
    %616 = tpu.matmul %615, %7, %cst_199 {dimension_numbers = #tpu.dot_dimension_numbers<[1], [0], [0], [1], [0, 0, 1, 1], [], []>} : vector<2x64xf32>, vector<64x32xf32>, vector<2x32xf32> -> vector<2x32xf32>
    %cst_200 = arith.constant dense<0.000000e+00> : vector<2x192xf32>
    %617 = tpu.matmul %577, %9, %cst_200 {dimension_numbers = #tpu.dot_dimension_numbers<[1], [0], [0], [1], [0, 0, 1, 1], [], []>} : vector<2x32xf32>, vector<32x192xf32>, vector<2x192xf32> -> vector<2x192xf32>
    %618 = vector.broadcast %11 : vector<1x192xf32> to vector<2x192xf32>
    %619 = arith.addf %617, %618 : vector<2x192xf32>
    %cst_201 = arith.constant dense<0.000000e+00> : vector<2x192xf32>
    %620 = tpu.matmul %616, %13, %cst_201 {dimension_numbers = #tpu.dot_dimension_numbers<[1], [0], [0], [1], [0, 0, 1, 1], [], []>} : vector<2x32xf32>, vector<32x192xf32>, vector<2x192xf32> -> vector<2x192xf32>
    %621 = vector.broadcast %15 : vector<1x192xf32> to vector<2x192xf32>
    %622 = arith.addf %620, %621 : vector<2x192xf32>
    %623 = vector.extract_strided_slice %619 {offsets = [0, 0], sizes = [2, 96], strides = [1, 1]} : vector<2x192xf32> to vector<2x96xf32>
    %624 = vector.extract_strided_slice %619 {offsets = [0, 96], sizes = [2, 96], strides = [1, 1]} : vector<2x192xf32> to vector<2x96xf32>
    %625 = vector.extract_strided_slice %622 {offsets = [0, 0], sizes = [2, 96], strides = [1, 1]} : vector<2x192xf32> to vector<2x96xf32>
    %626 = vector.extract_strided_slice %622 {offsets = [0, 96], sizes = [2, 96], strides = [1, 1]} : vector<2x192xf32> to vector<2x96xf32>
    %627 = vector.extract_strided_slice %623 {offsets = [0, 0], sizes = [2, 32], strides = [1, 1]} : vector<2x96xf32> to vector<2x32xf32>
    %628 = vector.extract_strided_slice %625 {offsets = [0, 0], sizes = [2, 32], strides = [1, 1]} : vector<2x96xf32> to vector<2x32xf32>
    %629 = arith.addf %627, %628 : vector<2x32xf32>
    %630 = arith.negf %629 : vector<2x32xf32>
    %631 = math.exp %630 : vector<2x32xf32>
    %cst_202 = arith.constant 1.000000e+00 : f32
    %632 = vector.broadcast %cst_202 : f32 to vector<2x32xf32>
    %633 = arith.addf %632, %631 : vector<2x32xf32>
    %634 = arith.divf %632, %633 : vector<2x32xf32>
    %635 = vector.extract_strided_slice %623 {offsets = [0, 32], sizes = [2, 32], strides = [1, 1]} : vector<2x96xf32> to vector<2x32xf32>
    %636 = vector.extract_strided_slice %625 {offsets = [0, 32], sizes = [2, 32], strides = [1, 1]} : vector<2x96xf32> to vector<2x32xf32>
    %637 = arith.addf %635, %636 : vector<2x32xf32>
    %638 = arith.negf %637 : vector<2x32xf32>
    %639 = math.exp %638 : vector<2x32xf32>
    %cst_203 = arith.constant 1.000000e+00 : f32
    %640 = vector.broadcast %cst_203 : f32 to vector<2x32xf32>
    %641 = arith.addf %640, %639 : vector<2x32xf32>
    %642 = arith.divf %640, %641 : vector<2x32xf32>
    %643 = vector.extract_strided_slice %623 {offsets = [0, 64], sizes = [2, 32], strides = [1, 1]} : vector<2x96xf32> to vector<2x32xf32>
    %644 = vector.extract_strided_slice %625 {offsets = [0, 64], sizes = [2, 32], strides = [1, 1]} : vector<2x96xf32> to vector<2x32xf32>
    %645 = arith.mulf %634, %644 : vector<2x32xf32>
    %646 = arith.addf %643, %645 : vector<2x32xf32>
    %647 = math.tanh %646 : vector<2x32xf32>
    %cst_204 = arith.constant 1.000000e+00 : f32
    %648 = vector.broadcast %cst_204 : f32 to vector<2x32xf32>
    %649 = arith.subf %648, %642 : vector<2x32xf32>
    %650 = arith.mulf %649, %647 : vector<2x32xf32>
    %651 = arith.mulf %642, %616 : vector<2x32xf32>
    %652 = arith.addf %650, %651 : vector<2x32xf32>
    %653 = vector.extract_strided_slice %626 {offsets = [0, 0], sizes = [2, 32], strides = [1, 1]} : vector<2x96xf32> to vector<2x32xf32>
    %654 = vector.extract_strided_slice %624 {offsets = [0, 0], sizes = [2, 32], strides = [1, 1]} : vector<2x96xf32> to vector<2x32xf32>
    %655 = arith.addf %653, %654 : vector<2x32xf32>
    %656 = arith.negf %655 : vector<2x32xf32>
    %657 = math.exp %656 : vector<2x32xf32>
    %cst_205 = arith.constant 1.000000e+00 : f32
    %658 = vector.broadcast %cst_205 : f32 to vector<2x32xf32>
    %659 = arith.addf %658, %657 : vector<2x32xf32>
    %660 = arith.divf %658, %659 : vector<2x32xf32>
    %661 = vector.extract_strided_slice %626 {offsets = [0, 32], sizes = [2, 32], strides = [1, 1]} : vector<2x96xf32> to vector<2x32xf32>
    %662 = vector.extract_strided_slice %624 {offsets = [0, 32], sizes = [2, 32], strides = [1, 1]} : vector<2x96xf32> to vector<2x32xf32>
    %663 = arith.addf %661, %662 : vector<2x32xf32>
    %664 = arith.negf %663 : vector<2x32xf32>
    %665 = math.exp %664 : vector<2x32xf32>
    %cst_206 = arith.constant 1.000000e+00 : f32
    %666 = vector.broadcast %cst_206 : f32 to vector<2x32xf32>
    %667 = arith.addf %666, %665 : vector<2x32xf32>
    %668 = arith.divf %666, %667 : vector<2x32xf32>
    %669 = vector.extract_strided_slice %626 {offsets = [0, 64], sizes = [2, 32], strides = [1, 1]} : vector<2x96xf32> to vector<2x32xf32>
    %670 = vector.extract_strided_slice %624 {offsets = [0, 64], sizes = [2, 32], strides = [1, 1]} : vector<2x96xf32> to vector<2x32xf32>
    %671 = arith.mulf %660, %670 : vector<2x32xf32>
    %672 = arith.addf %669, %671 : vector<2x32xf32>
    %673 = math.tanh %672 : vector<2x32xf32>
    %cst_207 = arith.constant 1.000000e+00 : f32
    %674 = vector.broadcast %cst_207 : f32 to vector<2x32xf32>
    %675 = arith.subf %674, %668 : vector<2x32xf32>
    %676 = arith.mulf %675, %673 : vector<2x32xf32>
    %677 = arith.mulf %668, %577 : vector<2x32xf32>
    %678 = arith.addf %676, %677 : vector<2x32xf32>
    %679 = arith.addf %652, %678 : vector<2x32xf32>
    %680 = vector.shape_cast %679 : vector<2x32xf32> to vector<1x2x32xf32>
    %c0_208 = arith.constant 0 : index
    %681 = arith.index_cast %c5_i32 : i32 to index
    %c0_209 = arith.constant 0 : index
    %c0_210 = arith.constant 0 : index
    %682 = vector.load %arg12[%c0_208, %681, %c0_209, %c0_210] : memref<1x8x2x32xf32, #tpu.memory_space<vmem>>, vector<1x1x2x32xf32>
    %683 = vector.shape_cast %682 : vector<1x1x2x32xf32> to vector<1x2x32xf32>
    %684 = vector.shape_cast %680 : vector<1x2x32xf32> to vector<1x1x2x32xf32>
    tpu.vector_store %arg12[%c0_208, %681, %c0_209, %c0_210], %684 {strides = array<i32>} : memref<1x8x2x32xf32, #tpu.memory_space<vmem>>, vector<1x1x2x32xf32>,
    %685 = vector.broadcast %c5_i32 : i32 to vector<8x2xi32>
    %686 = arith.cmpi eq, %16, %685 : vector<8x2xi32>
    %687 = vector.broadcast %3 : vector<1x32xf32> to vector<2x32xf32>
    %688 = arith.mulf %679, %687 : vector<2x32xf32>
    %cst_211 = arith.constant dense<0.000000e+00> : vector<2xf32>
    %689 = vector.multi_reduction <add>, %688, %cst_211 [1] : vector<2x32xf32> to vector<2xf32>
    %690 = vector.shape_cast %689 : vector<2xf32> to vector<1x2xf32>
    %691 = vector.broadcast %690 : vector<1x2xf32> to vector<8x2xf32>
    %692 = arith.select %686, %691, %584 : vector<8x2xi1>, vector<8x2xf32>
    %c0_212 = arith.constant 0 : index
    %c0_213 = arith.constant 0 : index
    %693 = vector.load %arg13[%c0_212, %c0_213] : memref<8x2xf32, #tpu.memory_space<vmem>>, vector<8x2xf32>
    tpu.vector_store %arg13[%c0_212, %c0_213], %692 {strides = array<i32>} : memref<8x2xf32, #tpu.memory_space<vmem>>, vector<8x2xf32>,
    %c6_i32 = arith.constant 6 : i32
    %c0_214 = arith.constant 0 : index
    %694 = arith.index_cast %c6_i32 : i32 to index
    %c0_215 = arith.constant 0 : index
    %c0_216 = arith.constant 0 : index
    %695 = vector.load %arg1[%c0_214, %694, %c0_215, %c0_216] : memref<1x8x2x32xf32, #tpu.memory_space<vmem>>, vector<1x1x2x32xf32>
    %696 = vector.shape_cast %695 : vector<1x1x2x32xf32> to vector<2x32xf32>
    %697 = arith.index_cast %c6_i32 : i32 to index
    %c0_217 = arith.constant 0 : index
    %c0_218 = arith.constant 0 : index
    %698 = vector.load %arg3[%697, %c0_217, %c0_218] : memref<8x8x2xf32, #tpu.memory_space<vmem>>, vector<1x8x2xf32>
    %699 = vector.shape_cast %698 : vector<1x8x2xf32> to vector<8x2xf32>
    %c0_219 = arith.constant 0 : index
    %700 = arith.index_cast %c6_i32 : i32 to index
    %c0_220 = arith.constant 0 : index
    %c0_221 = arith.constant 0 : index
    %701 = vector.load %arg2[%c0_219, %700, %c0_220, %c0_221] : memref<1x8x8x2xf32, #tpu.memory_space<vmem>>, vector<1x1x8x2xf32>
    %702 = vector.shape_cast %701 : vector<1x1x8x2xf32> to vector<8x2xf32>
    %c0_222 = arith.constant 0 : index
    %c0_223 = arith.constant 0 : index
    %703 = vector.load %arg13[%c0_222, %c0_223] : memref<8x2xf32, #tpu.memory_space<vmem>>, vector<8x2xf32>
    %c0_224 = arith.constant 0 : index
    %c0_225 = arith.constant 0 : index
    %c0_226 = arith.constant 0 : index
    %c0_227 = arith.constant 0 : index
    %704 = vector.load %arg12[%c0_224, %c0_225, %c0_226, %c0_227] : memref<1x8x2x32xf32, #tpu.memory_space<vmem>>, vector<1x8x2x32xf32>
    %705 = vector.shape_cast %704 : vector<1x8x2x32xf32> to vector<8x2x32xf32>
    %706 = vector.broadcast %1 : vector<1x32xf32> to vector<2x32xf32>
    %707 = arith.mulf %696, %706 : vector<2x32xf32>
    %cst_228 = arith.constant dense<0.000000e+00> : vector<2xf32>
    %708 = vector.multi_reduction <add>, %707, %cst_228 [1] : vector<2x32xf32> to vector<2xf32>
    %709 = vector.shape_cast %708 : vector<2xf32> to vector<1x2xf32>
    %710 = vector.broadcast %709 : vector<1x2xf32> to vector<8x2xf32>
    %711 = arith.addf %703, %710 : vector<8x2xf32>
    %712 = vector.broadcast %5 : vector<1x1xf32> to vector<8x2xf32>
    %713 = arith.addf %711, %712 : vector<8x2xf32>
    %714 = arith.addf %713, %702 : vector<8x2xf32>
    %cst_229 = arith.constant dense<0xFF800000> : vector<2xf32>
    %715 = vector.multi_reduction <maximumf>, %714, %cst_229 [0] : vector<8x2xf32> to vector<2xf32>
    %716 = vector.shape_cast %715 : vector<2xf32> to vector<1x2xf32>
    %717 = vector.broadcast %716 : vector<1x2xf32> to vector<8x2xf32>
    %718 = arith.subf %714, %717 : vector<8x2xf32>
    %719 = math.exp %718 : vector<8x2xf32>
    %cst_230 = arith.constant dense<0.000000e+00> : vector<2xf32>
    %720 = vector.multi_reduction <add>, %719, %cst_230 [0] : vector<8x2xf32> to vector<2xf32>
    %721 = vector.shape_cast %720 : vector<2xf32> to vector<1x2xf32>
    %722 = vector.broadcast %721 : vector<1x2xf32> to vector<8x2xf32>
    %723 = arith.divf %719, %722 : vector<8x2xf32>
    %724 = arith.mulf %723, %699 : vector<8x2xf32>
    %725 = arith.subf %723, %724 : vector<8x2xf32>
    %726 = vector.shape_cast %724 : vector<8x2xf32> to vector<8x2x1xf32>
    %727 = vector.broadcast %726 : vector<8x2x1xf32> to vector<8x2x32xf32>
    %728 = arith.mulf %727, %705 : vector<8x2x32xf32>
    %cst_231 = arith.constant dense<0.000000e+00> : vector<2x32xf32>
    %729 = vector.multi_reduction <add>, %728, %cst_231 [0] : vector<8x2x32xf32> to vector<2x32xf32>
    %730 = vector.shape_cast %725 : vector<8x2xf32> to vector<8x2x1xf32>
    %731 = vector.broadcast %730 : vector<8x2x1xf32> to vector<8x2x32xf32>
    %732 = arith.mulf %731, %705 : vector<8x2x32xf32>
    %cst_232 = arith.constant dense<0.000000e+00> : vector<2x32xf32>
    %733 = vector.multi_reduction <add>, %732, %cst_232 [0] : vector<8x2x32xf32> to vector<2x32xf32>
    %734 = tpu.concatenate %729, %733 in 1 : vector<2x32xf32>, vector<2x32xf32> -> vector<2x64xf32>
    %cst_233 = arith.constant dense<0.000000e+00> : vector<2x32xf32>
    %735 = tpu.matmul %734, %7, %cst_233 {dimension_numbers = #tpu.dot_dimension_numbers<[1], [0], [0], [1], [0, 0, 1, 1], [], []>} : vector<2x64xf32>, vector<64x32xf32>, vector<2x32xf32> -> vector<2x32xf32>
    %cst_234 = arith.constant dense<0.000000e+00> : vector<2x192xf32>
    %736 = tpu.matmul %696, %9, %cst_234 {dimension_numbers = #tpu.dot_dimension_numbers<[1], [0], [0], [1], [0, 0, 1, 1], [], []>} : vector<2x32xf32>, vector<32x192xf32>, vector<2x192xf32> -> vector<2x192xf32>
    %737 = vector.broadcast %11 : vector<1x192xf32> to vector<2x192xf32>
    %738 = arith.addf %736, %737 : vector<2x192xf32>
    %cst_235 = arith.constant dense<0.000000e+00> : vector<2x192xf32>
    %739 = tpu.matmul %735, %13, %cst_235 {dimension_numbers = #tpu.dot_dimension_numbers<[1], [0], [0], [1], [0, 0, 1, 1], [], []>} : vector<2x32xf32>, vector<32x192xf32>, vector<2x192xf32> -> vector<2x192xf32>
    %740 = vector.broadcast %15 : vector<1x192xf32> to vector<2x192xf32>
    %741 = arith.addf %739, %740 : vector<2x192xf32>
    %742 = vector.extract_strided_slice %738 {offsets = [0, 0], sizes = [2, 96], strides = [1, 1]} : vector<2x192xf32> to vector<2x96xf32>
    %743 = vector.extract_strided_slice %738 {offsets = [0, 96], sizes = [2, 96], strides = [1, 1]} : vector<2x192xf32> to vector<2x96xf32>
    %744 = vector.extract_strided_slice %741 {offsets = [0, 0], sizes = [2, 96], strides = [1, 1]} : vector<2x192xf32> to vector<2x96xf32>
    %745 = vector.extract_strided_slice %741 {offsets = [0, 96], sizes = [2, 96], strides = [1, 1]} : vector<2x192xf32> to vector<2x96xf32>
    %746 = vector.extract_strided_slice %742 {offsets = [0, 0], sizes = [2, 32], strides = [1, 1]} : vector<2x96xf32> to vector<2x32xf32>
    %747 = vector.extract_strided_slice %744 {offsets = [0, 0], sizes = [2, 32], strides = [1, 1]} : vector<2x96xf32> to vector<2x32xf32>
    %748 = arith.addf %746, %747 : vector<2x32xf32>
    %749 = arith.negf %748 : vector<2x32xf32>
    %750 = math.exp %749 : vector<2x32xf32>
    %cst_236 = arith.constant 1.000000e+00 : f32
    %751 = vector.broadcast %cst_236 : f32 to vector<2x32xf32>
    %752 = arith.addf %751, %750 : vector<2x32xf32>
    %753 = arith.divf %751, %752 : vector<2x32xf32>
    %754 = vector.extract_strided_slice %742 {offsets = [0, 32], sizes = [2, 32], strides = [1, 1]} : vector<2x96xf32> to vector<2x32xf32>
    %755 = vector.extract_strided_slice %744 {offsets = [0, 32], sizes = [2, 32], strides = [1, 1]} : vector<2x96xf32> to vector<2x32xf32>
    %756 = arith.addf %754, %755 : vector<2x32xf32>
    %757 = arith.negf %756 : vector<2x32xf32>
    %758 = math.exp %757 : vector<2x32xf32>
    %cst_237 = arith.constant 1.000000e+00 : f32
    %759 = vector.broadcast %cst_237 : f32 to vector<2x32xf32>
    %760 = arith.addf %759, %758 : vector<2x32xf32>
    %761 = arith.divf %759, %760 : vector<2x32xf32>
    %762 = vector.extract_strided_slice %742 {offsets = [0, 64], sizes = [2, 32], strides = [1, 1]} : vector<2x96xf32> to vector<2x32xf32>
    %763 = vector.extract_strided_slice %744 {offsets = [0, 64], sizes = [2, 32], strides = [1, 1]} : vector<2x96xf32> to vector<2x32xf32>
    %764 = arith.mulf %753, %763 : vector<2x32xf32>
    %765 = arith.addf %762, %764 : vector<2x32xf32>
    %766 = math.tanh %765 : vector<2x32xf32>
    %cst_238 = arith.constant 1.000000e+00 : f32
    %767 = vector.broadcast %cst_238 : f32 to vector<2x32xf32>
    %768 = arith.subf %767, %761 : vector<2x32xf32>
    %769 = arith.mulf %768, %766 : vector<2x32xf32>
    %770 = arith.mulf %761, %735 : vector<2x32xf32>
    %771 = arith.addf %769, %770 : vector<2x32xf32>
    %772 = vector.extract_strided_slice %745 {offsets = [0, 0], sizes = [2, 32], strides = [1, 1]} : vector<2x96xf32> to vector<2x32xf32>
    %773 = vector.extract_strided_slice %743 {offsets = [0, 0], sizes = [2, 32], strides = [1, 1]} : vector<2x96xf32> to vector<2x32xf32>
    %774 = arith.addf %772, %773 : vector<2x32xf32>
    %775 = arith.negf %774 : vector<2x32xf32>
    %776 = math.exp %775 : vector<2x32xf32>
    %cst_239 = arith.constant 1.000000e+00 : f32
    %777 = vector.broadcast %cst_239 : f32 to vector<2x32xf32>
    %778 = arith.addf %777, %776 : vector<2x32xf32>
    %779 = arith.divf %777, %778 : vector<2x32xf32>
    %780 = vector.extract_strided_slice %745 {offsets = [0, 32], sizes = [2, 32], strides = [1, 1]} : vector<2x96xf32> to vector<2x32xf32>
    %781 = vector.extract_strided_slice %743 {offsets = [0, 32], sizes = [2, 32], strides = [1, 1]} : vector<2x96xf32> to vector<2x32xf32>
    %782 = arith.addf %780, %781 : vector<2x32xf32>
    %783 = arith.negf %782 : vector<2x32xf32>
    %784 = math.exp %783 : vector<2x32xf32>
    %cst_240 = arith.constant 1.000000e+00 : f32
    %785 = vector.broadcast %cst_240 : f32 to vector<2x32xf32>
    %786 = arith.addf %785, %784 : vector<2x32xf32>
    %787 = arith.divf %785, %786 : vector<2x32xf32>
    %788 = vector.extract_strided_slice %745 {offsets = [0, 64], sizes = [2, 32], strides = [1, 1]} : vector<2x96xf32> to vector<2x32xf32>
    %789 = vector.extract_strided_slice %743 {offsets = [0, 64], sizes = [2, 32], strides = [1, 1]} : vector<2x96xf32> to vector<2x32xf32>
    %790 = arith.mulf %779, %789 : vector<2x32xf32>
    %791 = arith.addf %788, %790 : vector<2x32xf32>
    %792 = math.tanh %791 : vector<2x32xf32>
    %cst_241 = arith.constant 1.000000e+00 : f32
    %793 = vector.broadcast %cst_241 : f32 to vector<2x32xf32>
    %794 = arith.subf %793, %787 : vector<2x32xf32>
    %795 = arith.mulf %794, %792 : vector<2x32xf32>
    %796 = arith.mulf %787, %696 : vector<2x32xf32>
    %797 = arith.addf %795, %796 : vector<2x32xf32>
    %798 = arith.addf %771, %797 : vector<2x32xf32>
    %799 = vector.shape_cast %798 : vector<2x32xf32> to vector<1x2x32xf32>
    %c0_242 = arith.constant 0 : index
    %800 = arith.index_cast %c6_i32 : i32 to index
    %c0_243 = arith.constant 0 : index
    %c0_244 = arith.constant 0 : index
    %801 = vector.load %arg12[%c0_242, %800, %c0_243, %c0_244] : memref<1x8x2x32xf32, #tpu.memory_space<vmem>>, vector<1x1x2x32xf32>
    %802 = vector.shape_cast %801 : vector<1x1x2x32xf32> to vector<1x2x32xf32>
    %803 = vector.shape_cast %799 : vector<1x2x32xf32> to vector<1x1x2x32xf32>
    tpu.vector_store %arg12[%c0_242, %800, %c0_243, %c0_244], %803 {strides = array<i32>} : memref<1x8x2x32xf32, #tpu.memory_space<vmem>>, vector<1x1x2x32xf32>,
    %804 = vector.broadcast %c6_i32 : i32 to vector<8x2xi32>
    %805 = arith.cmpi eq, %16, %804 : vector<8x2xi32>
    %806 = vector.broadcast %3 : vector<1x32xf32> to vector<2x32xf32>
    %807 = arith.mulf %798, %806 : vector<2x32xf32>
    %cst_245 = arith.constant dense<0.000000e+00> : vector<2xf32>
    %808 = vector.multi_reduction <add>, %807, %cst_245 [1] : vector<2x32xf32> to vector<2xf32>
    %809 = vector.shape_cast %808 : vector<2xf32> to vector<1x2xf32>
    %810 = vector.broadcast %809 : vector<1x2xf32> to vector<8x2xf32>
    %811 = arith.select %805, %810, %703 : vector<8x2xi1>, vector<8x2xf32>
    %c0_246 = arith.constant 0 : index
    %c0_247 = arith.constant 0 : index
    %812 = vector.load %arg13[%c0_246, %c0_247] : memref<8x2xf32, #tpu.memory_space<vmem>>, vector<8x2xf32>
    tpu.vector_store %arg13[%c0_246, %c0_247], %811 {strides = array<i32>} : memref<8x2xf32, #tpu.memory_space<vmem>>, vector<8x2xf32>,
    %c7_i32 = arith.constant 7 : i32
    %c0_248 = arith.constant 0 : index
    %813 = arith.index_cast %c7_i32 : i32 to index
    %c0_249 = arith.constant 0 : index
    %c0_250 = arith.constant 0 : index
    %814 = vector.load %arg1[%c0_248, %813, %c0_249, %c0_250] : memref<1x8x2x32xf32, #tpu.memory_space<vmem>>, vector<1x1x2x32xf32>
    %815 = vector.shape_cast %814 : vector<1x1x2x32xf32> to vector<2x32xf32>
    %816 = arith.index_cast %c7_i32 : i32 to index
    %c0_251 = arith.constant 0 : index
    %c0_252 = arith.constant 0 : index
    %817 = vector.load %arg3[%816, %c0_251, %c0_252] : memref<8x8x2xf32, #tpu.memory_space<vmem>>, vector<1x8x2xf32>
    %818 = vector.shape_cast %817 : vector<1x8x2xf32> to vector<8x2xf32>
    %c0_253 = arith.constant 0 : index
    %819 = arith.index_cast %c7_i32 : i32 to index
    %c0_254 = arith.constant 0 : index
    %c0_255 = arith.constant 0 : index
    %820 = vector.load %arg2[%c0_253, %819, %c0_254, %c0_255] : memref<1x8x8x2xf32, #tpu.memory_space<vmem>>, vector<1x1x8x2xf32>
    %821 = vector.shape_cast %820 : vector<1x1x8x2xf32> to vector<8x2xf32>
    %c0_256 = arith.constant 0 : index
    %c0_257 = arith.constant 0 : index
    %822 = vector.load %arg13[%c0_256, %c0_257] : memref<8x2xf32, #tpu.memory_space<vmem>>, vector<8x2xf32>
    %c0_258 = arith.constant 0 : index
    %c0_259 = arith.constant 0 : index
    %c0_260 = arith.constant 0 : index
    %c0_261 = arith.constant 0 : index
    %823 = vector.load %arg12[%c0_258, %c0_259, %c0_260, %c0_261] : memref<1x8x2x32xf32, #tpu.memory_space<vmem>>, vector<1x8x2x32xf32>
    %824 = vector.shape_cast %823 : vector<1x8x2x32xf32> to vector<8x2x32xf32>
    %825 = vector.broadcast %1 : vector<1x32xf32> to vector<2x32xf32>
    %826 = arith.mulf %815, %825 : vector<2x32xf32>
    %cst_262 = arith.constant dense<0.000000e+00> : vector<2xf32>
    %827 = vector.multi_reduction <add>, %826, %cst_262 [1] : vector<2x32xf32> to vector<2xf32>
    %828 = vector.shape_cast %827 : vector<2xf32> to vector<1x2xf32>
    %829 = vector.broadcast %828 : vector<1x2xf32> to vector<8x2xf32>
    %830 = arith.addf %822, %829 : vector<8x2xf32>
    %831 = vector.broadcast %5 : vector<1x1xf32> to vector<8x2xf32>
    %832 = arith.addf %830, %831 : vector<8x2xf32>
    %833 = arith.addf %832, %821 : vector<8x2xf32>
    %cst_263 = arith.constant dense<0xFF800000> : vector<2xf32>
    %834 = vector.multi_reduction <maximumf>, %833, %cst_263 [0] : vector<8x2xf32> to vector<2xf32>
    %835 = vector.shape_cast %834 : vector<2xf32> to vector<1x2xf32>
    %836 = vector.broadcast %835 : vector<1x2xf32> to vector<8x2xf32>
    %837 = arith.subf %833, %836 : vector<8x2xf32>
    %838 = math.exp %837 : vector<8x2xf32>
    %cst_264 = arith.constant dense<0.000000e+00> : vector<2xf32>
    %839 = vector.multi_reduction <add>, %838, %cst_264 [0] : vector<8x2xf32> to vector<2xf32>
    %840 = vector.shape_cast %839 : vector<2xf32> to vector<1x2xf32>
    %841 = vector.broadcast %840 : vector<1x2xf32> to vector<8x2xf32>
    %842 = arith.divf %838, %841 : vector<8x2xf32>
    %843 = arith.mulf %842, %818 : vector<8x2xf32>
    %844 = arith.subf %842, %843 : vector<8x2xf32>
    %845 = vector.shape_cast %843 : vector<8x2xf32> to vector<8x2x1xf32>
    %846 = vector.broadcast %845 : vector<8x2x1xf32> to vector<8x2x32xf32>
    %847 = arith.mulf %846, %824 : vector<8x2x32xf32>
    %cst_265 = arith.constant dense<0.000000e+00> : vector<2x32xf32>
    %848 = vector.multi_reduction <add>, %847, %cst_265 [0] : vector<8x2x32xf32> to vector<2x32xf32>
    %849 = vector.shape_cast %844 : vector<8x2xf32> to vector<8x2x1xf32>
    %850 = vector.broadcast %849 : vector<8x2x1xf32> to vector<8x2x32xf32>
    %851 = arith.mulf %850, %824 : vector<8x2x32xf32>
    %cst_266 = arith.constant dense<0.000000e+00> : vector<2x32xf32>
    %852 = vector.multi_reduction <add>, %851, %cst_266 [0] : vector<8x2x32xf32> to vector<2x32xf32>
    %853 = tpu.concatenate %848, %852 in 1 : vector<2x32xf32>, vector<2x32xf32> -> vector<2x64xf32>
    %cst_267 = arith.constant dense<0.000000e+00> : vector<2x32xf32>
    %854 = tpu.matmul %853, %7, %cst_267 {dimension_numbers = #tpu.dot_dimension_numbers<[1], [0], [0], [1], [0, 0, 1, 1], [], []>} : vector<2x64xf32>, vector<64x32xf32>, vector<2x32xf32> -> vector<2x32xf32>
    %cst_268 = arith.constant dense<0.000000e+00> : vector<2x192xf32>
    %855 = tpu.matmul %815, %9, %cst_268 {dimension_numbers = #tpu.dot_dimension_numbers<[1], [0], [0], [1], [0, 0, 1, 1], [], []>} : vector<2x32xf32>, vector<32x192xf32>, vector<2x192xf32> -> vector<2x192xf32>
    %856 = vector.broadcast %11 : vector<1x192xf32> to vector<2x192xf32>
    %857 = arith.addf %855, %856 : vector<2x192xf32>
    %cst_269 = arith.constant dense<0.000000e+00> : vector<2x192xf32>
    %858 = tpu.matmul %854, %13, %cst_269 {dimension_numbers = #tpu.dot_dimension_numbers<[1], [0], [0], [1], [0, 0, 1, 1], [], []>} : vector<2x32xf32>, vector<32x192xf32>, vector<2x192xf32> -> vector<2x192xf32>
    %859 = vector.broadcast %15 : vector<1x192xf32> to vector<2x192xf32>
    %860 = arith.addf %858, %859 : vector<2x192xf32>
    %861 = vector.extract_strided_slice %857 {offsets = [0, 0], sizes = [2, 96], strides = [1, 1]} : vector<2x192xf32> to vector<2x96xf32>
    %862 = vector.extract_strided_slice %857 {offsets = [0, 96], sizes = [2, 96], strides = [1, 1]} : vector<2x192xf32> to vector<2x96xf32>
    %863 = vector.extract_strided_slice %860 {offsets = [0, 0], sizes = [2, 96], strides = [1, 1]} : vector<2x192xf32> to vector<2x96xf32>
    %864 = vector.extract_strided_slice %860 {offsets = [0, 96], sizes = [2, 96], strides = [1, 1]} : vector<2x192xf32> to vector<2x96xf32>
    %865 = vector.extract_strided_slice %861 {offsets = [0, 0], sizes = [2, 32], strides = [1, 1]} : vector<2x96xf32> to vector<2x32xf32>
    %866 = vector.extract_strided_slice %863 {offsets = [0, 0], sizes = [2, 32], strides = [1, 1]} : vector<2x96xf32> to vector<2x32xf32>
    %867 = arith.addf %865, %866 : vector<2x32xf32>
    %868 = arith.negf %867 : vector<2x32xf32>
    %869 = math.exp %868 : vector<2x32xf32>
    %cst_270 = arith.constant 1.000000e+00 : f32
    %870 = vector.broadcast %cst_270 : f32 to vector<2x32xf32>
    %871 = arith.addf %870, %869 : vector<2x32xf32>
    %872 = arith.divf %870, %871 : vector<2x32xf32>
    %873 = vector.extract_strided_slice %861 {offsets = [0, 32], sizes = [2, 32], strides = [1, 1]} : vector<2x96xf32> to vector<2x32xf32>
    %874 = vector.extract_strided_slice %863 {offsets = [0, 32], sizes = [2, 32], strides = [1, 1]} : vector<2x96xf32> to vector<2x32xf32>
    %875 = arith.addf %873, %874 : vector<2x32xf32>
    %876 = arith.negf %875 : vector<2x32xf32>
    %877 = math.exp %876 : vector<2x32xf32>
    %cst_271 = arith.constant 1.000000e+00 : f32
    %878 = vector.broadcast %cst_271 : f32 to vector<2x32xf32>
    %879 = arith.addf %878, %877 : vector<2x32xf32>
    %880 = arith.divf %878, %879 : vector<2x32xf32>
    %881 = vector.extract_strided_slice %861 {offsets = [0, 64], sizes = [2, 32], strides = [1, 1]} : vector<2x96xf32> to vector<2x32xf32>
    %882 = vector.extract_strided_slice %863 {offsets = [0, 64], sizes = [2, 32], strides = [1, 1]} : vector<2x96xf32> to vector<2x32xf32>
    %883 = arith.mulf %872, %882 : vector<2x32xf32>
    %884 = arith.addf %881, %883 : vector<2x32xf32>
    %885 = math.tanh %884 : vector<2x32xf32>
    %cst_272 = arith.constant 1.000000e+00 : f32
    %886 = vector.broadcast %cst_272 : f32 to vector<2x32xf32>
    %887 = arith.subf %886, %880 : vector<2x32xf32>
    %888 = arith.mulf %887, %885 : vector<2x32xf32>
    %889 = arith.mulf %880, %854 : vector<2x32xf32>
    %890 = arith.addf %888, %889 : vector<2x32xf32>
    %891 = vector.extract_strided_slice %864 {offsets = [0, 0], sizes = [2, 32], strides = [1, 1]} : vector<2x96xf32> to vector<2x32xf32>
    %892 = vector.extract_strided_slice %862 {offsets = [0, 0], sizes = [2, 32], strides = [1, 1]} : vector<2x96xf32> to vector<2x32xf32>
    %893 = arith.addf %891, %892 : vector<2x32xf32>
    %894 = arith.negf %893 : vector<2x32xf32>
    %895 = math.exp %894 : vector<2x32xf32>
    %cst_273 = arith.constant 1.000000e+00 : f32
    %896 = vector.broadcast %cst_273 : f32 to vector<2x32xf32>
    %897 = arith.addf %896, %895 : vector<2x32xf32>
    %898 = arith.divf %896, %897 : vector<2x32xf32>
    %899 = vector.extract_strided_slice %864 {offsets = [0, 32], sizes = [2, 32], strides = [1, 1]} : vector<2x96xf32> to vector<2x32xf32>
    %900 = vector.extract_strided_slice %862 {offsets = [0, 32], sizes = [2, 32], strides = [1, 1]} : vector<2x96xf32> to vector<2x32xf32>
    %901 = arith.addf %899, %900 : vector<2x32xf32>
    %902 = arith.negf %901 : vector<2x32xf32>
    %903 = math.exp %902 : vector<2x32xf32>
    %cst_274 = arith.constant 1.000000e+00 : f32
    %904 = vector.broadcast %cst_274 : f32 to vector<2x32xf32>
    %905 = arith.addf %904, %903 : vector<2x32xf32>
    %906 = arith.divf %904, %905 : vector<2x32xf32>
    %907 = vector.extract_strided_slice %864 {offsets = [0, 64], sizes = [2, 32], strides = [1, 1]} : vector<2x96xf32> to vector<2x32xf32>
    %908 = vector.extract_strided_slice %862 {offsets = [0, 64], sizes = [2, 32], strides = [1, 1]} : vector<2x96xf32> to vector<2x32xf32>
    %909 = arith.mulf %898, %908 : vector<2x32xf32>
    %910 = arith.addf %907, %909 : vector<2x32xf32>
    %911 = math.tanh %910 : vector<2x32xf32>
    %cst_275 = arith.constant 1.000000e+00 : f32
    %912 = vector.broadcast %cst_275 : f32 to vector<2x32xf32>
    %913 = arith.subf %912, %906 : vector<2x32xf32>
    %914 = arith.mulf %913, %911 : vector<2x32xf32>
    %915 = arith.mulf %906, %815 : vector<2x32xf32>
    %916 = arith.addf %914, %915 : vector<2x32xf32>
    %917 = arith.addf %890, %916 : vector<2x32xf32>
    %918 = vector.shape_cast %917 : vector<2x32xf32> to vector<1x2x32xf32>
    %c0_276 = arith.constant 0 : index
    %919 = arith.index_cast %c7_i32 : i32 to index
    %c0_277 = arith.constant 0 : index
    %c0_278 = arith.constant 0 : index
    %920 = vector.load %arg12[%c0_276, %919, %c0_277, %c0_278] : memref<1x8x2x32xf32, #tpu.memory_space<vmem>>, vector<1x1x2x32xf32>
    %921 = vector.shape_cast %920 : vector<1x1x2x32xf32> to vector<1x2x32xf32>
    %922 = vector.shape_cast %918 : vector<1x2x32xf32> to vector<1x1x2x32xf32>
    tpu.vector_store %arg12[%c0_276, %919, %c0_277, %c0_278], %922 {strides = array<i32>} : memref<1x8x2x32xf32, #tpu.memory_space<vmem>>, vector<1x1x2x32xf32>,
    %923 = vector.broadcast %c7_i32 : i32 to vector<8x2xi32>
    %924 = arith.cmpi eq, %16, %923 : vector<8x2xi32>
    %925 = vector.broadcast %3 : vector<1x32xf32> to vector<2x32xf32>
    %926 = arith.mulf %917, %925 : vector<2x32xf32>
    %cst_279 = arith.constant dense<0.000000e+00> : vector<2xf32>
    %927 = vector.multi_reduction <add>, %926, %cst_279 [1] : vector<2x32xf32> to vector<2xf32>
    %928 = vector.shape_cast %927 : vector<2xf32> to vector<1x2xf32>
    %929 = vector.broadcast %928 : vector<1x2xf32> to vector<8x2xf32>
    %930 = arith.select %924, %929, %822 : vector<8x2xi1>, vector<8x2xf32>
    %c0_280 = arith.constant 0 : index
    %c0_281 = arith.constant 0 : index
    %931 = vector.load %arg13[%c0_280, %c0_281] : memref<8x2xf32, #tpu.memory_space<vmem>>, vector<8x2xf32>
    tpu.vector_store %arg13[%c0_280, %c0_281], %930 {strides = array<i32>} : memref<8x2xf32, #tpu.memory_space<vmem>>, vector<8x2xf32>,
    %c7_i32_282 = arith.constant 7 : i32
    return
  }
  func.func @transform_0(%arg0: i32) -> (i32, i32, i32, i32) {
    %c0_i32 = arith.constant 0 : i32
    %c0_i32_0 = arith.constant 0 : i32
    %c0_i32_1 = arith.constant 0 : i32
    %c0_i32_2 = arith.constant 0 : i32
    return %arg0, %c0_i32, %c0_i32_0, %c0_i32_1 : i32, i32, i32, i32
  }
  func.func @transform_1(%arg0: i32) -> (i32, i32, i32, i32) {
    %c0_i32 = arith.constant 0 : i32
    %c0_i32_0 = arith.constant 0 : i32
    %c0_i32_1 = arith.constant 0 : i32
    %c0_i32_2 = arith.constant 0 : i32
    return %arg0, %c0_i32, %c0_i32_0, %c0_i32_1 : i32, i32, i32, i32
  }
  func.func @transform_2(%arg0: i32) -> (i32, i32, i32) {
    %c0_i32 = arith.constant 0 : i32
    %c0_i32_0 = arith.constant 0 : i32
    %c0_i32_1 = arith.constant 0 : i32
    %c0_i32_2 = arith.constant 0 : i32
    return %c0_i32, %c0_i32_0, %c0_i32_1 : i32, i32, i32
  }
  func.func @transform_3(%arg0: i32) -> (i32, i32, i32) {
    %c0_i32 = arith.constant 0 : i32
    %c0_i32_0 = arith.constant 0 : i32
    %c0_i32_1 = arith.constant 0 : i32
    return %arg0, %c0_i32, %c0_i32_0 : i32, i32, i32
  }
  func.func @transform_4(%arg0: i32) -> (i32, i32, i32) {
    %c0_i32 = arith.constant 0 : i32
    %c0_i32_0 = arith.constant 0 : i32
    %c0_i32_1 = arith.constant 0 : i32
    return %arg0, %c0_i32, %c0_i32_0 : i32, i32, i32
  }
  func.func @transform_5(%arg0: i32) -> (i32, i32, i32) {
    %c0_i32 = arith.constant 0 : i32
    %c0_i32_0 = arith.constant 0 : i32
    %c0_i32_1 = arith.constant 0 : i32
    return %arg0, %c0_i32, %c0_i32_0 : i32, i32, i32
  }
  func.func @transform_6(%arg0: i32) -> (i32, i32, i32) {
    %c0_i32 = arith.constant 0 : i32
    %c0_i32_0 = arith.constant 0 : i32
    %c0_i32_1 = arith.constant 0 : i32
    return %arg0, %c0_i32, %c0_i32_0 : i32, i32, i32
  }
  func.func @transform_7(%arg0: i32) -> (i32, i32, i32) {
    %c0_i32 = arith.constant 0 : i32
    %c0_i32_0 = arith.constant 0 : i32
    %c0_i32_1 = arith.constant 0 : i32
    return %arg0, %c0_i32, %c0_i32_0 : i32, i32, i32
  }
  func.func @transform_8(%arg0: i32) -> (i32, i32, i32) {
    %c0_i32 = arith.constant 0 : i32
    %c0_i32_0 = arith.constant 0 : i32
    %c0_i32_1 = arith.constant 0 : i32
    return %arg0, %c0_i32, %c0_i32_0 : i32, i32, i32
  }
  func.func @transform_9(%arg0: i32) -> (i32, i32, i32) {
    %c0_i32 = arith.constant 0 : i32
    %c0_i32_0 = arith.constant 0 : i32
    %c0_i32_1 = arith.constant 0 : i32
    return %arg0, %c0_i32, %c0_i32_0 : i32, i32, i32
  }
  func.func @transform_10(%arg0: i32) -> (i32, i32, i32) {
    %c0_i32 = arith.constant 0 : i32
    %c0_i32_0 = arith.constant 0 : i32
    %c0_i32_1 = arith.constant 0 : i32
    return %arg0, %c0_i32, %c0_i32_0 : i32, i32, i32
  }
  func.func @transform_11(%arg0: i32) -> (i32, i32, i32, i32) {
    %c0_i32 = arith.constant 0 : i32
    %c0_i32_0 = arith.constant 0 : i32
    %c0_i32_1 = arith.constant 0 : i32
    %c0_i32_2 = arith.constant 0 : i32
    return %arg0, %c0_i32, %c0_i32_0, %c0_i32_1 : i32, i32, i32, i32
  }
}

module attributes {stable_mosaic.version = 11 : i64} {
  func.func @mlp_head_kernel(%arg0: memref<16x160xf32, #tpu.memory_space<vmem>>, %arg1: memref<160x32xf32, #tpu.memory_space<vmem>>, %arg2: memref<1x32xf32, #tpu.memory_space<vmem>>, %arg3: memref<32x32xf32, #tpu.memory_space<vmem>>, %arg4: memref<1x32xf32, #tpu.memory_space<vmem>>, %arg5: memref<32x6xf32, #tpu.memory_space<vmem>>, %arg6: memref<1x6xf32, #tpu.memory_space<vmem>>, %arg7: memref<16x6xf32, #tpu.memory_space<vmem>>) attributes {dimension_semantics = [], scalar_prefetch = 0 : i64, scratch_operands = 0 : i64, tpu.core_type = #tpu.core_type<tc>} {
    %c0 = arith.constant 0 : index
    %c0_0 = arith.constant 0 : index
    %0 = vector.load %arg0[%c0, %c0_0] : memref<16x160xf32, #tpu.memory_space<vmem>>, vector<16x160xf32>
    %c0_1 = arith.constant 0 : index
    %c0_2 = arith.constant 0 : index
    %1 = vector.load %arg1[%c0_1, %c0_2] : memref<160x32xf32, #tpu.memory_space<vmem>>, vector<160x32xf32>
    %cst = arith.constant dense<0.000000e+00> : vector<16x32xf32>
    %2 = tpu.matmul %0, %1, %cst {dimension_numbers = #tpu.dot_dimension_numbers<[1], [0], [0], [1], [0, 0, 1, 1], [], []>} : vector<16x160xf32>, vector<160x32xf32>, vector<16x32xf32> -> vector<16x32xf32>
    %c0_3 = arith.constant 0 : index
    %c0_4 = arith.constant 0 : index
    %3 = vector.load %arg2[%c0_3, %c0_4] : memref<1x32xf32, #tpu.memory_space<vmem>>, vector<1x32xf32>
    %4 = vector.broadcast %3 : vector<1x32xf32> to vector<16x32xf32>
    %5 = arith.addf %2, %4 : vector<16x32xf32>
    %cst_5 = arith.constant 0.000000e+00 : f32
    %6 = vector.broadcast %cst_5 : f32 to vector<16x32xf32>
    %7 = arith.maximumf %5, %6 : vector<16x32xf32>
    %c0_6 = arith.constant 0 : index
    %c0_7 = arith.constant 0 : index
    %8 = vector.load %arg3[%c0_6, %c0_7] : memref<32x32xf32, #tpu.memory_space<vmem>>, vector<32x32xf32>
    %cst_8 = arith.constant dense<0.000000e+00> : vector<16x32xf32>
    %9 = tpu.matmul %7, %8, %cst_8 {dimension_numbers = #tpu.dot_dimension_numbers<[1], [0], [0], [1], [0, 0, 1, 1], [], []>} : vector<16x32xf32>, vector<32x32xf32>, vector<16x32xf32> -> vector<16x32xf32>
    %c0_9 = arith.constant 0 : index
    %c0_10 = arith.constant 0 : index
    %10 = vector.load %arg4[%c0_9, %c0_10] : memref<1x32xf32, #tpu.memory_space<vmem>>, vector<1x32xf32>
    %11 = vector.broadcast %10 : vector<1x32xf32> to vector<16x32xf32>
    %12 = arith.addf %9, %11 : vector<16x32xf32>
    %cst_11 = arith.constant 0.000000e+00 : f32
    %13 = vector.broadcast %cst_11 : f32 to vector<16x32xf32>
    %14 = arith.maximumf %12, %13 : vector<16x32xf32>
    %c0_12 = arith.constant 0 : index
    %c0_13 = arith.constant 0 : index
    %15 = vector.load %arg5[%c0_12, %c0_13] : memref<32x6xf32, #tpu.memory_space<vmem>>, vector<32x6xf32>
    %cst_14 = arith.constant dense<0.000000e+00> : vector<16x6xf32>
    %16 = tpu.matmul %14, %15, %cst_14 {dimension_numbers = #tpu.dot_dimension_numbers<[1], [0], [0], [1], [0, 0, 1, 1], [], []>} : vector<16x32xf32>, vector<32x6xf32>, vector<16x6xf32> -> vector<16x6xf32>
    %c0_15 = arith.constant 0 : index
    %c0_16 = arith.constant 0 : index
    %17 = vector.load %arg6[%c0_15, %c0_16] : memref<1x6xf32, #tpu.memory_space<vmem>>, vector<1x6xf32>
    %18 = vector.broadcast %17 : vector<1x6xf32> to vector<16x6xf32>
    %19 = arith.addf %16, %18 : vector<16x6xf32>
    %c0_17 = arith.constant 0 : index
    %c0_18 = arith.constant 0 : index
    %20 = vector.load %arg7[%c0_17, %c0_18] : memref<16x6xf32, #tpu.memory_space<vmem>>, vector<16x6xf32>
    tpu.vector_store %arg7[%c0_17, %c0_18], %19 {strides = array<i32>} : memref<16x6xf32, #tpu.memory_space<vmem>>, vector<16x6xf32>,
    return
  }
}

</mosaic_0001>

<llo_original>
// kernel: forward.4
$region0: #{forward.4}
  #allocation0 [shape = 'u32[]', space=smem, size = 0x4, offset = 0x4, fixed_abs, tag = 'smem constant byte address 0x4 - core index']
  #allocation1 [shape = 'u32[144,128]{1,0:T(1,128)}', space=vmem, size = 0x12000, scoped, tag = 'internal scratch']
  %s0 = inlined_call_operand.vmem [shape: f32[16,64], index: 0, kind: input, shape index: {}]
  %s1 = inlined_call_operand.vmem [shape: f32[64,32], index: 1, kind: input, shape index: {}]
  %s2 = inlined_call_operand.vmem [shape: f32[1,32], index: 2, kind: input, shape index: {}]
  %s3 = inlined_call_operand.vmem [shape: f32[16,32], index: 3, kind: output, shape index: {}]
  %s4 = sld [smem:[#allocation0]]
  $region22: #{forward.4} parent=0
    _
  %s6 = ssub.s32 1, %s4
  %s7 = scalar_select 0, %s6, %s4
  // Predicated region
  $region2: #{forward.4} parent=0 // pred_check
    _
  $region3: #{forward.4} parent=0 // pred_check_branch
    %9 = sbr.rel (0) target = $region5
  $region4: #{forward.4} parent=0 // pred_region
    _
  $region5: #{forward.4} parent=0 // pred_fallthru
    _
  // Predicated region
  $region6: #{forward.4} parent=0 // pred_check
    _
  $region7: #{forward.4} parent=0 // pred_check_branch
    %11 = sbr.rel (0) target = $region9
  $region8: #{forward.4} parent=0 // pred_region
    _
  $region9: #{forward.4} parent=0 // pred_fallthru
    _
  // Predicated region
  $region10: #{forward.4} parent=0 // pred_check
    _
  $region11: #{forward.4} parent=0 // pred_check_branch
    %13 = sbr.rel (0) target = $region13
  $region12: #{forward.4} parent=0 // pred_region
    _
  $region13: #{forward.4} parent=0 // pred_fallthru
    _
  %v14 = vld [vmem:[%s0] sm:$0xff]
  %v15 = vld [vmem:[%s0 + $0x8] sm:$0xff]
  %v16 = vld [vmem:[%s1] sm:$0xff]
  %v17 = vld [vmem:[%s1 + $0x8] sm:$0xff]
  %v18 = vld [vmem:[%s1 + $0x10] sm:$0xff]
  %v19 = vld [vmem:[%s1 + $0x18] sm:$0xff]
  %v20 = vld [vmem:[%s1 + $0x20] sm:$0xff]
  %v21 = vld [vmem:[%s1 + $0x28] sm:$0xff]
  %v22 = vld [vmem:[%s1 + $0x30] sm:$0xff]
  %v23 = vld [vmem:[%s1 + $0x38] sm:$0xff]
  %v24 = vld [vmem:[%s2] sm:$0x1]
  %v26 = vlaneseq
  %v27 = vshrl.u32 %v26, 7
  %v28 = vsub.s32 0, %v27
  %v29 = vrot.slane %v24, %v28
  %vm31 = vcmask 523264
  %v33 = vsel %vm31, %v14, 0
  %v36 = vsel %vm31, %v15, 0
  %38 = vmatprep.subr.mxu0 0.0
  %39 = vmatpush1.msra.mxu0 %v16
  %40 = vmatprep.subr.mxu0 0.0
  %41 = vmatpush1.msra.mxu0 %v17
  %42 = vmatprep.subr.mxu0 0.0
  %43 = vmatpush1.msra.mxu0 %v18
  %44 = vmatprep.subr.mxu0 0.0
  %45 = vmatpush1.msra.mxu0 %v19
  %46 = vmatprep.subr.mxu0 0.0
  %47 = vmatpush1.msra.mxu0 %v20
  %48 = vmatprep.subr.mxu0 0.0
  %49 = vmatpush1.msra.mxu0 %v21
  %50 = vmatprep.subr.mxu0 0.0
  %51 = vmatpush1.msra.mxu0 %v22
  %52 = vmatprep.subr.mxu0 0.0
  %53 = vmatpush1.msra.mxu0 %v23
  %54 = vmatprep.subr.mxu0 0.0
  %55 = vmatpush1.msra.mxu0 0.0
  %56 = vmatprep.subr.mxu0 0.0
  %57 = vmatpush1.msra.mxu0 0.0
  %58 = vmatprep.subr.mxu0 0.0
  %59 = vmatpush1.msra.mxu0 0.0
  %60 = vmatprep.subr.mxu0 0.0
  %61 = vmatpush1.msra.mxu0 0.0
  %62 = vmatprep.subr.mxu0 0.0
  %63 = vmatpush1.msra.mxu0 0.0
  %64 = vmatprep.subr.mxu0 0.0
  %65 = vmatpush1.msra.mxu0 0.0
  %66 = vmatprep.subr.mxu0 0.0
  %67 = vmatpush1.msra.mxu0 0.0
  %68 = vmatprep.subr.mxu0 0.0
  %69 = vmatpush1.msra.mxu0 0.0
  %70 = vmatprep.subr.mxu0 0.0
  %71 = vmatpush1.msra.mxu0 0.0
  %72 = vmatprep.subr.mxu0 0.0
  %73 = vmatpush1.msra.mxu0 0.0
  %74 = vmatprep.subr.mxu0 0.0
  %75 = vmatpush1.msra.mxu0 0.0
  %76 = vmatprep.subr.mxu0 0.0
  %77 = vmatpush1.msra.mxu0 0.0
  %78 = vmatprep.subr.mxu0 0.0
  %79 = vmatpush1.msra.mxu0 0.0
  %80 = vmatprep.subr.mxu0 0.0
  %81 = vmatpush1.msra.mxu0 0.0
  %82 = vmatprep.subr.mxu0 0.0
  %83 = vmatpush1.msra.mxu0 0.0
  %84 = vmatprep.subr.mxu0 0.0
  %85 = vmatpush1.msra.mxu0 0.0
  %86 = vmatprep.subr.mxu0 0.0
  %87 = vmatpush1.msra.mxu0 0.0
  %88 = vmatprep.subr.mxu0 0.0
  %89 = vmatpush1.msra.mxu0 0.0
  %90 = vmatprep.subr.mxu0 0.0
  %91 = vmatpush1.msra.mxu0 0.0
  %92 = vmatprep.subr.mxu0 0.0
  %93 = vmatpush1.msra.mxu0 0.0
  %94 = vmatprep.subr.mxu0 0.0
  %95 = vmatpush1.msra.mxu0 0.0
  %96 = vmatprep.subr.mxu0 0.0
  %97 = vmatpush1.msra.mxu0 0.0
  %98 = vmatprep.subr.mxu0 0.0
  %99 = vmatpush1.msra.mxu0 0.0
  %100 = vmatprep.subr.mxu0 0.0
  %101 = vmatpush1.msra.mxu0 0.0
  %102 = vmatprep.mubr.f32.mxu0 0.0
  %103 = vmatmul.mubr.f32.gmra.mrb[0].mxu0 %v33
  %v104 = vpop.f32.mrb[0].mxu0
  %v105 = vadd.f32 %v29, %v104
  %v106 = vpop.f32.mrb[0].mxu0
  %107 = vmatprep.mubr.f32.mxu0 0.0
  %108 = vmatmul.mubr.f32.gmra.mrb[0].mxu0 %v36
  %v109 = vpop.f32.mrb[0].mxu0
  %v110 = vadd.f32 %v29, %v109
  %v111 = vpop.f32.mrb[0].mxu0
  %112 = vdwg.mxu0
  %v113 = vmax.f32 %v105, 0.0
  %v114 = vmax.f32 %v110, 0.0
  %vm115 = vcmask 261120
  %116 = vst.msk [vmem:[%s3] sm:$0xff] %vm115, %v113
  %117 = vst.msk [vmem:[%s3 + $0x8] sm:$0xff] %vm115, %v114
  // Predicated region
  $region14: #{forward.4} parent=0 // pred_check
    _
  $region15: #{forward.4} parent=0 // pred_check_branch
    %119 = sbr.rel (0) target = $region17
  $region16: #{forward.4} parent=0 // pred_region
    _
  $region17: #{forward.4} parent=0 // pred_fallthru
    _
  // Predicated region
  $region18: #{forward.4} parent=0 // pred_check
    _
  $region19: #{forward.4} parent=0 // pred_check_branch
    %121 = sbr.rel (0) target = $region21
  $region20: #{forward.4} parent=0 // pred_region
    _
  $region21: #{forward.4} parent=0 // pred_fallthru
    _

// kernel: forward.7
$region0: #{forward.7}
  #allocation0 [shape = 'u32[]', space=smem, size = 0x4, offset = 0x4, fixed_abs, tag = 'smem constant byte address 0x4 - core index']
  #allocation1 [shape = 'u32[144,128]{1,0:T(1,128)}', space=vmem, size = 0x12000, scoped, tag = 'internal scratch']
  %s0 = inlined_call_operand.vmem [shape: f32[16,160], index: 0, kind: input, shape index: {}]
  %s1 = inlined_call_operand.vmem [shape: f32[160,32], index: 1, kind: input, shape index: {}]
  %s2 = inlined_call_operand.vmem [shape: f32[1,32], index: 2, kind: input, shape index: {}]
  %s3 = inlined_call_operand.vmem [shape: f32[32,32], index: 3, kind: input, shape index: {}]
  %s4 = inlined_call_operand.vmem [shape: f32[1,32], index: 4, kind: input, shape index: {}]
  %s5 = inlined_call_operand.vmem [shape: f32[32,6], index: 5, kind: input, shape index: {}]
  %s6 = inlined_call_operand.vmem [shape: f32[1,6], index: 6, kind: input, shape index: {}]
  %s7 = inlined_call_operand.vmem [shape: f32[16,6], index: 7, kind: output, shape index: {}]
  %s8 = sld [smem:[#allocation0]]
  $region38: #{forward.7} parent=0
    _
  %s10 = ssub.s32 1, %s8
  %s11 = scalar_select 0, %s10, %s8
  // Predicated region
  $region2: #{forward.7} parent=0 // pred_check
    _
  $region3: #{forward.7} parent=0 // pred_check_branch
    %13 = sbr.rel (0) target = $region5
  $region4: #{forward.7} parent=0 // pred_region
    _
  $region5: #{forward.7} parent=0 // pred_fallthru
    _
  // Predicated region
  $region6: #{forward.7} parent=0 // pred_check
    _
  $region7: #{forward.7} parent=0 // pred_check_branch
    %15 = sbr.rel (0) target = $region9
  $region8: #{forward.7} parent=0 // pred_region
    _
  $region9: #{forward.7} parent=0 // pred_fallthru
    _
  // Predicated region
  $region10: #{forward.7} parent=0 // pred_check
    _
  $region11: #{forward.7} parent=0 // pred_check_branch
    %17 = sbr.rel (0) target = $region13
  $region12: #{forward.7} parent=0 // pred_region
    _
  $region13: #{forward.7} parent=0 // pred_fallthru
    _
  // Predicated region
  $region14: #{forward.7} parent=0 // pred_check
    _
  $region15: #{forward.7} parent=0 // pred_check_branch
    %19 = sbr.rel (0) target = $region17
  $region16: #{forward.7} parent=0 // pred_region
    _
  $region17: #{forward.7} parent=0 // pred_fallthru
    _
  // Predicated region
  $region18: #{forward.7} parent=0 // pred_check
    _
  $region19: #{forward.7} parent=0 // pred_check_branch
    %21 = sbr.rel (0) target = $region21
  $region20: #{forward.7} parent=0 // pred_region
    _
  $region21: #{forward.7} parent=0 // pred_fallthru
    _
  // Predicated region
  $region22: #{forward.7} parent=0 // pred_check
    _
  $region23: #{forward.7} parent=0 // pred_check_branch
    %23 = sbr.rel (0) target = $region25
  $region24: #{forward.7} parent=0 // pred_region
    _
  $region25: #{forward.7} parent=0 // pred_fallthru
    _
  // Predicated region
  $region26: #{forward.7} parent=0 // pred_check
    _
  $region27: #{forward.7} parent=0 // pred_check_branch
    %25 = sbr.rel (0) target = $region29
  $region28: #{forward.7} parent=0 // pred_region
    _
  $region29: #{forward.7} parent=0 // pred_fallthru
    _
  %v26 = vld [vmem:[%s0] sm:$0xff]
  %v27 = vld [vmem:[%s0 + $0x8] sm:$0xff]
  %v28 = vld [vmem:[%s0 + $0x10] sm:$0xff]
  %v29 = vld [vmem:[%s0 + $0x18] sm:$0xff]
  %v30 = vld [vmem:[%s1] sm:$0xff]
  %v31 = vld [vmem:[%s1 + $0x8] sm:$0xff]
  %v32 = vld [vmem:[%s1 + $0x10] sm:$0xff]
  %v33 = vld [vmem:[%s1 + $0x18] sm:$0xff]
  %v34 = vld [vmem:[%s1 + $0x20] sm:$0xff]
  %v35 = vld [vmem:[%s1 + $0x28] sm:$0xff]
  %v36 = vld [vmem:[%s1 + $0x30] sm:$0xff]
  %v37 = vld [vmem:[%s1 + $0x38] sm:$0xff]
  %v38 = vld [vmem:[%s1 + $0x40] sm:$0xff]
  %v39 = vld [vmem:[%s1 + $0x48] sm:$0xff]
  %v40 = vld [vmem:[%s1 + $0x50] sm:$0xff]
  %v41 = vld [vmem:[%s1 + $0x58] sm:$0xff]
  %v42 = vld [vmem:[%s1 + $0x60] sm:$0xff]
  %v43 = vld [vmem:[%s1 + $0x68] sm:$0xff]
  %v44 = vld [vmem:[%s1 + $0x70] sm:$0xff]
  %v45 = vld [vmem:[%s1 + $0x78] sm:$0xff]
  %v46 = vld [vmem:[%s1 + $0x80] sm:$0xff]
  %v47 = vld [vmem:[%s1 + $0x88] sm:$0xff]
  %v48 = vld [vmem:[%s1 + $0x90] sm:$0xff]
  %v49 = vld [vmem:[%s1 + $0x98] sm:$0xff]
  %v50 = vld [vmem:[%s2] sm:$0x1]
  %v52 = vlaneseq
  %v53 = vshrl.u32 %v52, 7
  %v54 = vsub.s32 0, %v53
  %v55 = vrot.slane %v50, %v54
  %vm57 = vcmask 261120
  %v59 = vsel %vm57, %v27, 0
  %v62 = vsel %vm57, %v29, 0
  %64 = vmatprep.subr.mxu0 0.0
  %65 = vmatpush1.msra.mxu0 %v30
  %66 = vmatprep.subr.mxu0 0.0
  %67 = vmatpush1.msra.mxu0 %v31
  %68 = vmatprep.subr.mxu0 0.0
  %69 = vmatpush1.msra.mxu0 %v32
  %70 = vmatprep.subr.mxu0 0.0
  %71 = vmatpush1.msra.mxu0 %v33
  %72 = vmatprep.subr.mxu0 0.0
  %73 = vmatpush1.msra.mxu0 %v34
  %74 = vmatprep.subr.mxu0 0.0
  %75 = vmatpush1.msra.mxu0 %v35
  %76 = vmatprep.subr.mxu0 0.0
  %77 = vmatpush1.msra.mxu0 %v36
  %78 = vmatprep.subr.mxu0 0.0
  %79 = vmatpush1.msra.mxu0 %v37
  %80 = vmatprep.subr.mxu0 0.0
  %81 = vmatpush1.msra.mxu0 %v38
  %82 = vmatprep.subr.mxu0 0.0
  %83 = vmatpush1.msra.mxu0 %v39
  %84 = vmatprep.subr.mxu0 0.0
  %85 = vmatpush1.msra.mxu0 %v40
  %86 = vmatprep.subr.mxu0 0.0
  %87 = vmatpush1.msra.mxu0 %v41
  %88 = vmatprep.subr.mxu0 0.0
  %89 = vmatpush1.msra.mxu0 %v42
  %90 = vmatprep.subr.mxu0 0.0
  %91 = vmatpush1.msra.mxu0 %v43
  %92 = vmatprep.subr.mxu0 0.0
  %93 = vmatpush1.msra.mxu0 %v44
  %94 = vmatprep.subr.mxu0 0.0
  %95 = vmatpush1.msra.mxu0 %v45
  %96 = vmatprep.subr.mxu0 0.0
  %97 = vmatpush1.msra.mxu0 %v46
  %98 = vmatprep.subr.mxu0 0.0
  %99 = vmatpush1.msra.mxu0 %v47
  %100 = vmatprep.subr.mxu0 0.0
  %101 = vmatpush1.msra.mxu0 %v48
  %102 = vmatprep.subr.mxu0 0.0
  %103 = vmatpush1.msra.mxu0 %v49
  %104 = vmatprep.subr.mxu0 0.0
  %105 = vmatpush1.msra.mxu0 0.0
  %106 = vmatprep.subr.mxu0 0.0
  %107 = vmatpush1.msra.mxu0 0.0
  %108 = vmatprep.subr.mxu0 0.0
  %109 = vmatpush1.msra.mxu0 0.0
  %110 = vmatprep.subr.mxu0 0.0
  %111 = vmatpush1.msra.mxu0 0.0
  %112 = vmatprep.subr.mxu0 0.0
  %113 = vmatpush1.msra.mxu0 0.0
  %114 = vmatprep.subr.mxu0 0.0
  %115 = vmatpush1.msra.mxu0 0.0
  %116 = vmatprep.subr.mxu0 0.0
  %117 = vmatpush1.msra.mxu0 0.0
  %118 = vmatprep.subr.mxu0 0.0
  %119 = vmatpush1.msra.mxu0 0.0
  %120 = vmatprep.subr.mxu0 0.0
  %121 = vmatpush1.msra.mxu0 0.0
  %122 = vmatprep.subr.mxu0 0.0
  %123 = vmatpush1.msra.mxu0 0.0
  %124 = vmatprep.subr.mxu0 0.0
  %125 = vmatpush1.msra.mxu0 0.0
  %126 = vmatprep.subr.mxu0 0.0
  %127 = vmatpush1.msra.mxu0 0.0
  %128 = vmatprep.mubr.f32.mxu0 %v59
  %129 = vmatmul.mubr.f32.gmra.mrb[0].mxu0 %v26
  %v130 = vpop.f32.mrb[0].mxu0
  %v131 = vadd.f32 %v55, %v130
  %v132 = vpop.f32.mrb[0].mxu0
  %133 = vmatprep.mubr.f32.mxu0 %v62
  %134 = vmatmul.mubr.f32.gmra.mrb[0].mxu0 %v28
  %v135 = vpop.f32.mrb[0].mxu0
  %v136 = vadd.f32 %v55, %v135
  %v137 = vpop.f32.mrb[0].mxu0
  %138 = vdwg.mxu0
  %v139 = vmax.f32 %v131, 0.0
  %v140 = vmax.f32 %v136, 0.0
  %v141 = vld [vmem:[%s3] sm:$0xff]
  %v142 = vld [vmem:[%s3 + $0x8] sm:$0xff]
  %v143 = vld [vmem:[%s3 + $0x10] sm:$0xff]
  %v144 = vld [vmem:[%s3 + $0x18] sm:$0xff]
  %v145 = vld [vmem:[%s4] sm:$0x1]
  %v147 = vlaneseq
  %v148 = vshrl.u32 %v147, 7
  %v149 = vsub.s32 0, %v148
  %v150 = vrot.slane %v145, %v149
  %v153 = vsel %vm57, %v139, 0
  %v156 = vsel %vm57, %v140, 0
  %158 = vmatprep.subr.mxu0 0.0
  %159 = vmatpush1.msra.mxu0 %v141
  %160 = vmatprep.subr.mxu0 0.0
  %161 = vmatpush1.msra.mxu0 %v142
  %162 = vmatprep.subr.mxu0 0.0
  %163 = vmatpush1.msra.mxu0 %v143
  %164 = vmatprep.subr.mxu0 0.0
  %165 = vmatpush1.msra.mxu0 %v144
  %166 = vmatprep.subr.mxu0 0.0
  %167 = vmatpush1.msra.mxu0 0.0
  %168 = vmatprep.subr.mxu0 0.0
  %169 = vmatpush1.msra.mxu0 0.0
  %170 = vmatprep.subr.mxu0 0.0
  %171 = vmatpush1.msra.mxu0 0.0
  %172 = vmatprep.subr.mxu0 0.0
  %173 = vmatpush1.msra.mxu0 0.0
  %174 = vmatprep.subr.mxu0 0.0
  %175 = vmatpush1.msra.mxu0 0.0
  %176 = vmatprep.subr.mxu0 0.0
  %177 = vmatpush1.msra.mxu0 0.0
  %178 = vmatprep.subr.mxu0 0.0
  %179 = vmatpush1.msra.mxu0 0.0
  %180 = vmatprep.subr.mxu0 0.0
  %181 = vmatpush1.msra.mxu0 0.0
  %182 = vmatprep.subr.mxu0 0.0
  %183 = vmatpush1.msra.mxu0 0.0
  %184 = vmatprep.subr.mxu0 0.0
  %185 = vmatpush1.msra.mxu0 0.0
  %186 = vmatprep.subr.mxu0 0.0
  %187 = vmatpush1.msra.mxu0 0.0
  %188 = vmatprep.subr.mxu0 0.0
  %189 = vmatpush1.msra.mxu0 0.0
  %190 = vmatprep.subr.mxu0 0.0
  %191 = vmatpush1.msra.mxu0 0.0
  %192 = vmatprep.subr.mxu0 0.0
  %193 = vmatpush1.msra.mxu0 0.0
  %194 = vmatprep.subr.mxu0 0.0
  %195 = vmatpush1.msra.mxu0 0.0
  %196 = vmatprep.subr.mxu0 0.0
  %197 = vmatpush1.msra.mxu0 0.0
  %198 = vmatprep.subr.mxu0 0.0
  %199 = vmatpush1.msra.mxu0 0.0
  %200 = vmatprep.subr.mxu0 0.0
  %201 = vmatpush1.msra.mxu0 0.0
  %202 = vmatprep.subr.mxu0 0.0
  %203 = vmatpush1.msra.mxu0 0.0
  %204 = vmatprep.subr.mxu0 0.0
  %205 = vmatpush1.msra.mxu0 0.0
  %206 = vmatprep.subr.mxu0 0.0
  %207 = vmatpush1.msra.mxu0 0.0
  %208 = vmatprep.subr.mxu0 0.0
  %209 = vmatpush1.msra.mxu0 0.0
  %210 = vmatprep.subr.mxu0 0.0
  %211 = vmatpush1.msra.mxu0 0.0
  %212 = vmatprep.subr.mxu0 0.0
  %213 = vmatpush1.msra.mxu0 0.0
  %214 = vmatprep.subr.mxu0 0.0
  %215 = vmatpush1.msra.mxu0 0.0
  %216 = vmatprep.subr.mxu0 0.0
  %217 = vmatpush1.msra.mxu0 0.0
  %218 = vmatprep.subr.mxu0 0.0
  %219 = vmatpush1.msra.mxu0 0.0
  %220 = vmatprep.subr.mxu0 0.0
  %221 = vmatpush1.msra.mxu0 0.0
  %222 = vmatprep.mubr.f32.mxu0 0.0
  %223 = vmatmul.mubr.f32.gmra.mrb[0].mxu0 %v153
  %v224 = vpop.f32.mrb[0].mxu0
  %v225 = vadd.f32 %v150, %v224
  %v226 = vpop.f32.mrb[0].mxu0
  %227 = vmatprep.mubr.f32.mxu0 0.0
  %228 = vmatmul.mubr.f32.gmra.mrb[0].mxu0 %v156
  %v229 = vpop.f32.mrb[0].mxu0
  %v230 = vadd.f32 %v150, %v229
  %v231 = vpop.f32.mrb[0].mxu0
  %232 = vdwg.mxu0
  %v233 = vmax.f32 %v225, 0.0
  %v234 = vmax.f32 %v230, 0.0
  %v235 = vld [vmem:[%s5] sm:$0xff]
  %v236 = vld [vmem:[%s5 + $0x8] sm:$0xff]
  %v237 = vld [vmem:[%s5 + $0x10] sm:$0xff]
  %v238 = vld [vmem:[%s5 + $0x18] sm:$0xff]
  %v239 = vld [vmem:[%s6] sm:$0x1]
  %v241 = vlaneseq
  %v242 = vshrl.u32 %v241, 7
  %v243 = vsub.s32 0, %v242
  %v244 = vrot.slane %v239, %v243
  %v247 = vsel %vm57, %v233, 0
  %v250 = vsel %vm57, %v234, 0
  %252 = vmatprep.subr.mxu0 0.0
  %253 = vmatpush1.msra.mxu0 %v235
  %254 = vmatprep.subr.mxu0 0.0
  %255 = vmatpush1.msra.mxu0 %v236
  %256 = vmatprep.subr.mxu0 0.0
  %257 = vmatpush1.msra.mxu0 %v237
  %258 = vmatprep.subr.mxu0 0.0
  %259 = vmatpush1.msra.mxu0 %v238
  %260 = vmatprep.subr.mxu0 0.0
  %261 = vmatpush1.msra.mxu0 0.0
  %262 = vmatprep.subr.mxu0 0.0
  %263 = vmatpush1.msra.mxu0 0.0
  %264 = vmatprep.subr.mxu0 0.0
  %265 = vmatpush1.msra.mxu0 0.0
  %266 = vmatprep.subr.mxu0 0.0
  %267 = vmatpush1.msra.mxu0 0.0
  %268 = vmatprep.subr.mxu0 0.0
  %269 = vmatpush1.msra.mxu0 0.0
  %270 = vmatprep.subr.mxu0 0.0
  %271 = vmatpush1.msra.mxu0 0.0
  %272 = vmatprep.subr.mxu0 0.0
  %273 = vmatpush1.msra.mxu0 0.0
  %274 = vmatprep.subr.mxu0 0.0
  %275 = vmatpush1.msra.mxu0 0.0
  %276 = vmatprep.subr.mxu0 0.0
  %277 = vmatpush1.msra.mxu0 0.0
  %278 = vmatprep.subr.mxu0 0.0
  %279 = vmatpush1.msra.mxu0 0.0
  %280 = vmatprep.subr.mxu0 0.0
  %281 = vmatpush1.msra.mxu0 0.0
  %282 = vmatprep.subr.mxu0 0.0
  %283 = vmatpush1.msra.mxu0 0.0
  %284 = vmatprep.subr.mxu0 0.0
  %285 = vmatpush1.msra.mxu0 0.0
  %286 = vmatprep.subr.mxu0 0.0
  %287 = vmatpush1.msra.mxu0 0.0
  %288 = vmatprep.subr.mxu0 0.0
  %289 = vmatpush1.msra.mxu0 0.0
  %290 = vmatprep.subr.mxu0 0.0
  %291 = vmatpush1.msra.mxu0 0.0
  %292 = vmatprep.subr.mxu0 0.0
  %293 = vmatpush1.msra.mxu0 0.0
  %294 = vmatprep.subr.mxu0 0.0
  %295 = vmatpush1.msra.mxu0 0.0
  %296 = vmatprep.subr.mxu0 0.0
  %297 = vmatpush1.msra.mxu0 0.0
  %298 = vmatprep.subr.mxu0 0.0
  %299 = vmatpush1.msra.mxu0 0.0
  %300 = vmatprep.subr.mxu0 0.0
  %301 = vmatpush1.msra.mxu0 0.0
  %302 = vmatprep.subr.mxu0 0.0
  %303 = vmatpush1.msra.mxu0 0.0
  %304 = vmatprep.subr.mxu0 0.0
  %305 = vmatpush1.msra.mxu0 0.0
  %306 = vmatprep.subr.mxu0 0.0
  %307 = vmatpush1.msra.mxu0 0.0
  %308 = vmatprep.subr.mxu0 0.0
  %309 = vmatpush1.msra.mxu0 0.0
  %310 = vmatprep.subr.mxu0 0.0
  %311 = vmatpush1.msra.mxu0 0.0
  %312 = vmatprep.subr.mxu0 0.0
  %313 = vmatpush1.msra.mxu0 0.0
  %314 = vmatprep.subr.mxu0 0.0
  %315 = vmatpush1.msra.mxu0 0.0
  %316 = vmatprep.mubr.f32.mxu0 0.0
  %317 = vmatmul.mubr.f32.gmra.mrb[0].mxu0 %v247
  %v318 = vpop.f32.mrb[0].mxu0
  %v319 = vadd.f32 %v244, %v318
  %v320 = vpop.f32.mrb[0].mxu0
  %321 = vmatprep.mubr.f32.mxu0 0.0
  %322 = vmatmul.mubr.f32.gmra.mrb[0].mxu0 %v250
  %v323 = vpop.f32.mrb[0].mxu0
  %v324 = vadd.f32 %v244, %v323
  %v325 = vpop.f32.mrb[0].mxu0
  %326 = vdwg.mxu0
  %vm327 = vcmask 48128
  %328 = vst.msk [vmem:[%s7] sm:$0xff] %vm327, %v319
  %329 = vst.msk [vmem:[%s7 + $0x8] sm:$0xff] %vm327, %v324
  // Predicated region
  $region30: #{forward.7} parent=0 // pred_check
    _
  $region31: #{forward.7} parent=0 // pred_check_branch
    %331 = sbr.rel (0) target = $region33
  $region32: #{forward.7} parent=0 // pred_region
    _
  $region33: #{forward.7} parent=0 // pred_fallthru
    _
  // Predicated region
  $region34: #{forward.7} parent=0 // pred_check
    _
  $region35: #{forward.7} parent=0 // pred_check_branch
    %333 = sbr.rel (0) target = $region37
  $region36: #{forward.7} parent=0 // pred_region
    _
  $region37: #{forward.7} parent=0 // pred_fallthru
    _

// kernel: forward.5
$region0: #{forward.5}
  #allocation0 [shape = 'u32[]', space=smem, size = 0x4, offset = 0x4, fixed_abs, tag = 'smem constant byte address 0x4 - core index']
  #allocation1 [shape = 'u32[144,128]{1,0:T(1,128)}', space=vmem, size = 0x12000, scoped, tag = 'internal scratch']
  #allocation2 [shape = 'f32[8,2]{1,0:T(8,128)}', space=vmem, size = 0x1000, scoped, tag = 'scratch operand']
  %s0 = inlined_call_operand.vmem [shape: f32[2,8,2,32], index: 0, kind: input, shape index: {}]
  %s1 = inlined_call_operand.vmem [shape: f32[2,8,8,2], index: 1, kind: input, shape index: {}]
  %s2 = inlined_call_operand.vmem [shape: f32[8,8,2], index: 2, kind: input, shape index: {}]
  %s3 = inlined_call_operand.vmem [shape: f32[2,1,32], index: 3, kind: input, shape index: {}]
  %s4 = inlined_call_operand.vmem [shape: f32[2,1,32], index: 4, kind: input, shape index: {}]
  %s5 = inlined_call_operand.vmem [shape: f32[2,1,1], index: 5, kind: input, shape index: {}]
  %s6 = inlined_call_operand.vmem [shape: f32[2,64,32], index: 6, kind: input, shape index: {}]
  %s7 = inlined_call_operand.vmem [shape: f32[2,32,192], index: 7, kind: input, shape index: {}]
  %s8 = inlined_call_operand.vmem [shape: f32[2,1,192], index: 8, kind: input, shape index: {}]
  %s9 = inlined_call_operand.vmem [shape: f32[2,32,192], index: 9, kind: input, shape index: {}]
  %s10 = inlined_call_operand.vmem [shape: f32[2,1,192], index: 10, kind: input, shape index: {}]
  %s11 = inlined_call_operand.vmem [shape: f32[2,8,2,32], index: 11, kind: output, shape index: {}]
  %s12 = sld [smem:[#allocation0]]
  $region77: #{forward.5} parent=0
    _
  %s14 = ssub.s32 1, %s12
  %s15 = scalar_select 0, %s14, %s12
  loop: start=0, step=1, limit=4
  $region2: #{forward.5} parent=0 // loop_pre_header
    _
  $region3: #{forward.5} parent=0 // loop_header
    %s17 = sphi 0, %s21
    %p18 = scmp.ge.s32.totalorder %s17, 4
    %s27 = sphi 0, %s29
    %s30 = sphi 0, %s27
    %s31 = sphi 0, %s30
    %s47 = sphi 0, %s31
    %s53 = sphi 0, %s55
    %s56 = sphi 0, %s53
    %s57 = sphi 0, %s56
    %s73 = sphi 0, %s57
    %s77 = sphi 0, %s77
    %s79 = sphi 0, %s77
    %s80 = sphi 0, %s79
    %s94 = sphi 0, %s80
    %s100 = sphi 0, %s102
    %s103 = sphi 0, %s100
    %s104 = sphi 0, %s103
    %s120 = sphi 0, %s104
    %s126 = sphi 0, %s128
    %s129 = sphi 0, %s126
    %s130 = sphi 0, %s129
    %s146 = sphi 0, %s130
    %s152 = sphi 0, %s154
    %s155 = sphi 0, %s152
    %s156 = sphi 0, %s155
    %s172 = sphi 0, %s156
    %s178 = sphi 0, %s180
    %s181 = sphi 0, %s178
    %s182 = sphi 0, %s181
    %s198 = sphi 0, %s182
    %s204 = sphi 0, %s206
    %s207 = sphi 0, %s204
    %s208 = sphi 0, %s207
    %s224 = sphi 0, %s208
    %s230 = sphi 0, %s232
    %s233 = sphi 0, %s230
    %s234 = sphi 0, %s233
    %s250 = sphi 0, %s234
    %s256 = sphi 0, %s258
    %s259 = sphi 0, %s256
    %s260 = sphi 0, %s259
    %s276 = sphi 0, %s260
    %s282 = sphi 0, %s284
    %s285 = sphi 0, %s282
    %s286 = sphi 0, %s285
    %s302 = sphi 0, %s286
    %s308 = sphi 0, %s310
    %s311 = sphi 0, %s308
    %s312 = sphi 0, %s311
    %s328 = sphi 0, %s312
  $region4: #{forward.5} parent=0 // loop_header_branch
    %20 = sbr.rel (%p18) target = $region8
  $region5: #{forward.5} parent=0 // loop_body
    %s22 = ssub.s32 %s17, 1
    %s23 = ssub.s32 %s17, 2
    %s24 = sadd.s32 %s17, 1
    %s25 = ssub.s32 %s17, %s24
    %p26 = scmp.eq.s32.totalorder %s25, 0
    %s28 = sadd.s32 %s27, 1
    %s29 = scalar_select %p26, %s27, %s28
    %p32 = pneg %p26
    %p33 = scmp.eq.s32.totalorder %s17, 1
    %p34 = por %p32, %p33
    %p35 = scmp.ne.s32.totalorder %s27, %s30
    %p36 = scmp.eq.s32.totalorder %s17, 0
    %p37 = por %p35, %p36
    %p38 = scmp.ne.s32.totalorder %s27, %s30
    %p39 = scmp.eq.s32.totalorder %s22, 1
    %p40 = por %p38, %p39
    %p41 = scmp.ne.s32.totalorder %s30, %s31
    %p42 = scmp.eq.s32.totalorder %s22, 0
    %p43 = por %p41, %p42
    %p44 = scmp.ne.s32.totalorder %s30, %s31
    %p45 = scmp.eq.s32.totalorder %s23, 1
    %p46 = por %p44, %p45
    %p48 = scmp.ne.s32.totalorder %s31, %s47
    %p49 = scmp.eq.s32.totalorder %s23, 0
    %p50 = por %p48, %p49
    %s51 = ssub.s32 %s17, %s24
    %p52 = scmp.eq.s32.totalorder %s51, 0
    %s54 = sadd.s32 %s53, 1
    %s55 = scalar_select %p52, %s53, %s54
    %p58 = pneg %p52
    %p59 = scmp.eq.s32.totalorder %s17, 1
    %p60 = por %p58, %p59
    %p61 = scmp.ne.s32.totalorder %s53, %s56
    %p62 = scmp.eq.s32.totalorder %s17, 0
    %p63 = por %p61, %p62
    %p64 = scmp.ne.s32.totalorder %s53, %s56
    %p65 = scmp.eq.s32.totalorder %s22, 1
    %p66 = por %p64, %p65
    %p67 = scmp.ne.s32.totalorder %s56, %s57
    %p68 = scmp.eq.s32.totalorder %s22, 0
    %p69 = por %p67, %p68
    %p70 = scmp.ne.s32.totalorder %s56, %s57
    %p71 = scmp.eq.s32.totalorder %s23, 1
    %p72 = por %p70, %p71
    %p74 = scmp.ne.s32.totalorder %s57, %s73
    %p75 = scmp.eq.s32.totalorder %s23, 0
    %p76 = por %p74, %p75
    %s78 = sadd.s32 %s77, 1
    %p81 = scmp.eq.s32.totalorder %s17, 1
    %p82 = scmp.ne.s32.totalorder %s77, %s79
    %p83 = scmp.eq.s32.totalorder %s17, 0
    %p84 = por %p82, %p83
    %p85 = scmp.ne.s32.totalorder %s77, %s79
    %p86 = scmp.eq.s32.totalorder %s22, 1
    %p87 = por %p85, %p86
    %p88 = scmp.ne.s32.totalorder %s79, %s80
    %p89 = scmp.eq.s32.totalorder %s22, 0
    %p90 = por %p88, %p89
    %p91 = scmp.ne.s32.totalorder %s79, %s80
    %p92 = scmp.eq.s32.totalorder %s23, 1
    %p93 = por %p91, %p92
    %p95 = scmp.ne.s32.totalorder %s80, %s94
    %p96 = scmp.eq.s32.totalorder %s23, 0
    %p97 = por %p95, %p96
    %s98 = ssub.s32 %s17, %s24
    %p99 = scmp.eq.s32.totalorder %s98, 0
    %s101 = sadd.s32 %s100, 1
    %s102 = scalar_select %p99, %s100, %s101
    %p105 = pneg %p99
    %p106 = scmp.eq.s32.totalorder %s17, 1
    %p107 = por %p105, %p106
    %p108 = scmp.ne.s32.totalorder %s100, %s103
    %p109 = scmp.eq.s32.totalorder %s17, 0
    %p110 = por %p108, %p109
    %p111 = scmp.ne.s32.totalorder %s100, %s103
    %p112 = scmp.eq.s32.totalorder %s22, 1
    %p113 = por %p111, %p112
    %p114 = scmp.ne.s32.totalorder %s103, %s104
    %p115 = scmp.eq.s32.totalorder %s22, 0
    %p116 = por %p114, %p115
    %p117 = scmp.ne.s32.totalorder %s103, %s104
    %p118 = scmp.eq.s32.totalorder %s23, 1
    %p119 = por %p117, %p118
    %p121 = scmp.ne.s32.totalorder %s104, %s120
    %p122 = scmp.eq.s32.totalorder %s23, 0
    %p123 = por %p121, %p122
    %s124 = ssub.s32 %s17, %s24
    %p125 = scmp.eq.s32.totalorder %s124, 0
    %s127 = sadd.s32 %s126, 1
    %s128 = scalar_select %p125, %s126, %s127
    %p131 = pneg %p125
    %p132 = scmp.eq.s32.totalorder %s17, 1
    %p133 = por %p131, %p132
    %p134 = scmp.ne.s32.totalorder %s126, %s129
    %p135 = scmp.eq.s32.totalorder %s17, 0
    %p136 = por %p134, %p135
    %p137 = scmp.ne.s32.totalorder %s126, %s129
    %p138 = scmp.eq.s32.totalorder %s22, 1
    %p139 = por %p137, %p138
    %p140 = scmp.ne.s32.totalorder %s129, %s130
    %p141 = scmp.eq.s32.totalorder %s22, 0
    %p142 = por %p140, %p141
    %p143 = scmp.ne.s32.totalorder %s129, %s130
    %p144 = scmp.eq.s32.totalorder %s23, 1
    %p145 = por %p143, %p144
    %p147 = scmp.ne.s32.totalorder %s130, %s146
    %p148 = scmp.eq.s32.totalorder %s23, 0
    %p149 = por %p147, %p148
    %s150 = ssub.s32 %s17, %s24
    %p151 = scmp.eq.s32.totalorder %s150, 0
    %s153 = sadd.s32 %s152, 1
    %s154 = scalar_select %p151, %s152, %s153
    %p157 = pneg %p151
    %p158 = scmp.eq.s32.totalorder %s17, 1
    %p159 = por %p157, %p158
    %p160 = scmp.ne.s32.totalorder %s152, %s155
    %p161 = scmp.eq.s32.totalorder %s17, 0
    %p162 = por %p160, %p161
    %p163 = scmp.ne.s32.totalorder %s152, %s155
    %p164 = scmp.eq.s32.totalorder %s22, 1
    %p165 = por %p163, %p164
    %p166 = scmp.ne.s32.totalorder %s155, %s156
    %p167 = scmp.eq.s32.totalorder %s22, 0
    %p168 = por %p166, %p167
    %p169 = scmp.ne.s32.totalorder %s155, %s156
    %p170 = scmp.eq.s32.totalorder %s23, 1
    %p171 = por %p169, %p170
    %p173 = scmp.ne.s32.totalorder %s156, %s172
    %p174 = scmp.eq.s32.totalorder %s23, 0
    %p175 = por %p173, %p174
    %s176 = ssub.s32 %s17, %s24
    %p177 = scmp.eq.s32.totalorder %s176, 0
    %s179 = sadd.s32 %s178, 1
    %s180 = scalar_select %p177, %s178, %s179
    %p183 = pneg %p177
    %p184 = scmp.eq.s32.totalorder %s17, 1
    %p185 = por %p183, %p184
    %p186 = scmp.ne.s32.totalorder %s178, %s181
    %p187 = scmp.eq.s32.totalorder %s17, 0
    %p188 = por %p186, %p187
    %p189 = scmp.ne.s32.totalorder %s178, %s181
    %p190 = scmp.eq.s32.totalorder %s22, 1
    %p191 = por %p189, %p190
    %p192 = scmp.ne.s32.totalorder %s181, %s182
    %p193 = scmp.eq.s32.totalorder %s22, 0
    %p194 = por %p192, %p193
    %p195 = scmp.ne.s32.totalorder %s181, %s182
    %p196 = scmp.eq.s32.totalorder %s23, 1
    %p197 = por %p195, %p196
    %p199 = scmp.ne.s32.totalorder %s182, %s198
    %p200 = scmp.eq.s32.totalorder %s23, 0
    %p201 = por %p199, %p200
    %s202 = ssub.s32 %s17, %s24
    %p203 = scmp.eq.s32.totalorder %s202, 0
    %s205 = sadd.s32 %s204, 1
    %s206 = scalar_select %p203, %s204, %s205
    %p209 = pneg %p203
    %p210 = scmp.eq.s32.totalorder %s17, 1
    %p211 = por %p209, %p210
    %p212 = scmp.ne.s32.totalorder %s204, %s207
    %p213 = scmp.eq.s32.totalorder %s17, 0
    %p214 = por %p212, %p213
    %p215 = scmp.ne.s32.totalorder %s204, %s207
    %p216 = scmp.eq.s32.totalorder %s22, 1
    %p217 = por %p215, %p216
    %p218 = scmp.ne.s32.totalorder %s207, %s208
    %p219 = scmp.eq.s32.totalorder %s22, 0
    %p220 = por %p218, %p219
    %p221 = scmp.ne.s32.totalorder %s207, %s208
    %p222 = scmp.eq.s32.totalorder %s23, 1
    %p223 = por %p221, %p222
    %p225 = scmp.ne.s32.totalorder %s208, %s224
    %p226 = scmp.eq.s32.totalorder %s23, 0
    %p227 = por %p225, %p226
    %s228 = ssub.s32 %s17, %s24
    %p229 = scmp.eq.s32.totalorder %s228, 0
    %s231 = sadd.s32 %s230, 1
    %s232 = scalar_select %p229, %s230, %s231
    %p235 = pneg %p229
    %p236 = scmp.eq.s32.totalorder %s17, 1
    %p237 = por %p235, %p236
    %p238 = scmp.ne.s32.totalorder %s230, %s233
    %p239 = scmp.eq.s32.totalorder %s17, 0
    %p240 = por %p238, %p239
    %p241 = scmp.ne.s32.totalorder %s230, %s233
    %p242 = scmp.eq.s32.totalorder %s22, 1
    %p243 = por %p241, %p242
    %p244 = scmp.ne.s32.totalorder %s233, %s234
    %p245 = scmp.eq.s32.totalorder %s22, 0
    %p246 = por %p244, %p245
    %p247 = scmp.ne.s32.totalorder %s233, %s234
    %p248 = scmp.eq.s32.totalorder %s23, 1
    %p249 = por %p247, %p248
    %p251 = scmp.ne.s32.totalorder %s234, %s250
    %p252 = scmp.eq.s32.totalorder %s23, 0
    %p253 = por %p251, %p252
    %s254 = ssub.s32 %s17, %s24
    %p255 = scmp.eq.s32.totalorder %s254, 0
    %s257 = sadd.s32 %s256, 1
    %s258 = scalar_select %p255, %s256, %s257
    %p261 = pneg %p255
    %p262 = scmp.eq.s32.totalorder %s17, 1
    %p263 = por %p261, %p262
    %p264 = scmp.ne.s32.totalorder %s256, %s259
    %p265 = scmp.eq.s32.totalorder %s17, 0
    %p266 = por %p264, %p265
    %p267 = scmp.ne.s32.totalorder %s256, %s259
    %p268 = scmp.eq.s32.totalorder %s22, 1
    %p269 = por %p267, %p268
    %p270 = scmp.ne.s32.totalorder %s259, %s260
    %p271 = scmp.eq.s32.totalorder %s22, 0
    %p272 = por %p270, %p271
    %p273 = scmp.ne.s32.totalorder %s259, %s260
    %p274 = scmp.eq.s32.totalorder %s23, 1
    %p275 = por %p273, %p274
    %p277 = scmp.ne.s32.totalorder %s260, %s276
    %p278 = scmp.eq.s32.totalorder %s23, 0
    %p279 = por %p277, %p278
    %s280 = ssub.s32 %s17, %s24
    %p281 = scmp.eq.s32.totalorder %s280, 0
    %s283 = sadd.s32 %s282, 1
    %s284 = scalar_select %p281, %s282, %s283
    %p287 = pneg %p281
    %p288 = scmp.eq.s32.totalorder %s17, 1
    %p289 = por %p287, %p288
    %p290 = scmp.ne.s32.totalorder %s282, %s285
    %p291 = scmp.eq.s32.totalorder %s17, 0
    %p292 = por %p290, %p291
    %p293 = scmp.ne.s32.totalorder %s282, %s285
    %p294 = scmp.eq.s32.totalorder %s22, 1
    %p295 = por %p293, %p294
    %p296 = scmp.ne.s32.totalorder %s285, %s286
    %p297 = scmp.eq.s32.totalorder %s22, 0
    %p298 = por %p296, %p297
    %p299 = scmp.ne.s32.totalorder %s285, %s286
    %p300 = scmp.eq.s32.totalorder %s23, 1
    %p301 = por %p299, %p300
    %p303 = scmp.ne.s32.totalorder %s286, %s302
    %p304 = scmp.eq.s32.totalorder %s23, 0
    %p305 = por %p303, %p304
    %s306 = ssub.s32 %s17, %s24
    %p307 = scmp.eq.s32.totalorder %s306, 0
    %s309 = sadd.s32 %s308, 1
    %s310 = scalar_select %p307, %s308, %s309
    %p313 = pneg %p307
    %p314 = scmp.eq.s32.totalorder %s17, 1
    %p315 = por %p313, %p314
    %p316 = scmp.ne.s32.totalorder %s308, %s311
    %p317 = scmp.eq.s32.totalorder %s17, 0
    %p318 = por %p316, %p317
    %p319 = scmp.ne.s32.totalorder %s308, %s311
    %p320 = scmp.eq.s32.totalorder %s22, 1
    %p321 = por %p319, %p320
    %p322 = scmp.ne.s32.totalorder %s311, %s312
    %p323 = scmp.eq.s32.totalorder %s22, 0
    %p324 = por %p322, %p323
    %p325 = scmp.ne.s32.totalorder %s311, %s312
    %p326 = scmp.eq.s32.totalorder %s23, 1
    %p327 = por %p325, %p326
    %p329 = scmp.ne.s32.totalorder %s312, %s328
    %p330 = scmp.eq.s32.totalorder %s23, 0
    %p331 = por %p329, %p330
    %p332 = scmp.le.s32.totalorder 1, %s17
    %p333 = scmp.lt.s32.totalorder %s17, 3
    %p334 = pnand %p332, %p333
    %p335 = pneg %p334
    // Predicated region
    $region9: #{forward.5} parent=5 // pred_check
      _
    $region10: #{forward.5} parent=5 // pred_check_branch
      %337 = sbr.rel (%p334) target = $region12
    $region11: #{forward.5} parent=5 // pred_region
      %s338 = ssub.s32 %s17, 1
      // Predicated region
      $region13: #{forward.5} parent=11 // pred_check
        %p339 = pneg %p90
      $region14: #{forward.5} parent=11 // pred_check_branch
        %341 = sbr.rel (%p339) target = $region16
      $region15: #{forward.5} parent=11 // pred_region
        _
      $region16: #{forward.5} parent=11 // pred_fallthru
        _
    $region12: #{forward.5} parent=5 // pred_fallthru
      _
    %p342 = scmp.lt.s32.totalorder %s17, 2
    // Predicated region
    $region17: #{forward.5} parent=5 // pred_check
      %p343 = pneg %p342
    $region18: #{forward.5} parent=5 // pred_check_branch
      %345 = sbr.rel (%p343) target = $region20
    $region19: #{forward.5} parent=5 // pred_region
      // Predicated region
      $region21: #{forward.5} parent=19 // pred_check
        %p346 = pneg %p37
      $region22: #{forward.5} parent=19 // pred_check_branch
        %348 = sbr.rel (%p346) target = $region24
      $region23: #{forward.5} parent=19 // pred_region
        %p349 = scmp.lt.s32.totalorder %s17, 1
        %s350 = scalar_select %p349, %s17, 1
        %s351 = smul.addr %s350, 8
        %s352 = smul.addr %s351, 2
        %s353 = scalar_lea.vmem %s0, %s352
      $region24: #{forward.5} parent=19 // pred_fallthru
        _
      // Predicated region
      $region25: #{forward.5} parent=19 // pred_check
        %p354 = pneg %p63
      $region26: #{forward.5} parent=19 // pred_check_branch
        %356 = sbr.rel (%p354) target = $region28
      $region27: #{forward.5} parent=19 // pred_region
        %p357 = scmp.lt.s32.totalorder %s17, 1
        %s358 = scalar_select %p357, %s17, 1
        %s359 = smul.addr %s358, 8
        %s360 = smul.addr %s359, 8
        %s361 = scalar_lea.vmem %s1, %s360
      $region28: #{forward.5} parent=19 // pred_fallthru
        _
      // Predicated region
      $region29: #{forward.5} parent=19 // pred_check
        %p362 = pneg %p110
      $region30: #{forward.5} parent=19 // pred_check_branch
        %364 = sbr.rel (%p362) target = $region32
      $region31: #{forward.5} parent=19 // pred_region
        %p365 = scmp.lt.s32.totalorder %s17, 1
        %s366 = scalar_select %p365, %s17, 1
        %s367 = scalar_lea.vmem %s3, %s366
      $region32: #{forward.5} parent=19 // pred_fallthru
        _
      // Predicated region
      $region33: #{forward.5} parent=19 // pred_check
        %p368 = pneg %p136
      $region34: #{forward.5} parent=19 // pred_check_branch
        %370 = sbr.rel (%p368) target = $region36
      $region35: #{forward.5} parent=19 // pred_region
        %p371 = scmp.lt.s32.totalorder %s17, 1
        %s372 = scalar_select %p371, %s17, 1
        %s373 = scalar_lea.vmem %s4, %s372
      $region36: #{forward.5} parent=19 // pred_fallthru
        _
      // Predicated region
      $region37: #{forward.5} parent=19 // pred_check
        %p374 = pneg %p162
      $region38: #{forward.5} parent=19 // pred_check_branch
        %376 = sbr.rel (%p374) target = $region40
      $region39: #{forward.5} parent=19 // pred_region
        %p377 = scmp.lt.s32.totalorder %s17, 1
        %s378 = scalar_select %p377, %s17, 1
        %s379 = scalar_lea.vmem %s5, %s378
      $region40: #{forward.5} parent=19 // pred_fallthru
        _
      // Predicated region
      $region41: #{forward.5} parent=19 // pred_check
        %p380 = pneg %p188
      $region42: #{forward.5} parent=19 // pred_check_branch
        %382 = sbr.rel (%p380) target = $region44
      $region43: #{forward.5} parent=19 // pred_region
        %p383 = scmp.lt.s32.totalorder %s17, 1
        %s384 = scalar_select %p383, %s17, 1
        %s385 = smul.addr %s384, 8
        %s386 = smul.addr %s385, 8
        %s387 = scalar_lea.vmem %s6, %s386
      $region44: #{forward.5} parent=19 // pred_fallthru
        _
      // Predicated region
      $region45: #{forward.5} parent=19 // pred_check
        %p388 = pneg %p214
      $region46: #{forward.5} parent=19 // pred_check_branch
        %390 = sbr.rel (%p388) target = $region48
      $region47: #{forward.5} parent=19 // pred_region
        %p391 = scmp.lt.s32.totalorder %s17, 1
        %s392 = scalar_select %p391, %s17, 1
        %s393 = smul.addr %s392, 8
        %s394 = smul.addr %s393, 8
        %s395 = scalar_lea.vmem %s7, %s394
      $region48: #{forward.5} parent=19 // pred_fallthru
        _
      // Predicated region
      $region49: #{forward.5} parent=19 // pred_check
        %p396 = pneg %p240
      $region50: #{forward.5} parent=19 // pred_check_branch
        %398 = sbr.rel (%p396) target = $region52
      $region51: #{forward.5} parent=19 // pred_region
        %p399 = scmp.lt.s32.totalorder %s17, 1
        %s400 = scalar_select %p399, %s17, 1
        %s401 = smul.addr %s400, 2
        %s402 = scalar_lea.vmem %s8, %s401
      $region52: #{forward.5} parent=19 // pred_fallthru
        _
      // Predicated region
      $region53: #{forward.5} parent=19 // pred_check
        %p403 = pneg %p266
      $region54: #{forward.5} parent=19 // pred_check_branch
        %405 = sbr.rel (%p403) target = $region56
      $region55: #{forward.5} parent=19 // pred_region
        %p406 = scmp.lt.s32.totalorder %s17, 1
        %s407 = scalar_select %p406, %s17, 1
        %s408 = smul.addr %s407, 8
        %s409 = smul.addr %s408, 8
        %s410 = scalar_lea.vmem %s9, %s409
      $region56: #{forward.5} parent=19 // pred_fallthru
        _
      // Predicated region
      $region57: #{forward.5} parent=19 // pred_check
        %p411 = pneg %p292
      $region58: #{forward.5} parent=19 // pred_check_branch
        %413 = sbr.rel (%p411) target = $region60
      $region59: #{forward.5} parent=19 // pred_region
        %p414 = scmp.lt.s32.totalorder %s17, 1
        %s415 = scalar_select %p414, %s17, 1
        %s416 = smul.addr %s415, 2
        %s417 = scalar_lea.vmem %s10, %s416
      $region60: #{forward.5} parent=19 // pred_fallthru
        _
    $region20: #{forward.5} parent=5 // pred_fallthru
      _
    %p418 = scmp.le.s32.totalorder 1, %s17
    %p419 = scmp.lt.s32.totalorder %s17, 3
    %p420 = pnand %p418, %p419
    %p421 = pneg %p420
    // Predicated region
    $region61: #{forward.5} parent=5 // pred_check
      _
    $region62: #{forward.5} parent=5 // pred_check_branch
      %423 = sbr.rel (%p420) target = $region64
    $region63: #{forward.5} parent=5 // pred_region
      %s424 = ssub.s32 %s17, 1
      %p425 = scmp.lt.s32.totalorder %s22, 1
      %s426 = scalar_select %p425, %s22, 1
      %s427 = smul.addr %s426, 8
      %s428 = smul.addr %s427, 2
      %s429 = scalar_lea.vmem %s0, %s428
      %p430 = pneg %p43
      %p431 = pneg %p40
      %p432 = scmp.lt.s32.totalorder %s22, 1
      %s433 = scalar_select %p432, %s22, 1
      %s434 = smul.addr %s433, 8
      %s435 = smul.addr %s434, 8
      %s436 = scalar_lea.vmem %s1, %s435
      %p437 = pneg %p69
      %p438 = pneg %p66
      %p439 = pneg %p90
      %p440 = pneg %p87
      %p441 = scmp.lt.s32.totalorder %s22, 1
      %s442 = scalar_select %p441, %s22, 1
      %s443 = scalar_lea.vmem %s3, %s442
      %p444 = pneg %p116
      %p445 = pneg %p113
      %p446 = scmp.lt.s32.totalorder %s22, 1
      %s447 = scalar_select %p446, %s22, 1
      %s448 = scalar_lea.vmem %s4, %s447
      %p449 = pneg %p142
      %p450 = pneg %p139
      %p451 = scmp.lt.s32.totalorder %s22, 1
      %s452 = scalar_select %p451, %s22, 1
      %s453 = scalar_lea.vmem %s5, %s452
      %p454 = pneg %p168
      %p455 = pneg %p165
      %p456 = scmp.lt.s32.totalorder %s22, 1
      %s457 = scalar_select %p456, %s22, 1
      %s458 = smul.addr %s457, 8
      %s459 = smul.addr %s458, 8
      %s460 = scalar_lea.vmem %s6, %s459
      %p461 = pneg %p194
      %p462 = pneg %p191
      %p463 = scmp.lt.s32.totalorder %s22, 1
      %s464 = scalar_select %p463, %s22, 1
      %s465 = smul.addr %s464, 8
      %s466 = smul.addr %s465, 8
      %s467 = scalar_lea.vmem %s7, %s466
      %p468 = pneg %p220
      %p469 = pneg %p217
      %p470 = scmp.lt.s32.totalorder %s22, 1
      %s471 = scalar_select %p470, %s22, 1
      %s472 = smul.addr %s471, 2
      %s473 = scalar_lea.vmem %s8, %s472
      %p474 = pneg %p246
      %p475 = pneg %p243
      %p476 = scmp.lt.s32.totalorder %s22, 1
      %s477 = scalar_select %p476, %s22, 1
      %s478 = smul.addr %s477, 8
      %s479 = smul.addr %s478, 8
      %s480 = scalar_lea.vmem %s9, %s479
      %p481 = pneg %p272
      %p482 = pneg %p269
      %p483 = scmp.lt.s32.totalorder %s22, 1
      %s484 = scalar_select %p483, %s22, 1
      %s485 = smul.addr %s484, 2
      %s486 = scalar_lea.vmem %s10, %s485
      %p487 = pneg %p298
      %p488 = pneg %p295
      %p489 = pneg %p324
      %p490 = pneg %p321
      %p491 = scmp.lt.s32.totalorder %s22, 1
      %s492 = scalar_select %p491, %s22, 1
      %s493 = smul.addr %s492, 8
      %s494 = smul.addr %s493, 2
      %s495 = scalar_lea.vmem %s11, %s494
      %p496 = scmp.lt.s32.totalorder %s22, 1
      %s497 = scalar_select %p496, %s22, 1
      %s498 = smul.addr %s497, 8
      %s499 = smul.addr %s498, 2
      %s500 = scalar_lea.vmem %s0, %s499
      %p501 = scmp.lt.s32.totalorder %s22, 1
      %s502 = scalar_select %p501, %s22, 1
      %s503 = smul.addr %s502, 8
      %s504 = smul.addr %s503, 8
      %s505 = scalar_lea.vmem %s1, %s504
      %p506 = scmp.lt.s32.totalorder %s22, 1
      %s507 = scalar_select %p506, %s22, 1
      %s508 = scalar_lea.vmem %s3, %s507
      %p509 = scmp.lt.s32.totalorder %s22, 1
      %s510 = scalar_select %p509, %s22, 1
      %s511 = scalar_lea.vmem %s4, %s510
      %p512 = scmp.lt.s32.totalorder %s22, 1
      %s513 = scalar_select %p512, %s22, 1
      %s514 = scalar_lea.vmem %s5, %s513
      %p515 = scmp.lt.s32.totalorder %s22, 1
      %s516 = scalar_select %p515, %s22, 1
      %s517 = smul.addr %s516, 8
      %s518 = smul.addr %s517, 8
      %s519 = scalar_lea.vmem %s6, %s518
      %p520 = scmp.lt.s32.totalorder %s22, 1
      %s521 = scalar_select %p520, %s22, 1
      %s522 = smul.addr %s521, 8
      %s523 = smul.addr %s522, 8
      %s524 = scalar_lea.vmem %s7, %s523
      %p525 = scmp.lt.s32.totalorder %s22, 1
      %s526 = scalar_select %p525, %s22, 1
      %s527 = smul.addr %s526, 2
      %s528 = scalar_lea.vmem %s8, %s527
      %p529 = scmp.lt.s32.totalorder %s22, 1
      %s530 = scalar_select %p529, %s22, 1
      %s531 = smul.addr %s530, 8
      %s532 = smul.addr %s531, 8
      %s533 = scalar_lea.vmem %s9, %s532
      %p534 = scmp.lt.s32.totalorder %s22, 1
      %s535 = scalar_select %p534, %s22, 1
      %s536 = smul.addr %s535, 2
      %s537 = scalar_lea.vmem %s10, %s536
      %p538 = scmp.lt.s32.totalorder %s22, 1
      %s539 = scalar_select %p538, %s22, 1
      %s540 = smul.addr %s539, 8
      %s541 = smul.addr %s540, 2
      %s542 = scalar_lea.vmem %s11, %s541
      %v543 = vld [vmem:[%s508] sm:$0x1]
      %v544 = vld [vmem:[%s511] sm:$0x1]
      %v545 = vld [vmem:[%s514] sm:$0x1]
      %v546 = vld [vmem:[%s519] sm:$0xff]
      %v547 = vld [vmem:[%s519 + $0x8] sm:$0xff]
      %v548 = vld [vmem:[%s519 + $0x10] sm:$0xff]
      %v549 = vld [vmem:[%s519 + $0x18] sm:$0xff]
      %v550 = vld [vmem:[%s519 + $0x20] sm:$0xff]
      %v551 = vld [vmem:[%s519 + $0x28] sm:$0xff]
      %v552 = vld [vmem:[%s519 + $0x30] sm:$0xff]
      %v553 = vld [vmem:[%s519 + $0x38] sm:$0xff]
      %v554 = vld [vmem:[%s524] sm:$0xff]
      %v555 = vld [vmem:[%s524 + $0x8] sm:$0xff]
      %v556 = vld [vmem:[%s524 + $0x10] sm:$0xff]
      %v557 = vld [vmem:[%s524 + $0x18] sm:$0xff]
      %v558 = vld [vmem:[%s524 + $0x20] sm:$0xff]
      %v559 = vld [vmem:[%s524 + $0x28] sm:$0xff]
      %v560 = vld [vmem:[%s524 + $0x30] sm:$0xff]
      %v561 = vld [vmem:[%s524 + $0x38] sm:$0xff]
      %v562 = vld [vmem:[%s528] sm:$0x3]
      %v563 = vld [vmem:[%s533] sm:$0xff]
      %v564 = vld [vmem:[%s533 + $0x8] sm:$0xff]
      %v565 = vld [vmem:[%s533 + $0x10] sm:$0xff]
      %v566 = vld [vmem:[%s533 + $0x18] sm:$0xff]
      %v567 = vld [vmem:[%s533 + $0x20] sm:$0xff]
      %v568 = vld [vmem:[%s533 + $0x28] sm:$0xff]
      %v569 = vld [vmem:[%s533 + $0x30] sm:$0xff]
      %v570 = vld [vmem:[%s533 + $0x38] sm:$0xff]
      %v571 = vld [vmem:[%s537] sm:$0x3]
      %v572 = vlaneseq
      %v573 = vshrl.u32 %v572, 7
      %v574 = vld [vmem:[%s500] sm:$0x3]
      %v576 = vlaneseq
      %v577 = vshrl.u32 %v576, 7
      %v578 = vsub.s32 0, %v577
      %v579 = vrot.slane %v562, %v578
      %v580 = vlaneseq
      %v581 = vshrl.u32 %v580, 7
      %v582 = vsub.s32 1, %v581
      %v583 = vrot.slane %v562, %v582
      %vm586 = vcmask 261120
      %v588 = vsel %vm586, %v574, 0
      %590 = vmatprep.subr.mxu0 %v555
      %591 = vmatpush1.msra.mxu0 %v554
      %592 = vmatprep.subr.mxu0 %v557
      %593 = vmatpush1.msra.mxu0 %v556
      %594 = vmatprep.subr.mxu0 %v559
      %595 = vmatpush1.msra.mxu0 %v558
      %596 = vmatprep.subr.mxu0 %v561
      %597 = vmatpush1.msra.mxu0 %v560
      %598 = vmatprep.subr.mxu0 0.0
      %599 = vmatpush1.msra.mxu0 0.0
      %600 = vmatprep.subr.mxu0 0.0
      %601 = vmatpush1.msra.mxu0 0.0
      %602 = vmatprep.subr.mxu0 0.0
      %603 = vmatpush1.msra.mxu0 0.0
      %604 = vmatprep.subr.mxu0 0.0
      %605 = vmatpush1.msra.mxu0 0.0
      %606 = vmatprep.subr.mxu0 0.0
      %607 = vmatpush1.msra.mxu0 0.0
      %608 = vmatprep.subr.mxu0 0.0
      %609 = vmatpush1.msra.mxu0 0.0
      %610 = vmatprep.subr.mxu0 0.0
      %611 = vmatpush1.msra.mxu0 0.0
      %612 = vmatprep.subr.mxu0 0.0
      %613 = vmatpush1.msra.mxu0 0.0
      %614 = vmatprep.subr.mxu0 0.0
      %615 = vmatpush1.msra.mxu0 0.0
      %616 = vmatprep.subr.mxu0 0.0
      %617 = vmatpush1.msra.mxu0 0.0
      %618 = vmatprep.subr.mxu0 0.0
      %619 = vmatpush1.msra.mxu0 0.0
      %620 = vmatprep.subr.mxu0 0.0
      %621 = vmatpush1.msra.mxu0 0.0
      %622 = vmatprep.subr.mxu0 0.0
      %623 = vmatpush1.msra.mxu0 0.0
      %624 = vmatprep.subr.mxu0 0.0
      %625 = vmatpush1.msra.mxu0 0.0
      %626 = vmatprep.subr.mxu0 0.0
      %627 = vmatpush1.msra.mxu0 0.0
      %628 = vmatprep.subr.mxu0 0.0
      %629 = vmatpush1.msra.mxu0 0.0
      %630 = vmatprep.subr.mxu0 0.0
      %631 = vmatpush1.msra.mxu0 0.0
      %632 = vmatprep.subr.mxu0 0.0
      %633 = vmatpush1.msra.mxu0 0.0
      %634 = vmatprep.subr.mxu0 0.0
      %635 = vmatpush1.msra.mxu0 0.0
      %636 = vmatprep.subr.mxu0 0.0
      %637 = vmatpush1.msra.mxu0 0.0
      %638 = vmatprep.subr.mxu0 0.0
      %639 = vmatpush1.msra.mxu0 0.0
      %640 = vmatprep.subr.mxu0 0.0
      %641 = vmatpush1.msra.mxu0 0.0
      %642 = vmatprep.subr.mxu0 0.0
      %643 = vmatpush1.msra.mxu0 0.0
      %644 = vmatprep.subr.mxu0 0.0
      %645 = vmatpush1.msra.mxu0 0.0
      %646 = vmatprep.subr.mxu0 0.0
      %647 = vmatpush1.msra.mxu0 0.0
      %648 = vmatprep.subr.mxu0 0.0
      %649 = vmatpush1.msra.mxu0 0.0
      %650 = vmatprep.subr.mxu0 0.0
      %651 = vmatpush1.msra.mxu0 0.0
      %652 = vmatprep.subr.mxu0 0.0
      %653 = vmatpush1.msra.mxu0 0.0
      %654 = vmatprep.mubr.f32.mxu0 0.0
      %655 = vmatmul.mubr.f32.gmra.mrb[0].mxu0 %v588
      %v656 = vpop.f32.mrb[0].mxu0
      %v657 = vadd.f32 %v579, %v656
      %v658 = vpop.f32.mrb[0].mxu0
      %v659 = vadd.f32 %v583, %v658
      %660 = vdwg.mxu0
      %v662 = vlaneseq
      %v663 = vshrl.u32 %v662, 7
      %v664 = vsub.s32 0, %v663
      %v665 = vrot.slane %v571, %v664
      %v666 = vlaneseq
      %v667 = vshrl.u32 %v666, 7
      %v668 = vsub.s32 1, %v667
      %v669 = vrot.slane %v571, %v668
      %v673 = vsel %vm586, 0.0, 0
      %675 = vmatprep.subr.mxu0 %v564
      %676 = vmatpush1.msra.mxu0 %v563
      %677 = vmatprep.subr.mxu0 %v566
      %678 = vmatpush1.msra.mxu0 %v565
      %679 = vmatprep.subr.mxu0 %v568
      %680 = vmatpush1.msra.mxu0 %v567
      %681 = vmatprep.subr.mxu0 %v570
      %682 = vmatpush1.msra.mxu0 %v569
      %683 = vmatprep.subr.mxu0 0.0
      %684 = vmatpush1.msra.mxu0 0.0
      %685 = vmatprep.subr.mxu0 0.0
      %686 = vmatpush1.msra.mxu0 0.0
      %687 = vmatprep.subr.mxu0 0.0
      %688 = vmatpush1.msra.mxu0 0.0
      %689 = vmatprep.subr.mxu0 0.0
      %690 = vmatpush1.msra.mxu0 0.0
      %691 = vmatprep.subr.mxu0 0.0
      %692 = vmatpush1.msra.mxu0 0.0
      %693 = vmatprep.subr.mxu0 0.0
      %694 = vmatpush1.msra.mxu0 0.0
      %695 = vmatprep.subr.mxu0 0.0
      %696 = vmatpush1.msra.mxu0 0.0
      %697 = vmatprep.subr.mxu0 0.0
      %698 = vmatpush1.msra.mxu0 0.0
      %699 = vmatprep.subr.mxu0 0.0
      %700 = vmatpush1.msra.mxu0 0.0
      %701 = vmatprep.subr.mxu0 0.0
      %702 = vmatpush1.msra.mxu0 0.0
      %703 = vmatprep.subr.mxu0 0.0
      %704 = vmatpush1.msra.mxu0 0.0
      %705 = vmatprep.subr.mxu0 0.0
      %706 = vmatpush1.msra.mxu0 0.0
      %707 = vmatprep.subr.mxu0 0.0
      %708 = vmatpush1.msra.mxu0 0.0
      %709 = vmatprep.subr.mxu0 0.0
      %710 = vmatpush1.msra.mxu0 0.0
      %711 = vmatprep.subr.mxu0 0.0
      %712 = vmatpush1.msra.mxu0 0.0
      %713 = vmatprep.subr.mxu0 0.0
      %714 = vmatpush1.msra.mxu0 0.0
      %715 = vmatprep.subr.mxu0 0.0
      %716 = vmatpush1.msra.mxu0 0.0
      %717 = vmatprep.subr.mxu0 0.0
      %718 = vmatpush1.msra.mxu0 0.0
      %719 = vmatprep.subr.mxu0 0.0
      %720 = vmatpush1.msra.mxu0 0.0
      %721 = vmatprep.subr.mxu0 0.0
      %722 = vmatpush1.msra.mxu0 0.0
      %723 = vmatprep.subr.mxu0 0.0
      %724 = vmatpush1.msra.mxu0 0.0
      %725 = vmatprep.subr.mxu0 0.0
      %726 = vmatpush1.msra.mxu0 0.0
      %727 = vmatprep.subr.mxu0 0.0
      %728 = vmatpush1.msra.mxu0 0.0
      %729 = vmatprep.subr.mxu0 0.0
      %730 = vmatpush1.msra.mxu0 0.0
      %731 = vmatprep.subr.mxu0 0.0
      %732 = vmatpush1.msra.mxu0 0.0
      %733 = vmatprep.subr.mxu0 0.0
      %734 = vmatpush1.msra.mxu0 0.0
      %735 = vmatprep.subr.mxu0 0.0
      %736 = vmatpush1.msra.mxu0 0.0
      %737 = vmatprep.subr.mxu0 0.0
      %738 = vmatpush1.msra.mxu0 0.0
      %739 = vmatprep.mubr.f32.mxu0 0.0
      %740 = vmatmul.mubr.f32.gmra.mrb[0].mxu0 %v673
      %v741 = vpop.f32.mrb[0].mxu0
      %v742 = vadd.f32 %v665, %v741
      %v743 = vpop.f32.mrb[0].mxu0
      %v744 = vadd.f32 %v669, %v743
      %745 = vdwg.mxu0
      %v746 = vadd.f32 %v657, %v742
      %v747 = vxor.u32 %v746, 2147483648
      %v748 = vmul.f32 %v747, 1.442695
      %v749 = vpow.pop %v748
      %v750 = vadd.f32 %v749, 1.0
      %v751 = vrcp.pop %v750
      %v752 = vmul.f32 1.0, %v751
      %754 = vrot.lane.b32.xlu0 %v742, 64
      %v755 = vpop.permute.xlu0 %754
      %v757 = vmul.f32 %v752, %v755
      %759 = vrot.lane.b32.xlu0 %v757, 64
      %v760 = vpop.permute.xlu0 %759
      %v762 = vadd.f32 %v657, %v760
      %v763 = vtanh.pop %v762
      %v764 = vsub.f32 1.0, %v752
      %766 = vrot.lane.b32.xlu0 %v763, 96
      %v767 = vpop.permute.xlu0 %766
      %v769 = vmul.f32 %v764, %v767
      %v770 = vmul.f32 %v752, 0.0
      %v771 = vadd.f32 %v769, %v770
      %v772 = vadd.f32 %v744, %v659
      %v773 = vxor.u32 %v772, 2147483648
      %v774 = vmul.f32 %v773, 1.442695
      %v775 = vpow.pop %v774
      %v776 = vadd.f32 %v775, 1.0
      %v777 = vrcp.pop %v776
      %v778 = vmul.f32 1.0, %v777
      %780 = vrot.lane.b32.xlu0 %v659, 64
      %v781 = vpop.permute.xlu0 %780
      %v783 = vmul.f32 %v752, %v781
      %785 = vrot.lane.b32.xlu0 %v783, 64
      %v786 = vpop.permute.xlu0 %785
      %v788 = vadd.f32 %v744, %v786
      %v789 = vtanh.pop %v788
      %v790 = vsub.f32 1.0, %v778
      %792 = vrot.lane.b32.xlu0 %v789, 96
      %v793 = vpop.permute.xlu0 %792
      %v795 = vmul.f32 %v790, %v793
      %v796 = vmul.f32 %v778, %v574
      %v797 = vadd.f32 %v795, %v796
      %799 = vrot.lane.b32.xlu0 %v797, 32
      %v800 = vpop.permute.xlu0 %799
      %v802 = vadd.f32 %v771, %v800
      %804 = vrot.lane.b32.xlu0 %v802, 96
      %v805 = vpop.permute.xlu0 %804
      %806 = vrot.lane.b32.xlu0 0.0, 96
      %v807 = vpop.permute.xlu0 %806
      %vm810 = vcmask 254976
      %811 = vst.msk [vmem:[%s542] sm:$0x3] %vm810, %v805
      %812 = vst.msk [vmem:[%s542 + $0x2] sm:$0x3] %vm810, %v807
      %813 = vst.msk [vmem:[%s542 + $0x4] sm:$0x3] %vm810, %v807
      %814 = vst.msk [vmem:[%s542 + $0x6] sm:$0x3] %vm810, %v807
      %815 = vst.msk [vmem:[%s542 + $0x8] sm:$0x3] %vm810, %v807
      %816 = vst.msk [vmem:[%s542 + $0xa] sm:$0x3] %vm810, %v807
      %817 = vst.msk [vmem:[%s542 + $0xc] sm:$0x3] %vm810, %v807
      %818 = vst.msk [vmem:[%s542 + $0xe] sm:$0x3] %vm810, %v807
      %vm819 = vcmp.eq.s32.totalorder %v573, 0
      %v821 = vlaneseq
      %v822 = vshrl.u32 %v821, 7
      %v823 = vsub.s32 0, %v822
      %v824 = vrot.slane %v544, %v823
      %825 = vrot.lane.b32.xlu0 %v824, 32
      %v826 = vpop.permute.xlu0 %825
      %v828 = vmul.f32 %v802, %v826
      %830 = vrot.lane.b32.xlu0 %v828, 96
      %v831 = vpop.permute.xlu0 %830
      %v833 = vsel %vm810, %v831, 0.0
      %834 = vadd.xlane.f32.xlu0 %v833
      %v835 = vpop.xlane.xlu0 %834
      %v837 = vlaneseq
      %v838 = vand.u32 %v837, 127
      %v839 = vlaneseq
      %v840 = vshrl.u32 %v839, 7
      %v841 = vsub.s32 %v838, %v840
      %v842 = vrot.slane %v835, %v841
      %vm843 = vcmask 1042434
      %v844 = vsel %vm843, %v842, %v842
      %vm845 = vcmask 1043459
      %v846 = vsel %vm845, %v842, %v844
      %vm847 = vcmask 1044484
      %v848 = vsel %vm847, %v842, %v846
      %vm849 = vcmask 1045509
      %v850 = vsel %vm849, %v842, %v848
      %vm851 = vcmask 1046534
      %v852 = vsel %vm851, %v842, %v850
      %vm853 = vcmask 1047559
      %v854 = vsel %vm853, %v842, %v852
      %v856 = vsel %vm819, %v854, 0.0
      %vm857 = vcmask 15360
      %858 = vst.msk [vmem:[#allocation2] sm:$0xff] %vm857, %v856
      %s859 = scalar_lea.vmem %s500, 2
      %v860 = vld [vmem:[%s859] sm:$0x3]
      %s861 = scalar_lea.vmem %s2, 8
      %v862 = vld [vmem:[%s861] sm:$0xff]
      %s863 = scalar_lea.vmem %s505, 8
      %v864 = vld [vmem:[%s863] sm:$0xff]
      %v865 = vld [vmem:[#allocation2] sm:$0xff]
      %v866 = vld [vmem:[%s542] sm:$0x3]
      %v867 = vld [vmem:[%s542 + $0x2] sm:$0x3]
      %v868 = vld [vmem:[%s542 + $0x4] sm:$0x3]
      %v869 = vld [vmem:[%s542 + $0x6] sm:$0x3]
      %v870 = vld [vmem:[%s542 + $0x8] sm:$0x3]
      %v871 = vld [vmem:[%s542 + $0xa] sm:$0x3]
      %v872 = vld [vmem:[%s542 + $0xc] sm:$0x3]
      %v873 = vld [vmem:[%s542 + $0xe] sm:$0x3]
      %v875 = vlaneseq
      %v876 = vshrl.u32 %v875, 7
      %v877 = vsub.s32 0, %v876
      %v878 = vrot.slane %v543, %v877
      %v880 = vmul.f32 %v860, %v878
      %v881 = vsel %vm810, %v880, 0.0
      %882 = vadd.xlane.f32.xlu0 %v881
      %v883 = vpop.xlane.xlu0 %882
      %v885 = vlaneseq
      %v886 = vshrl.u32 %v885, 7
      %v887 = vsub.s32 %v838, %v886
      %v888 = vrot.slane %v883, %v887
      %v889 = vsel %vm843, %v888, %v888
      %v890 = vsel %vm845, %v888, %v889
      %v891 = vsel %vm847, %v888, %v890
      %v892 = vsel %vm849, %v888, %v891
      %v893 = vsel %vm851, %v888, %v892
      %v894 = vsel %vm853, %v888, %v893
      %v896 = vadd.f32 %v865, %v894
      %v898 = vlaneseq
      %v899 = vshrl.u32 %v898, 7
      %v900 = vsub.s32 0, %v899
      %v901 = vrot.slane %v545, %v900
      %902 = vset.pattern.permute.xlu0 0
      %903 = vperm.xlu0 %902, %v901
      %v904 = vpop.permute.xlu0 %903
      %v906 = vadd.f32 %v896, %v904
      %v907 = vadd.f32 %v906, %v864
      %v908 = vsel %vm857, %v907, -inf
      %v909 = vrot.slane %v908, 4
      %v910 = vmax.f32 %v908, %v909
      %v911 = vrot.slane %v910, 2
      %v912 = vmax.f32 %v910, %v911
      %v913 = vrot.slane %v912, 1
      %v914 = vmax.f32 %v912, %v913
      %v915 = vsub.f32 %v907, %v914
      %v916 = vmul.f32 %v915, 1.442695
      %v917 = vpow.pop %v916
      %v918 = vsel %vm857, %v917, 0.0
      %v919 = vrot.slane %v918, 4
      %v920 = vadd.f32 %v918, %v919
      %v921 = vrot.slane %v920, 2
      %v922 = vadd.f32 %v920, %v921
      %v923 = vrot.slane %v922, 1
      %v924 = vadd.f32 %v922, %v923
      %v925 = vrcp.pop %v924
      %v926 = vmul.f32 %v917, %v925
      %v927 = vmul.f32 %v926, %v862
      %v928 = vsub.f32 %v926, %v927
      %v929 = vlaneseq
      %v930 = vshrl.u32 %v929, 7
      %v931 = vsub.s32 0, %v930
      %v932 = vrot.slane %v927, %v931
      %934 = vbcast.lane.b32.xlu0 %v932, 256
      %v935 = vpop.permute.xlu0 %934
      %v936 = vlaneseq
      %v937 = vshrl.u32 %v936, 7
      %v938 = vsub.s32 1, %v937
      %v939 = vrot.slane %v927, %v938
      %941 = vbcast.lane.b32.xlu0 %v939, 256
      %v942 = vpop.permute.xlu0 %941
      %v943 = vlaneseq
      %v944 = vshrl.u32 %v943, 7
      %v945 = vsub.s32 2, %v944
      %v946 = vrot.slane %v927, %v945
      %948 = vbcast.lane.b32.xlu0 %v946, 256
      %v949 = vpop.permute.xlu0 %948
      %v950 = vlaneseq
      %v951 = vshrl.u32 %v950, 7
      %v952 = vsub.s32 3, %v951
      %v953 = vrot.slane %v927, %v952
      %955 = vbcast.lane.b32.xlu0 %v953, 256
      %v956 = vpop.permute.xlu0 %955
      %v957 = vlaneseq
      %v958 = vshrl.u32 %v957, 7
      %v959 = vsub.s32 4, %v958
      %v960 = vrot.slane %v927, %v959
      %962 = vbcast.lane.b32.xlu0 %v960, 256
      %v963 = vpop.permute.xlu0 %962
      %v964 = vlaneseq
      %v965 = vshrl.u32 %v964, 7
      %v966 = vsub.s32 5, %v965
      %v967 = vrot.slane %v927, %v966
      %969 = vbcast.lane.b32.xlu0 %v967, 256
      %v970 = vpop.permute.xlu0 %969
      %v971 = vlaneseq
      %v972 = vshrl.u32 %v971, 7
      %v973 = vsub.s32 6, %v972
      %v974 = vrot.slane %v927, %v973
      %976 = vbcast.lane.b32.xlu0 %v974, 256
      %v977 = vpop.permute.xlu0 %976
      %v978 = vlaneseq
      %v979 = vshrl.u32 %v978, 7
      %v980 = vsub.s32 7, %v979
      %v981 = vrot.slane %v927, %v980
      %983 = vbcast.lane.b32.xlu0 %v981, 256
      %v984 = vpop.permute.xlu0 %983
      %v985 = vmul.f32 %v935, %v866
      %v986 = vmul.f32 %v942, %v867
      %v987 = vmul.f32 %v949, %v868
      %v988 = vmul.f32 %v956, %v869
      %v989 = vmul.f32 %v963, %v870
      %v990 = vmul.f32 %v970, %v871
      %v991 = vmul.f32 %v977, %v872
      %v992 = vmul.f32 %v984, %v873
      %v993 = vsel %vm810, %v985, 0.0
      %v994 = vsel %vm810, %v986, 0.0
      %v995 = vadd.f32 %v993, %v994
      %v996 = vsel %vm810, %v987, 0.0
      %v997 = vadd.f32 %v995, %v996
      %v998 = vsel %vm810, %v988, 0.0
      %v999 = vadd.f32 %v997, %v998
      %v1000 = vsel %vm810, %v989, 0.0
      %v1001 = vadd.f32 %v999, %v1000
      %v1002 = vsel %vm810, %v990, 0.0
      %v1003 = vadd.f32 %v1001, %v1002
      %v1004 = vsel %vm810, %v991, 0.0
      %v1005 = vadd.f32 %v1003, %v1004
      %v1006 = vsel %vm810, %v992, 0.0
      %v1007 = vadd.f32 %v1005, %v1006
      %v1008 = vlaneseq
      %v1009 = vshrl.u32 %v1008, 7
      %v1010 = vsub.s32 0, %v1009
      %v1011 = vrot.slane %v928, %v1010
      %1013 = vbcast.lane.b32.xlu0 %v1011, 256
      %v1014 = vpop.permute.xlu0 %1013
      %v1015 = vlaneseq
      %v1016 = vshrl.u32 %v1015, 7
      %v1017 = vsub.s32 1, %v1016
      %v1018 = vrot.slane %v928, %v1017
      %1020 = vbcast.lane.b32.xlu0 %v1018, 256
      %v1021 = vpop.permute.xlu0 %1020
      %v1022 = vlaneseq
      %v1023 = vshrl.u32 %v1022, 7
      %v1024 = vsub.s32 2, %v1023
      %v1025 = vrot.slane %v928, %v1024
      %1027 = vbcast.lane.b32.xlu0 %v1025, 256
      %v1028 = vpop.permute.xlu0 %1027
      %v1029 = vlaneseq
      %v1030 = vshrl.u32 %v1029, 7
      %v1031 = vsub.s32 3, %v1030
      %v1032 = vrot.slane %v928, %v1031
      %1034 = vbcast.lane.b32.xlu0 %v1032, 256
      %v1035 = vpop.permute.xlu0 %1034
      %v1036 = vlaneseq
      %v1037 = vshrl.u32 %v1036, 7
      %v1038 = vsub.s32 4, %v1037
      %v1039 = vrot.slane %v928, %v1038
      %1041 = vbcast.lane.b32.xlu0 %v1039, 256
      %v1042 = vpop.permute.xlu0 %1041
      %v1043 = vlaneseq
      %v1044 = vshrl.u32 %v1043, 7
      %v1045 = vsub.s32 5, %v1044
      %v1046 = vrot.slane %v928, %v1045
      %1048 = vbcast.lane.b32.xlu0 %v1046, 256
      %v1049 = vpop.permute.xlu0 %1048
      %v1050 = vlaneseq
      %v1051 = vshrl.u32 %v1050, 7
      %v1052 = vsub.s32 6, %v1051
      %v1053 = vrot.slane %v928, %v1052
      %1055 = vbcast.lane.b32.xlu0 %v1053, 256
      %v1056 = vpop.permute.xlu0 %1055
      %v1057 = vlaneseq
      %v1058 = vshrl.u32 %v1057, 7
      %v1059 = vsub.s32 7, %v1058
      %v1060 = vrot.slane %v928, %v1059
      %1062 = vbcast.lane.b32.xlu0 %v1060, 256
      %v1063 = vpop.permute.xlu0 %1062
      %v1064 = vmul.f32 %v1014, %v866
      %v1065 = vmul.f32 %v1021, %v867
      %v1066 = vmul.f32 %v1028, %v868
      %v1067 = vmul.f32 %v1035, %v869
      %v1068 = vmul.f32 %v1042, %v870
      %v1069 = vmul.f32 %v1049, %v871
      %v1070 = vmul.f32 %v1056, %v872
      %v1071 = vmul.f32 %v1063, %v873
      %v1072 = vsel %vm810, %v1064, 0.0
      %v1073 = vsel %vm810, %v1065, 0.0
      %v1074 = vadd.f32 %v1072, %v1073
      %v1075 = vsel %vm810, %v1066, 0.0
      %v1076 = vadd.f32 %v1074, %v1075
      %v1077 = vsel %vm810, %v1067, 0.0
      %v1078 = vadd.f32 %v1076, %v1077
      %v1079 = vsel %vm810, %v1068, 0.0
      %v1080 = vadd.f32 %v1078, %v1079
      %v1081 = vsel %vm810, %v1069, 0.0
      %v1082 = vadd.f32 %v1080, %v1081
      %v1083 = vsel %vm810, %v1070, 0.0
      %v1084 = vadd.f32 %v1082, %v1083
      %v1085 = vsel %vm810, %v1071, 0.0
      %v1086 = vadd.f32 %v1084, %v1085
      %1088 = vrot.lane.b32.xlu0 %v1086, 32
      %v1089 = vpop.permute.xlu0 %1088
      %v1091 = vsel %vm586, %v1007, %v1089
      %vm1092 = vcmask 523264
      %v1094 = vsel %vm1092, %v1091, 0
      %1096 = vmatprep.subr.mxu0 0.0
      %1097 = vmatpush1.msra.mxu0 %v546
      %1098 = vmatprep.subr.mxu0 0.0
      %1099 = vmatpush1.msra.mxu0 %v547
      %1100 = vmatprep.subr.mxu0 0.0
      %1101 = vmatpush1.msra.mxu0 %v548
      %1102 = vmatprep.subr.mxu0 0.0
      %1103 = vmatpush1.msra.mxu0 %v549
      %1104 = vmatprep.subr.mxu0 0.0
      %1105 = vmatpush1.msra.mxu0 %v550
      %1106 = vmatprep.subr.mxu0 0.0
      %1107 = vmatpush1.msra.mxu0 %v551
      %1108 = vmatprep.subr.mxu0 0.0
      %1109 = vmatpush1.msra.mxu0 %v552
      %1110 = vmatprep.subr.mxu0 0.0
      %1111 = vmatpush1.msra.mxu0 %v553
      %1112 = vmatprep.subr.mxu0 0.0
      %1113 = vmatpush1.msra.mxu0 0.0
      %1114 = vmatprep.subr.mxu0 0.0
      %1115 = vmatpush1.msra.mxu0 0.0
      %1116 = vmatprep.subr.mxu0 0.0
      %1117 = vmatpush1.msra.mxu0 0.0
      %1118 = vmatprep.subr.mxu0 0.0
      %1119 = vmatpush1.msra.mxu0 0.0
      %1120 = vmatprep.subr.mxu0 0.0
      %1121 = vmatpush1.msra.mxu0 0.0
      %1122 = vmatprep.subr.mxu0 0.0
      %1123 = vmatpush1.msra.mxu0 0.0
      %1124 = vmatprep.subr.mxu0 0.0
      %1125 = vmatpush1.msra.mxu0 0.0
      %1126 = vmatprep.subr.mxu0 0.0
      %1127 = vmatpush1.msra.mxu0 0.0
      %1128 = vmatprep.subr.mxu0 0.0
      %1129 = vmatpush1.msra.mxu0 0.0
      %1130 = vmatprep.subr.mxu0 0.0
      %1131 = vmatpush1.msra.mxu0 0.0
      %1132 = vmatprep.subr.mxu0 0.0
      %1133 = vmatpush1.msra.mxu0 0.0
      %1134 = vmatprep.subr.mxu0 0.0
      %1135 = vmatpush1.msra.mxu0 0.0
      %1136 = vmatprep.subr.mxu0 0.0
      %1137 = vmatpush1.msra.mxu0 0.0
      %1138 = vmatprep.subr.mxu0 0.0
      %1139 = vmatpush1.msra.mxu0 0.0
      %1140 = vmatprep.subr.mxu0 0.0
      %1141 = vmatpush1.msra.mxu0 0.0
      %1142 = vmatprep.subr.mxu0 0.0
      %1143 = vmatpush1.msra.mxu0 0.0
      %1144 = vmatprep.subr.mxu0 0.0
      %1145 = vmatpush1.msra.mxu0 0.0
      %1146 = vmatprep.subr.mxu0 0.0
      %1147 = vmatpush1.msra.mxu0 0.0
      %1148 = vmatprep.subr.mxu0 0.0
      %1149 = vmatpush1.msra.mxu0 0.0
      %1150 = vmatprep.subr.mxu0 0.0
      %1151 = vmatpush1.msra.mxu0 0.0
      %1152 = vmatprep.subr.mxu0 0.0
      %1153 = vmatpush1.msra.mxu0 0.0
      %1154 = vmatprep.subr.mxu0 0.0
      %1155 = vmatpush1.msra.mxu0 0.0
      %1156 = vmatprep.subr.mxu0 0.0
      %1157 = vmatpush1.msra.mxu0 0.0
      %1158 = vmatprep.subr.mxu0 0.0
      %1159 = vmatpush1.msra.mxu0 0.0
      %1160 = vmatprep.mubr.f32.mxu0 0.0
      %1161 = vmatmul.mubr.f32.gmra.mrb[0].mxu0 %v1094
      %v1162 = vpop.f32.mrb[0].mxu0
      %v1163 = vadd.f32 0.0, %v1162
      %v1164 = vpop.f32.mrb[0].mxu0
      %1165 = vdwg.mxu0
      %v1167 = vsel %vm586, %v860, 0
      %1169 = vmatprep.subr.mxu0 %v555
      %1170 = vmatpush1.msra.mxu0 %v554
      %1171 = vmatprep.subr.mxu0 %v557
      %1172 = vmatpush1.msra.mxu0 %v556
      %1173 = vmatprep.subr.mxu0 %v559
      %1174 = vmatpush1.msra.mxu0 %v558
      %1175 = vmatprep.subr.mxu0 %v561
      %1176 = vmatpush1.msra.mxu0 %v560
      %1177 = vmatprep.subr.mxu0 0.0
      %1178 = vmatpush1.msra.mxu0 0.0
      %1179 = vmatprep.subr.mxu0 0.0
      %1180 = vmatpush1.msra.mxu0 0.0
      %1181 = vmatprep.subr.mxu0 0.0
      %1182 = vmatpush1.msra.mxu0 0.0
      %1183 = vmatprep.subr.mxu0 0.0
      %1184 = vmatpush1.msra.mxu0 0.0
      %1185 = vmatprep.subr.mxu0 0.0
      %1186 = vmatpush1.msra.mxu0 0.0
      %1187 = vmatprep.subr.mxu0 0.0
      %1188 = vmatpush1.msra.mxu0 0.0
      %1189 = vmatprep.subr.mxu0 0.0
      %1190 = vmatpush1.msra.mxu0 0.0
      %1191 = vmatprep.subr.mxu0 0.0
      %1192 = vmatpush1.msra.mxu0 0.0
      %1193 = vmatprep.subr.mxu0 0.0
      %1194 = vmatpush1.msra.mxu0 0.0
      %1195 = vmatprep.subr.mxu0 0.0
      %1196 = vmatpush1.msra.mxu0 0.0
      %1197 = vmatprep.subr.mxu0 0.0
      %1198 = vmatpush1.msra.mxu0 0.0
      %1199 = vmatprep.subr.mxu0 0.0
      %1200 = vmatpush1.msra.mxu0 0.0
      %1201 = vmatprep.subr.mxu0 0.0
      %1202 = vmatpush1.msra.mxu0 0.0
      %1203 = vmatprep.subr.mxu0 0.0
      %1204 = vmatpush1.msra.mxu0 0.0
      %1205 = vmatprep.subr.mxu0 0.0
      %1206 = vmatpush1.msra.mxu0 0.0
      %1207 = vmatprep.subr.mxu0 0.0
      %1208 = vmatpush1.msra.mxu0 0.0
      %1209 = vmatprep.subr.mxu0 0.0
      %1210 = vmatpush1.msra.mxu0 0.0
      %1211 = vmatprep.subr.mxu0 0.0
      %1212 = vmatpush1.msra.mxu0 0.0
      %1213 = vmatprep.subr.mxu0 0.0
      %1214 = vmatpush1.msra.mxu0 0.0
      %1215 = vmatprep.subr.mxu0 0.0
      %1216 = vmatpush1.msra.mxu0 0.0
      %1217 = vmatprep.subr.mxu0 0.0
      %1218 = vmatpush1.msra.mxu0 0.0
      %1219 = vmatprep.subr.mxu0 0.0
      %1220 = vmatpush1.msra.mxu0 0.0
      %1221 = vmatprep.subr.mxu0 0.0
      %1222 = vmatpush1.msra.mxu0 0.0
      %1223 = vmatprep.subr.mxu0 0.0
      %1224 = vmatpush1.msra.mxu0 0.0
      %1225 = vmatprep.subr.mxu0 0.0
      %1226 = vmatpush1.msra.mxu0 0.0
      %1227 = vmatprep.subr.mxu0 0.0
      %1228 = vmatpush1.msra.mxu0 0.0
      %1229 = vmatprep.subr.mxu0 0.0
      %1230 = vmatpush1.msra.mxu0 0.0
      %1231 = vmatprep.subr.mxu0 0.0
      %1232 = vmatpush1.msra.mxu0 0.0
      %1233 = vmatprep.mubr.f32.mxu0 0.0
      %1234 = vmatmul.mubr.f32.gmra.mrb[0].mxu0 %v1167
      %v1235 = vpop.f32.mrb[0].mxu0
      %v1236 = vadd.f32 %v579, %v1235
      %v1237 = vpop.f32.mrb[0].mxu0
      %v1238 = vadd.f32 %v583, %v1237
      %1239 = vdwg.mxu0
      %v1241 = vsel %vm586, %v1163, 0
      %1243 = vmatprep.subr.mxu0 %v564
      %1244 = vmatpush1.msra.mxu0 %v563
      %1245 = vmatprep.subr.mxu0 %v566
      %1246 = vmatpush1.msra.mxu0 %v565
      %1247 = vmatprep.subr.mxu0 %v568
      %1248 = vmatpush1.msra.mxu0 %v567
      %1249 = vmatprep.subr.mxu0 %v570
      %1250 = vmatpush1.msra.mxu0 %v569
      %1251 = vmatprep.subr.mxu0 0.0
      %1252 = vmatpush1.msra.mxu0 0.0
      %1253 = vmatprep.subr.mxu0 0.0
      %1254 = vmatpush1.msra.mxu0 0.0
      %1255 = vmatprep.subr.mxu0 0.0
      %1256 = vmatpush1.msra.mxu0 0.0
      %1257 = vmatprep.subr.mxu0 0.0
      %1258 = vmatpush1.msra.mxu0 0.0
      %1259 = vmatprep.subr.mxu0 0.0
      %1260 = vmatpush1.msra.mxu0 0.0
      %1261 = vmatprep.subr.mxu0 0.0
      %1262 = vmatpush1.msra.mxu0 0.0
      %1263 = vmatprep.subr.mxu0 0.0
      %1264 = vmatpush1.msra.mxu0 0.0
      %1265 = vmatprep.subr.mxu0 0.0
      %1266 = vmatpush1.msra.mxu0 0.0
      %1267 = vmatprep.subr.mxu0 0.0
      %1268 = vmatpush1.msra.mxu0 0.0
      %1269 = vmatprep.subr.mxu0 0.0
      %1270 = vmatpush1.msra.mxu0 0.0
      %1271 = vmatprep.subr.mxu0 0.0
      %1272 = vmatpush1.msra.mxu0 0.0
      %1273 = vmatprep.subr.mxu0 0.0
      %1274 = vmatpush1.msra.mxu0 0.0
      %1275 = vmatprep.subr.mxu0 0.0
      %1276 = vmatpush1.msra.mxu0 0.0
      %1277 = vmatprep.subr.mxu0 0.0
      %1278 = vmatpush1.msra.mxu0 0.0
      %1279 = vmatprep.subr.mxu0 0.0
      %1280 = vmatpush1.msra.mxu0 0.0
      %1281 = vmatprep.subr.mxu0 0.0
      %1282 = vmatpush1.msra.mxu0 0.0
      %1283 = vmatprep.subr.mxu0 0.0
      %1284 = vmatpush1.msra.mxu0 0.0
      %1285 = vmatprep.subr.mxu0 0.0
      %1286 = vmatpush1.msra.mxu0 0.0
      %1287 = vmatprep.subr.mxu0 0.0
      %1288 = vmatpush1.msra.mxu0 0.0
      %1289 = vmatprep.subr.mxu0 0.0
      %1290 = vmatpush1.msra.mxu0 0.0
      %1291 = vmatprep.subr.mxu0 0.0
      %1292 = vmatpush1.msra.mxu0 0.0
      %1293 = vmatprep.subr.mxu0 0.0
      %1294 = vmatpush1.msra.mxu0 0.0
      %1295 = vmatprep.subr.mxu0 0.0
      %1296 = vmatpush1.msra.mxu0 0.0
      %1297 = vmatprep.subr.mxu0 0.0
      %1298 = vmatpush1.msra.mxu0 0.0
      %1299 = vmatprep.subr.mxu0 0.0
      %1300 = vmatpush1.msra.mxu0 0.0
      %1301 = vmatprep.subr.mxu0 0.0
      %1302 = vmatpush1.msra.mxu0 0.0
      %1303 = vmatprep.subr.mxu0 0.0
      %1304 = vmatpush1.msra.mxu0 0.0
      %1305 = vmatprep.subr.mxu0 0.0
      %1306 = vmatpush1.msra.mxu0 0.0
      %1307 = vmatprep.mubr.f32.mxu0 0.0
      %1308 = vmatmul.mubr.f32.gmra.mrb[0].mxu0 %v1241
      %v1309 = vpop.f32.mrb[0].mxu0
      %v1310 = vadd.f32 %v665, %v1309
      %v1311 = vpop.f32.mrb[0].mxu0
      %v1312 = vadd.f32 %v669, %v1311
      %1313 = vdwg.mxu0
      %v1314 = vadd.f32 %v1236, %v1310
      %v1315 = vxor.u32 %v1314, 2147483648
      %v1316 = vmul.f32 %v1315, 1.442695
      %v1317 = vpow.pop %v1316
      %v1318 = vadd.f32 %v1317, 1.0
      %v1319 = vrcp.pop %v1318
      %v1320 = vmul.f32 1.0, %v1319
      %1322 = vrot.lane.b32.xlu0 %v1310, 64
      %v1323 = vpop.permute.xlu0 %1322
      %v1325 = vmul.f32 %v1320, %v1323
      %1327 = vrot.lane.b32.xlu0 %v1325, 64
      %v1328 = vpop.permute.xlu0 %1327
      %v1330 = vadd.f32 %v1236, %v1328
      %v1331 = vtanh.pop %v1330
      %v1332 = vsub.f32 1.0, %v1320
      %1334 = vrot.lane.b32.xlu0 %v1331, 96
      %v1335 = vpop.permute.xlu0 %1334
      %v1337 = vmul.f32 %v1332, %v1335
      %1338 = vrot.lane.b32.xlu0 %v1163, 32
      %v1339 = vpop.permute.xlu0 %1338
      %v1341 = vmul.f32 %v1320, %v1339
      %v1342 = vadd.f32 %v1337, %v1341
      %v1343 = vadd.f32 %v1312, %v1238
      %v1344 = vxor.u32 %v1343, 2147483648
      %v1345 = vmul.f32 %v1344, 1.442695
      %v1346 = vpow.pop %v1345
      %v1347 = vadd.f32 %v1346, 1.0
      %v1348 = vrcp.pop %v1347
      %v1349 = vmul.f32 1.0, %v1348
      %1351 = vrot.lane.b32.xlu0 %v1238, 64
      %v1352 = vpop.permute.xlu0 %1351
      %v1354 = vmul.f32 %v1320, %v1352
      %1356 = vrot.lane.b32.xlu0 %v1354, 64
      %v1357 = vpop.permute.xlu0 %1356
      %v1359 = vadd.f32 %v1312, %v1357
      %v1360 = vtanh.pop %v1359
      %v1361 = vsub.f32 1.0, %v1349
      %1363 = vrot.lane.b32.xlu0 %v1360, 96
      %v1364 = vpop.permute.xlu0 %1363
      %v1366 = vmul.f32 %v1361, %v1364
      %v1367 = vmul.f32 %v1349, %v860
      %v1368 = vadd.f32 %v1366, %v1367
      %1370 = vrot.lane.b32.xlu0 %v1368, 32
      %v1371 = vpop.permute.xlu0 %1370
      %v1373 = vadd.f32 %v1342, %v1371
      %1375 = vrot.lane.b32.xlu0 %v1373, 96
      %v1376 = vpop.permute.xlu0 %1375
      %s1378 = scalar_lea.vmem %s542, 2
      %1379 = vst.msk [vmem:[%s1378] sm:$0x3] %vm810, %v1376
      %vm1380 = vcmp.eq.s32.totalorder %v573, 1
      %v1381 = vmul.f32 %v1373, %v826
      %1383 = vrot.lane.b32.xlu0 %v1381, 96
      %v1384 = vpop.permute.xlu0 %1383
      %v1386 = vsel %vm810, %v1384, 0.0
      %1387 = vadd.xlane.f32.xlu0 %v1386
      %v1388 = vpop.xlane.xlu0 %1387
      %v1390 = vlaneseq
      %v1391 = vshrl.u32 %v1390, 7
      %v1392 = vsub.s32 %v838, %v1391
      %v1393 = vrot.slane %v1388, %v1392
      %v1394 = vsel %vm843, %v1393, %v1393
      %v1395 = vsel %vm845, %v1393, %v1394
      %v1396 = vsel %vm847, %v1393, %v1395
      %v1397 = vsel %vm849, %v1393, %v1396
      %v1398 = vsel %vm851, %v1393, %v1397
      %v1399 = vsel %vm853, %v1393, %v1398
      %v1401 = vsel %vm1380, %v1399, %v865
      %1402 = vst.msk [vmem:[#allocation2] sm:$0xff] %vm857, %v1401
      %s1403 = scalar_lea.vmem %s500, 4
      %v1404 = vld [vmem:[%s1403] sm:$0x3]
      %s1405 = scalar_lea.vmem %s2, 16
      %v1406 = vld [vmem:[%s1405] sm:$0xff]
      %s1407 = scalar_lea.vmem %s505, 16
      %v1408 = vld [vmem:[%s1407] sm:$0xff]
      %v1409 = vld [vmem:[#allocation2] sm:$0xff]
      %v1410 = vld [vmem:[%s542] sm:$0x3]
      %v1411 = vld [vmem:[%s542 + $0x2] sm:$0x3]
      %v1412 = vld [vmem:[%s542 + $0x4] sm:$0x3]
      %v1413 = vld [vmem:[%s542 + $0x6] sm:$0x3]
      %v1414 = vld [vmem:[%s542 + $0x8] sm:$0x3]
      %v1415 = vld [vmem:[%s542 + $0xa] sm:$0x3]
      %v1416 = vld [vmem:[%s542 + $0xc] sm:$0x3]
      %v1417 = vld [vmem:[%s542 + $0xe] sm:$0x3]
      %v1418 = vmul.f32 %v1404, %v878
      %v1419 = vsel %vm810, %v1418, 0.0
      %1420 = vadd.xlane.f32.xlu0 %v1419
      %v1421 = vpop.xlane.xlu0 %1420
      %v1423 = vlaneseq
      %v1424 = vshrl.u32 %v1423, 7
      %v1425 = vsub.s32 %v838, %v1424
      %v1426 = vrot.slane %v1421, %v1425
      %v1427 = vsel %vm843, %v1426, %v1426
      %v1428 = vsel %vm845, %v1426, %v1427
      %v1429 = vsel %vm847, %v1426, %v1428
      %v1430 = vsel %vm849, %v1426, %v1429
      %v1431 = vsel %vm851, %v1426, %v1430
      %v1432 = vsel %vm853, %v1426, %v1431
      %v1434 = vadd.f32 %v1409, %v1432
      %v1435 = vadd.f32 %v1434, %v904
      %v1436 = vadd.f32 %v1435, %v1408
      %v1437 = vsel %vm857, %v1436, -inf
      %v1438 = vrot.slane %v1437, 4
      %v1439 = vmax.f32 %v1437, %v1438
      %v1440 = vrot.slane %v1439, 2
      %v1441 = vmax.f32 %v1439, %v1440
      %v1442 = vrot.slane %v1441, 1
      %v1443 = vmax.f32 %v1441, %v1442
      %v1444 = vsub.f32 %v1436, %v1443
      %v1445 = vmul.f32 %v1444, 1.442695
      %v1446 = vpow.pop %v1445
      %v1447 = vsel %vm857, %v1446, 0.0
      %v1448 = vrot.slane %v1447, 4
      %v1449 = vadd.f32 %v1447, %v1448
      %v1450 = vrot.slane %v1449, 2
      %v1451 = vadd.f32 %v1449, %v1450
      %v1452 = vrot.slane %v1451, 1
      %v1453 = vadd.f32 %v1451, %v1452
      %v1454 = vrcp.pop %v1453
      %v1455 = vmul.f32 %v1446, %v1454
      %v1456 = vmul.f32 %v1455, %v1406
      %v1457 = vsub.f32 %v1455, %v1456
      %v1458 = vlaneseq
      %v1459 = vshrl.u32 %v1458, 7
      %v1460 = vsub.s32 0, %v1459
      %v1461 = vrot.slane %v1456, %v1460
      %1463 = vbcast.lane.b32.xlu0 %v1461, 256
      %v1464 = vpop.permute.xlu0 %1463
      %v1465 = vlaneseq
      %v1466 = vshrl.u32 %v1465, 7
      %v1467 = vsub.s32 1, %v1466
      %v1468 = vrot.slane %v1456, %v1467
      %1470 = vbcast.lane.b32.xlu0 %v1468, 256
      %v1471 = vpop.permute.xlu0 %1470
      %v1472 = vlaneseq
      %v1473 = vshrl.u32 %v1472, 7
      %v1474 = vsub.s32 2, %v1473
      %v1475 = vrot.slane %v1456, %v1474
      %1477 = vbcast.lane.b32.xlu0 %v1475, 256
      %v1478 = vpop.permute.xlu0 %1477
      %v1479 = vlaneseq
      %v1480 = vshrl.u32 %v1479, 7
      %v1481 = vsub.s32 3, %v1480
      %v1482 = vrot.slane %v1456, %v1481
      %1484 = vbcast.lane.b32.xlu0 %v1482, 256
      %v1485 = vpop.permute.xlu0 %1484
      %v1486 = vlaneseq
      %v1487 = vshrl.u32 %v1486, 7
      %v1488 = vsub.s32 4, %v1487
      %v1489 = vrot.slane %v1456, %v1488
      %1491 = vbcast.lane.b32.xlu0 %v1489, 256
      %v1492 = vpop.permute.xlu0 %1491
      %v1493 = vlaneseq
      %v1494 = vshrl.u32 %v1493, 7
      %v1495 = vsub.s32 5, %v1494
      %v1496 = vrot.slane %v1456, %v1495
      %1498 = vbcast.lane.b32.xlu0 %v1496, 256
      %v1499 = vpop.permute.xlu0 %1498
      %v1500 = vlaneseq
      %v1501 = vshrl.u32 %v1500, 7
      %v1502 = vsub.s32 6, %v1501
      %v1503 = vrot.slane %v1456, %v1502
      %1505 = vbcast.lane.b32.xlu0 %v1503, 256
      %v1506 = vpop.permute.xlu0 %1505
      %v1507 = vlaneseq
      %v1508 = vshrl.u32 %v1507, 7
      %v1509 = vsub.s32 7, %v1508
      %v1510 = vrot.slane %v1456, %v1509
      %1512 = vbcast.lane.b32.xlu0 %v1510, 256
      %v1513 = vpop.permute.xlu0 %1512
      %v1514 = vmul.f32 %v1464, %v1410
      %v1515 = vmul.f32 %v1471, %v1411
      %v1516 = vmul.f32 %v1478, %v1412
      %v1517 = vmul.f32 %v1485, %v1413
      %v1518 = vmul.f32 %v1492, %v1414
      %v1519 = vmul.f32 %v1499, %v1415
      %v1520 = vmul.f32 %v1506, %v1416
      %v1521 = vmul.f32 %v1513, %v1417
      %v1522 = vsel %vm810, %v1514, 0.0
      %v1523 = vsel %vm810, %v1515, 0.0
      %v1524 = vadd.f32 %v1522, %v1523
      %v1525 = vsel %vm810, %v1516, 0.0
      %v1526 = vadd.f32 %v1524, %v1525
      %v1527 = vsel %vm810, %v1517, 0.0
      %v1528 = vadd.f32 %v1526, %v1527
      %v1529 = vsel %vm810, %v1518, 0.0
      %v1530 = vadd.f32 %v1528, %v1529
      %v1531 = vsel %vm810, %v1519, 0.0
      %v1532 = vadd.f32 %v1530, %v1531
      %v1533 = vsel %vm810, %v1520, 0.0
      %v1534 = vadd.f32 %v1532, %v1533
      %v1535 = vsel %vm810, %v1521, 0.0
      %v1536 = vadd.f32 %v1534, %v1535
      %v1537 = vlaneseq
      %v1538 = vshrl.u32 %v1537, 7
      %v1539 = vsub.s32 0, %v1538
      %v1540 = vrot.slane %v1457, %v1539
      %1542 = vbcast.lane.b32.xlu0 %v1540, 256
      %v1543 = vpop.permute.xlu0 %1542
      %v1544 = vlaneseq
      %v1545 = vshrl.u32 %v1544, 7
      %v1546 = vsub.s32 1, %v1545
      %v1547 = vrot.slane %v1457, %v1546
      %1549 = vbcast.lane.b32.xlu0 %v1547, 256
      %v1550 = vpop.permute.xlu0 %1549
      %v1551 = vlaneseq
      %v1552 = vshrl.u32 %v1551, 7
      %v1553 = vsub.s32 2, %v1552
      %v1554 = vrot.slane %v1457, %v1553
      %1556 = vbcast.lane.b32.xlu0 %v1554, 256
      %v1557 = vpop.permute.xlu0 %1556
      %v1558 = vlaneseq
      %v1559 = vshrl.u32 %v1558, 7
      %v1560 = vsub.s32 3, %v1559
      %v1561 = vrot.slane %v1457, %v1560
      %1563 = vbcast.lane.b32.xlu0 %v1561, 256
      %v1564 = vpop.permute.xlu0 %1563
      %v1565 = vlaneseq
      %v1566 = vshrl.u32 %v1565, 7
      %v1567 = vsub.s32 4, %v1566
      %v1568 = vrot.slane %v1457, %v1567
      %1570 = vbcast.lane.b32.xlu0 %v1568, 256
      %v1571 = vpop.permute.xlu0 %1570
      %v1572 = vlaneseq
      %v1573 = vshrl.u32 %v1572, 7
      %v1574 = vsub.s32 5, %v1573
      %v1575 = vrot.slane %v1457, %v1574
      %1577 = vbcast.lane.b32.xlu0 %v1575, 256
      %v1578 = vpop.permute.xlu0 %1577
      %v1579 = vlaneseq
      %v1580 = vshrl.u32 %v1579, 7
      %v1581 = vsub.s32 6, %v1580
      %v1582 = vrot.slane %v1457, %v1581
      %1584 = vbcast.lane.b32.xlu0 %v1582, 256
      %v1585 = vpop.permute.xlu0 %1584
      %v1586 = vlaneseq
      %v1587 = vshrl.u32 %v1586, 7
      %v1588 = vsub.s32 7, %v1587
      %v1589 = vrot.slane %v1457, %v1588
      %1591 = vbcast.lane.b32.xlu0 %v1589, 256
      %v1592 = vpop.permute.xlu0 %1591
      %v1593 = vmul.f32 %v1543, %v1410
      %v1594 = vmul.f32 %v1550, %v1411
      %v1595 = vmul.f32 %v1557, %v1412
      %v1596 = vmul.f32 %v1564, %v1413
      %v1597 = vmul.f32 %v1571, %v1414
      %v1598 = vmul.f32 %v1578, %v1415
      %v1599 = vmul.f32 %v1585, %v1416
      %v1600 = vmul.f32 %v1592, %v1417
      %v1601 = vsel %vm810, %v1593, 0.0
      %v1602 = vsel %vm810, %v1594, 0.0
      %v1603 = vadd.f32 %v1601, %v1602
      %v1604 = vsel %vm810, %v1595, 0.0
      %v1605 = vadd.f32 %v1603, %v1604
      %v1606 = vsel %vm810, %v1596, 0.0
      %v1607 = vadd.f32 %v1605, %v1606
      %v1608 = vsel %vm810, %v1597, 0.0
      %v1609 = vadd.f32 %v1607, %v1608
      %v1610 = vsel %vm810, %v1598, 0.0
      %v1611 = vadd.f32 %v1609, %v1610
      %v1612 = vsel %vm810, %v1599, 0.0
      %v1613 = vadd.f32 %v1611, %v1612
      %v1614 = vsel %vm810, %v1600, 0.0
      %v1615 = vadd.f32 %v1613, %v1614
      %1617 = vrot.lane.b32.xlu0 %v1615, 32
      %v1618 = vpop.permute.xlu0 %1617
      %v1620 = vsel %vm586, %v1536, %v1618
      %v1622 = vsel %vm1092, %v1620, 0
      %1624 = vmatprep.subr.mxu0 0.0
      %1625 = vmatpush1.msra.mxu0 %v546
      %1626 = vmatprep.subr.mxu0 0.0
      %1627 = vmatpush1.msra.mxu0 %v547
      %1628 = vmatprep.subr.mxu0 0.0
      %1629 = vmatpush1.msra.mxu0 %v548
      %1630 = vmatprep.subr.mxu0 0.0
      %1631 = vmatpush1.msra.mxu0 %v549
      %1632 = vmatprep.subr.mxu0 0.0
      %1633 = vmatpush1.msra.mxu0 %v550
      %1634 = vmatprep.subr.mxu0 0.0
      %1635 = vmatpush1.msra.mxu0 %v551
      %1636 = vmatprep.subr.mxu0 0.0
      %1637 = vmatpush1.msra.mxu0 %v552
      %1638 = vmatprep.subr.mxu0 0.0
      %1639 = vmatpush1.msra.mxu0 %v553
      %1640 = vmatprep.subr.mxu0 0.0
      %1641 = vmatpush1.msra.mxu0 0.0
      %1642 = vmatprep.subr.mxu0 0.0
      %1643 = vmatpush1.msra.mxu0 0.0
      %1644 = vmatprep.subr.mxu0 0.0
      %1645 = vmatpush1.msra.mxu0 0.0
      %1646 = vmatprep.subr.mxu0 0.0
      %1647 = vmatpush1.msra.mxu0 0.0
      %1648 = vmatprep.subr.mxu0 0.0
      %1649 = vmatpush1.msra.mxu0 0.0
      %1650 = vmatprep.subr.mxu0 0.0
      %1651 = vmatpush1.msra.mxu0 0.0
      %1652 = vmatprep.subr.mxu0 0.0
      %1653 = vmatpush1.msra.mxu0 0.0
      %1654 = vmatprep.subr.mxu0 0.0
      %1655 = vmatpush1.msra.mxu0 0.0
      %1656 = vmatprep.subr.mxu0 0.0
      %1657 = vmatpush1.msra.mxu0 0.0
      %1658 = vmatprep.subr.mxu0 0.0
      %1659 = vmatpush1.msra.mxu0 0.0
      %1660 = vmatprep.subr.mxu0 0.0
      %1661 = vmatpush1.msra.mxu0 0.0
      %1662 = vmatprep.subr.mxu0 0.0
      %1663 = vmatpush1.msra.mxu0 0.0
      %1664 = vmatprep.subr.mxu0 0.0
      %1665 = vmatpush1.msra.mxu0 0.0
      %1666 = vmatprep.subr.mxu0 0.0
      %1667 = vmatpush1.msra.mxu0 0.0
      %1668 = vmatprep.subr.mxu0 0.0
      %1669 = vmatpush1.msra.mxu0 0.0
      %1670 = vmatprep.subr.mxu0 0.0
      %1671 = vmatpush1.msra.mxu0 0.0
      %1672 = vmatprep.subr.mxu0 0.0
      %1673 = vmatpush1.msra.mxu0 0.0
      %1674 = vmatprep.subr.mxu0 0.0
      %1675 = vmatpush1.msra.mxu0 0.0
      %1676 = vmatprep.subr.mxu0 0.0
      %1677 = vmatpush1.msra.mxu0 0.0
      %1678 = vmatprep.subr.mxu0 0.0
      %1679 = vmatpush1.msra.mxu0 0.0
      %1680 = vmatprep.subr.mxu0 0.0
      %1681 = vmatpush1.msra.mxu0 0.0
      %1682 = vmatprep.subr.mxu0 0.0
      %1683 = vmatpush1.msra.mxu0 0.0
      %1684 = vmatprep.subr.mxu0 0.0
      %1685 = vmatpush1.msra.mxu0 0.0
      %1686 = vmatprep.subr.mxu0 0.0
      %1687 = vmatpush1.msra.mxu0 0.0
      %1688 = vmatprep.mubr.f32.mxu0 0.0
      %1689 = vmatmul.mubr.f32.gmra.mrb[0].mxu0 %v1622
      %v1690 = vpop.f32.mrb[0].mxu0
      %v1691 = vadd.f32 0.0, %v1690
      %v1692 = vpop.f32.mrb[0].mxu0
      %1693 = vdwg.mxu0
      %v1695 = vsel %vm586, %v1404, 0
      %1697 = vmatprep.subr.mxu0 %v555
      %1698 = vmatpush1.msra.mxu0 %v554
      %1699 = vmatprep.subr.mxu0 %v557
      %1700 = vmatpush1.msra.mxu0 %v556
      %1701 = vmatprep.subr.mxu0 %v559
      %1702 = vmatpush1.msra.mxu0 %v558
      %1703 = vmatprep.subr.mxu0 %v561
      %1704 = vmatpush1.msra.mxu0 %v560
      %1705 = vmatprep.subr.mxu0 0.0
      %1706 = vmatpush1.msra.mxu0 0.0
      %1707 = vmatprep.subr.mxu0 0.0
      %1708 = vmatpush1.msra.mxu0 0.0
      %1709 = vmatprep.subr.mxu0 0.0
      %1710 = vmatpush1.msra.mxu0 0.0
      %1711 = vmatprep.subr.mxu0 0.0
      %1712 = vmatpush1.msra.mxu0 0.0
      %1713 = vmatprep.subr.mxu0 0.0
      %1714 = vmatpush1.msra.mxu0 0.0
      %1715 = vmatprep.subr.mxu0 0.0
      %1716 = vmatpush1.msra.mxu0 0.0
      %1717 = vmatprep.subr.mxu0 0.0
      %1718 = vmatpush1.msra.mxu0 0.0
      %1719 = vmatprep.subr.mxu0 0.0
      %1720 = vmatpush1.msra.mxu0 0.0
      %1721 = vmatprep.subr.mxu0 0.0
      %1722 = vmatpush1.msra.mxu0 0.0
      %1723 = vmatprep.subr.mxu0 0.0
      %1724 = vmatpush1.msra.mxu0 0.0
      %1725 = vmatprep.subr.mxu0 0.0
      %1726 = vmatpush1.msra.mxu0 0.0
      %1727 = vmatprep.subr.mxu0 0.0
      %1728 = vmatpush1.msra.mxu0 0.0
      %1729 = vmatprep.subr.mxu0 0.0
      %1730 = vmatpush1.msra.mxu0 0.0
      %1731 = vmatprep.subr.mxu0 0.0
      %1732 = vmatpush1.msra.mxu0 0.0
      %1733 = vmatprep.subr.mxu0 0.0
      %1734 = vmatpush1.msra.mxu0 0.0
      %1735 = vmatprep.subr.mxu0 0.0
      %1736 = vmatpush1.msra.mxu0 0.0
      %1737 = vmatprep.subr.mxu0 0.0
      %1738 = vmatpush1.msra.mxu0 0.0
      %1739 = vmatprep.subr.mxu0 0.0
      %1740 = vmatpush1.msra.mxu0 0.0
      %1741 = vmatprep.subr.mxu0 0.0
      %1742 = vmatpush1.msra.mxu0 0.0
      %1743 = vmatprep.subr.mxu0 0.0
      %1744 = vmatpush1.msra.mxu0 0.0
      %1745 = vmatprep.subr.mxu0 0.0
      %1746 = vmatpush1.msra.mxu0 0.0
      %1747 = vmatprep.subr.mxu0 0.0
      %1748 = vmatpush1.msra.mxu0 0.0
      %1749 = vmatprep.subr.mxu0 0.0
      %1750 = vmatpush1.msra.mxu0 0.0
      %1751 = vmatprep.subr.mxu0 0.0
      %1752 = vmatpush1.msra.mxu0 0.0
      %1753 = vmatprep.subr.mxu0 0.0
      %1754 = vmatpush1.msra.mxu0 0.0
      %1755 = vmatprep.subr.mxu0 0.0
      %1756 = vmatpush1.msra.mxu0 0.0
      %1757 = vmatprep.subr.mxu0 0.0
      %1758 = vmatpush1.msra.mxu0 0.0
      %1759 = vmatprep.subr.mxu0 0.0
      %1760 = vmatpush1.msra.mxu0 0.0
      %1761 = vmatprep.mubr.f32.mxu0 0.0
      %1762 = vmatmul.mubr.f32.gmra.mrb[0].mxu0 %v1695
      %v1763 = vpop.f32.mrb[0].mxu0
      %v1764 = vadd.f32 %v579, %v1763
      %v1765 = vpop.f32.mrb[0].mxu0
      %v1766 = vadd.f32 %v583, %v1765
      %1767 = vdwg.mxu0
      %v1769 = vsel %vm586, %v1691, 0
      %1771 = vmatprep.subr.mxu0 %v564
      %1772 = vmatpush1.msra.mxu0 %v563
      %1773 = vmatprep.subr.mxu0 %v566
      %1774 = vmatpush1.msra.mxu0 %v565
      %1775 = vmatprep.subr.mxu0 %v568
      %1776 = vmatpush1.msra.mxu0 %v567
      %1777 = vmatprep.subr.mxu0 %v570
      %1778 = vmatpush1.msra.mxu0 %v569
      %1779 = vmatprep.subr.mxu0 0.0
      %1780 = vmatpush1.msra.mxu0 0.0
      %1781 = vmatprep.subr.mxu0 0.0
      %1782 = vmatpush1.msra.mxu0 0.0
      %1783 = vmatprep.subr.mxu0 0.0
      %1784 = vmatpush1.msra.mxu0 0.0
      %1785 = vmatprep.subr.mxu0 0.0
      %1786 = vmatpush1.msra.mxu0 0.0
      %1787 = vmatprep.subr.mxu0 0.0
      %1788 = vmatpush1.msra.mxu0 0.0
      %1789 = vmatprep.subr.mxu0 0.0
      %1790 = vmatpush1.msra.mxu0 0.0
      %1791 = vmatprep.subr.mxu0 0.0
      %1792 = vmatpush1.msra.mxu0 0.0
      %1793 = vmatprep.subr.mxu0 0.0
      %1794 = vmatpush1.msra.mxu0 0.0
      %1795 = vmatprep.subr.mxu0 0.0
      %1796 = vmatpush1.msra.mxu0 0.0
      %1797 = vmatprep.subr.mxu0 0.0
      %1798 = vmatpush1.msra.mxu0 0.0
      %1799 = vmatprep.subr.mxu0 0.0
      %1800 = vmatpush1.msra.mxu0 0.0
      %1801 = vmatprep.subr.mxu0 0.0
      %1802 = vmatpush1.msra.mxu0 0.0
      %1803 = vmatprep.subr.mxu0 0.0
      %1804 = vmatpush1.msra.mxu0 0.0
      %1805 = vmatprep.subr.mxu0 0.0
      %1806 = vmatpush1.msra.mxu0 0.0
      %1807 = vmatprep.subr.mxu0 0.0
      %1808 = vmatpush1.msra.mxu0 0.0
      %1809 = vmatprep.subr.mxu0 0.0
      %1810 = vmatpush1.msra.mxu0 0.0
      %1811 = vmatprep.subr.mxu0 0.0
      %1812 = vmatpush1.msra.mxu0 0.0
      %1813 = vmatprep.subr.mxu0 0.0
      %1814 = vmatpush1.msra.mxu0 0.0
      %1815 = vmatprep.subr.mxu0 0.0
      %1816 = vmatpush1.msra.mxu0 0.0
      %1817 = vmatprep.subr.mxu0 0.0
      %1818 = vmatpush1.msra.mxu0 0.0
      %1819 = vmatprep.subr.mxu0 0.0
      %1820 = vmatpush1.msra.mxu0 0.0
      %1821 = vmatprep.subr.mxu0 0.0
      %1822 = vmatpush1.msra.mxu0 0.0
      %1823 = vmatprep.subr.mxu0 0.0
      %1824 = vmatpush1.msra.mxu0 0.0
      %1825 = vmatprep.subr.mxu0 0.0
      %1826 = vmatpush1.msra.mxu0 0.0
      %1827 = vmatprep.subr.mxu0 0.0
      %1828 = vmatpush1.msra.mxu0 0.0
      %1829 = vmatprep.subr.mxu0 0.0
      %1830 = vmatpush1.msra.mxu0 0.0
      %1831 = vmatprep.subr.mxu0 0.0
      %1832 = vmatpush1.msra.mxu0 0.0
      %1833 = vmatprep.subr.mxu0 0.0
      %1834 = vmatpush1.msra.mxu0 0.0
      %1835 = vmatprep.mubr.f32.mxu0 0.0
      %1836 = vmatmul.mubr.f32.gmra.mrb[0].mxu0 %v1769
      %v1837 = vpop.f32.mrb[0].mxu0
      %v1838 = vadd.f32 %v665, %v1837
      %v1839 = vpop.f32.mrb[0].mxu0
      %v1840 = vadd.f32 %v669, %v1839
      %1841 = vdwg.mxu0
      %v1842 = vadd.f32 %v1764, %v1838
      %v1843 = vxor.u32 %v1842, 2147483648
      %v1844 = vmul.f32 %v1843, 1.442695
      %v1845 = vpow.pop %v1844
      %v1846 = vadd.f32 %v1845, 1.0
      %v1847 = vrcp.pop %v1846
      %v1848 = vmul.f32 1.0, %v1847
      %1850 = vrot.lane.b32.xlu0 %v1838, 64
      %v1851 = vpop.permute.xlu0 %1850
      %v1853 = vmul.f32 %v1848, %v1851
      %1855 = vrot.lane.b32.xlu0 %v1853, 64
      %v1856 = vpop.permute.xlu0 %1855
      %v1858 = vadd.f32 %v1764, %v1856
      %v1859 = vtanh.pop %v1858
      %v1860 = vsub.f32 1.0, %v1848
      %1862 = vrot.lane.b32.xlu0 %v1859, 96
      %v1863 = vpop.permute.xlu0 %1862
      %v1865 = vmul.f32 %v1860, %v1863
      %1866 = vrot.lane.b32.xlu0 %v1691, 32
      %v1867 = vpop.permute.xlu0 %1866
      %v1869 = vmul.f32 %v1848, %v1867
      %v1870 = vadd.f32 %v1865, %v1869
      %v1871 = vadd.f32 %v1840, %v1766
      %v1872 = vxor.u32 %v1871, 2147483648
      %v1873 = vmul.f32 %v1872, 1.442695
      %v1874 = vpow.pop %v1873
      %v1875 = vadd.f32 %v1874, 1.0
      %v1876 = vrcp.pop %v1875
      %v1877 = vmul.f32 1.0, %v1876
      %1879 = vrot.lane.b32.xlu0 %v1766, 64
      %v1880 = vpop.permute.xlu0 %1879
      %v1882 = vmul.f32 %v1848, %v1880
      %1884 = vrot.lane.b32.xlu0 %v1882, 64
      %v1885 = vpop.permute.xlu0 %1884
      %v1887 = vadd.f32 %v1840, %v1885
      %v1888 = vtanh.pop %v1887
      %v1889 = vsub.f32 1.0, %v1877
      %1891 = vrot.lane.b32.xlu0 %v1888, 96
      %v1892 = vpop.permute.xlu0 %1891
      %v1894 = vmul.f32 %v1889, %v1892
      %v1895 = vmul.f32 %v1877, %v1404
      %v1896 = vadd.f32 %v1894, %v1895
      %1898 = vrot.lane.b32.xlu0 %v1896, 32
      %v1899 = vpop.permute.xlu0 %1898
      %v1901 = vadd.f32 %v1870, %v1899
      %1903 = vrot.lane.b32.xlu0 %v1901, 96
      %v1904 = vpop.permute.xlu0 %1903
      %s1906 = scalar_lea.vmem %s542, 4
      %1907 = vst.msk [vmem:[%s1906] sm:$0x3] %vm810, %v1904
      %vm1908 = vcmp.eq.s32.totalorder %v573, 2
      %v1909 = vmul.f32 %v1901, %v826
      %1911 = vrot.lane.b32.xlu0 %v1909, 96
      %v1912 = vpop.permute.xlu0 %1911
      %v1914 = vsel %vm810, %v1912, 0.0
      %1915 = vadd.xlane.f32.xlu0 %v1914
      %v1916 = vpop.xlane.xlu0 %1915
      %v1918 = vlaneseq
      %v1919 = vshrl.u32 %v1918, 7
      %v1920 = vsub.s32 %v838, %v1919
      %v1921 = vrot.slane %v1916, %v1920
      %v1922 = vsel %vm843, %v1921, %v1921
      %v1923 = vsel %vm845, %v1921, %v1922
      %v1924 = vsel %vm847, %v1921, %v1923
      %v1925 = vsel %vm849, %v1921, %v1924
      %v1926 = vsel %vm851, %v1921, %v1925
      %v1927 = vsel %vm853, %v1921, %v1926
      %v1929 = vsel %vm1908, %v1927, %v1409
      %1930 = vst.msk [vmem:[#allocation2] sm:$0xff] %vm857, %v1929
      %s1931 = scalar_lea.vmem %s500, 6
      %v1932 = vld [vmem:[%s1931] sm:$0x3]
      %s1933 = scalar_lea.vmem %s2, 24
      %v1934 = vld [vmem:[%s1933] sm:$0xff]
      %s1935 = scalar_lea.vmem %s505, 24
      %v1936 = vld [vmem:[%s1935] sm:$0xff]
      %v1937 = vld [vmem:[#allocation2] sm:$0xff]
      %v1938 = vld [vmem:[%s542] sm:$0x3]
      %v1939 = vld [vmem:[%s542 + $0x2] sm:$0x3]
      %v1940 = vld [vmem:[%s542 + $0x4] sm:$0x3]
      %v1941 = vld [vmem:[%s542 + $0x6] sm:$0x3]
      %v1942 = vld [vmem:[%s542 + $0x8] sm:$0x3]
      %v1943 = vld [vmem:[%s542 + $0xa] sm:$0x3]
      %v1944 = vld [vmem:[%s542 + $0xc] sm:$0x3]
      %v1945 = vld [vmem:[%s542 + $0xe] sm:$0x3]
      %v1946 = vmul.f32 %v1932, %v878
      %v1947 = vsel %vm810, %v1946, 0.0
      %1948 = vadd.xlane.f32.xlu0 %v1947
      %v1949 = vpop.xlane.xlu0 %1948
      %v1951 = vlaneseq
      %v1952 = vshrl.u32 %v1951, 7
      %v1953 = vsub.s32 %v838, %v1952
      %v1954 = vrot.slane %v1949, %v1953
      %v1955 = vsel %vm843, %v1954, %v1954
      %v1956 = vsel %vm845, %v1954, %v1955
      %v1957 = vsel %vm847, %v1954, %v1956
      %v1958 = vsel %vm849, %v1954, %v1957
      %v1959 = vsel %vm851, %v1954, %v1958
      %v1960 = vsel %vm853, %v1954, %v1959
      %v1962 = vadd.f32 %v1937, %v1960
      %v1963 = vadd.f32 %v1962, %v904
      %v1964 = vadd.f32 %v1963, %v1936
      %v1965 = vsel %vm857, %v1964, -inf
      %v1966 = vrot.slane %v1965, 4
      %v1967 = vmax.f32 %v1965, %v1966
      %v1968 = vrot.slane %v1967, 2
      %v1969 = vmax.f32 %v1967, %v1968
      %v1970 = vrot.slane %v1969, 1
      %v1971 = vmax.f32 %v1969, %v1970
      %v1972 = vsub.f32 %v1964, %v1971
      %v1973 = vmul.f32 %v1972, 1.442695
      %v1974 = vpow.pop %v1973
      %v1975 = vsel %vm857, %v1974, 0.0
      %v1976 = vrot.slane %v1975, 4
      %v1977 = vadd.f32 %v1975, %v1976
      %v1978 = vrot.slane %v1977, 2
      %v1979 = vadd.f32 %v1977, %v1978
      %v1980 = vrot.slane %v1979, 1
      %v1981 = vadd.f32 %v1979, %v1980
      %v1982 = vrcp.pop %v1981
      %v1983 = vmul.f32 %v1974, %v1982
      %v1984 = vmul.f32 %v1983, %v1934
      %v1985 = vsub.f32 %v1983, %v1984
      %v1986 = vlaneseq
      %v1987 = vshrl.u32 %v1986, 7
      %v1988 = vsub.s32 0, %v1987
      %v1989 = vrot.slane %v1984, %v1988
      %1991 = vbcast.lane.b32.xlu0 %v1989, 256
      %v1992 = vpop.permute.xlu0 %1991
      %v1993 = vlaneseq
      %v1994 = vshrl.u32 %v1993, 7
      %v1995 = vsub.s32 1, %v1994
      %v1996 = vrot.slane %v1984, %v1995
      %1998 = vbcast.lane.b32.xlu0 %v1996, 256
      %v1999 = vpop.permute.xlu0 %1998
      %v2000 = vlaneseq
      %v2001 = vshrl.u32 %v2000, 7
      %v2002 = vsub.s32 2, %v2001
      %v2003 = vrot.slane %v1984, %v2002
      %2005 = vbcast.lane.b32.xlu0 %v2003, 256
      %v2006 = vpop.permute.xlu0 %2005
      %v2007 = vlaneseq
      %v2008 = vshrl.u32 %v2007, 7
      %v2009 = vsub.s32 3, %v2008
      %v2010 = vrot.slane %v1984, %v2009
      %2012 = vbcast.lane.b32.xlu0 %v2010, 256
      %v2013 = vpop.permute.xlu0 %2012
      %v2014 = vlaneseq
      %v2015 = vshrl.u32 %v2014, 7
      %v2016 = vsub.s32 4, %v2015
      %v2017 = vrot.slane %v1984, %v2016
      %2019 = vbcast.lane.b32.xlu0 %v2017, 256
      %v2020 = vpop.permute.xlu0 %2019
      %v2021 = vlaneseq
      %v2022 = vshrl.u32 %v2021, 7
      %v2023 = vsub.s32 5, %v2022
      %v2024 = vrot.slane %v1984, %v2023
      %2026 = vbcast.lane.b32.xlu0 %v2024, 256
      %v2027 = vpop.permute.xlu0 %2026
      %v2028 = vlaneseq
      %v2029 = vshrl.u32 %v2028, 7
      %v2030 = vsub.s32 6, %v2029
      %v2031 = vrot.slane %v1984, %v2030
      %2033 = vbcast.lane.b32.xlu0 %v2031, 256
      %v2034 = vpop.permute.xlu0 %2033
      %v2035 = vlaneseq
      %v2036 = vshrl.u32 %v2035, 7
      %v2037 = vsub.s32 7, %v2036
      %v2038 = vrot.slane %v1984, %v2037
      %2040 = vbcast.lane.b32.xlu0 %v2038, 256
      %v2041 = vpop.permute.xlu0 %2040
      %v2042 = vmul.f32 %v1992, %v1938
      %v2043 = vmul.f32 %v1999, %v1939
      %v2044 = vmul.f32 %v2006, %v1940
      %v2045 = vmul.f32 %v2013, %v1941
      %v2046 = vmul.f32 %v2020, %v1942
      %v2047 = vmul.f32 %v2027, %v1943
      %v2048 = vmul.f32 %v2034, %v1944
      %v2049 = vmul.f32 %v2041, %v1945
      %v2050 = vsel %vm810, %v2042, 0.0
      %v2051 = vsel %vm810, %v2043, 0.0
      %v2052 = vadd.f32 %v2050, %v2051
      %v2053 = vsel %vm810, %v2044, 0.0
      %v2054 = vadd.f32 %v2052, %v2053
      %v2055 = vsel %vm810, %v2045, 0.0
      %v2056 = vadd.f32 %v2054, %v2055
      %v2057 = vsel %vm810, %v2046, 0.0
      %v2058 = vadd.f32 %v2056, %v2057
      %v2059 = vsel %vm810, %v2047, 0.0
      %v2060 = vadd.f32 %v2058, %v2059
      %v2061 = vsel %vm810, %v2048, 0.0
      %v2062 = vadd.f32 %v2060, %v2061
      %v2063 = vsel %vm810, %v2049, 0.0
      %v2064 = vadd.f32 %v2062, %v2063
      %v2065 = vlaneseq
      %v2066 = vshrl.u32 %v2065, 7
      %v2067 = vsub.s32 0, %v2066
      %v2068 = vrot.slane %v1985, %v2067
      %2070 = vbcast.lane.b32.xlu0 %v2068, 256
      %v2071 = vpop.permute.xlu0 %2070
      %v2072 = vlaneseq
      %v2073 = vshrl.u32 %v2072, 7
      %v2074 = vsub.s32 1, %v2073
      %v2075 = vrot.slane %v1985, %v2074
      %2077 = vbcast.lane.b32.xlu0 %v2075, 256
      %v2078 = vpop.permute.xlu0 %2077
      %v2079 = vlaneseq
      %v2080 = vshrl.u32 %v2079, 7
      %v2081 = vsub.s32 2, %v2080
      %v2082 = vrot.slane %v1985, %v2081
      %2084 = vbcast.lane.b32.xlu0 %v2082, 256
      %v2085 = vpop.permute.xlu0 %2084
      %v2086 = vlaneseq
      %v2087 = vshrl.u32 %v2086, 7
      %v2088 = vsub.s32 3, %v2087
      %v2089 = vrot.slane %v1985, %v2088
      %2091 = vbcast.lane.b32.xlu0 %v2089, 256
      %v2092 = vpop.permute.xlu0 %2091
      %v2093 = vlaneseq
      %v2094 = vshrl.u32 %v2093, 7
      %v2095 = vsub.s32 4, %v2094
      %v2096 = vrot.slane %v1985, %v2095
      %2098 = vbcast.lane.b32.xlu0 %v2096, 256
      %v2099 = vpop.permute.xlu0 %2098
      %v2100 = vlaneseq
      %v2101 = vshrl.u32 %v2100, 7
      %v2102 = vsub.s32 5, %v2101
      %v2103 = vrot.slane %v1985, %v2102
      %2105 = vbcast.lane.b32.xlu0 %v2103, 256
      %v2106 = vpop.permute.xlu0 %2105
      %v2107 = vlaneseq
      %v2108 = vshrl.u32 %v2107, 7
      %v2109 = vsub.s32 6, %v2108
      %v2110 = vrot.slane %v1985, %v2109
      %2112 = vbcast.lane.b32.xlu0 %v2110, 256
      %v2113 = vpop.permute.xlu0 %2112
      %v2114 = vlaneseq
      %v2115 = vshrl.u32 %v2114, 7
      %v2116 = vsub.s32 7, %v2115
      %v2117 = vrot.slane %v1985, %v2116
      %2119 = vbcast.lane.b32.xlu0 %v2117, 256
      %v2120 = vpop.permute.xlu0 %2119
      %v2121 = vmul.f32 %v2071, %v1938
      %v2122 = vmul.f32 %v2078, %v1939
      %v2123 = vmul.f32 %v2085, %v1940
      %v2124 = vmul.f32 %v2092, %v1941
      %v2125 = vmul.f32 %v2099, %v1942
      %v2126 = vmul.f32 %v2106, %v1943
      %v2127 = vmul.f32 %v2113, %v1944
      %v2128 = vmul.f32 %v2120, %v1945
      %v2129 = vsel %vm810, %v2121, 0.0
      %v2130 = vsel %vm810, %v2122, 0.0
      %v2131 = vadd.f32 %v2129, %v2130
      %v2132 = vsel %vm810, %v2123, 0.0
      %v2133 = vadd.f32 %v2131, %v2132
      %v2134 = vsel %vm810, %v2124, 0.0
      %v2135 = vadd.f32 %v2133, %v2134
      %v2136 = vsel %vm810, %v2125, 0.0
      %v2137 = vadd.f32 %v2135, %v2136
      %v2138 = vsel %vm810, %v2126, 0.0
      %v2139 = vadd.f32 %v2137, %v2138
      %v2140 = vsel %vm810, %v2127, 0.0
      %v2141 = vadd.f32 %v2139, %v2140
      %v2142 = vsel %vm810, %v2128, 0.0
      %v2143 = vadd.f32 %v2141, %v2142
      %2145 = vrot.lane.b32.xlu0 %v2143, 32
      %v2146 = vpop.permute.xlu0 %2145
      %v2148 = vsel %vm586, %v2064, %v2146
      %v2150 = vsel %vm1092, %v2148, 0
      %2152 = vmatprep.subr.mxu0 0.0
      %2153 = vmatpush1.msra.mxu0 %v546
      %2154 = vmatprep.subr.mxu0 0.0
      %2155 = vmatpush1.msra.mxu0 %v547
      %2156 = vmatprep.subr.mxu0 0.0
      %2157 = vmatpush1.msra.mxu0 %v548
      %2158 = vmatprep.subr.mxu0 0.0
      %2159 = vmatpush1.msra.mxu0 %v549
      %2160 = vmatprep.subr.mxu0 0.0
      %2161 = vmatpush1.msra.mxu0 %v550
      %2162 = vmatprep.subr.mxu0 0.0
      %2163 = vmatpush1.msra.mxu0 %v551
      %2164 = vmatprep.subr.mxu0 0.0
      %2165 = vmatpush1.msra.mxu0 %v552
      %2166 = vmatprep.subr.mxu0 0.0
      %2167 = vmatpush1.msra.mxu0 %v553
      %2168 = vmatprep.subr.mxu0 0.0
      %2169 = vmatpush1.msra.mxu0 0.0
      %2170 = vmatprep.subr.mxu0 0.0
      %2171 = vmatpush1.msra.mxu0 0.0
      %2172 = vmatprep.subr.mxu0 0.0
      %2173 = vmatpush1.msra.mxu0 0.0
      %2174 = vmatprep.subr.mxu0 0.0
      %2175 = vmatpush1.msra.mxu0 0.0
      %2176 = vmatprep.subr.mxu0 0.0
      %2177 = vmatpush1.msra.mxu0 0.0
      %2178 = vmatprep.subr.mxu0 0.0
      %2179 = vmatpush1.msra.mxu0 0.0
      %2180 = vmatprep.subr.mxu0 0.0
      %2181 = vmatpush1.msra.mxu0 0.0
      %2182 = vmatprep.subr.mxu0 0.0
      %2183 = vmatpush1.msra.mxu0 0.0
      %2184 = vmatprep.subr.mxu0 0.0
      %2185 = vmatpush1.msra.mxu0 0.0
      %2186 = vmatprep.subr.mxu0 0.0
      %2187 = vmatpush1.msra.mxu0 0.0
      %2188 = vmatprep.subr.mxu0 0.0
      %2189 = vmatpush1.msra.mxu0 0.0
      %2190 = vmatprep.subr.mxu0 0.0
      %2191 = vmatpush1.msra.mxu0 0.0
      %2192 = vmatprep.subr.mxu0 0.0
      %2193 = vmatpush1.msra.mxu0 0.0
      %2194 = vmatprep.subr.mxu0 0.0
      %2195 = vmatpush1.msra.mxu0 0.0
      %2196 = vmatprep.subr.mxu0 0.0
      %2197 = vmatpush1.msra.mxu0 0.0
      %2198 = vmatprep.subr.mxu0 0.0
      %2199 = vmatpush1.msra.mxu0 0.0
      %2200 = vmatprep.subr.mxu0 0.0
      %2201 = vmatpush1.msra.mxu0 0.0
      %2202 = vmatprep.subr.mxu0 0.0
      %2203 = vmatpush1.msra.mxu0 0.0
      %2204 = vmatprep.subr.mxu0 0.0
      %2205 = vmatpush1.msra.mxu0 0.0
      %2206 = vmatprep.subr.mxu0 0.0
      %2207 = vmatpush1.msra.mxu0 0.0
      %2208 = vmatprep.subr.mxu0 0.0
      %2209 = vmatpush1.msra.mxu0 0.0
      %2210 = vmatprep.subr.mxu0 0.0
      %2211 = vmatpush1.msra.mxu0 0.0
      %2212 = vmatprep.subr.mxu0 0.0
      %2213 = vmatpush1.msra.mxu0 0.0
      %2214 = vmatprep.subr.mxu0 0.0
      %2215 = vmatpush1.msra.mxu0 0.0
      %2216 = vmatprep.mubr.f32.mxu0 0.0
      %2217 = vmatmul.mubr.f32.gmra.mrb[0].mxu0 %v2150
      %v2218 = vpop.f32.mrb[0].mxu0
      %v2219 = vadd.f32 0.0, %v2218
      %v2220 = vpop.f32.mrb[0].mxu0
      %2221 = vdwg.mxu0
      %v2223 = vsel %vm586, %v1932, 0
      %2225 = vmatprep.subr.mxu0 %v555
      %2226 = vmatpush1.msra.mxu0 %v554
      %2227 = vmatprep.subr.mxu0 %v557
      %2228 = vmatpush1.msra.mxu0 %v556
      %2229 = vmatprep.subr.mxu0 %v559
      %2230 = vmatpush1.msra.mxu0 %v558
      %2231 = vmatprep.subr.mxu0 %v561
      %2232 = vmatpush1.msra.mxu0 %v560
      %2233 = vmatprep.subr.mxu0 0.0
      %2234 = vmatpush1.msra.mxu0 0.0
      %2235 = vmatprep.subr.mxu0 0.0
      %2236 = vmatpush1.msra.mxu0 0.0
      %2237 = vmatprep.subr.mxu0 0.0
      %2238 = vmatpush1.msra.mxu0 0.0
      %2239 = vmatprep.subr.mxu0 0.0
      %2240 = vmatpush1.msra.mxu0 0.0
      %2241 = vmatprep.subr.mxu0 0.0
      %2242 = vmatpush1.msra.mxu0 0.0
      %2243 = vmatprep.subr.mxu0 0.0
      %2244 = vmatpush1.msra.mxu0 0.0
      %2245 = vmatprep.subr.mxu0 0.0
      %2246 = vmatpush1.msra.mxu0 0.0
      %2247 = vmatprep.subr.mxu0 0.0
      %2248 = vmatpush1.msra.mxu0 0.0
      %2249 = vmatprep.subr.mxu0 0.0
      %2250 = vmatpush1.msra.mxu0 0.0
      %2251 = vmatprep.subr.mxu0 0.0
      %2252 = vmatpush1.msra.mxu0 0.0
      %2253 = vmatprep.subr.mxu0 0.0
      %2254 = vmatpush1.msra.mxu0 0.0
      %2255 = vmatprep.subr.mxu0 0.0
      %2256 = vmatpush1.msra.mxu0 0.0
      %2257 = vmatprep.subr.mxu0 0.0
      %2258 = vmatpush1.msra.mxu0 0.0
      %2259 = vmatprep.subr.mxu0 0.0
      %2260 = vmatpush1.msra.mxu0 0.0
      %2261 = vmatprep.subr.mxu0 0.0
      %2262 = vmatpush1.msra.mxu0 0.0
      %2263 = vmatprep.subr.mxu0 0.0
      %2264 = vmatpush1.msra.mxu0 0.0
      %2265 = vmatprep.subr.mxu0 0.0
      %2266 = vmatpush1.msra.mxu0 0.0
      %2267 = vmatprep.subr.mxu0 0.0
      %2268 = vmatpush1.msra.mxu0 0.0
      %2269 = vmatprep.subr.mxu0 0.0
      %2270 = vmatpush1.msra.mxu0 0.0
      %2271 = vmatprep.subr.mxu0 0.0
      %2272 = vmatpush1.msra.mxu0 0.0
      %2273 = vmatprep.subr.mxu0 0.0
      %2274 = vmatpush1.msra.mxu0 0.0
      %2275 = vmatprep.subr.mxu0 0.0
      %2276 = vmatpush1.msra.mxu0 0.0
      %2277 = vmatprep.subr.mxu0 0.0
      %2278 = vmatpush1.msra.mxu0 0.0
      %2279 = vmatprep.subr.mxu0 0.0
      %2280 = vmatpush1.msra.mxu0 0.0
      %2281 = vmatprep.subr.mxu0 0.0
      %2282 = vmatpush1.msra.mxu0 0.0
      %2283 = vmatprep.subr.mxu0 0.0
      %2284 = vmatpush1.msra.mxu0 0.0
      %2285 = vmatprep.subr.mxu0 0.0
      %2286 = vmatpush1.msra.mxu0 0.0
      %2287 = vmatprep.subr.mxu0 0.0
      %2288 = vmatpush1.msra.mxu0 0.0
      %2289 = vmatprep.mubr.f32.mxu0 0.0
      %2290 = vmatmul.mubr.f32.gmra.mrb[0].mxu0 %v2223
      %v2291 = vpop.f32.mrb[0].mxu0
      %v2292 = vadd.f32 %v579, %v2291
      %v2293 = vpop.f32.mrb[0].mxu0
      %v2294 = vadd.f32 %v583, %v2293
      %2295 = vdwg.mxu0
      %v2297 = vsel %vm586, %v2219, 0
      %2299 = vmatprep.subr.mxu0 %v564
      %2300 = vmatpush1.msra.mxu0 %v563
      %2301 = vmatprep.subr.mxu0 %v566
      %2302 = vmatpush1.msra.mxu0 %v565
      %2303 = vmatprep.subr.mxu0 %v568
      %2304 = vmatpush1.msra.mxu0 %v567
      %2305 = vmatprep.subr.mxu0 %v570
      %2306 = vmatpush1.msra.mxu0 %v569
      %2307 = vmatprep.subr.mxu0 0.0
      %2308 = vmatpush1.msra.mxu0 0.0
      %2309 = vmatprep.subr.mxu0 0.0
      %2310 = vmatpush1.msra.mxu0 0.0
      %2311 = vmatprep.subr.mxu0 0.0
      %2312 = vmatpush1.msra.mxu0 0.0
      %2313 = vmatprep.subr.mxu0 0.0
      %2314 = vmatpush1.msra.mxu0 0.0
      %2315 = vmatprep.subr.mxu0 0.0
      %2316 = vmatpush1.msra.mxu0 0.0
      %2317 = vmatprep.subr.mxu0 0.0
      %2318 = vmatpush1.msra.mxu0 0.0
      %2319 = vmatprep.subr.mxu0 0.0
      %2320 = vmatpush1.msra.mxu0 0.0
      %2321 = vmatprep.subr.mxu0 0.0
      %2322 = vmatpush1.msra.mxu0 0.0
      %2323 = vmatprep.subr.mxu0 0.0
      %2324 = vmatpush1.msra.mxu0 0.0
      %2325 = vmatprep.subr.mxu0 0.0
      %2326 = vmatpush1.msra.mxu0 0.0
      %2327 = vmatprep.subr.mxu0 0.0
      %2328 = vmatpush1.msra.mxu0 0.0
      %2329 = vmatprep.subr.mxu0 0.0
      %2330 = vmatpush1.msra.mxu0 0.0
      %2331 = vmatprep.subr.mxu0 0.0
      %2332 = vmatpush1.msra.mxu0 0.0
      %2333 = vmatprep.subr.mxu0 0.0
      %2334 = vmatpush1.msra.mxu0 0.0
      %2335 = vmatprep.subr.mxu0 0.0
      %2336 = vmatpush1.msra.mxu0 0.0
      %2337 = vmatprep.subr.mxu0 0.0
      %2338 = vmatpush1.msra.mxu0 0.0
      %2339 = vmatprep.subr.mxu0 0.0
      %2340 = vmatpush1.msra.mxu0 0.0
      %2341 = vmatprep.subr.mxu0 0.0
      %2342 = vmatpush1.msra.mxu0 0.0
      %2343 = vmatprep.subr.mxu0 0.0
      %2344 = vmatpush1.msra.mxu0 0.0
      %2345 = vmatprep.subr.mxu0 0.0
      %2346 = vmatpush1.msra.mxu0 0.0
      %2347 = vmatprep.subr.mxu0 0.0
      %2348 = vmatpush1.msra.mxu0 0.0
      %2349 = vmatprep.subr.mxu0 0.0
      %2350 = vmatpush1.msra.mxu0 0.0
      %2351 = vmatprep.subr.mxu0 0.0
      %2352 = vmatpush1.msra.mxu0 0.0
      %2353 = vmatprep.subr.mxu0 0.0
      %2354 = vmatpush1.msra.mxu0 0.0
      %2355 = vmatprep.subr.mxu0 0.0
      %2356 = vmatpush1.msra.mxu0 0.0
      %2357 = vmatprep.subr.mxu0 0.0
      %2358 = vmatpush1.msra.mxu0 0.0
      %2359 = vmatprep.subr.mxu0 0.0
      %2360 = vmatpush1.msra.mxu0 0.0
      %2361 = vmatprep.subr.mxu0 0.0
      %2362 = vmatpush1.msra.mxu0 0.0
      %2363 = vmatprep.mubr.f32.mxu0 0.0
      %2364 = vmatmul.mubr.f32.gmra.mrb[0].mxu0 %v2297
      %v2365 = vpop.f32.mrb[0].mxu0
      %v2366 = vadd.f32 %v665, %v2365
      %v2367 = vpop.f32.mrb[0].mxu0
      %v2368 = vadd.f32 %v669, %v2367
      %2369 = vdwg.mxu0
      %v2370 = vadd.f32 %v2292, %v2366
      %v2371 = vxor.u32 %v2370, 2147483648
      %v2372 = vmul.f32 %v2371, 1.442695
      %v2373 = vpow.pop %v2372
      %v2374 = vadd.f32 %v2373, 1.0
      %v2375 = vrcp.pop %v2374
      %v2376 = vmul.f32 1.0, %v2375
      %2378 = vrot.lane.b32.xlu0 %v2366, 64
      %v2379 = vpop.permute.xlu0 %2378
      %v2381 = vmul.f32 %v2376, %v2379
      %2383 = vrot.lane.b32.xlu0 %v2381, 64
      %v2384 = vpop.permute.xlu0 %2383
      %v2386 = vadd.f32 %v2292, %v2384
      %v2387 = vtanh.pop %v2386
      %v2388 = vsub.f32 1.0, %v2376
      %2390 = vrot.lane.b32.xlu0 %v2387, 96
      %v2391 = vpop.permute.xlu0 %2390
      %v2393 = vmul.f32 %v2388, %v2391
      %2394 = vrot.lane.b32.xlu0 %v2219, 32
      %v2395 = vpop.permute.xlu0 %2394
      %v2397 = vmul.f32 %v2376, %v2395
      %v2398 = vadd.f32 %v2393, %v2397
      %v2399 = vadd.f32 %v2368, %v2294
      %v2400 = vxor.u32 %v2399, 2147483648
      %v2401 = vmul.f32 %v2400, 1.442695
      %v2402 = vpow.pop %v2401
      %v2403 = vadd.f32 %v2402, 1.0
      %v2404 = vrcp.pop %v2403
      %v2405 = vmul.f32 1.0, %v2404
      %2407 = vrot.lane.b32.xlu0 %v2294, 64
      %v2408 = vpop.permute.xlu0 %2407
      %v2410 = vmul.f32 %v2376, %v2408
      %2412 = vrot.lane.b32.xlu0 %v2410, 64
      %v2413 = vpop.permute.xlu0 %2412
      %v2415 = vadd.f32 %v2368, %v2413
      %v2416 = vtanh.pop %v2415
      %v2417 = vsub.f32 1.0, %v2405
      %2419 = vrot.lane.b32.xlu0 %v2416, 96
      %v2420 = vpop.permute.xlu0 %2419
      %v2422 = vmul.f32 %v2417, %v2420
      %v2423 = vmul.f32 %v2405, %v1932
      %v2424 = vadd.f32 %v2422, %v2423
      %2426 = vrot.lane.b32.xlu0 %v2424, 32
      %v2427 = vpop.permute.xlu0 %2426
      %v2429 = vadd.f32 %v2398, %v2427
      %2431 = vrot.lane.b32.xlu0 %v2429, 96
      %v2432 = vpop.permute.xlu0 %2431
      %s2434 = scalar_lea.vmem %s542, 6
      %2435 = vst.msk [vmem:[%s2434] sm:$0x3] %vm810, %v2432
      %vm2436 = vcmp.eq.s32.totalorder %v573, 3
      %v2437 = vmul.f32 %v2429, %v826
      %2439 = vrot.lane.b32.xlu0 %v2437, 96
      %v2440 = vpop.permute.xlu0 %2439
      %v2442 = vsel %vm810, %v2440, 0.0
      %2443 = vadd.xlane.f32.xlu0 %v2442
      %v2444 = vpop.xlane.xlu0 %2443
      %v2446 = vlaneseq
      %v2447 = vshrl.u32 %v2446, 7
      %v2448 = vsub.s32 %v838, %v2447
      %v2449 = vrot.slane %v2444, %v2448
      %v2450 = vsel %vm843, %v2449, %v2449
      %v2451 = vsel %vm845, %v2449, %v2450
      %v2452 = vsel %vm847, %v2449, %v2451
      %v2453 = vsel %vm849, %v2449, %v2452
      %v2454 = vsel %vm851, %v2449, %v2453
      %v2455 = vsel %vm853, %v2449, %v2454
      %v2457 = vsel %vm2436, %v2455, %v1937
      %2458 = vst.msk [vmem:[#allocation2] sm:$0xff] %vm857, %v2457
      %s2459 = scalar_lea.vmem %s500, 8
      %v2460 = vld [vmem:[%s2459] sm:$0x3]
      %s2461 = scalar_lea.vmem %s2, 32
      %v2462 = vld [vmem:[%s2461] sm:$0xff]
      %s2463 = scalar_lea.vmem %s505, 32
      %v2464 = vld [vmem:[%s2463] sm:$0xff]
      %v2465 = vld [vmem:[#allocation2] sm:$0xff]
      %v2466 = vld [vmem:[%s542] sm:$0x3]
      %v2467 = vld [vmem:[%s542 + $0x2] sm:$0x3]
      %v2468 = vld [vmem:[%s542 + $0x4] sm:$0x3]
      %v2469 = vld [vmem:[%s542 + $0x6] sm:$0x3]
      %v2470 = vld [vmem:[%s542 + $0x8] sm:$0x3]
      %v2471 = vld [vmem:[%s542 + $0xa] sm:$0x3]
      %v2472 = vld [vmem:[%s542 + $0xc] sm:$0x3]
      %v2473 = vld [vmem:[%s542 + $0xe] sm:$0x3]
      %v2474 = vmul.f32 %v2460, %v878
      %v2475 = vsel %vm810, %v2474, 0.0
      %2476 = vadd.xlane.f32.xlu0 %v2475
      %v2477 = vpop.xlane.xlu0 %2476
      %v2479 = vlaneseq
      %v2480 = vshrl.u32 %v2479, 7
      %v2481 = vsub.s32 %v838, %v2480
      %v2482 = vrot.slane %v2477, %v2481
      %v2483 = vsel %vm843, %v2482, %v2482
      %v2484 = vsel %vm845, %v2482, %v2483
      %v2485 = vsel %vm847, %v2482, %v2484
      %v2486 = vsel %vm849, %v2482, %v2485
      %v2487 = vsel %vm851, %v2482, %v2486
      %v2488 = vsel %vm853, %v2482, %v2487
      %v2490 = vadd.f32 %v2465, %v2488
      %v2491 = vadd.f32 %v2490, %v904
      %v2492 = vadd.f32 %v2491, %v2464
      %v2493 = vsel %vm857, %v2492, -inf
      %v2494 = vrot.slane %v2493, 4
      %v2495 = vmax.f32 %v2493, %v2494
      %v2496 = vrot.slane %v2495, 2
      %v2497 = vmax.f32 %v2495, %v2496
      %v2498 = vrot.slane %v2497, 1
      %v2499 = vmax.f32 %v2497, %v2498
      %v2500 = vsub.f32 %v2492, %v2499
      %v2501 = vmul.f32 %v2500, 1.442695
      %v2502 = vpow.pop %v2501
      %v2503 = vsel %vm857, %v2502, 0.0
      %v2504 = vrot.slane %v2503, 4
      %v2505 = vadd.f32 %v2503, %v2504
      %v2506 = vrot.slane %v2505, 2
      %v2507 = vadd.f32 %v2505, %v2506
      %v2508 = vrot.slane %v2507, 1
      %v2509 = vadd.f32 %v2507, %v2508
      %v2510 = vrcp.pop %v2509
      %v2511 = vmul.f32 %v2502, %v2510
      %v2512 = vmul.f32 %v2511, %v2462
      %v2513 = vsub.f32 %v2511, %v2512
      %v2514 = vlaneseq
      %v2515 = vshrl.u32 %v2514, 7
      %v2516 = vsub.s32 0, %v2515
      %v2517 = vrot.slane %v2512, %v2516
      %2519 = vbcast.lane.b32.xlu0 %v2517, 256
      %v2520 = vpop.permute.xlu0 %2519
      %v2521 = vlaneseq
      %v2522 = vshrl.u32 %v2521, 7
      %v2523 = vsub.s32 1, %v2522
      %v2524 = vrot.slane %v2512, %v2523
      %2526 = vbcast.lane.b32.xlu0 %v2524, 256
      %v2527 = vpop.permute.xlu0 %2526
      %v2528 = vlaneseq
      %v2529 = vshrl.u32 %v2528, 7
      %v2530 = vsub.s32 2, %v2529
      %v2531 = vrot.slane %v2512, %v2530
      %2533 = vbcast.lane.b32.xlu0 %v2531, 256
      %v2534 = vpop.permute.xlu0 %2533
      %v2535 = vlaneseq
      %v2536 = vshrl.u32 %v2535, 7
      %v2537 = vsub.s32 3, %v2536
      %v2538 = vrot.slane %v2512, %v2537
      %2540 = vbcast.lane.b32.xlu0 %v2538, 256
      %v2541 = vpop.permute.xlu0 %2540
      %v2542 = vlaneseq
      %v2543 = vshrl.u32 %v2542, 7
      %v2544 = vsub.s32 4, %v2543
      %v2545 = vrot.slane %v2512, %v2544
      %2547 = vbcast.lane.b32.xlu0 %v2545, 256
      %v2548 = vpop.permute.xlu0 %2547
      %v2549 = vlaneseq
      %v2550 = vshrl.u32 %v2549, 7
      %v2551 = vsub.s32 5, %v2550
      %v2552 = vrot.slane %v2512, %v2551
      %2554 = vbcast.lane.b32.xlu0 %v2552, 256
      %v2555 = vpop.permute.xlu0 %2554
      %v2556 = vlaneseq
      %v2557 = vshrl.u32 %v2556, 7
      %v2558 = vsub.s32 6, %v2557
      %v2559 = vrot.slane %v2512, %v2558
      %2561 = vbcast.lane.b32.xlu0 %v2559, 256
      %v2562 = vpop.permute.xlu0 %2561
      %v2563 = vlaneseq
      %v2564 = vshrl.u32 %v2563, 7
      %v2565 = vsub.s32 7, %v2564
      %v2566 = vrot.slane %v2512, %v2565
      %2568 = vbcast.lane.b32.xlu0 %v2566, 256
      %v2569 = vpop.permute.xlu0 %2568
      %v2570 = vmul.f32 %v2520, %v2466
      %v2571 = vmul.f32 %v2527, %v2467
      %v2572 = vmul.f32 %v2534, %v2468
      %v2573 = vmul.f32 %v2541, %v2469
      %v2574 = vmul.f32 %v2548, %v2470
      %v2575 = vmul.f32 %v2555, %v2471
      %v2576 = vmul.f32 %v2562, %v2472
      %v2577 = vmul.f32 %v2569, %v2473
      %v2578 = vsel %vm810, %v2570, 0.0
      %v2579 = vsel %vm810, %v2571, 0.0
      %v2580 = vadd.f32 %v2578, %v2579
      %v2581 = vsel %vm810, %v2572, 0.0
      %v2582 = vadd.f32 %v2580, %v2581
      %v2583 = vsel %vm810, %v2573, 0.0
      %v2584 = vadd.f32 %v2582, %v2583
      %v2585 = vsel %vm810, %v2574, 0.0
      %v2586 = vadd.f32 %v2584, %v2585
      %v2587 = vsel %vm810, %v2575, 0.0
      %v2588 = vadd.f32 %v2586, %v2587
      %v2589 = vsel %vm810, %v2576, 0.0
      %v2590 = vadd.f32 %v2588, %v2589
      %v2591 = vsel %vm810, %v2577, 0.0
      %v2592 = vadd.f32 %v2590, %v2591
      %v2593 = vlaneseq
      %v2594 = vshrl.u32 %v2593, 7
      %v2595 = vsub.s32 0, %v2594
      %v2596 = vrot.slane %v2513, %v2595
      %2598 = vbcast.lane.b32.xlu0 %v2596, 256
      %v2599 = vpop.permute.xlu0 %2598
      %v2600 = vlaneseq
      %v2601 = vshrl.u32 %v2600, 7
      %v2602 = vsub.s32 1, %v2601
      %v2603 = vrot.slane %v2513, %v2602
      %2605 = vbcast.lane.b32.xlu0 %v2603, 256
      %v2606 = vpop.permute.xlu0 %2605
      %v2607 = vlaneseq
      %v2608 = vshrl.u32 %v2607, 7
      %v2609 = vsub.s32 2, %v2608
      %v2610 = vrot.slane %v2513, %v2609
      %2612 = vbcast.lane.b32.xlu0 %v2610, 256
      %v2613 = vpop.permute.xlu0 %2612
      %v2614 = vlaneseq
      %v2615 = vshrl.u32 %v2614, 7
      %v2616 = vsub.s32 3, %v2615
      %v2617 = vrot.slane %v2513, %v2616
      %2619 = vbcast.lane.b32.xlu0 %v2617, 256
      %v2620 = vpop.permute.xlu0 %2619
      %v2621 = vlaneseq
      %v2622 = vshrl.u32 %v2621, 7
      %v2623 = vsub.s32 4, %v2622
      %v2624 = vrot.slane %v2513, %v2623
      %2626 = vbcast.lane.b32.xlu0 %v2624, 256
      %v2627 = vpop.permute.xlu0 %2626
      %v2628 = vlaneseq
      %v2629 = vshrl.u32 %v2628, 7
      %v2630 = vsub.s32 5, %v2629
      %v2631 = vrot.slane %v2513, %v2630
      %2633 = vbcast.lane.b32.xlu0 %v2631, 256
      %v2634 = vpop.permute.xlu0 %2633
      %v2635 = vlaneseq
      %v2636 = vshrl.u32 %v2635, 7
      %v2637 = vsub.s32 6, %v2636
      %v2638 = vrot.slane %v2513, %v2637
      %2640 = vbcast.lane.b32.xlu0 %v2638, 256
      %v2641 = vpop.permute.xlu0 %2640
      %v2642 = vlaneseq
      %v2643 = vshrl.u32 %v2642, 7
      %v2644 = vsub.s32 7, %v2643
      %v2645 = vrot.slane %v2513, %v2644
      %2647 = vbcast.lane.b32.xlu0 %v2645, 256
      %v2648 = vpop.permute.xlu0 %2647
      %v2649 = vmul.f32 %v2599, %v2466
      %v2650 = vmul.f32 %v2606, %v2467
      %v2651 = vmul.f32 %v2613, %v2468
      %v2652 = vmul.f32 %v2620, %v2469
      %v2653 = vmul.f32 %v2627, %v2470
      %v2654 = vmul.f32 %v2634, %v2471
      %v2655 = vmul.f32 %v2641, %v2472
      %v2656 = vmul.f32 %v2648, %v2473
      %v2657 = vsel %vm810, %v2649, 0.0
      %v2658 = vsel %vm810, %v2650, 0.0
      %v2659 = vadd.f32 %v2657, %v2658
      %v2660 = vsel %vm810, %v2651, 0.0
      %v2661 = vadd.f32 %v2659, %v2660
      %v2662 = vsel %vm810, %v2652, 0.0
      %v2663 = vadd.f32 %v2661, %v2662
      %v2664 = vsel %vm810, %v2653, 0.0
      %v2665 = vadd.f32 %v2663, %v2664
      %v2666 = vsel %vm810, %v2654, 0.0
      %v2667 = vadd.f32 %v2665, %v2666
      %v2668 = vsel %vm810, %v2655, 0.0
      %v2669 = vadd.f32 %v2667, %v2668
      %v2670 = vsel %vm810, %v2656, 0.0
      %v2671 = vadd.f32 %v2669, %v2670
      %2673 = vrot.lane.b32.xlu0 %v2671, 32
      %v2674 = vpop.permute.xlu0 %2673
      %v2676 = vsel %vm586, %v2592, %v2674
      %v2678 = vsel %vm1092, %v2676, 0
      %2680 = vmatprep.subr.mxu0 0.0
      %2681 = vmatpush1.msra.mxu0 %v546
      %2682 = vmatprep.subr.mxu0 0.0
      %2683 = vmatpush1.msra.mxu0 %v547
      %2684 = vmatprep.subr.mxu0 0.0
      %2685 = vmatpush1.msra.mxu0 %v548
      %2686 = vmatprep.subr.mxu0 0.0
      %2687 = vmatpush1.msra.mxu0 %v549
      %2688 = vmatprep.subr.mxu0 0.0
      %2689 = vmatpush1.msra.mxu0 %v550
      %2690 = vmatprep.subr.mxu0 0.0
      %2691 = vmatpush1.msra.mxu0 %v551
      %2692 = vmatprep.subr.mxu0 0.0
      %2693 = vmatpush1.msra.mxu0 %v552
      %2694 = vmatprep.subr.mxu0 0.0
      %2695 = vmatpush1.msra.mxu0 %v553
      %2696 = vmatprep.subr.mxu0 0.0
      %2697 = vmatpush1.msra.mxu0 0.0
      %2698 = vmatprep.subr.mxu0 0.0
      %2699 = vmatpush1.msra.mxu0 0.0
      %2700 = vmatprep.subr.mxu0 0.0
      %2701 = vmatpush1.msra.mxu0 0.0
      %2702 = vmatprep.subr.mxu0 0.0
      %2703 = vmatpush1.msra.mxu0 0.0
      %2704 = vmatprep.subr.mxu0 0.0
      %2705 = vmatpush1.msra.mxu0 0.0
      %2706 = vmatprep.subr.mxu0 0.0
      %2707 = vmatpush1.msra.mxu0 0.0
      %2708 = vmatprep.subr.mxu0 0.0
      %2709 = vmatpush1.msra.mxu0 0.0
      %2710 = vmatprep.subr.mxu0 0.0
      %2711 = vmatpush1.msra.mxu0 0.0
      %2712 = vmatprep.subr.mxu0 0.0
      %2713 = vmatpush1.msra.mxu0 0.0
      %2714 = vmatprep.subr.mxu0 0.0
      %2715 = vmatpush1.msra.mxu0 0.0
      %2716 = vmatprep.subr.mxu0 0.0
      %2717 = vmatpush1.msra.mxu0 0.0
      %2718 = vmatprep.subr.mxu0 0.0
      %2719 = vmatpush1.msra.mxu0 0.0
      %2720 = vmatprep.subr.mxu0 0.0
      %2721 = vmatpush1.msra.mxu0 0.0
      %2722 = vmatprep.subr.mxu0 0.0
      %2723 = vmatpush1.msra.mxu0 0.0
      %2724 = vmatprep.subr.mxu0 0.0
      %2725 = vmatpush1.msra.mxu0 0.0
      %2726 = vmatprep.subr.mxu0 0.0
      %2727 = vmatpush1.msra.mxu0 0.0
      %2728 = vmatprep.subr.mxu0 0.0
      %2729 = vmatpush1.msra.mxu0 0.0
      %2730 = vmatprep.subr.mxu0 0.0
      %2731 = vmatpush1.msra.mxu0 0.0
      %2732 = vmatprep.subr.mxu0 0.0
      %2733 = vmatpush1.msra.mxu0 0.0
      %2734 = vmatprep.subr.mxu0 0.0
      %2735 = vmatpush1.msra.mxu0 0.0
      %2736 = vmatprep.subr.mxu0 0.0
      %2737 = vmatpush1.msra.mxu0 0.0
      %2738 = vmatprep.subr.mxu0 0.0
      %2739 = vmatpush1.msra.mxu0 0.0
      %2740 = vmatprep.subr.mxu0 0.0
      %2741 = vmatpush1.msra.mxu0 0.0
      %2742 = vmatprep.subr.mxu0 0.0
      %2743 = vmatpush1.msra.mxu0 0.0
      %2744 = vmatprep.mubr.f32.mxu0 0.0
      %2745 = vmatmul.mubr.f32.gmra.mrb[0].mxu0 %v2678
      %v2746 = vpop.f32.mrb[0].mxu0
      %v2747 = vadd.f32 0.0, %v2746
      %v2748 = vpop.f32.mrb[0].mxu0
      %2749 = vdwg.mxu0
      %v2751 = vsel %vm586, %v2460, 0
      %2753 = vmatprep.subr.mxu0 %v555
      %2754 = vmatpush1.msra.mxu0 %v554
      %2755 = vmatprep.subr.mxu0 %v557
      %2756 = vmatpush1.msra.mxu0 %v556
      %2757 = vmatprep.subr.mxu0 %v559
      %2758 = vmatpush1.msra.mxu0 %v558
      %2759 = vmatprep.subr.mxu0 %v561
      %2760 = vmatpush1.msra.mxu0 %v560
      %2761 = vmatprep.subr.mxu0 0.0
      %2762 = vmatpush1.msra.mxu0 0.0
      %2763 = vmatprep.subr.mxu0 0.0
      %2764 = vmatpush1.msra.mxu0 0.0
      %2765 = vmatprep.subr.mxu0 0.0
      %2766 = vmatpush1.msra.mxu0 0.0
      %2767 = vmatprep.subr.mxu0 0.0
      %2768 = vmatpush1.msra.mxu0 0.0
      %2769 = vmatprep.subr.mxu0 0.0
      %2770 = vmatpush1.msra.mxu0 0.0
      %2771 = vmatprep.subr.mxu0 0.0
      %2772 = vmatpush1.msra.mxu0 0.0
      %2773 = vmatprep.subr.mxu0 0.0
      %2774 = vmatpush1.msra.mxu0 0.0
      %2775 = vmatprep.subr.mxu0 0.0
      %2776 = vmatpush1.msra.mxu0 0.0
      %2777 = vmatprep.subr.mxu0 0.0
      %2778 = vmatpush1.msra.mxu0 0.0
      %2779 = vmatprep.subr.mxu0 0.0
      %2780 = vmatpush1.msra.mxu0 0.0
      %2781 = vmatprep.subr.mxu0 0.0
      %2782 = vmatpush1.msra.mxu0 0.0
      %2783 = vmatprep.subr.mxu0 0.0
      %2784 = vmatpush1.msra.mxu0 0.0
      %2785 = vmatprep.subr.mxu0 0.0
      %2786 = vmatpush1.msra.mxu0 0.0
      %2787 = vmatprep.subr.mxu0 0.0
      %2788 = vmatpush1.msra.mxu0 0.0
      %2789 = vmatprep.subr.mxu0 0.0
      %2790 = vmatpush1.msra.mxu0 0.0
      %2791 = vmatprep.subr.mxu0 0.0
      %2792 = vmatpush1.msra.mxu0 0.0
      %2793 = vmatprep.subr.mxu0 0.0
      %2794 = vmatpush1.msra.mxu0 0.0
      %2795 = vmatprep.subr.mxu0 0.0
      %2796 = vmatpush1.msra.mxu0 0.0
      %2797 = vmatprep.subr.mxu0 0.0
      %2798 = vmatpush1.msra.mxu0 0.0
      %2799 = vmatprep.subr.mxu0 0.0
      %2800 = vmatpush1.msra.mxu0 0.0
      %2801 = vmatprep.subr.mxu0 0.0
      %2802 = vmatpush1.msra.mxu0 0.0
      %2803 = vmatprep.subr.mxu0 0.0
      %2804 = vmatpush1.msra.mxu0 0.0
      %2805 = vmatprep.subr.mxu0 0.0
      %2806 = vmatpush1.msra.mxu0 0.0
      %2807 = vmatprep.subr.mxu0 0.0
      %2808 = vmatpush1.msra.mxu0 0.0
      %2809 = vmatprep.subr.mxu0 0.0
      %2810 = vmatpush1.msra.mxu0 0.0
      %2811 = vmatprep.subr.mxu0 0.0
      %2812 = vmatpush1.msra.mxu0 0.0
      %2813 = vmatprep.subr.mxu0 0.0
      %2814 = vmatpush1.msra.mxu0 0.0
      %2815 = vmatprep.subr.mxu0 0.0
      %2816 = vmatpush1.msra.mxu0 0.0
      %2817 = vmatprep.mubr.f32.mxu0 0.0
      %2818 = vmatmul.mubr.f32.gmra.mrb[0].mxu0 %v2751
      %v2819 = vpop.f32.mrb[0].mxu0
      %v2820 = vadd.f32 %v579, %v2819
      %v2821 = vpop.f32.mrb[0].mxu0
      %v2822 = vadd.f32 %v583, %v2821
      %2823 = vdwg.mxu0
      %v2825 = vsel %vm586, %v2747, 0
      %2827 = vmatprep.subr.mxu0 %v564
      %2828 = vmatpush1.msra.mxu0 %v563
      %2829 = vmatprep.subr.mxu0 %v566
      %2830 = vmatpush1.msra.mxu0 %v565
      %2831 = vmatprep.subr.mxu0 %v568
      %2832 = vmatpush1.msra.mxu0 %v567
      %2833 = vmatprep.subr.mxu0 %v570
      %2834 = vmatpush1.msra.mxu0 %v569
      %2835 = vmatprep.subr.mxu0 0.0
      %2836 = vmatpush1.msra.mxu0 0.0
      %2837 = vmatprep.subr.mxu0 0.0
      %2838 = vmatpush1.msra.mxu0 0.0
      %2839 = vmatprep.subr.mxu0 0.0
      %2840 = vmatpush1.msra.mxu0 0.0
      %2841 = vmatprep.subr.mxu0 0.0
      %2842 = vmatpush1.msra.mxu0 0.0
      %2843 = vmatprep.subr.mxu0 0.0
      %2844 = vmatpush1.msra.mxu0 0.0
      %2845 = vmatprep.subr.mxu0 0.0
      %2846 = vmatpush1.msra.mxu0 0.0
      %2847 = vmatprep.subr.mxu0 0.0
      %2848 = vmatpush1.msra.mxu0 0.0
      %2849 = vmatprep.subr.mxu0 0.0
      %2850 = vmatpush1.msra.mxu0 0.0
      %2851 = vmatprep.subr.mxu0 0.0
      %2852 = vmatpush1.msra.mxu0 0.0
      %2853 = vmatprep.subr.mxu0 0.0
      %2854 = vmatpush1.msra.mxu0 0.0
      %2855 = vmatprep.subr.mxu0 0.0
      %2856 = vmatpush1.msra.mxu0 0.0
      %2857 = vmatprep.subr.mxu0 0.0
      %2858 = vmatpush1.msra.mxu0 0.0
      %2859 = vmatprep.subr.mxu0 0.0
      %2860 = vmatpush1.msra.mxu0 0.0
      %2861 = vmatprep.subr.mxu0 0.0
      %2862 = vmatpush1.msra.mxu0 0.0
      %2863 = vmatprep.subr.mxu0 0.0
      %2864 = vmatpush1.msra.mxu0 0.0
      %2865 = vmatprep.subr.mxu0 0.0
      %2866 = vmatpush1.msra.mxu0 0.0
      %2867 = vmatprep.subr.mxu0 0.0
      %2868 = vmatpush1.msra.mxu0 0.0
      %2869 = vmatprep.subr.mxu0 0.0
      %2870 = vmatpush1.msra.mxu0 0.0
      %2871 = vmatprep.subr.mxu0 0.0
      %2872 = vmatpush1.msra.mxu0 0.0
      %2873 = vmatprep.subr.mxu0 0.0
      %2874 = vmatpush1.msra.mxu0 0.0
      %2875 = vmatprep.subr.mxu0 0.0
      %2876 = vmatpush1.msra.mxu0 0.0
      %2877 = vmatprep.subr.mxu0 0.0
      %2878 = vmatpush1.msra.mxu0 0.0
      %2879 = vmatprep.subr.mxu0 0.0
      %2880 = vmatpush1.msra.mxu0 0.0
      %2881 = vmatprep.subr.mxu0 0.0
      %2882 = vmatpush1.msra.mxu0 0.0
      %2883 = vmatprep.subr.mxu0 0.0
      %2884 = vmatpush1.msra.mxu0 0.0
      %2885 = vmatprep.subr.mxu0 0.0
      %2886 = vmatpush1.msra.mxu0 0.0
      %2887 = vmatprep.subr.mxu0 0.0
      %2888 = vmatpush1.msra.mxu0 0.0
      %2889 = vmatprep.subr.mxu0 0.0
      %2890 = vmatpush1.msra.mxu0 0.0
      %2891 = vmatprep.mubr.f32.mxu0 0.0
      %2892 = vmatmul.mubr.f32.gmra.mrb[0].mxu0 %v2825
      %v2893 = vpop.f32.mrb[0].mxu0
      %v2894 = vadd.f32 %v665, %v2893
      %v2895 = vpop.f32.mrb[0].mxu0
      %v2896 = vadd.f32 %v669, %v2895
      %2897 = vdwg.mxu0
      %v2898 = vadd.f32 %v2820, %v2894
      %v2899 = vxor.u32 %v2898, 2147483648
      %v2900 = vmul.f32 %v2899, 1.442695
      %v2901 = vpow.pop %v2900
      %v2902 = vadd.f32 %v2901, 1.0
      %v2903 = vrcp.pop %v2902
      %v2904 = vmul.f32 1.0, %v2903
      %2906 = vrot.lane.b32.xlu0 %v2894, 64
      %v2907 = vpop.permute.xlu0 %2906
      %v2909 = vmul.f32 %v2904, %v2907
      %2911 = vrot.lane.b32.xlu0 %v2909, 64
      %v2912 = vpop.permute.xlu0 %2911
      %v2914 = vadd.f32 %v2820, %v2912
      %v2915 = vtanh.pop %v2914
      %v2916 = vsub.f32 1.0, %v2904
      %2918 = vrot.lane.b32.xlu0 %v2915, 96
      %v2919 = vpop.permute.xlu0 %2918
      %v2921 = vmul.f32 %v2916, %v2919
      %2922 = vrot.lane.b32.xlu0 %v2747, 32
      %v2923 = vpop.permute.xlu0 %2922
      %v2925 = vmul.f32 %v2904, %v2923
      %v2926 = vadd.f32 %v2921, %v2925
      %v2927 = vadd.f32 %v2896, %v2822
      %v2928 = vxor.u32 %v2927, 2147483648
      %v2929 = vmul.f32 %v2928, 1.442695
      %v2930 = vpow.pop %v2929
      %v2931 = vadd.f32 %v2930, 1.0
      %v2932 = vrcp.pop %v2931
      %v2933 = vmul.f32 1.0, %v2932
      %2935 = vrot.lane.b32.xlu0 %v2822, 64
      %v2936 = vpop.permute.xlu0 %2935
      %v2938 = vmul.f32 %v2904, %v2936
      %2940 = vrot.lane.b32.xlu0 %v2938, 64
      %v2941 = vpop.permute.xlu0 %2940
      %v2943 = vadd.f32 %v2896, %v2941
      %v2944 = vtanh.pop %v2943
      %v2945 = vsub.f32 1.0, %v2933
      %2947 = vrot.lane.b32.xlu0 %v2944, 96
      %v2948 = vpop.permute.xlu0 %2947
      %v2950 = vmul.f32 %v2945, %v2948
      %v2951 = vmul.f32 %v2933, %v2460
      %v2952 = vadd.f32 %v2950, %v2951
      %2954 = vrot.lane.b32.xlu0 %v2952, 32
      %v2955 = vpop.permute.xlu0 %2954
      %v2957 = vadd.f32 %v2926, %v2955
      %2959 = vrot.lane.b32.xlu0 %v2957, 96
      %v2960 = vpop.permute.xlu0 %2959
      %s2962 = scalar_lea.vmem %s542, 8
      %2963 = vst.msk [vmem:[%s2962] sm:$0x3] %vm810, %v2960
      %vm2964 = vcmp.eq.s32.totalorder %v573, 4
      %v2965 = vmul.f32 %v2957, %v826
      %2967 = vrot.lane.b32.xlu0 %v2965, 96
      %v2968 = vpop.permute.xlu0 %2967
      %v2970 = vsel %vm810, %v2968, 0.0
      %2971 = vadd.xlane.f32.xlu0 %v2970
      %v2972 = vpop.xlane.xlu0 %2971
      %v2974 = vlaneseq
      %v2975 = vshrl.u32 %v2974, 7
      %v2976 = vsub.s32 %v838, %v2975
      %v2977 = vrot.slane %v2972, %v2976
      %v2978 = vsel %vm843, %v2977, %v2977
      %v2979 = vsel %vm845, %v2977, %v2978
      %v2980 = vsel %vm847, %v2977, %v2979
      %v2981 = vsel %vm849, %v2977, %v2980
      %v2982 = vsel %vm851, %v2977, %v2981
      %v2983 = vsel %vm853, %v2977, %v2982
      %v2985 = vsel %vm2964, %v2983, %v2465
      %2986 = vst.msk [vmem:[#allocation2] sm:$0xff] %vm857, %v2985
      %s2987 = scalar_lea.vmem %s500, 10
      %v2988 = vld [vmem:[%s2987] sm:$0x3]
      %s2989 = scalar_lea.vmem %s2, 40
      %v2990 = vld [vmem:[%s2989] sm:$0xff]
      %s2991 = scalar_lea.vmem %s505, 40
      %v2992 = vld [vmem:[%s2991] sm:$0xff]
      %v2993 = vld [vmem:[#allocation2] sm:$0xff]
      %v2994 = vld [vmem:[%s542] sm:$0x3]
      %v2995 = vld [vmem:[%s542 + $0x2] sm:$0x3]
      %v2996 = vld [vmem:[%s542 + $0x4] sm:$0x3]
      %v2997 = vld [vmem:[%s542 + $0x6] sm:$0x3]
      %v2998 = vld [vmem:[%s542 + $0x8] sm:$0x3]
      %v2999 = vld [vmem:[%s542 + $0xa] sm:$0x3]
      %v3000 = vld [vmem:[%s542 + $0xc] sm:$0x3]
      %v3001 = vld [vmem:[%s542 + $0xe] sm:$0x3]
      %v3002 = vmul.f32 %v2988, %v878
      %v3003 = vsel %vm810, %v3002, 0.0
      %3004 = vadd.xlane.f32.xlu0 %v3003
      %v3005 = vpop.xlane.xlu0 %3004
      %v3007 = vlaneseq
      %v3008 = vshrl.u32 %v3007, 7
      %v3009 = vsub.s32 %v838, %v3008
      %v3010 = vrot.slane %v3005, %v3009
      %v3011 = vsel %vm843, %v3010, %v3010
      %v3012 = vsel %vm845, %v3010, %v3011
      %v3013 = vsel %vm847, %v3010, %v3012
      %v3014 = vsel %vm849, %v3010, %v3013
      %v3015 = vsel %vm851, %v3010, %v3014
      %v3016 = vsel %vm853, %v3010, %v3015
      %v3018 = vadd.f32 %v2993, %v3016
      %v3019 = vadd.f32 %v3018, %v904
      %v3020 = vadd.f32 %v3019, %v2992
      %v3021 = vsel %vm857, %v3020, -inf
      %v3022 = vrot.slane %v3021, 4
      %v3023 = vmax.f32 %v3021, %v3022
      %v3024 = vrot.slane %v3023, 2
      %v3025 = vmax.f32 %v3023, %v3024
      %v3026 = vrot.slane %v3025, 1
      %v3027 = vmax.f32 %v3025, %v3026
      %v3028 = vsub.f32 %v3020, %v3027
      %v3029 = vmul.f32 %v3028, 1.442695
      %v3030 = vpow.pop %v3029
      %v3031 = vsel %vm857, %v3030, 0.0
      %v3032 = vrot.slane %v3031, 4
      %v3033 = vadd.f32 %v3031, %v3032
      %v3034 = vrot.slane %v3033, 2
      %v3035 = vadd.f32 %v3033, %v3034
      %v3036 = vrot.slane %v3035, 1
      %v3037 = vadd.f32 %v3035, %v3036
      %v3038 = vrcp.pop %v3037
      %v3039 = vmul.f32 %v3030, %v3038
      %v3040 = vmul.f32 %v3039, %v2990
      %v3041 = vsub.f32 %v3039, %v3040
      %v3042 = vlaneseq
      %v3043 = vshrl.u32 %v3042, 7
      %v3044 = vsub.s32 0, %v3043
      %v3045 = vrot.slane %v3040, %v3044
      %3047 = vbcast.lane.b32.xlu0 %v3045, 256
      %v3048 = vpop.permute.xlu0 %3047
      %v3049 = vlaneseq
      %v3050 = vshrl.u32 %v3049, 7
      %v3051 = vsub.s32 1, %v3050
      %v3052 = vrot.slane %v3040, %v3051
      %3054 = vbcast.lane.b32.xlu0 %v3052, 256
      %v3055 = vpop.permute.xlu0 %3054
      %v3056 = vlaneseq
      %v3057 = vshrl.u32 %v3056, 7
      %v3058 = vsub.s32 2, %v3057
      %v3059 = vrot.slane %v3040, %v3058
      %3061 = vbcast.lane.b32.xlu0 %v3059, 256
      %v3062 = vpop.permute.xlu0 %3061
      %v3063 = vlaneseq
      %v3064 = vshrl.u32 %v3063, 7
      %v3065 = vsub.s32 3, %v3064
      %v3066 = vrot.slane %v3040, %v3065
      %3068 = vbcast.lane.b32.xlu0 %v3066, 256
      %v3069 = vpop.permute.xlu0 %3068
      %v3070 = vlaneseq
      %v3071 = vshrl.u32 %v3070, 7
      %v3072 = vsub.s32 4, %v3071
      %v3073 = vrot.slane %v3040, %v3072
      %3075 = vbcast.lane.b32.xlu0 %v3073, 256
      %v3076 = vpop.permute.xlu0 %3075
      %v3077 = vlaneseq
      %v3078 = vshrl.u32 %v3077, 7
      %v3079 = vsub.s32 5, %v3078
      %v3080 = vrot.slane %v3040, %v3079
      %3082 = vbcast.lane.b32.xlu0 %v3080, 256
      %v3083 = vpop.permute.xlu0 %3082
      %v3084 = vlaneseq
      %v3085 = vshrl.u32 %v3084, 7
      %v3086 = vsub.s32 6, %v3085
      %v3087 = vrot.slane %v3040, %v3086
      %3089 = vbcast.lane.b32.xlu0 %v3087, 256
      %v3090 = vpop.permute.xlu0 %3089
      %v3091 = vlaneseq
      %v3092 = vshrl.u32 %v3091, 7
      %v3093 = vsub.s32 7, %v3092
      %v3094 = vrot.slane %v3040, %v3093
      %3096 = vbcast.lane.b32.xlu0 %v3094, 256
      %v3097 = vpop.permute.xlu0 %3096
      %v3098 = vmul.f32 %v3048, %v2994
      %v3099 = vmul.f32 %v3055, %v2995
      %v3100 = vmul.f32 %v3062, %v2996
      %v3101 = vmul.f32 %v3069, %v2997
      %v3102 = vmul.f32 %v3076, %v2998
      %v3103 = vmul.f32 %v3083, %v2999
      %v3104 = vmul.f32 %v3090, %v3000
      %v3105 = vmul.f32 %v3097, %v3001
      %v3106 = vsel %vm810, %v3098, 0.0
      %v3107 = vsel %vm810, %v3099, 0.0
      %v3108 = vadd.f32 %v3106, %v3107
      %v3109 = vsel %vm810, %v3100, 0.0
      %v3110 = vadd.f32 %v3108, %v3109
      %v3111 = vsel %vm810, %v3101, 0.0
      %v3112 = vadd.f32 %v3110, %v3111
      %v3113 = vsel %vm810, %v3102, 0.0
      %v3114 = vadd.f32 %v3112, %v3113
      %v3115 = vsel %vm810, %v3103, 0.0
      %v3116 = vadd.f32 %v3114, %v3115
      %v3117 = vsel %vm810, %v3104, 0.0
      %v3118 = vadd.f32 %v3116, %v3117
      %v3119 = vsel %vm810, %v3105, 0.0
      %v3120 = vadd.f32 %v3118, %v3119
      %v3121 = vlaneseq
      %v3122 = vshrl.u32 %v3121, 7
      %v3123 = vsub.s32 0, %v3122
      %v3124 = vrot.slane %v3041, %v3123
      %3126 = vbcast.lane.b32.xlu0 %v3124, 256
      %v3127 = vpop.permute.xlu0 %3126
      %v3128 = vlaneseq
      %v3129 = vshrl.u32 %v3128, 7
      %v3130 = vsub.s32 1, %v3129
      %v3131 = vrot.slane %v3041, %v3130
      %3133 = vbcast.lane.b32.xlu0 %v3131, 256
      %v3134 = vpop.permute.xlu0 %3133
      %v3135 = vlaneseq
      %v3136 = vshrl.u32 %v3135, 7
      %v3137 = vsub.s32 2, %v3136
      %v3138 = vrot.slane %v3041, %v3137
      %3140 = vbcast.lane.b32.xlu0 %v3138, 256
      %v3141 = vpop.permute.xlu0 %3140
      %v3142 = vlaneseq
      %v3143 = vshrl.u32 %v3142, 7
      %v3144 = vsub.s32 3, %v3143
      %v3145 = vrot.slane %v3041, %v3144
      %3147 = vbcast.lane.b32.xlu0 %v3145, 256
      %v3148 = vpop.permute.xlu0 %3147
      %v3149 = vlaneseq
      %v3150 = vshrl.u32 %v3149, 7
      %v3151 = vsub.s32 4, %v3150
      %v3152 = vrot.slane %v3041, %v3151
      %3154 = vbcast.lane.b32.xlu0 %v3152, 256
      %v3155 = vpop.permute.xlu0 %3154
      %v3156 = vlaneseq
      %v3157 = vshrl.u32 %v3156, 7
      %v3158 = vsub.s32 5, %v3157
      %v3159 = vrot.slane %v3041, %v3158
      %3161 = vbcast.lane.b32.xlu0 %v3159, 256
      %v3162 = vpop.permute.xlu0 %3161
      %v3163 = vlaneseq
      %v3164 = vshrl.u32 %v3163, 7
      %v3165 = vsub.s32 6, %v3164
      %v3166 = vrot.slane %v3041, %v3165
      %3168 = vbcast.lane.b32.xlu0 %v3166, 256
      %v3169 = vpop.permute.xlu0 %3168
      %v3170 = vlaneseq
      %v3171 = vshrl.u32 %v3170, 7
      %v3172 = vsub.s32 7, %v3171
      %v3173 = vrot.slane %v3041, %v3172
      %3175 = vbcast.lane.b32.xlu0 %v3173, 256
      %v3176 = vpop.permute.xlu0 %3175
      %v3177 = vmul.f32 %v3127, %v2994
      %v3178 = vmul.f32 %v3134, %v2995
      %v3179 = vmul.f32 %v3141, %v2996
      %v3180 = vmul.f32 %v3148, %v2997
      %v3181 = vmul.f32 %v3155, %v2998
      %v3182 = vmul.f32 %v3162, %v2999
      %v3183 = vmul.f32 %v3169, %v3000
      %v3184 = vmul.f32 %v3176, %v3001
      %v3185 = vsel %vm810, %v3177, 0.0
      %v3186 = vsel %vm810, %v3178, 0.0
      %v3187 = vadd.f32 %v3185, %v3186
      %v3188 = vsel %vm810, %v3179, 0.0
      %v3189 = vadd.f32 %v3187, %v3188
      %v3190 = vsel %vm810, %v3180, 0.0
      %v3191 = vadd.f32 %v3189, %v3190
      %v3192 = vsel %vm810, %v3181, 0.0
      %v3193 = vadd.f32 %v3191, %v3192
      %v3194 = vsel %vm810, %v3182, 0.0
      %v3195 = vadd.f32 %v3193, %v3194
      %v3196 = vsel %vm810, %v3183, 0.0
      %v3197 = vadd.f32 %v3195, %v3196
      %v3198 = vsel %vm810, %v3184, 0.0
      %v3199 = vadd.f32 %v3197, %v3198
      %3201 = vrot.lane.b32.xlu0 %v3199, 32
      %v3202 = vpop.permute.xlu0 %3201
      %v3204 = vsel %vm586, %v3120, %v3202
      %v3206 = vsel %vm1092, %v3204, 0
      %3208 = vmatprep.subr.mxu0 0.0
      %3209 = vmatpush1.msra.mxu0 %v546
      %3210 = vmatprep.subr.mxu0 0.0
      %3211 = vmatpush1.msra.mxu0 %v547
      %3212 = vmatprep.subr.mxu0 0.0
      %3213 = vmatpush1.msra.mxu0 %v548
      %3214 = vmatprep.subr.mxu0 0.0
      %3215 = vmatpush1.msra.mxu0 %v549
      %3216 = vmatprep.subr.mxu0 0.0
      %3217 = vmatpush1.msra.mxu0 %v550
      %3218 = vmatprep.subr.mxu0 0.0
      %3219 = vmatpush1.msra.mxu0 %v551
      %3220 = vmatprep.subr.mxu0 0.0
      %3221 = vmatpush1.msra.mxu0 %v552
      %3222 = vmatprep.subr.mxu0 0.0
      %3223 = vmatpush1.msra.mxu0 %v553
      %3224 = vmatprep.subr.mxu0 0.0
      %3225 = vmatpush1.msra.mxu0 0.0
      %3226 = vmatprep.subr.mxu0 0.0
      %3227 = vmatpush1.msra.mxu0 0.0
      %3228 = vmatprep.subr.mxu0 0.0
      %3229 = vmatpush1.msra.mxu0 0.0
      %3230 = vmatprep.subr.mxu0 0.0
      %3231 = vmatpush1.msra.mxu0 0.0
      %3232 = vmatprep.subr.mxu0 0.0
      %3233 = vmatpush1.msra.mxu0 0.0
      %3234 = vmatprep.subr.mxu0 0.0
      %3235 = vmatpush1.msra.mxu0 0.0
      %3236 = vmatprep.subr.mxu0 0.0
      %3237 = vmatpush1.msra.mxu0 0.0
      %3238 = vmatprep.subr.mxu0 0.0
      %3239 = vmatpush1.msra.mxu0 0.0
      %3240 = vmatprep.subr.mxu0 0.0
      %3241 = vmatpush1.msra.mxu0 0.0
      %3242 = vmatprep.subr.mxu0 0.0
      %3243 = vmatpush1.msra.mxu0 0.0
      %3244 = vmatprep.subr.mxu0 0.0
      %3245 = vmatpush1.msra.mxu0 0.0
      %3246 = vmatprep.subr.mxu0 0.0
      %3247 = vmatpush1.msra.mxu0 0.0
      %3248 = vmatprep.subr.mxu0 0.0
      %3249 = vmatpush1.msra.mxu0 0.0
      %3250 = vmatprep.subr.mxu0 0.0
      %3251 = vmatpush1.msra.mxu0 0.0
      %3252 = vmatprep.subr.mxu0 0.0
      %3253 = vmatpush1.msra.mxu0 0.0
      %3254 = vmatprep.subr.mxu0 0.0
      %3255 = vmatpush1.msra.mxu0 0.0
      %3256 = vmatprep.subr.mxu0 0.0
      %3257 = vmatpush1.msra.mxu0 0.0
      %3258 = vmatprep.subr.mxu0 0.0
      %3259 = vmatpush1.msra.mxu0 0.0
      %3260 = vmatprep.subr.mxu0 0.0
      %3261 = vmatpush1.msra.mxu0 0.0
      %3262 = vmatprep.subr.mxu0 0.0
      %3263 = vmatpush1.msra.mxu0 0.0
      %3264 = vmatprep.subr.mxu0 0.0
      %3265 = vmatpush1.msra.mxu0 0.0
      %3266 = vmatprep.subr.mxu0 0.0
      %3267 = vmatpush1.msra.mxu0 0.0
      %3268 = vmatprep.subr.mxu0 0.0
      %3269 = vmatpush1.msra.mxu0 0.0
      %3270 = vmatprep.subr.mxu0 0.0
      %3271 = vmatpush1.msra.mxu0 0.0
      %3272 = vmatprep.mubr.f32.mxu0 0.0
      %3273 = vmatmul.mubr.f32.gmra.mrb[0].mxu0 %v3206
      %v3274 = vpop.f32.mrb[0].mxu0
      %v3275 = vadd.f32 0.0, %v3274
      %v3276 = vpop.f32.mrb[0].mxu0
      %3277 = vdwg.mxu0
      %v3279 = vsel %vm586, %v2988, 0
      %3281 = vmatprep.subr.mxu0 %v555
      %3282 = vmatpush1.msra.mxu0 %v554
      %3283 = vmatprep.subr.mxu0 %v557
      %3284 = vmatpush1.msra.mxu0 %v556
      %3285 = vmatprep.subr.mxu0 %v559
      %3286 = vmatpush1.msra.mxu0 %v558
      %3287 = vmatprep.subr.mxu0 %v561
      %3288 = vmatpush1.msra.mxu0 %v560
      %3289 = vmatprep.subr.mxu0 0.0
      %3290 = vmatpush1.msra.mxu0 0.0
      %3291 = vmatprep.subr.mxu0 0.0
      %3292 = vmatpush1.msra.mxu0 0.0
      %3293 = vmatprep.subr.mxu0 0.0
      %3294 = vmatpush1.msra.mxu0 0.0
      %3295 = vmatprep.subr.mxu0 0.0
      %3296 = vmatpush1.msra.mxu0 0.0
      %3297 = vmatprep.subr.mxu0 0.0
      %3298 = vmatpush1.msra.mxu0 0.0
      %3299 = vmatprep.subr.mxu0 0.0
      %3300 = vmatpush1.msra.mxu0 0.0
      %3301 = vmatprep.subr.mxu0 0.0
      %3302 = vmatpush1.msra.mxu0 0.0
      %3303 = vmatprep.subr.mxu0 0.0
      %3304 = vmatpush1.msra.mxu0 0.0
      %3305 = vmatprep.subr.mxu0 0.0
      %3306 = vmatpush1.msra.mxu0 0.0
      %3307 = vmatprep.subr.mxu0 0.0
      %3308 = vmatpush1.msra.mxu0 0.0
      %3309 = vmatprep.subr.mxu0 0.0
      %3310 = vmatpush1.msra.mxu0 0.0
      %3311 = vmatprep.subr.mxu0 0.0
      %3312 = vmatpush1.msra.mxu0 0.0
      %3313 = vmatprep.subr.mxu0 0.0
      %3314 = vmatpush1.msra.mxu0 0.0
      %3315 = vmatprep.subr.mxu0 0.0
      %3316 = vmatpush1.msra.mxu0 0.0
      %3317 = vmatprep.subr.mxu0 0.0
      %3318 = vmatpush1.msra.mxu0 0.0
      %3319 = vmatprep.subr.mxu0 0.0
      %3320 = vmatpush1.msra.mxu0 0.0
      %3321 = vmatprep.subr.mxu0 0.0
      %3322 = vmatpush1.msra.mxu0 0.0
      %3323 = vmatprep.subr.mxu0 0.0
      %3324 = vmatpush1.msra.mxu0 0.0
      %3325 = vmatprep.subr.mxu0 0.0
      %3326 = vmatpush1.msra.mxu0 0.0
      %3327 = vmatprep.subr.mxu0 0.0
      %3328 = vmatpush1.msra.mxu0 0.0
      %3329 = vmatprep.subr.mxu0 0.0
      %3330 = vmatpush1.msra.mxu0 0.0
      %3331 = vmatprep.subr.mxu0 0.0
      %3332 = vmatpush1.msra.mxu0 0.0
      %3333 = vmatprep.subr.mxu0 0.0
      %3334 = vmatpush1.msra.mxu0 0.0
      %3335 = vmatprep.subr.mxu0 0.0
      %3336 = vmatpush1.msra.mxu0 0.0
      %3337 = vmatprep.subr.mxu0 0.0
      %3338 = vmatpush1.msra.mxu0 0.0
      %3339 = vmatprep.subr.mxu0 0.0
      %3340 = vmatpush1.msra.mxu0 0.0
      %3341 = vmatprep.subr.mxu0 0.0
      %3342 = vmatpush1.msra.mxu0 0.0
      %3343 = vmatprep.subr.mxu0 0.0
      %3344 = vmatpush1.msra.mxu0 0.0
      %3345 = vmatprep.mubr.f32.mxu0 0.0
      %3346 = vmatmul.mubr.f32.gmra.mrb[0].mxu0 %v3279
      %v3347 = vpop.f32.mrb[0].mxu0
      %v3348 = vadd.f32 %v579, %v3347
      %v3349 = vpop.f32.mrb[0].mxu0
      %v3350 = vadd.f32 %v583, %v3349
      %3351 = vdwg.mxu0
      %v3353 = vsel %vm586, %v3275, 0
      %3355 = vmatprep.subr.mxu0 %v564
      %3356 = vmatpush1.msra.mxu0 %v563
      %3357 = vmatprep.subr.mxu0 %v566
      %3358 = vmatpush1.msra.mxu0 %v565
      %3359 = vmatprep.subr.mxu0 %v568
      %3360 = vmatpush1.msra.mxu0 %v567
      %3361 = vmatprep.subr.mxu0 %v570
      %3362 = vmatpush1.msra.mxu0 %v569
      %3363 = vmatprep.subr.mxu0 0.0
      %3364 = vmatpush1.msra.mxu0 0.0
      %3365 = vmatprep.subr.mxu0 0.0
      %3366 = vmatpush1.msra.mxu0 0.0
      %3367 = vmatprep.subr.mxu0 0.0
      %3368 = vmatpush1.msra.mxu0 0.0
      %3369 = vmatprep.subr.mxu0 0.0
      %3370 = vmatpush1.msra.mxu0 0.0
      %3371 = vmatprep.subr.mxu0 0.0
      %3372 = vmatpush1.msra.mxu0 0.0
      %3373 = vmatprep.subr.mxu0 0.0
      %3374 = vmatpush1.msra.mxu0 0.0
      %3375 = vmatprep.subr.mxu0 0.0
      %3376 = vmatpush1.msra.mxu0 0.0
      %3377 = vmatprep.subr.mxu0 0.0
      %3378 = vmatpush1.msra.mxu0 0.0
      %3379 = vmatprep.subr.mxu0 0.0
      %3380 = vmatpush1.msra.mxu0 0.0
      %3381 = vmatprep.subr.mxu0 0.0
      %3382 = vmatpush1.msra.mxu0 0.0
      %3383 = vmatprep.subr.mxu0 0.0
      %3384 = vmatpush1.msra.mxu0 0.0
      %3385 = vmatprep.subr.mxu0 0.0
      %3386 = vmatpush1.msra.mxu0 0.0
      %3387 = vmatprep.subr.mxu0 0.0
      %3388 = vmatpush1.msra.mxu0 0.0
      %3389 = vmatprep.subr.mxu0 0.0
      %3390 = vmatpush1.msra.mxu0 0.0
      %3391 = vmatprep.subr.mxu0 0.0
      %3392 = vmatpush1.msra.mxu0 0.0
      %3393 = vmatprep.subr.mxu0 0.0
      %3394 = vmatpush1.msra.mxu0 0.0
      %3395 = vmatprep.subr.mxu0 0.0
      %3396 = vmatpush1.msra.mxu0 0.0
      %3397 = vmatprep.subr.mxu0 0.0
      %3398 = vmatpush1.msra.mxu0 0.0
      %3399 = vmatprep.subr.mxu0 0.0
      %3400 = vmatpush1.msra.mxu0 0.0
      %3401 = vmatprep.subr.mxu0 0.0
      %3402 = vmatpush1.msra.mxu0 0.0
      %3403 = vmatprep.subr.mxu0 0.0
      %3404 = vmatpush1.msra.mxu0 0.0
      %3405 = vmatprep.subr.mxu0 0.0
      %3406 = vmatpush1.msra.mxu0 0.0
      %3407 = vmatprep.subr.mxu0 0.0
      %3408 = vmatpush1.msra.mxu0 0.0
      %3409 = vmatprep.subr.mxu0 0.0
      %3410 = vmatpush1.msra.mxu0 0.0
      %3411 = vmatprep.subr.mxu0 0.0
      %3412 = vmatpush1.msra.mxu0 0.0
      %3413 = vmatprep.subr.mxu0 0.0
      %3414 = vmatpush1.msra.mxu0 0.0
      %3415 = vmatprep.subr.mxu0 0.0
      %3416 = vmatpush1.msra.mxu0 0.0
      %3417 = vmatprep.subr.mxu0 0.0
      %3418 = vmatpush1.msra.mxu0 0.0
      %3419 = vmatprep.mubr.f32.mxu0 0.0
      %3420 = vmatmul.mubr.f32.gmra.mrb[0].mxu0 %v3353
      %v3421 = vpop.f32.mrb[0].mxu0
      %v3422 = vadd.f32 %v665, %v3421
      %v3423 = vpop.f32.mrb[0].mxu0
      %v3424 = vadd.f32 %v669, %v3423
      %3425 = vdwg.mxu0
      %v3426 = vadd.f32 %v3348, %v3422
      %v3427 = vxor.u32 %v3426, 2147483648
      %v3428 = vmul.f32 %v3427, 1.442695
      %v3429 = vpow.pop %v3428
      %v3430 = vadd.f32 %v3429, 1.0
      %v3431 = vrcp.pop %v3430
      %v3432 = vmul.f32 1.0, %v3431
      %3434 = vrot.lane.b32.xlu0 %v3422, 64
      %v3435 = vpop.permute.xlu0 %3434
      %v3437 = vmul.f32 %v3432, %v3435
      %3439 = vrot.lane.b32.xlu0 %v3437, 64
      %v3440 = vpop.permute.xlu0 %3439
      %v3442 = vadd.f32 %v3348, %v3440
      %v3443 = vtanh.pop %v3442
      %v3444 = vsub.f32 1.0, %v3432
      %3446 = vrot.lane.b32.xlu0 %v3443, 96
      %v3447 = vpop.permute.xlu0 %3446
      %v3449 = vmul.f32 %v3444, %v3447
      %3450 = vrot.lane.b32.xlu0 %v3275, 32
      %v3451 = vpop.permute.xlu0 %3450
      %v3453 = vmul.f32 %v3432, %v3451
      %v3454 = vadd.f32 %v3449, %v3453
      %v3455 = vadd.f32 %v3424, %v3350
      %v3456 = vxor.u32 %v3455, 2147483648
      %v3457 = vmul.f32 %v3456, 1.442695
      %v3458 = vpow.pop %v3457
      %v3459 = vadd.f32 %v3458, 1.0
      %v3460 = vrcp.pop %v3459
      %v3461 = vmul.f32 1.0, %v3460
      %3463 = vrot.lane.b32.xlu0 %v3350, 64
      %v3464 = vpop.permute.xlu0 %3463
      %v3466 = vmul.f32 %v3432, %v3464
      %3468 = vrot.lane.b32.xlu0 %v3466, 64
      %v3469 = vpop.permute.xlu0 %3468
      %v3471 = vadd.f32 %v3424, %v3469
      %v3472 = vtanh.pop %v3471
      %v3473 = vsub.f32 1.0, %v3461
      %3475 = vrot.lane.b32.xlu0 %v3472, 96
      %v3476 = vpop.permute.xlu0 %3475
      %v3478 = vmul.f32 %v3473, %v3476
      %v3479 = vmul.f32 %v3461, %v2988
      %v3480 = vadd.f32 %v3478, %v3479
      %3482 = vrot.lane.b32.xlu0 %v3480, 32
      %v3483 = vpop.permute.xlu0 %3482
      %v3485 = vadd.f32 %v3454, %v3483
      %3487 = vrot.lane.b32.xlu0 %v3485, 96
      %v3488 = vpop.permute.xlu0 %3487
      %s3490 = scalar_lea.vmem %s542, 10
      %3491 = vst.msk [vmem:[%s3490] sm:$0x3] %vm810, %v3488
      %vm3492 = vcmp.eq.s32.totalorder %v573, 5
      %v3493 = vmul.f32 %v3485, %v826
      %3495 = vrot.lane.b32.xlu0 %v3493, 96
      %v3496 = vpop.permute.xlu0 %3495
      %v3498 = vsel %vm810, %v3496, 0.0
      %3499 = vadd.xlane.f32.xlu0 %v3498
      %v3500 = vpop.xlane.xlu0 %3499
      %v3502 = vlaneseq
      %v3503 = vshrl.u32 %v3502, 7
      %v3504 = vsub.s32 %v838, %v3503
      %v3505 = vrot.slane %v3500, %v3504
      %v3506 = vsel %vm843, %v3505, %v3505
      %v3507 = vsel %vm845, %v3505, %v3506
      %v3508 = vsel %vm847, %v3505, %v3507
      %v3509 = vsel %vm849, %v3505, %v3508
      %v3510 = vsel %vm851, %v3505, %v3509
      %v3511 = vsel %vm853, %v3505, %v3510
      %v3513 = vsel %vm3492, %v3511, %v2993
      %3514 = vst.msk [vmem:[#allocation2] sm:$0xff] %vm857, %v3513
      %s3515 = scalar_lea.vmem %s500, 12
      %v3516 = vld [vmem:[%s3515] sm:$0x3]
      %s3517 = scalar_lea.vmem %s2, 48
      %v3518 = vld [vmem:[%s3517] sm:$0xff]
      %s3519 = scalar_lea.vmem %s505, 48
      %v3520 = vld [vmem:[%s3519] sm:$0xff]
      %v3521 = vld [vmem:[#allocation2] sm:$0xff]
      %v3522 = vld [vmem:[%s542] sm:$0x3]
      %v3523 = vld [vmem:[%s542 + $0x2] sm:$0x3]
      %v3524 = vld [vmem:[%s542 + $0x4] sm:$0x3]
      %v3525 = vld [vmem:[%s542 + $0x6] sm:$0x3]
      %v3526 = vld [vmem:[%s542 + $0x8] sm:$0x3]
      %v3527 = vld [vmem:[%s542 + $0xa] sm:$0x3]
      %v3528 = vld [vmem:[%s542 + $0xc] sm:$0x3]
      %v3529 = vld [vmem:[%s542 + $0xe] sm:$0x3]
      %v3530 = vmul.f32 %v3516, %v878
      %v3531 = vsel %vm810, %v3530, 0.0
      %3532 = vadd.xlane.f32.xlu0 %v3531
      %v3533 = vpop.xlane.xlu0 %3532
      %v3535 = vlaneseq
      %v3536 = vshrl.u32 %v3535, 7
      %v3537 = vsub.s32 %v838, %v3536
      %v3538 = vrot.slane %v3533, %v3537
      %v3539 = vsel %vm843, %v3538, %v3538
      %v3540 = vsel %vm845, %v3538, %v3539
      %v3541 = vsel %vm847, %v3538, %v3540
      %v3542 = vsel %vm849, %v3538, %v3541
      %v3543 = vsel %vm851, %v3538, %v3542
      %v3544 = vsel %vm853, %v3538, %v3543
      %v3546 = vadd.f32 %v3521, %v3544
      %v3547 = vadd.f32 %v3546, %v904
      %v3548 = vadd.f32 %v3547, %v3520
      %v3549 = vsel %vm857, %v3548, -inf
      %v3550 = vrot.slane %v3549, 4
      %v3551 = vmax.f32 %v3549, %v3550
      %v3552 = vrot.slane %v3551, 2
      %v3553 = vmax.f32 %v3551, %v3552
      %v3554 = vrot.slane %v3553, 1
      %v3555 = vmax.f32 %v3553, %v3554
      %v3556 = vsub.f32 %v3548, %v3555
      %v3557 = vmul.f32 %v3556, 1.442695
      %v3558 = vpow.pop %v3557
      %v3559 = vsel %vm857, %v3558, 0.0
      %v3560 = vrot.slane %v3559, 4
      %v3561 = vadd.f32 %v3559, %v3560
      %v3562 = vrot.slane %v3561, 2
      %v3563 = vadd.f32 %v3561, %v3562
      %v3564 = vrot.slane %v3563, 1
      %v3565 = vadd.f32 %v3563, %v3564
      %v3566 = vrcp.pop %v3565
      %v3567 = vmul.f32 %v3558, %v3566
      %v3568 = vmul.f32 %v3567, %v3518
      %v3569 = vsub.f32 %v3567, %v3568
      %v3570 = vlaneseq
      %v3571 = vshrl.u32 %v3570, 7
      %v3572 = vsub.s32 0, %v3571
      %v3573 = vrot.slane %v3568, %v3572
      %3575 = vbcast.lane.b32.xlu0 %v3573, 256
      %v3576 = vpop.permute.xlu0 %3575
      %v3577 = vlaneseq
      %v3578 = vshrl.u32 %v3577, 7
      %v3579 = vsub.s32 1, %v3578
      %v3580 = vrot.slane %v3568, %v3579
      %3582 = vbcast.lane.b32.xlu0 %v3580, 256
      %v3583 = vpop.permute.xlu0 %3582
      %v3584 = vlaneseq
      %v3585 = vshrl.u32 %v3584, 7
      %v3586 = vsub.s32 2, %v3585
      %v3587 = vrot.slane %v3568, %v3586
      %3589 = vbcast.lane.b32.xlu0 %v3587, 256
      %v3590 = vpop.permute.xlu0 %3589
      %v3591 = vlaneseq
      %v3592 = vshrl.u32 %v3591, 7
      %v3593 = vsub.s32 3, %v3592
      %v3594 = vrot.slane %v3568, %v3593
      %3596 = vbcast.lane.b32.xlu0 %v3594, 256
      %v3597 = vpop.permute.xlu0 %3596
      %v3598 = vlaneseq
      %v3599 = vshrl.u32 %v3598, 7
      %v3600 = vsub.s32 4, %v3599
      %v3601 = vrot.slane %v3568, %v3600
      %3603 = vbcast.lane.b32.xlu0 %v3601, 256
      %v3604 = vpop.permute.xlu0 %3603
      %v3605 = vlaneseq
      %v3606 = vshrl.u32 %v3605, 7
      %v3607 = vsub.s32 5, %v3606
      %v3608 = vrot.slane %v3568, %v3607
      %3610 = vbcast.lane.b32.xlu0 %v3608, 256
      %v3611 = vpop.permute.xlu0 %3610
      %v3612 = vlaneseq
      %v3613 = vshrl.u32 %v3612, 7
      %v3614 = vsub.s32 6, %v3613
      %v3615 = vrot.slane %v3568, %v3614
      %3617 = vbcast.lane.b32.xlu0 %v3615, 256
      %v3618 = vpop.permute.xlu0 %3617
      %v3619 = vlaneseq
      %v3620 = vshrl.u32 %v3619, 7
      %v3621 = vsub.s32 7, %v3620
      %v3622 = vrot.slane %v3568, %v3621
      %3624 = vbcast.lane.b32.xlu0 %v3622, 256
      %v3625 = vpop.permute.xlu0 %3624
      %v3626 = vmul.f32 %v3576, %v3522
      %v3627 = vmul.f32 %v3583, %v3523
      %v3628 = vmul.f32 %v3590, %v3524
      %v3629 = vmul.f32 %v3597, %v3525
      %v3630 = vmul.f32 %v3604, %v3526
      %v3631 = vmul.f32 %v3611, %v3527
      %v3632 = vmul.f32 %v3618, %v3528
      %v3633 = vmul.f32 %v3625, %v3529
      %v3634 = vsel %vm810, %v3626, 0.0
      %v3635 = vsel %vm810, %v3627, 0.0
      %v3636 = vadd.f32 %v3634, %v3635
      %v3637 = vsel %vm810, %v3628, 0.0
      %v3638 = vadd.f32 %v3636, %v3637
      %v3639 = vsel %vm810, %v3629, 0.0
      %v3640 = vadd.f32 %v3638, %v3639
      %v3641 = vsel %vm810, %v3630, 0.0
      %v3642 = vadd.f32 %v3640, %v3641
      %v3643 = vsel %vm810, %v3631, 0.0
      %v3644 = vadd.f32 %v3642, %v3643
      %v3645 = vsel %vm810, %v3632, 0.0
      %v3646 = vadd.f32 %v3644, %v3645
      %v3647 = vsel %vm810, %v3633, 0.0
      %v3648 = vadd.f32 %v3646, %v3647
      %v3649 = vlaneseq
      %v3650 = vshrl.u32 %v3649, 7
      %v3651 = vsub.s32 0, %v3650
      %v3652 = vrot.slane %v3569, %v3651
      %3654 = vbcast.lane.b32.xlu0 %v3652, 256
      %v3655 = vpop.permute.xlu0 %3654
      %v3656 = vlaneseq
      %v3657 = vshrl.u32 %v3656, 7
      %v3658 = vsub.s32 1, %v3657
      %v3659 = vrot.slane %v3569, %v3658
      %3661 = vbcast.lane.b32.xlu0 %v3659, 256
      %v3662 = vpop.permute.xlu0 %3661
      %v3663 = vlaneseq
      %v3664 = vshrl.u32 %v3663, 7
      %v3665 = vsub.s32 2, %v3664
      %v3666 = vrot.slane %v3569, %v3665
      %3668 = vbcast.lane.b32.xlu0 %v3666, 256
      %v3669 = vpop.permute.xlu0 %3668
      %v3670 = vlaneseq
      %v3671 = vshrl.u32 %v3670, 7
      %v3672 = vsub.s32 3, %v3671
      %v3673 = vrot.slane %v3569, %v3672
      %3675 = vbcast.lane.b32.xlu0 %v3673, 256
      %v3676 = vpop.permute.xlu0 %3675
      %v3677 = vlaneseq
      %v3678 = vshrl.u32 %v3677, 7
      %v3679 = vsub.s32 4, %v3678
      %v3680 = vrot.slane %v3569, %v3679
      %3682 = vbcast.lane.b32.xlu0 %v3680, 256
      %v3683 = vpop.permute.xlu0 %3682
      %v3684 = vlaneseq
      %v3685 = vshrl.u32 %v3684, 7
      %v3686 = vsub.s32 5, %v3685
      %v3687 = vrot.slane %v3569, %v3686
      %3689 = vbcast.lane.b32.xlu0 %v3687, 256
      %v3690 = vpop.permute.xlu0 %3689
      %v3691 = vlaneseq
      %v3692 = vshrl.u32 %v3691, 7
      %v3693 = vsub.s32 6, %v3692
      %v3694 = vrot.slane %v3569, %v3693
      %3696 = vbcast.lane.b32.xlu0 %v3694, 256
      %v3697 = vpop.permute.xlu0 %3696
      %v3698 = vlaneseq
      %v3699 = vshrl.u32 %v3698, 7
      %v3700 = vsub.s32 7, %v3699
      %v3701 = vrot.slane %v3569, %v3700
      %3703 = vbcast.lane.b32.xlu0 %v3701, 256
      %v3704 = vpop.permute.xlu0 %3703
      %v3705 = vmul.f32 %v3655, %v3522
      %v3706 = vmul.f32 %v3662, %v3523
      %v3707 = vmul.f32 %v3669, %v3524
      %v3708 = vmul.f32 %v3676, %v3525
      %v3709 = vmul.f32 %v3683, %v3526
      %v3710 = vmul.f32 %v3690, %v3527
      %v3711 = vmul.f32 %v3697, %v3528
      %v3712 = vmul.f32 %v3704, %v3529
      %v3713 = vsel %vm810, %v3705, 0.0
      %v3714 = vsel %vm810, %v3706, 0.0
      %v3715 = vadd.f32 %v3713, %v3714
      %v3716 = vsel %vm810, %v3707, 0.0
      %v3717 = vadd.f32 %v3715, %v3716
      %v3718 = vsel %vm810, %v3708, 0.0
      %v3719 = vadd.f32 %v3717, %v3718
      %v3720 = vsel %vm810, %v3709, 0.0
      %v3721 = vadd.f32 %v3719, %v3720
      %v3722 = vsel %vm810, %v3710, 0.0
      %v3723 = vadd.f32 %v3721, %v3722
      %v3724 = vsel %vm810, %v3711, 0.0
      %v3725 = vadd.f32 %v3723, %v3724
      %v3726 = vsel %vm810, %v3712, 0.0
      %v3727 = vadd.f32 %v3725, %v3726
      %3729 = vrot.lane.b32.xlu0 %v3727, 32
      %v3730 = vpop.permute.xlu0 %3729
      %v3732 = vsel %vm586, %v3648, %v3730
      %v3734 = vsel %vm1092, %v3732, 0
      %3736 = vmatprep.subr.mxu0 0.0
      %3737 = vmatpush1.msra.mxu0 %v546
      %3738 = vmatprep.subr.mxu0 0.0
      %3739 = vmatpush1.msra.mxu0 %v547
      %3740 = vmatprep.subr.mxu0 0.0
      %3741 = vmatpush1.msra.mxu0 %v548
      %3742 = vmatprep.subr.mxu0 0.0
      %3743 = vmatpush1.msra.mxu0 %v549
      %3744 = vmatprep.subr.mxu0 0.0
      %3745 = vmatpush1.msra.mxu0 %v550
      %3746 = vmatprep.subr.mxu0 0.0
      %3747 = vmatpush1.msra.mxu0 %v551
      %3748 = vmatprep.subr.mxu0 0.0
      %3749 = vmatpush1.msra.mxu0 %v552
      %3750 = vmatprep.subr.mxu0 0.0
      %3751 = vmatpush1.msra.mxu0 %v553
      %3752 = vmatprep.subr.mxu0 0.0
      %3753 = vmatpush1.msra.mxu0 0.0
      %3754 = vmatprep.subr.mxu0 0.0
      %3755 = vmatpush1.msra.mxu0 0.0
      %3756 = vmatprep.subr.mxu0 0.0
      %3757 = vmatpush1.msra.mxu0 0.0
      %3758 = vmatprep.subr.mxu0 0.0
      %3759 = vmatpush1.msra.mxu0 0.0
      %3760 = vmatprep.subr.mxu0 0.0
      %3761 = vmatpush1.msra.mxu0 0.0
      %3762 = vmatprep.subr.mxu0 0.0
      %3763 = vmatpush1.msra.mxu0 0.0
      %3764 = vmatprep.subr.mxu0 0.0
      %3765 = vmatpush1.msra.mxu0 0.0
      %3766 = vmatprep.subr.mxu0 0.0
      %3767 = vmatpush1.msra.mxu0 0.0
      %3768 = vmatprep.subr.mxu0 0.0
      %3769 = vmatpush1.msra.mxu0 0.0
      %3770 = vmatprep.subr.mxu0 0.0
      %3771 = vmatpush1.msra.mxu0 0.0
      %3772 = vmatprep.subr.mxu0 0.0
      %3773 = vmatpush1.msra.mxu0 0.0
      %3774 = vmatprep.subr.mxu0 0.0
      %3775 = vmatpush1.msra.mxu0 0.0
      %3776 = vmatprep.subr.mxu0 0.0
      %3777 = vmatpush1.msra.mxu0 0.0
      %3778 = vmatprep.subr.mxu0 0.0
      %3779 = vmatpush1.msra.mxu0 0.0
      %3780 = vmatprep.subr.mxu0 0.0
      %3781 = vmatpush1.msra.mxu0 0.0
      %3782 = vmatprep.subr.mxu0 0.0
      %3783 = vmatpush1.msra.mxu0 0.0
      %3784 = vmatprep.subr.mxu0 0.0
      %3785 = vmatpush1.msra.mxu0 0.0
      %3786 = vmatprep.subr.mxu0 0.0
      %3787 = vmatpush1.msra.mxu0 0.0
      %3788 = vmatprep.subr.mxu0 0.0
      %3789 = vmatpush1.msra.mxu0 0.0
      %3790 = vmatprep.subr.mxu0 0.0
      %3791 = vmatpush1.msra.mxu0 0.0
      %3792 = vmatprep.subr.mxu0 0.0
      %3793 = vmatpush1.msra.mxu0 0.0
      %3794 = vmatprep.subr.mxu0 0.0
      %3795 = vmatpush1.msra.mxu0 0.0
      %3796 = vmatprep.subr.mxu0 0.0
      %3797 = vmatpush1.msra.mxu0 0.0
      %3798 = vmatprep.subr.mxu0 0.0
      %3799 = vmatpush1.msra.mxu0 0.0
      %3800 = vmatprep.mubr.f32.mxu0 0.0
      %3801 = vmatmul.mubr.f32.gmra.mrb[0].mxu0 %v3734
      %v3802 = vpop.f32.mrb[0].mxu0
      %v3803 = vadd.f32 0.0, %v3802
      %v3804 = vpop.f32.mrb[0].mxu0
      %3805 = vdwg.mxu0
      %v3807 = vsel %vm586, %v3516, 0
      %3809 = vmatprep.subr.mxu0 %v555
      %3810 = vmatpush1.msra.mxu0 %v554
      %3811 = vmatprep.subr.mxu0 %v557
      %3812 = vmatpush1.msra.mxu0 %v556
      %3813 = vmatprep.subr.mxu0 %v559
      %3814 = vmatpush1.msra.mxu0 %v558
      %3815 = vmatprep.subr.mxu0 %v561
      %3816 = vmatpush1.msra.mxu0 %v560
      %3817 = vmatprep.subr.mxu0 0.0
      %3818 = vmatpush1.msra.mxu0 0.0
      %3819 = vmatprep.subr.mxu0 0.0
      %3820 = vmatpush1.msra.mxu0 0.0
      %3821 = vmatprep.subr.mxu0 0.0
      %3822 = vmatpush1.msra.mxu0 0.0
      %3823 = vmatprep.subr.mxu0 0.0
      %3824 = vmatpush1.msra.mxu0 0.0
      %3825 = vmatprep.subr.mxu0 0.0
      %3826 = vmatpush1.msra.mxu0 0.0
      %3827 = vmatprep.subr.mxu0 0.0
      %3828 = vmatpush1.msra.mxu0 0.0
      %3829 = vmatprep.subr.mxu0 0.0
      %3830 = vmatpush1.msra.mxu0 0.0
      %3831 = vmatprep.subr.mxu0 0.0
      %3832 = vmatpush1.msra.mxu0 0.0
      %3833 = vmatprep.subr.mxu0 0.0
      %3834 = vmatpush1.msra.mxu0 0.0
      %3835 = vmatprep.subr.mxu0 0.0
      %3836 = vmatpush1.msra.mxu0 0.0
      %3837 = vmatprep.subr.mxu0 0.0
      %3838 = vmatpush1.msra.mxu0 0.0
      %3839 = vmatprep.subr.mxu0 0.0
      %3840 = vmatpush1.msra.mxu0 0.0
      %3841 = vmatprep.subr.mxu0 0.0
      %3842 = vmatpush1.msra.mxu0 0.0
      %3843 = vmatprep.subr.mxu0 0.0
      %3844 = vmatpush1.msra.mxu0 0.0
      %3845 = vmatprep.subr.mxu0 0.0
      %3846 = vmatpush1.msra.mxu0 0.0
      %3847 = vmatprep.subr.mxu0 0.0
      %3848 = vmatpush1.msra.mxu0 0.0
      %3849 = vmatprep.subr.mxu0 0.0
      %3850 = vmatpush1.msra.mxu0 0.0
      %3851 = vmatprep.subr.mxu0 0.0
      %3852 = vmatpush1.msra.mxu0 0.0
      %3853 = vmatprep.subr.mxu0 0.0
      %3854 = vmatpush1.msra.mxu0 0.0
      %3855 = vmatprep.subr.mxu0 0.0
      %3856 = vmatpush1.msra.mxu0 0.0
      %3857 = vmatprep.subr.mxu0 0.0
      %3858 = vmatpush1.msra.mxu0 0.0
      %3859 = vmatprep.subr.mxu0 0.0
      %3860 = vmatpush1.msra.mxu0 0.0
      %3861 = vmatprep.subr.mxu0 0.0
      %3862 = vmatpush1.msra.mxu0 0.0
      %3863 = vmatprep.subr.mxu0 0.0
      %3864 = vmatpush1.msra.mxu0 0.0
      %3865 = vmatprep.subr.mxu0 0.0
      %3866 = vmatpush1.msra.mxu0 0.0
      %3867 = vmatprep.subr.mxu0 0.0
      %3868 = vmatpush1.msra.mxu0 0.0
      %3869 = vmatprep.subr.mxu0 0.0
      %3870 = vmatpush1.msra.mxu0 0.0
      %3871 = vmatprep.subr.mxu0 0.0
      %3872 = vmatpush1.msra.mxu0 0.0
      %3873 = vmatprep.mubr.f32.mxu0 0.0
      %3874 = vmatmul.mubr.f32.gmra.mrb[0].mxu0 %v3807
      %v3875 = vpop.f32.mrb[0].mxu0
      %v3876 = vadd.f32 %v579, %v3875
      %v3877 = vpop.f32.mrb[0].mxu0
      %v3878 = vadd.f32 %v583, %v3877
      %3879 = vdwg.mxu0
      %v3881 = vsel %vm586, %v3803, 0
      %3883 = vmatprep.subr.mxu0 %v564
      %3884 = vmatpush1.msra.mxu0 %v563
      %3885 = vmatprep.subr.mxu0 %v566
      %3886 = vmatpush1.msra.mxu0 %v565
      %3887 = vmatprep.subr.mxu0 %v568
      %3888 = vmatpush1.msra.mxu0 %v567
      %3889 = vmatprep.subr.mxu0 %v570
      %3890 = vmatpush1.msra.mxu0 %v569
      %3891 = vmatprep.subr.mxu0 0.0
      %3892 = vmatpush1.msra.mxu0 0.0
      %3893 = vmatprep.subr.mxu0 0.0
      %3894 = vmatpush1.msra.mxu0 0.0
      %3895 = vmatprep.subr.mxu0 0.0
      %3896 = vmatpush1.msra.mxu0 0.0
      %3897 = vmatprep.subr.mxu0 0.0
      %3898 = vmatpush1.msra.mxu0 0.0
      %3899 = vmatprep.subr.mxu0 0.0
      %3900 = vmatpush1.msra.mxu0 0.0
      %3901 = vmatprep.subr.mxu0 0.0
      %3902 = vmatpush1.msra.mxu0 0.0
      %3903 = vmatprep.subr.mxu0 0.0
      %3904 = vmatpush1.msra.mxu0 0.0
      %3905 = vmatprep.subr.mxu0 0.0
      %3906 = vmatpush1.msra.mxu0 0.0
      %3907 = vmatprep.subr.mxu0 0.0
      %3908 = vmatpush1.msra.mxu0 0.0
      %3909 = vmatprep.subr.mxu0 0.0
      %3910 = vmatpush1.msra.mxu0 0.0
      %3911 = vmatprep.subr.mxu0 0.0
      %3912 = vmatpush1.msra.mxu0 0.0
      %3913 = vmatprep.subr.mxu0 0.0
      %3914 = vmatpush1.msra.mxu0 0.0
      %3915 = vmatprep.subr.mxu0 0.0
      %3916 = vmatpush1.msra.mxu0 0.0
      %3917 = vmatprep.subr.mxu0 0.0
      %3918 = vmatpush1.msra.mxu0 0.0
      %3919 = vmatprep.subr.mxu0 0.0
      %3920 = vmatpush1.msra.mxu0 0.0
      %3921 = vmatprep.subr.mxu0 0.0
      %3922 = vmatpush1.msra.mxu0 0.0
      %3923 = vmatprep.subr.mxu0 0.0
      %3924 = vmatpush1.msra.mxu0 0.0
      %3925 = vmatprep.subr.mxu0 0.0
      %3926 = vmatpush1.msra.mxu0 0.0
      %3927 = vmatprep.subr.mxu0 0.0
      %3928 = vmatpush1.msra.mxu0 0.0
      %3929 = vmatprep.subr.mxu0 0.0
      %3930 = vmatpush1.msra.mxu0 0.0
      %3931 = vmatprep.subr.mxu0 0.0
      %3932 = vmatpush1.msra.mxu0 0.0
      %3933 = vmatprep.subr.mxu0 0.0
      %3934 = vmatpush1.msra.mxu0 0.0
      %3935 = vmatprep.subr.mxu0 0.0
      %3936 = vmatpush1.msra.mxu0 0.0
      %3937 = vmatprep.subr.mxu0 0.0
      %3938 = vmatpush1.msra.mxu0 0.0
      %3939 = vmatprep.subr.mxu0 0.0
      %3940 = vmatpush1.msra.mxu0 0.0
      %3941 = vmatprep.subr.mxu0 0.0
      %3942 = vmatpush1.msra.mxu0 0.0
      %3943 = vmatprep.subr.mxu0 0.0
      %3944 = vmatpush1.msra.mxu0 0.0
      %3945 = vmatprep.subr.mxu0 0.0
      %3946 = vmatpush1.msra.mxu0 0.0
      %3947 = vmatprep.mubr.f32.mxu0 0.0
      %3948 = vmatmul.mubr.f32.gmra.mrb[0].mxu0 %v3881
      %v3949 = vpop.f32.mrb[0].mxu0
      %v3950 = vadd.f32 %v665, %v3949
      %v3951 = vpop.f32.mrb[0].mxu0
      %v3952 = vadd.f32 %v669, %v3951
      %3953 = vdwg.mxu0
      %v3954 = vadd.f32 %v3876, %v3950
      %v3955 = vxor.u32 %v3954, 2147483648
      %v3956 = vmul.f32 %v3955, 1.442695
      %v3957 = vpow.pop %v3956
      %v3958 = vadd.f32 %v3957, 1.0
      %v3959 = vrcp.pop %v3958
      %v3960 = vmul.f32 1.0, %v3959
      %3962 = vrot.lane.b32.xlu0 %v3950, 64
      %v3963 = vpop.permute.xlu0 %3962
      %v3965 = vmul.f32 %v3960, %v3963
      %3967 = vrot.lane.b32.xlu0 %v3965, 64
      %v3968 = vpop.permute.xlu0 %3967
      %v3970 = vadd.f32 %v3876, %v3968
      %v3971 = vtanh.pop %v3970
      %v3972 = vsub.f32 1.0, %v3960
      %3974 = vrot.lane.b32.xlu0 %v3971, 96
      %v3975 = vpop.permute.xlu0 %3974
      %v3977 = vmul.f32 %v3972, %v3975
      %3978 = vrot.lane.b32.xlu0 %v3803, 32
      %v3979 = vpop.permute.xlu0 %3978
      %v3981 = vmul.f32 %v3960, %v3979
      %v3982 = vadd.f32 %v3977, %v3981
      %v3983 = vadd.f32 %v3952, %v3878
      %v3984 = vxor.u32 %v3983, 2147483648
      %v3985 = vmul.f32 %v3984, 1.442695
      %v3986 = vpow.pop %v3985
      %v3987 = vadd.f32 %v3986, 1.0
      %v3988 = vrcp.pop %v3987
      %v3989 = vmul.f32 1.0, %v3988
      %3991 = vrot.lane.b32.xlu0 %v3878, 64
      %v3992 = vpop.permute.xlu0 %3991
      %v3994 = vmul.f32 %v3960, %v3992
      %3996 = vrot.lane.b32.xlu0 %v3994, 64
      %v3997 = vpop.permute.xlu0 %3996
      %v3999 = vadd.f32 %v3952, %v3997
      %v4000 = vtanh.pop %v3999
      %v4001 = vsub.f32 1.0, %v3989
      %4003 = vrot.lane.b32.xlu0 %v4000, 96
      %v4004 = vpop.permute.xlu0 %4003
      %v4006 = vmul.f32 %v4001, %v4004
      %v4007 = vmul.f32 %v3989, %v3516
      %v4008 = vadd.f32 %v4006, %v4007
      %4010 = vrot.lane.b32.xlu0 %v4008, 32
      %v4011 = vpop.permute.xlu0 %4010
      %v4013 = vadd.f32 %v3982, %v4011
      %4015 = vrot.lane.b32.xlu0 %v4013, 96
      %v4016 = vpop.permute.xlu0 %4015
      %s4018 = scalar_lea.vmem %s542, 12
      %4019 = vst.msk [vmem:[%s4018] sm:$0x3] %vm810, %v4016
      %vm4020 = vcmp.eq.s32.totalorder %v573, 6
      %v4021 = vmul.f32 %v4013, %v826
      %4023 = vrot.lane.b32.xlu0 %v4021, 96
      %v4024 = vpop.permute.xlu0 %4023
      %v4026 = vsel %vm810, %v4024, 0.0
      %4027 = vadd.xlane.f32.xlu0 %v4026
      %v4028 = vpop.xlane.xlu0 %4027
      %v4030 = vlaneseq
      %v4031 = vshrl.u32 %v4030, 7
      %v4032 = vsub.s32 %v838, %v4031
      %v4033 = vrot.slane %v4028, %v4032
      %v4034 = vsel %vm843, %v4033, %v4033
      %v4035 = vsel %vm845, %v4033, %v4034
      %v4036 = vsel %vm847, %v4033, %v4035
      %v4037 = vsel %vm849, %v4033, %v4036
      %v4038 = vsel %vm851, %v4033, %v4037
      %v4039 = vsel %vm853, %v4033, %v4038
      %v4041 = vsel %vm4020, %v4039, %v3521
      %4042 = vst.msk [vmem:[#allocation2] sm:$0xff] %vm857, %v4041
      %s4043 = scalar_lea.vmem %s500, 14
      %v4044 = vld [vmem:[%s4043] sm:$0x3]
      %s4045 = scalar_lea.vmem %s2, 56
      %v4046 = vld [vmem:[%s4045] sm:$0xff]
      %s4047 = scalar_lea.vmem %s505, 56
      %v4048 = vld [vmem:[%s4047] sm:$0xff]
      %v4049 = vld [vmem:[#allocation2] sm:$0xff]
      %v4050 = vld [vmem:[%s542] sm:$0x3]
      %v4051 = vld [vmem:[%s542 + $0x2] sm:$0x3]
      %v4052 = vld [vmem:[%s542 + $0x4] sm:$0x3]
      %v4053 = vld [vmem:[%s542 + $0x6] sm:$0x3]
      %v4054 = vld [vmem:[%s542 + $0x8] sm:$0x3]
      %v4055 = vld [vmem:[%s542 + $0xa] sm:$0x3]
      %v4056 = vld [vmem:[%s542 + $0xc] sm:$0x3]
      %v4057 = vld [vmem:[%s542 + $0xe] sm:$0x3]
      %v4058 = vmul.f32 %v4044, %v878
      %v4059 = vsel %vm810, %v4058, 0.0
      %4060 = vadd.xlane.f32.xlu0 %v4059
      %v4061 = vpop.xlane.xlu0 %4060
      %v4063 = vlaneseq
      %v4064 = vshrl.u32 %v4063, 7
      %v4065 = vsub.s32 %v838, %v4064
      %v4066 = vrot.slane %v4061, %v4065
      %v4067 = vsel %vm843, %v4066, %v4066
      %v4068 = vsel %vm845, %v4066, %v4067
      %v4069 = vsel %vm847, %v4066, %v4068
      %v4070 = vsel %vm849, %v4066, %v4069
      %v4071 = vsel %vm851, %v4066, %v4070
      %v4072 = vsel %vm853, %v4066, %v4071
      %v4074 = vadd.f32 %v4049, %v4072
      %v4075 = vadd.f32 %v4074, %v904
      %v4076 = vadd.f32 %v4075, %v4048
      %v4077 = vsel %vm857, %v4076, -inf
      %v4078 = vrot.slane %v4077, 4
      %v4079 = vmax.f32 %v4077, %v4078
      %v4080 = vrot.slane %v4079, 2
      %v4081 = vmax.f32 %v4079, %v4080
      %v4082 = vrot.slane %v4081, 1
      %v4083 = vmax.f32 %v4081, %v4082
      %v4084 = vsub.f32 %v4076, %v4083
      %v4085 = vmul.f32 %v4084, 1.442695
      %v4086 = vpow.pop %v4085
      %v4087 = vsel %vm857, %v4086, 0.0
      %v4088 = vrot.slane %v4087, 4
      %v4089 = vadd.f32 %v4087, %v4088
      %v4090 = vrot.slane %v4089, 2
      %v4091 = vadd.f32 %v4089, %v4090
      %v4092 = vrot.slane %v4091, 1
      %v4093 = vadd.f32 %v4091, %v4092
      %v4094 = vrcp.pop %v4093
      %v4095 = vmul.f32 %v4086, %v4094
      %v4096 = vmul.f32 %v4095, %v4046
      %v4097 = vsub.f32 %v4095, %v4096
      %v4098 = vlaneseq
      %v4099 = vshrl.u32 %v4098, 7
      %v4100 = vsub.s32 0, %v4099
      %v4101 = vrot.slane %v4096, %v4100
      %4103 = vbcast.lane.b32.xlu0 %v4101, 256
      %v4104 = vpop.permute.xlu0 %4103
      %v4105 = vlaneseq
      %v4106 = vshrl.u32 %v4105, 7
      %v4107 = vsub.s32 1, %v4106
      %v4108 = vrot.slane %v4096, %v4107
      %4110 = vbcast.lane.b32.xlu0 %v4108, 256
      %v4111 = vpop.permute.xlu0 %4110
      %v4112 = vlaneseq
      %v4113 = vshrl.u32 %v4112, 7
      %v4114 = vsub.s32 2, %v4113
      %v4115 = vrot.slane %v4096, %v4114
      %4117 = vbcast.lane.b32.xlu0 %v4115, 256
      %v4118 = vpop.permute.xlu0 %4117
      %v4119 = vlaneseq
      %v4120 = vshrl.u32 %v4119, 7
      %v4121 = vsub.s32 3, %v4120
      %v4122 = vrot.slane %v4096, %v4121
      %4124 = vbcast.lane.b32.xlu0 %v4122, 256
      %v4125 = vpop.permute.xlu0 %4124
      %v4126 = vlaneseq
      %v4127 = vshrl.u32 %v4126, 7
      %v4128 = vsub.s32 4, %v4127
      %v4129 = vrot.slane %v4096, %v4128
      %4131 = vbcast.lane.b32.xlu0 %v4129, 256
      %v4132 = vpop.permute.xlu0 %4131
      %v4133 = vlaneseq
      %v4134 = vshrl.u32 %v4133, 7
      %v4135 = vsub.s32 5, %v4134
      %v4136 = vrot.slane %v4096, %v4135
      %4138 = vbcast.lane.b32.xlu0 %v4136, 256
      %v4139 = vpop.permute.xlu0 %4138
      %v4140 = vlaneseq
      %v4141 = vshrl.u32 %v4140, 7
      %v4142 = vsub.s32 6, %v4141
      %v4143 = vrot.slane %v4096, %v4142
      %4145 = vbcast.lane.b32.xlu0 %v4143, 256
      %v4146 = vpop.permute.xlu0 %4145
      %v4147 = vlaneseq
      %v4148 = vshrl.u32 %v4147, 7
      %v4149 = vsub.s32 7, %v4148
      %v4150 = vrot.slane %v4096, %v4149
      %4152 = vbcast.lane.b32.xlu0 %v4150, 256
      %v4153 = vpop.permute.xlu0 %4152
      %v4154 = vmul.f32 %v4104, %v4050
      %v4155 = vmul.f32 %v4111, %v4051
      %v4156 = vmul.f32 %v4118, %v4052
      %v4157 = vmul.f32 %v4125, %v4053
      %v4158 = vmul.f32 %v4132, %v4054
      %v4159 = vmul.f32 %v4139, %v4055
      %v4160 = vmul.f32 %v4146, %v4056
      %v4161 = vmul.f32 %v4153, %v4057
      %v4162 = vsel %vm810, %v4154, 0.0
      %v4163 = vsel %vm810, %v4155, 0.0
      %v4164 = vadd.f32 %v4162, %v4163
      %v4165 = vsel %vm810, %v4156, 0.0
      %v4166 = vadd.f32 %v4164, %v4165
      %v4167 = vsel %vm810, %v4157, 0.0
      %v4168 = vadd.f32 %v4166, %v4167
      %v4169 = vsel %vm810, %v4158, 0.0
      %v4170 = vadd.f32 %v4168, %v4169
      %v4171 = vsel %vm810, %v4159, 0.0
      %v4172 = vadd.f32 %v4170, %v4171
      %v4173 = vsel %vm810, %v4160, 0.0
      %v4174 = vadd.f32 %v4172, %v4173
      %v4175 = vsel %vm810, %v4161, 0.0
      %v4176 = vadd.f32 %v4174, %v4175
      %v4177 = vlaneseq
      %v4178 = vshrl.u32 %v4177, 7
      %v4179 = vsub.s32 0, %v4178
      %v4180 = vrot.slane %v4097, %v4179
      %4182 = vbcast.lane.b32.xlu0 %v4180, 256
      %v4183 = vpop.permute.xlu0 %4182
      %v4184 = vlaneseq
      %v4185 = vshrl.u32 %v4184, 7
      %v4186 = vsub.s32 1, %v4185
      %v4187 = vrot.slane %v4097, %v4186
      %4189 = vbcast.lane.b32.xlu0 %v4187, 256
      %v4190 = vpop.permute.xlu0 %4189
      %v4191 = vlaneseq
      %v4192 = vshrl.u32 %v4191, 7
      %v4193 = vsub.s32 2, %v4192
      %v4194 = vrot.slane %v4097, %v4193
      %4196 = vbcast.lane.b32.xlu0 %v4194, 256
      %v4197 = vpop.permute.xlu0 %4196
      %v4198 = vlaneseq
      %v4199 = vshrl.u32 %v4198, 7
      %v4200 = vsub.s32 3, %v4199
      %v4201 = vrot.slane %v4097, %v4200
      %4203 = vbcast.lane.b32.xlu0 %v4201, 256
      %v4204 = vpop.permute.xlu0 %4203
      %v4205 = vlaneseq
      %v4206 = vshrl.u32 %v4205, 7
      %v4207 = vsub.s32 4, %v4206
      %v4208 = vrot.slane %v4097, %v4207
      %4210 = vbcast.lane.b32.xlu0 %v4208, 256
      %v4211 = vpop.permute.xlu0 %4210
      %v4212 = vlaneseq
      %v4213 = vshrl.u32 %v4212, 7
      %v4214 = vsub.s32 5, %v4213
      %v4215 = vrot.slane %v4097, %v4214
      %4217 = vbcast.lane.b32.xlu0 %v4215, 256
      %v4218 = vpop.permute.xlu0 %4217
      %v4219 = vlaneseq
      %v4220 = vshrl.u32 %v4219, 7
      %v4221 = vsub.s32 6, %v4220
      %v4222 = vrot.slane %v4097, %v4221
      %4224 = vbcast.lane.b32.xlu0 %v4222, 256
      %v4225 = vpop.permute.xlu0 %4224
      %v4226 = vlaneseq
      %v4227 = vshrl.u32 %v4226, 7
      %v4228 = vsub.s32 7, %v4227
      %v4229 = vrot.slane %v4097, %v4228
      %4231 = vbcast.lane.b32.xlu0 %v4229, 256
      %v4232 = vpop.permute.xlu0 %4231
      %v4233 = vmul.f32 %v4183, %v4050
      %v4234 = vmul.f32 %v4190, %v4051
      %v4235 = vmul.f32 %v4197, %v4052
      %v4236 = vmul.f32 %v4204, %v4053
      %v4237 = vmul.f32 %v4211, %v4054
      %v4238 = vmul.f32 %v4218, %v4055
      %v4239 = vmul.f32 %v4225, %v4056
      %v4240 = vmul.f32 %v4232, %v4057
      %v4241 = vsel %vm810, %v4233, 0.0
      %v4242 = vsel %vm810, %v4234, 0.0
      %v4243 = vadd.f32 %v4241, %v4242
      %v4244 = vsel %vm810, %v4235, 0.0
      %v4245 = vadd.f32 %v4243, %v4244
      %v4246 = vsel %vm810, %v4236, 0.0
      %v4247 = vadd.f32 %v4245, %v4246
      %v4248 = vsel %vm810, %v4237, 0.0
      %v4249 = vadd.f32 %v4247, %v4248
      %v4250 = vsel %vm810, %v4238, 0.0
      %v4251 = vadd.f32 %v4249, %v4250
      %v4252 = vsel %vm810, %v4239, 0.0
      %v4253 = vadd.f32 %v4251, %v4252
      %v4254 = vsel %vm810, %v4240, 0.0
      %v4255 = vadd.f32 %v4253, %v4254
      %4257 = vrot.lane.b32.xlu0 %v4255, 32
      %v4258 = vpop.permute.xlu0 %4257
      %v4260 = vsel %vm586, %v4176, %v4258
      %v4262 = vsel %vm1092, %v4260, 0
      %4264 = vmatprep.subr.mxu0 0.0
      %4265 = vmatpush1.msra.mxu0 %v546
      %4266 = vmatprep.subr.mxu0 0.0
      %4267 = vmatpush1.msra.mxu0 %v547
      %4268 = vmatprep.subr.mxu0 0.0
      %4269 = vmatpush1.msra.mxu0 %v548
      %4270 = vmatprep.subr.mxu0 0.0
      %4271 = vmatpush1.msra.mxu0 %v549
      %4272 = vmatprep.subr.mxu0 0.0
      %4273 = vmatpush1.msra.mxu0 %v550
      %4274 = vmatprep.subr.mxu0 0.0
      %4275 = vmatpush1.msra.mxu0 %v551
      %4276 = vmatprep.subr.mxu0 0.0
      %4277 = vmatpush1.msra.mxu0 %v552
      %4278 = vmatprep.subr.mxu0 0.0
      %4279 = vmatpush1.msra.mxu0 %v553
      %4280 = vmatprep.subr.mxu0 0.0
      %4281 = vmatpush1.msra.mxu0 0.0
      %4282 = vmatprep.subr.mxu0 0.0
      %4283 = vmatpush1.msra.mxu0 0.0
      %4284 = vmatprep.subr.mxu0 0.0
      %4285 = vmatpush1.msra.mxu0 0.0
      %4286 = vmatprep.subr.mxu0 0.0
      %4287 = vmatpush1.msra.mxu0 0.0
      %4288 = vmatprep.subr.mxu0 0.0
      %4289 = vmatpush1.msra.mxu0 0.0
      %4290 = vmatprep.subr.mxu0 0.0
      %4291 = vmatpush1.msra.mxu0 0.0
      %4292 = vmatprep.subr.mxu0 0.0
      %4293 = vmatpush1.msra.mxu0 0.0
      %4294 = vmatprep.subr.mxu0 0.0
      %4295 = vmatpush1.msra.mxu0 0.0
      %4296 = vmatprep.subr.mxu0 0.0
      %4297 = vmatpush1.msra.mxu0 0.0
      %4298 = vmatprep.subr.mxu0 0.0
      %4299 = vmatpush1.msra.mxu0 0.0
      %4300 = vmatprep.subr.mxu0 0.0
      %4301 = vmatpush1.msra.mxu0 0.0
      %4302 = vmatprep.subr.mxu0 0.0
      %4303 = vmatpush1.msra.mxu0 0.0
      %4304 = vmatprep.subr.mxu0 0.0
      %4305 = vmatpush1.msra.mxu0 0.0
      %4306 = vmatprep.subr.mxu0 0.0
      %4307 = vmatpush1.msra.mxu0 0.0
      %4308 = vmatprep.subr.mxu0 0.0
      %4309 = vmatpush1.msra.mxu0 0.0
      %4310 = vmatprep.subr.mxu0 0.0
      %4311 = vmatpush1.msra.mxu0 0.0
      %4312 = vmatprep.subr.mxu0 0.0
      %4313 = vmatpush1.msra.mxu0 0.0
      %4314 = vmatprep.subr.mxu0 0.0
      %4315 = vmatpush1.msra.mxu0 0.0
      %4316 = vmatprep.subr.mxu0 0.0
      %4317 = vmatpush1.msra.mxu0 0.0
      %4318 = vmatprep.subr.mxu0 0.0
      %4319 = vmatpush1.msra.mxu0 0.0
      %4320 = vmatprep.subr.mxu0 0.0
      %4321 = vmatpush1.msra.mxu0 0.0
      %4322 = vmatprep.subr.mxu0 0.0
      %4323 = vmatpush1.msra.mxu0 0.0
      %4324 = vmatprep.subr.mxu0 0.0
      %4325 = vmatpush1.msra.mxu0 0.0
      %4326 = vmatprep.subr.mxu0 0.0
      %4327 = vmatpush1.msra.mxu0 0.0
      %4328 = vmatprep.mubr.f32.mxu0 0.0
      %4329 = vmatmul.mubr.f32.gmra.mrb[0].mxu0 %v4262
      %v4330 = vpop.f32.mrb[0].mxu0
      %v4331 = vadd.f32 0.0, %v4330
      %v4332 = vpop.f32.mrb[0].mxu0
      %4333 = vdwg.mxu0
      %v4335 = vsel %vm586, %v4044, 0
      %4337 = vmatprep.subr.mxu0 %v555
      %4338 = vmatpush1.msra.mxu0 %v554
      %4339 = vmatprep.subr.mxu0 %v557
      %4340 = vmatpush1.msra.mxu0 %v556
      %4341 = vmatprep.subr.mxu0 %v559
      %4342 = vmatpush1.msra.mxu0 %v558
      %4343 = vmatprep.subr.mxu0 %v561
      %4344 = vmatpush1.msra.mxu0 %v560
      %4345 = vmatprep.subr.mxu0 0.0
      %4346 = vmatpush1.msra.mxu0 0.0
      %4347 = vmatprep.subr.mxu0 0.0
      %4348 = vmatpush1.msra.mxu0 0.0
      %4349 = vmatprep.subr.mxu0 0.0
      %4350 = vmatpush1.msra.mxu0 0.0
      %4351 = vmatprep.subr.mxu0 0.0
      %4352 = vmatpush1.msra.mxu0 0.0
      %4353 = vmatprep.subr.mxu0 0.0
      %4354 = vmatpush1.msra.mxu0 0.0
      %4355 = vmatprep.subr.mxu0 0.0
      %4356 = vmatpush1.msra.mxu0 0.0
      %4357 = vmatprep.subr.mxu0 0.0
      %4358 = vmatpush1.msra.mxu0 0.0
      %4359 = vmatprep.subr.mxu0 0.0
      %4360 = vmatpush1.msra.mxu0 0.0
      %4361 = vmatprep.subr.mxu0 0.0
      %4362 = vmatpush1.msra.mxu0 0.0
      %4363 = vmatprep.subr.mxu0 0.0
      %4364 = vmatpush1.msra.mxu0 0.0
      %4365 = vmatprep.subr.mxu0 0.0
      %4366 = vmatpush1.msra.mxu0 0.0
      %4367 = vmatprep.subr.mxu0 0.0
      %4368 = vmatpush1.msra.mxu0 0.0
      %4369 = vmatprep.subr.mxu0 0.0
      %4370 = vmatpush1.msra.mxu0 0.0
      %4371 = vmatprep.subr.mxu0 0.0
      %4372 = vmatpush1.msra.mxu0 0.0
      %4373 = vmatprep.subr.mxu0 0.0
      %4374 = vmatpush1.msra.mxu0 0.0
      %4375 = vmatprep.subr.mxu0 0.0
      %4376 = vmatpush1.msra.mxu0 0.0
      %4377 = vmatprep.subr.mxu0 0.0
      %4378 = vmatpush1.msra.mxu0 0.0
      %4379 = vmatprep.subr.mxu0 0.0
      %4380 = vmatpush1.msra.mxu0 0.0
      %4381 = vmatprep.subr.mxu0 0.0
      %4382 = vmatpush1.msra.mxu0 0.0
      %4383 = vmatprep.subr.mxu0 0.0
      %4384 = vmatpush1.msra.mxu0 0.0
      %4385 = vmatprep.subr.mxu0 0.0
      %4386 = vmatpush1.msra.mxu0 0.0
      %4387 = vmatprep.subr.mxu0 0.0
      %4388 = vmatpush1.msra.mxu0 0.0
      %4389 = vmatprep.subr.mxu0 0.0
      %4390 = vmatpush1.msra.mxu0 0.0
      %4391 = vmatprep.subr.mxu0 0.0
      %4392 = vmatpush1.msra.mxu0 0.0
      %4393 = vmatprep.subr.mxu0 0.0
      %4394 = vmatpush1.msra.mxu0 0.0
      %4395 = vmatprep.subr.mxu0 0.0
      %4396 = vmatpush1.msra.mxu0 0.0
      %4397 = vmatprep.subr.mxu0 0.0
      %4398 = vmatpush1.msra.mxu0 0.0
      %4399 = vmatprep.subr.mxu0 0.0
      %4400 = vmatpush1.msra.mxu0 0.0
      %4401 = vmatprep.mubr.f32.mxu0 0.0
      %4402 = vmatmul.mubr.f32.gmra.mrb[0].mxu0 %v4335
      %v4403 = vpop.f32.mrb[0].mxu0
      %v4404 = vadd.f32 %v579, %v4403
      %v4405 = vpop.f32.mrb[0].mxu0
      %v4406 = vadd.f32 %v583, %v4405
      %4407 = vdwg.mxu0
      %v4409 = vsel %vm586, %v4331, 0
      %4411 = vmatprep.subr.mxu0 %v564
      %4412 = vmatpush1.msra.mxu0 %v563
      %4413 = vmatprep.subr.mxu0 %v566
      %4414 = vmatpush1.msra.mxu0 %v565
      %4415 = vmatprep.subr.mxu0 %v568
      %4416 = vmatpush1.msra.mxu0 %v567
      %4417 = vmatprep.subr.mxu0 %v570
      %4418 = vmatpush1.msra.mxu0 %v569
      %4419 = vmatprep.subr.mxu0 0.0
      %4420 = vmatpush1.msra.mxu0 0.0
      %4421 = vmatprep.subr.mxu0 0.0
      %4422 = vmatpush1.msra.mxu0 0.0
      %4423 = vmatprep.subr.mxu0 0.0
      %4424 = vmatpush1.msra.mxu0 0.0
      %4425 = vmatprep.subr.mxu0 0.0
      %4426 = vmatpush1.msra.mxu0 0.0
      %4427 = vmatprep.subr.mxu0 0.0
      %4428 = vmatpush1.msra.mxu0 0.0
      %4429 = vmatprep.subr.mxu0 0.0
      %4430 = vmatpush1.msra.mxu0 0.0
      %4431 = vmatprep.subr.mxu0 0.0
      %4432 = vmatpush1.msra.mxu0 0.0
      %4433 = vmatprep.subr.mxu0 0.0
      %4434 = vmatpush1.msra.mxu0 0.0
      %4435 = vmatprep.subr.mxu0 0.0
      %4436 = vmatpush1.msra.mxu0 0.0
      %4437 = vmatprep.subr.mxu0 0.0
      %4438 = vmatpush1.msra.mxu0 0.0
      %4439 = vmatprep.subr.mxu0 0.0
      %4440 = vmatpush1.msra.mxu0 0.0
      %4441 = vmatprep.subr.mxu0 0.0
      %4442 = vmatpush1.msra.mxu0 0.0
      %4443 = vmatprep.subr.mxu0 0.0
      %4444 = vmatpush1.msra.mxu0 0.0
      %4445 = vmatprep.subr.mxu0 0.0
      %4446 = vmatpush1.msra.mxu0 0.0
      %4447 = vmatprep.subr.mxu0 0.0
      %4448 = vmatpush1.msra.mxu0 0.0
      %4449 = vmatprep.subr.mxu0 0.0
      %4450 = vmatpush1.msra.mxu0 0.0
      %4451 = vmatprep.subr.mxu0 0.0
      %4452 = vmatpush1.msra.mxu0 0.0
      %4453 = vmatprep.subr.mxu0 0.0
      %4454 = vmatpush1.msra.mxu0 0.0
      %4455 = vmatprep.subr.mxu0 0.0
      %4456 = vmatpush1.msra.mxu0 0.0
      %4457 = vmatprep.subr.mxu0 0.0
      %4458 = vmatpush1.msra.mxu0 0.0
      %4459 = vmatprep.subr.mxu0 0.0
      %4460 = vmatpush1.msra.mxu0 0.0
      %4461 = vmatprep.subr.mxu0 0.0
      %4462 = vmatpush1.msra.mxu0 0.0
      %4463 = vmatprep.subr.mxu0 0.0
      %4464 = vmatpush1.msra.mxu0 0.0
      %4465 = vmatprep.subr.mxu0 0.0
      %4466 = vmatpush1.msra.mxu0 0.0
      %4467 = vmatprep.subr.mxu0 0.0
      %4468 = vmatpush1.msra.mxu0 0.0
      %4469 = vmatprep.subr.mxu0 0.0
      %4470 = vmatpush1.msra.mxu0 0.0
      %4471 = vmatprep.subr.mxu0 0.0
      %4472 = vmatpush1.msra.mxu0 0.0
      %4473 = vmatprep.subr.mxu0 0.0
      %4474 = vmatpush1.msra.mxu0 0.0
      %4475 = vmatprep.mubr.f32.mxu0 0.0
      %4476 = vmatmul.mubr.f32.gmra.mrb[0].mxu0 %v4409
      %v4477 = vpop.f32.mrb[0].mxu0
      %v4478 = vadd.f32 %v665, %v4477
      %v4479 = vpop.f32.mrb[0].mxu0
      %v4480 = vadd.f32 %v669, %v4479
      %4481 = vdwg.mxu0
      %v4482 = vadd.f32 %v4404, %v4478
      %v4483 = vxor.u32 %v4482, 2147483648
      %v4484 = vmul.f32 %v4483, 1.442695
      %v4485 = vpow.pop %v4484
      %v4486 = vadd.f32 %v4485, 1.0
      %v4487 = vrcp.pop %v4486
      %v4488 = vmul.f32 1.0, %v4487
      %4490 = vrot.lane.b32.xlu0 %v4478, 64
      %v4491 = vpop.permute.xlu0 %4490
      %v4493 = vmul.f32 %v4488, %v4491
      %4495 = vrot.lane.b32.xlu0 %v4493, 64
      %v4496 = vpop.permute.xlu0 %4495
      %v4498 = vadd.f32 %v4404, %v4496
      %v4499 = vtanh.pop %v4498
      %v4500 = vsub.f32 1.0, %v4488
      %4502 = vrot.lane.b32.xlu0 %v4499, 96
      %v4503 = vpop.permute.xlu0 %4502
      %v4505 = vmul.f32 %v4500, %v4503
      %4506 = vrot.lane.b32.xlu0 %v4331, 32
      %v4507 = vpop.permute.xlu0 %4506
      %v4509 = vmul.f32 %v4488, %v4507
      %v4510 = vadd.f32 %v4505, %v4509
      %v4511 = vadd.f32 %v4480, %v4406
      %v4512 = vxor.u32 %v4511, 2147483648
      %v4513 = vmul.f32 %v4512, 1.442695
      %v4514 = vpow.pop %v4513
      %v4515 = vadd.f32 %v4514, 1.0
      %v4516 = vrcp.pop %v4515
      %v4517 = vmul.f32 1.0, %v4516
      %4519 = vrot.lane.b32.xlu0 %v4406, 64
      %v4520 = vpop.permute.xlu0 %4519
      %v4522 = vmul.f32 %v4488, %v4520
      %4524 = vrot.lane.b32.xlu0 %v4522, 64
      %v4525 = vpop.permute.xlu0 %4524
      %v4527 = vadd.f32 %v4480, %v4525
      %v4528 = vtanh.pop %v4527
      %v4529 = vsub.f32 1.0, %v4517
      %4531 = vrot.lane.b32.xlu0 %v4528, 96
      %v4532 = vpop.permute.xlu0 %4531
      %v4534 = vmul.f32 %v4529, %v4532
      %v4535 = vmul.f32 %v4517, %v4044
      %v4536 = vadd.f32 %v4534, %v4535
      %4538 = vrot.lane.b32.xlu0 %v4536, 32
      %v4539 = vpop.permute.xlu0 %4538
      %v4541 = vadd.f32 %v4510, %v4539
      %4543 = vrot.lane.b32.xlu0 %v4541, 96
      %v4544 = vpop.permute.xlu0 %4543
      %s4546 = scalar_lea.vmem %s542, 14
      %4547 = vst.msk [vmem:[%s4546] sm:$0x3] %vm810, %v4544
      %vm4548 = vcmp.eq.s32.totalorder %v573, 7
      %v4549 = vmul.f32 %v4541, %v826
      %4551 = vrot.lane.b32.xlu0 %v4549, 96
      %v4552 = vpop.permute.xlu0 %4551
      %v4554 = vsel %vm810, %v4552, 0.0
      %4555 = vadd.xlane.f32.xlu0 %v4554
      %v4556 = vpop.xlane.xlu0 %4555
      %v4558 = vlaneseq
      %v4559 = vshrl.u32 %v4558, 7
      %v4560 = vsub.s32 %v838, %v4559
      %v4561 = vrot.slane %v4556, %v4560
      %v4562 = vsel %vm843, %v4561, %v4561
      %v4563 = vsel %vm845, %v4561, %v4562
      %v4564 = vsel %vm847, %v4561, %v4563
      %v4565 = vsel %vm849, %v4561, %v4564
      %v4566 = vsel %vm851, %v4561, %v4565
      %v4567 = vsel %vm853, %v4561, %v4566
      %v4569 = vsel %vm4548, %v4567, %v4049
      %4570 = vst.msk [vmem:[#allocation2] sm:$0xff] %vm857, %v4569
      %p4571 = scmp.lt.s32.totalorder %s22, 1
      %s4572 = scalar_select %p4571, %s22, 1
      %s4573 = smul.addr %s4572, 8
      %s4574 = smul.addr %s4573, 2
      %s4575 = scalar_lea.vmem %s11, %s4574
      // Predicated region
      $region65: #{forward.5} parent=63 // pred_check
        %p4576 = pneg %p321
      $region66: #{forward.5} parent=63 // pred_check_branch
        %4578 = sbr.rel (%p4576) target = $region68
      $region67: #{forward.5} parent=63 // pred_region
        _
      $region68: #{forward.5} parent=63 // pred_fallthru
        _
    $region64: #{forward.5} parent=5 // pred_fallthru
      _
    %p4579 = scmp.le.s32.totalorder 2, %s17
    // Predicated region
    $region69: #{forward.5} parent=5 // pred_check
      %p4580 = pneg %p4579
    $region70: #{forward.5} parent=5 // pred_check_branch
      %4582 = sbr.rel (%p4580) target = $region72
    $region71: #{forward.5} parent=5 // pred_region
      %s4583 = ssub.s32 %s17, 2
      // Predicated region
      $region73: #{forward.5} parent=71 // pred_check
        %p4584 = pneg %p327
      $region74: #{forward.5} parent=71 // pred_check_branch
        %4586 = sbr.rel (%p4584) target = $region76
      $region75: #{forward.5} parent=71 // pred_region
        %p4587 = scmp.lt.s32.totalorder %s23, 1
        %s4588 = scalar_select %p4587, %s23, 1
        %s4589 = smul.addr %s4588, 8
        %s4590 = smul.addr %s4589, 2
        %s4591 = scalar_lea.vmem %s11, %s4590
      $region76: #{forward.5} parent=71 // pred_fallthru
        _
    $region72: #{forward.5} parent=5 // pred_fallthru
      _
  $region6: #{forward.5} parent=0 // loop_footer
    %s21 = sadd.s32 1, %s17
  $region7: #{forward.5} parent=0 // loop_footer_branch
    %16 = sbr.rel target = $region3
  $region8: #{forward.5} parent=0 // loop_exit
    _

</llo_original>
